<compile_context>
chip_gen: v5e
topology: v5e:2x2
jax: 0.10.0
libtpu: 0.0.40
codegen_flags: <defaults>
</compile_context>

<pallas_src>
import jax
import jax.numpy as jnp
from jax.experimental import pallas as pl
from jax.experimental.pallas import tpu as pltpu

CIN = 3          # xyz point coordinates
CIN_PAD = 128    # pad input channels to a full 128-lane vreg (dense loads)
C1 = 128
C2 = 256
C3 = 512
EMB = 64         # emb_dim
EMB_PAD = 128    # pad output channels to a full 128-lane vreg (dense stores)


def pointnet_kernel(x_ref, w1_ref, b1_ref, w2_ref, b2_ref,
                    w3a_ref, w3b_ref, b3_ref, w4_ref, b4_ref, out_ref):
    Bb = out_ref.shape[0]            # batch elements folded into this step
    N = x_ref.shape[0] // Bb         # points per batch element

    x = x_ref[...]                   # (Bb*N, CIN_PAD) bf16, already cast in wrapper

    # MLP1: Conv_ReLU(3,128) ; Conv_ReLU(128,256)  (kernel-size-1 conv == matmul)
    h1 = jnp.maximum(
        jnp.dot(x, w1_ref[...], preferred_element_type=jnp.float32)
        + b1_ref[...], 0.0)                                        # (Bb*N, C1) f32
    pf1 = jnp.maximum(
        jnp.dot(h1.astype(jnp.bfloat16), w2_ref[...],
                preferred_element_type=jnp.float32)
        + b2_ref[...], 0.0)                                        # (Bb*N, C2) f32

    # Per-batch global max over points: single reshape + reduce (no concat).
    g1 = jnp.max(pf1.reshape(Bb, N, C2), axis=1)                   # (Bb, C2)

    # cat([global tiled over N, pf1]) @ W3  ==  g1 @ w3a (broadcast) + pf1 @ w3b
    g1c = jnp.dot(g1.astype(jnp.bfloat16), w3a_ref[...],
                  preferred_element_type=jnp.float32)              # (Bb, C3)
    pf1c = jnp.dot(pf1.astype(jnp.bfloat16), w3b_ref[...],
                   preferred_element_type=jnp.float32)             # (Bb*N, C3)
    gb = g1c + b3_ref[...]                                         # (Bb, C3), hoisted
    h3 = jnp.maximum(pf1c.reshape(Bb, N, C3) + gb[:, None, :], 0.0)  # (Bb, N, C3)

    # Conv_ReLU(512, emb) — output channels zero-padded to EMB_PAD lanes.
    pf2 = jnp.maximum(
        jnp.dot(h3.reshape(Bb * N, C3).astype(jnp.bfloat16), w4_ref[...],
                preferred_element_type=jnp.float32)
        + b4_ref[...], 0.0)                                        # (Bb*N, EMB_PAD)

    # Final per-batch max over points (torch.max(dim=2)).
    out_ref[...] = jnp.max(pf2.reshape(Bb, N, EMB_PAD),
                           axis=1).astype(out_ref.dtype)           # (Bb, EMB_PAD)


def pointnet_forward(x, params, *, batch_block=8):
    """x: (B, N, 3) float32.  Returns (B, EMB) float32.

    batch_block: batch elements per grid step (multiple of 8).  Default 8 keeps
    >= 2 parallel steps per TensorCore on v7x at the demo batch; on single-TC
    chips (v5e/v6e) it can be raised to B for a single larger step.
    """
    B, N, cin = x.shape
    assert cin == CIN
    assert batch_block % 8 == 0, "batch_block must be a multiple of 8"
    assert B % batch_block == 0, "B must be a multiple of batch_block"
    assert N % 8 == 0, "N must be a multiple of 8 (sublane alignment)"
    Bb = batch_block

    # Pad the input channel dim to a dense 128-lane tile, flatten batch*points
    # into rows, and cast to bf16 in the wrapper (x only feeds the MXU).
    x_flat = jnp.pad(x, ((0, 0), (0, 0), (0, CIN_PAD - CIN))).reshape(
        B * N, CIN_PAD).astype(jnp.bfloat16)

    (w1, b1, w2, b2, w3a, w3b, b3, w4, b4) = params

    grid_spec = pltpu.PrefetchScalarGridSpec(
        num_scalar_prefetch=0,
        grid=(B // Bb,),
        in_specs=[
            pl.BlockSpec((Bb * N, CIN_PAD), lambda i: (i, 0)),
            # weights/biases: constant index_map -> fetched once, reused.
            pl.BlockSpec((CIN_PAD, C1), lambda i: (0, 0)),
            pl.BlockSpec((1, C1), lambda i: (0, 0)),
            pl.BlockSpec((C1, C2), lambda i: (0, 0)),
            pl.BlockSpec((1, C2), lambda i: (0, 0)),
            pl.BlockSpec((C2, C3), lambda i: (0, 0)),
            pl.BlockSpec((C2, C3), lambda i: (0, 0)),
            pl.BlockSpec((1, C3), lambda i: (0, 0)),
            pl.BlockSpec((C3, EMB_PAD), lambda i: (0, 0)),
            pl.BlockSpec((1, EMB_PAD), lambda i: (0, 0)),
        ],
        out_specs=pl.BlockSpec((Bb, EMB_PAD), lambda i: (i, 0)),
    )

    out_padded = pl.pallas_call(
        pointnet_kernel,
        out_shape=jax.ShapeDtypeStruct((B, EMB_PAD), jnp.float32),
        grid_spec=grid_spec,
        compiler_params=pltpu.CompilerParams(
            dimension_semantics=("parallel",),
            vmem_limit_bytes=32 * 1024 * 1024),
    )(x_flat, w1, b1, w2, b2, w3a, w3b, b3, w4, b4)

    return out_padded[:, :EMB]


def make_params(key):
    """Deterministic synthetic weights.

    PyTorch Conv1d weights are (Cout, Cin, 1); stored transposed as (Cin, Cout)
    to match the (points, channels) kernel layout.  Kernel-side weights are
    bf16 (MXU inputs); biases stay f32 (VPU side).  Zero-padded weight rows
    (extra input channels) and zero-padded w4 columns / b4 lanes keep the
    padded regions exactly zero through ReLU and max.
    """
    ks = jax.random.split(key, 8)
    s = 0.1
    w1 = jax.random.normal(ks[0], (CIN, C1), jnp.float32) * s       # Conv(3,128)
    b1 = jax.random.normal(ks[1], (1, C1), jnp.float32) * s
    w2 = jax.random.normal(ks[2], (C1, C2), jnp.float32) * s        # Conv(128,256)
    b2 = jax.random.normal(ks[3], (1, C2), jnp.float32) * s
    w3 = jax.random.normal(ks[4], (2 * C2, C3), jnp.float32) * s    # Conv(512,512)
    b3 = jax.random.normal(ks[5], (1, C3), jnp.float32) * s
    w4 = jax.random.normal(ks[6], (C3, EMB), jnp.float32) * s       # Conv(512,emb)
    b4 = jax.random.normal(ks[7], (1, EMB), jnp.float32) * s

    # split concat weight: rows 0..255 act on the tiled global feature,
    # rows 256..511 act on point_feature1 (matches torch.cat order).
    w1_k = jnp.pad(w1, ((0, CIN_PAD - CIN), (0, 0))).astype(jnp.bfloat16)
    w2_k = w2.astype(jnp.bfloat16)
    w3a_k = w3[:C2].astype(jnp.bfloat16)
    w3b_k = w3[C2:].astype(jnp.bfloat16)
    w4_k = jnp.pad(w4, ((0, 0), (0, EMB_PAD - EMB))).astype(jnp.bfloat16)
    b4_k = jnp.pad(b4, ((0, 0), (0, EMB_PAD - EMB)))

    kernel_params = (w1_k, b1, w2_k, b2, w3a_k, w3b_k, b3, w4_k, b4_k)

    # Reference uses the same bf16-rounded weights (upcast to f32) so the
    # tolerance check isolates bf16 activation rounding only.
    ref_params = (
        w1_k[:CIN].astype(jnp.float32), b1,
        w2_k.astype(jnp.float32), b2,
        jnp.concatenate([w3a_k, w3b_k], axis=0).astype(jnp.float32), b3,
        w4_k[:, :EMB].astype(jnp.float32), b4,
    )
    return kernel_params, ref_params


def reference_forward(x, ref_params):
    """Pure-JAX f32 reference mirroring the PyTorch forward (B, N, 3) -> (B, EMB)."""
    w1, b1, w2, b2, w3, b3, w4, b4 = ref_params
    h1 = jax.nn.relu(jnp.einsum("bnc,cd->bnd", x, w1) + b1)
    pf1 = jax.nn.relu(jnp.einsum("bnc,cd->bnd", h1, w2) + b2)
    g1 = jnp.max(pf1, axis=1, keepdims=True)
    cat = jnp.concatenate([jnp.broadcast_to(g1, pf1.shape), pf1], axis=-1)
    h3 = jax.nn.relu(jnp.einsum("bnc,cd->bnd", cat, w3) + b3)
    pf2 = jax.nn.relu(jnp.einsum("bnc,cd->bnd", h3, w4) + b4)
    return jnp.max(pf2, axis=1)


if __name__ == "__main__":
    key = jax.random.PRNGKey(0)
    k_x, k_p = jax.random.split(key)

    B, N = 32, 128   # grid = (4,): >= 2 "parallel" steps per v7x TensorCore
    x = jax.random.normal(k_x, (B, N, CIN), jnp.float32)  # (batch, points, xyz)

    kernel_params, ref_params = make_params(k_p)

    out = pointnet_forward(x, kernel_params, batch_block=8)
    out = jax.block_until_ready(out)

    ref = reference_forward(x, ref_params)
    assert out.shape == (B, EMB)
    # bf16 MXU inputs -> loosen tolerance vs f32 reference.
    assert jnp.allclose(out, ref, atol=5e-2, rtol=5e-2), "mismatch vs reference"

    print("KERNEL_OK")
</pallas_src>

<mosaic_0001>
module attributes {stable_mosaic.version = 11 : i64} {
  func.func @pointnet_kernel(%arg0: i32, %arg1: memref<1024x128xbf16, #tpu.memory_space<vmem>>, %arg2: memref<128x128xbf16, #tpu.memory_space<vmem>>, %arg3: memref<1x128xf32, #tpu.memory_space<vmem>>, %arg4: memref<128x256xbf16, #tpu.memory_space<vmem>>, %arg5: memref<1x256xf32, #tpu.memory_space<vmem>>, %arg6: memref<256x512xbf16, #tpu.memory_space<vmem>>, %arg7: memref<256x512xbf16, #tpu.memory_space<vmem>>, %arg8: memref<1x512xf32, #tpu.memory_space<vmem>>, %arg9: memref<512x128xbf16, #tpu.memory_space<vmem>>, %arg10: memref<1x128xf32, #tpu.memory_space<vmem>>, %arg11: memref<8x128xf32, #tpu.memory_space<vmem>>) attributes {dimension_semantics = [#tpu.dimension_semantics<parallel>], iteration_bounds = array<i64: 4>, scalar_prefetch = 0 : i64, scratch_operands = 0 : i64, tpu.core_type = #tpu.core_type<tc>, window_params = [{transform_indices = @transform_0, window_bounds = array<i64: 1024, 128>}, {pipeline_mode = #tpu.pipeline_mode<synchronous>, transform_indices = @transform_1, window_bounds = array<i64: 128, 128>}, {pipeline_mode = #tpu.pipeline_mode<synchronous>, transform_indices = @transform_2, window_bounds = array<i64: 1, 128>}, {pipeline_mode = #tpu.pipeline_mode<synchronous>, transform_indices = @transform_3, window_bounds = array<i64: 128, 256>}, {pipeline_mode = #tpu.pipeline_mode<synchronous>, transform_indices = @transform_4, window_bounds = array<i64: 1, 256>}, {pipeline_mode = #tpu.pipeline_mode<synchronous>, transform_indices = @transform_5, window_bounds = array<i64: 256, 512>}, {pipeline_mode = #tpu.pipeline_mode<synchronous>, transform_indices = @transform_6, window_bounds = array<i64: 256, 512>}, {pipeline_mode = #tpu.pipeline_mode<synchronous>, transform_indices = @transform_7, window_bounds = array<i64: 1, 512>}, {pipeline_mode = #tpu.pipeline_mode<synchronous>, transform_indices = @transform_8, window_bounds = array<i64: 512, 128>}, {pipeline_mode = #tpu.pipeline_mode<synchronous>, transform_indices = @transform_9, window_bounds = array<i64: 1, 128>}, {transform_indices = @transform_10, window_bounds = array<i64: 8, 128>}]} {
    %c0 = arith.constant 0 : index
    %c0_0 = arith.constant 0 : index
    %0 = vector.load %arg1[%c0, %c0_0] : memref<1024x128xbf16, #tpu.memory_space<vmem>>, vector<1024x128xbf16>
    %c0_1 = arith.constant 0 : index
    %c0_2 = arith.constant 0 : index
    %1 = vector.load %arg2[%c0_1, %c0_2] : memref<128x128xbf16, #tpu.memory_space<vmem>>, vector<128x128xbf16>
    %cst = arith.constant dense<0.000000e+00> : vector<1024x128xf32>
    %2 = tpu.matmul %0, %1, %cst {dimension_numbers = #tpu.dot_dimension_numbers<[1], [0], [0], [1], [0, 0, 1, 1], [], []>} : vector<1024x128xbf16>, vector<128x128xbf16>, vector<1024x128xf32> -> vector<1024x128xf32>
    %c0_3 = arith.constant 0 : index
    %c0_4 = arith.constant 0 : index
    %3 = vector.load %arg3[%c0_3, %c0_4] : memref<1x128xf32, #tpu.memory_space<vmem>>, vector<1x128xf32>
    %4 = vector.broadcast %3 : vector<1x128xf32> to vector<1024x128xf32>
    %5 = arith.addf %2, %4 : vector<1024x128xf32>
    %cst_5 = arith.constant 0.000000e+00 : f32
    %6 = vector.broadcast %cst_5 : f32 to vector<1024x128xf32>
    %7 = arith.maximumf %5, %6 : vector<1024x128xf32>
    %8 = arith.truncf %7 : vector<1024x128xf32> to vector<1024x128xbf16>
    %c0_6 = arith.constant 0 : index
    %c0_7 = arith.constant 0 : index
    %9 = vector.load %arg4[%c0_6, %c0_7] : memref<128x256xbf16, #tpu.memory_space<vmem>>, vector<128x256xbf16>
    %cst_8 = arith.constant dense<0.000000e+00> : vector<1024x256xf32>
    %10 = tpu.matmul %8, %9, %cst_8 {dimension_numbers = #tpu.dot_dimension_numbers<[1], [0], [0], [1], [0, 0, 1, 1], [], []>} : vector<1024x128xbf16>, vector<128x256xbf16>, vector<1024x256xf32> -> vector<1024x256xf32>
    %c0_9 = arith.constant 0 : index
    %c0_10 = arith.constant 0 : index
    %11 = vector.load %arg5[%c0_9, %c0_10] : memref<1x256xf32, #tpu.memory_space<vmem>>, vector<1x256xf32>
    %12 = vector.broadcast %11 : vector<1x256xf32> to vector<1024x256xf32>
    %13 = arith.addf %10, %12 : vector<1024x256xf32>
    %cst_11 = arith.constant 0.000000e+00 : f32
    %14 = vector.broadcast %cst_11 : f32 to vector<1024x256xf32>
    %15 = arith.maximumf %13, %14 : vector<1024x256xf32>
    %16 = vector.shape_cast %15 : vector<1024x256xf32> to vector<8x128x256xf32>
    %cst_12 = arith.constant dense<0xFF800000> : vector<8x256xf32>
    %17 = vector.multi_reduction <maximumf>, %16, %cst_12 [1] : vector<8x128x256xf32> to vector<8x256xf32>
    %18 = arith.truncf %17 : vector<8x256xf32> to vector<8x256xbf16>
    %c0_13 = arith.constant 0 : index
    %c0_14 = arith.constant 0 : index
    %19 = vector.load %arg6[%c0_13, %c0_14] : memref<256x512xbf16, #tpu.memory_space<vmem>>, vector<256x512xbf16>
    %cst_15 = arith.constant dense<0.000000e+00> : vector<8x512xf32>
    %20 = tpu.matmul %18, %19, %cst_15 {dimension_numbers = #tpu.dot_dimension_numbers<[1], [0], [0], [1], [0, 0, 1, 1], [], []>} : vector<8x256xbf16>, vector<256x512xbf16>, vector<8x512xf32> -> vector<8x512xf32>
    %21 = arith.truncf %15 : vector<1024x256xf32> to vector<1024x256xbf16>
    %c0_16 = arith.constant 0 : index
    %c0_17 = arith.constant 0 : index
    %22 = vector.load %arg7[%c0_16, %c0_17] : memref<256x512xbf16, #tpu.memory_space<vmem>>, vector<256x512xbf16>
    %cst_18 = arith.constant dense<0.000000e+00> : vector<1024x512xf32>
    %23 = tpu.matmul %21, %22, %cst_18 {dimension_numbers = #tpu.dot_dimension_numbers<[1], [0], [0], [1], [0, 0, 1, 1], [], []>} : vector<1024x256xbf16>, vector<256x512xbf16>, vector<1024x512xf32> -> vector<1024x512xf32>
    %c0_19 = arith.constant 0 : index
    %c0_20 = arith.constant 0 : index
    %24 = vector.load %arg8[%c0_19, %c0_20] : memref<1x512xf32, #tpu.memory_space<vmem>>, vector<1x512xf32>
    %25 = vector.broadcast %24 : vector<1x512xf32> to vector<8x512xf32>
    %26 = arith.addf %20, %25 : vector<8x512xf32>
    %27 = vector.shape_cast %23 : vector<1024x512xf32> to vector<8x128x512xf32>
    %28 = vector.shape_cast %26 : vector<8x512xf32> to vector<8x1x512xf32>
    %29 = vector.broadcast %28 : vector<8x1x512xf32> to vector<8x128x512xf32>
    %30 = arith.addf %27, %29 : vector<8x128x512xf32>
    %cst_21 = arith.constant 0.000000e+00 : f32
    %31 = vector.broadcast %cst_21 : f32 to vector<8x128x512xf32>
    %32 = arith.maximumf %30, %31 : vector<8x128x512xf32>
    %33 = vector.shape_cast %32 : vector<8x128x512xf32> to vector<1024x512xf32>
    %34 = arith.truncf %33 : vector<1024x512xf32> to vector<1024x512xbf16>
    %c0_22 = arith.constant 0 : index
    %c0_23 = arith.constant 0 : index
    %35 = vector.load %arg9[%c0_22, %c0_23] : memref<512x128xbf16, #tpu.memory_space<vmem>>, vector<512x128xbf16>
    %cst_24 = arith.constant dense<0.000000e+00> : vector<1024x128xf32>
    %36 = tpu.matmul %34, %35, %cst_24 {dimension_numbers = #tpu.dot_dimension_numbers<[1], [0], [0], [1], [0, 0, 1, 1], [], []>} : vector<1024x512xbf16>, vector<512x128xbf16>, vector<1024x128xf32> -> vector<1024x128xf32>
    %c0_25 = arith.constant 0 : index
    %c0_26 = arith.constant 0 : index
    %37 = vector.load %arg10[%c0_25, %c0_26] : memref<1x128xf32, #tpu.memory_space<vmem>>, vector<1x128xf32>
    %38 = vector.broadcast %37 : vector<1x128xf32> to vector<1024x128xf32>
    %39 = arith.addf %36, %38 : vector<1024x128xf32>
    %cst_27 = arith.constant 0.000000e+00 : f32
    %40 = vector.broadcast %cst_27 : f32 to vector<1024x128xf32>
    %41 = arith.maximumf %39, %40 : vector<1024x128xf32>
    %42 = vector.shape_cast %41 : vector<1024x128xf32> to vector<8x128x128xf32>
    %cst_28 = arith.constant dense<0xFF800000> : vector<8x128xf32>
    %43 = vector.multi_reduction <maximumf>, %42, %cst_28 [1] : vector<8x128x128xf32> to vector<8x128xf32>
    %c0_29 = arith.constant 0 : index
    %c0_30 = arith.constant 0 : index
    %44 = vector.load %arg11[%c0_29, %c0_30] : memref<8x128xf32, #tpu.memory_space<vmem>>, vector<8x128xf32>
    tpu.vector_store %arg11[%c0_29, %c0_30], %43 {strides = array<i32>} : memref<8x128xf32, #tpu.memory_space<vmem>>, vector<8x128xf32>,
    return
  }
  func.func @transform_0(%arg0: i32) -> (i32, i32) {
    %c0_i32 = arith.constant 0 : i32
    %c0_i32_0 = arith.constant 0 : i32
    return %arg0, %c0_i32 : i32, i32
  }
  func.func @transform_1(%arg0: i32) -> (i32, i32) {
    %c0_i32 = arith.constant 0 : i32
    %c0_i32_0 = arith.constant 0 : i32
    %c0_i32_1 = arith.constant 0 : i32
    return %c0_i32, %c0_i32_0 : i32, i32
  }
  func.func @transform_2(%arg0: i32) -> (i32, i32) {
    %c0_i32 = arith.constant 0 : i32
    %c0_i32_0 = arith.constant 0 : i32
    %c0_i32_1 = arith.constant 0 : i32
    return %c0_i32, %c0_i32_0 : i32, i32
  }
  func.func @transform_3(%arg0: i32) -> (i32, i32) {
    %c0_i32 = arith.constant 0 : i32
    %c0_i32_0 = arith.constant 0 : i32
    %c0_i32_1 = arith.constant 0 : i32
    return %c0_i32, %c0_i32_0 : i32, i32
  }
  func.func @transform_4(%arg0: i32) -> (i32, i32) {
    %c0_i32 = arith.constant 0 : i32
    %c0_i32_0 = arith.constant 0 : i32
    %c0_i32_1 = arith.constant 0 : i32
    return %c0_i32, %c0_i32_0 : i32, i32
  }
  func.func @transform_5(%arg0: i32) -> (i32, i32) {
    %c0_i32 = arith.constant 0 : i32
    %c0_i32_0 = arith.constant 0 : i32
    %c0_i32_1 = arith.constant 0 : i32
    return %c0_i32, %c0_i32_0 : i32, i32
  }
  func.func @transform_6(%arg0: i32) -> (i32, i32) {
    %c0_i32 = arith.constant 0 : i32
    %c0_i32_0 = arith.constant 0 : i32
    %c0_i32_1 = arith.constant 0 : i32
    return %c0_i32, %c0_i32_0 : i32, i32
  }
  func.func @transform_7(%arg0: i32) -> (i32, i32) {
    %c0_i32 = arith.constant 0 : i32
    %c0_i32_0 = arith.constant 0 : i32
    %c0_i32_1 = arith.constant 0 : i32
    return %c0_i32, %c0_i32_0 : i32, i32
  }
  func.func @transform_8(%arg0: i32) -> (i32, i32) {
    %c0_i32 = arith.constant 0 : i32
    %c0_i32_0 = arith.constant 0 : i32
    %c0_i32_1 = arith.constant 0 : i32
    return %c0_i32, %c0_i32_0 : i32, i32
  }
  func.func @transform_9(%arg0: i32) -> (i32, i32) {
    %c0_i32 = arith.constant 0 : i32
    %c0_i32_0 = arith.constant 0 : i32
    %c0_i32_1 = arith.constant 0 : i32
    return %c0_i32, %c0_i32_0 : i32, i32
  }
  func.func @transform_10(%arg0: i32) -> (i32, i32) {
    %c0_i32 = arith.constant 0 : i32
    %c0_i32_0 = arith.constant 0 : i32
    return %arg0, %c0_i32 : i32, i32
  }
}

</mosaic_0001>

<llo_original>
// kernel: tpu_custom_call.1
$region0: #{tpu_custom_call.1}
  #allocation0 [shape = 'u32[]', space=smem, size = 0x4, offset = 0x4, fixed_abs, tag = 'smem constant byte address 0x4 - core index']
  #allocation1 [shape = 'u32[72,128]{1,0:T(1,128)}', space=vmem, size = 0x9000, scoped, tag = 'internal scratch']
  %s0 = inlined_call_operand.hbm [shape: bf16[4096,128], index: 0, kind: input, shape index: {}]
  %s1 = inlined_call_operand.hbm [shape: bf16[128,128], index: 1, kind: input, shape index: {}]
  %s2 = inlined_call_operand.hbm [shape: f32[1,128], index: 2, kind: input, shape index: {}]
  %s3 = inlined_call_operand.hbm [shape: bf16[128,256], index: 3, kind: input, shape index: {}]
  %s4 = inlined_call_operand.vmem [shape: f32[1,256], index: 4, kind: input, shape index: {}]
  %s5 = inlined_call_operand.hbm [shape: bf16[256,512], index: 5, kind: input, shape index: {}]
  %s6 = inlined_call_operand.hbm [shape: bf16[256,512], index: 6, kind: input, shape index: {}]
  %s7 = inlined_call_operand.vmem [shape: f32[1,512], index: 7, kind: input, shape index: {}]
  %s8 = inlined_call_operand.hbm [shape: bf16[512,128], index: 8, kind: input, shape index: {}]
  %s9 = inlined_call_operand.vmem [shape: f32[1,128], index: 9, kind: input, shape index: {}]
  %s10 = inlined_call_operand.hbm [shape: f32[32,128], index: 10, kind: output, shape index: {}]
  %s11 = sld [smem:[#allocation0]]
  $region101: #{tpu_custom_call.1} parent=0
    _
  %s13 = ssub.s32 1, %s11
  %s14 = scalar_select 0, %s13, %s11
  $region1: #{tpu_custom_call.1} parent=0
    #allocation2 [shape = 'u8[524288]{0}', space=vmem, size = 0x80000, scoped, tag = 'input window, operand 0']
    #allocation3 [shape = 's32[2]{0}', space=sflag, size = 0x8, scoped, tag = 'scoped memory for tpu_custom_call.1']
    #allocation4 [shape = 's32[2]{0}', space=sflag, size = 0x8, scoped, tag = 'scoped memory for tpu_custom_call.1']
    #allocation5 [shape = 'u8[32768]{0}', space=vmem, size = 0x8000, scoped, tag = 'input window, operand 1, single buffered']
    #allocation6 [shape = 's32[1]{0}', space=sflag, size = 0x4, scoped, tag = 'scoped memory for tpu_custom_call.1']
    #allocation7 [shape = 'u8[512]{0}', space=vmem, size = 0x400, scoped, tag = 'input window, operand 2, single buffered']
    #allocation8 [shape = 'u8[65536]{0}', space=vmem, size = 0x10000, scoped, tag = 'input window, operand 3, single buffered']
    #allocation9 [shape = 's32[1]{0}', space=sflag, size = 0x4, scoped, tag = 'scoped memory for tpu_custom_call.1']
    #allocation10 [shape = 'u8[262144]{0}', space=vmem, size = 0x40000, scoped, tag = 'input window, operand 5, single buffered']
    #allocation11 [shape = 'u8[262144]{0}', space=vmem, size = 0x40000, scoped, tag = 'input window, operand 6, single buffered']
    #allocation12 [shape = 's32[1]{0}', space=sflag, size = 0x4, scoped, tag = 'scoped memory for tpu_custom_call.1']
    #allocation13 [shape = 'u8[131072]{0}', space=vmem, size = 0x20000, scoped, tag = 'input window, operand 8, single buffered']
    #allocation14 [shape = 'u8[8192]{0}', space=vmem, size = 0x2000, scoped, tag = 'output window, operand 0']
    %15 = vsyncpa [#allocation3], 0
    %s16 = scalar_lea.sflag [#allocation3], 1
    %17 = vsyncpa %s16, 0
    %18 = vsyncpa [#allocation6], 0
    %19 = vsyncpa [#allocation9], 0
    %20 = vsyncpa [#allocation12], 0
    %21 = vsyncpa [#allocation4], 0
    %s22 = scalar_lea.sflag [#allocation4], 1
    %23 = vsyncpa %s22, 0
    loop: start=0, step=1, limit=6
    $region2: #{tpu_custom_call.1} parent=1 // loop_pre_header
      _
    $region3: #{tpu_custom_call.1} parent=1 // loop_header
      %s25 = sphi 0, %s29
      %p26 = scmp.ge.s32.totalorder %s25, 6
      %s35 = sphi 0, %s37
      %s38 = sphi 0, %s35
      %s39 = sphi 0, %s38
      %s55 = sphi 0, %s39
      %s59 = sphi 0, %s59
      %s61 = sphi 0, %s59
      %s62 = sphi 0, %s61
      %s76 = sphi 0, %s62
      %s80 = sphi 0, %s80
      %s82 = sphi 0, %s80
      %s83 = sphi 0, %s82
      %s97 = sphi 0, %s83
      %s101 = sphi 0, %s101
      %s103 = sphi 0, %s101
      %s104 = sphi 0, %s103
      %s118 = sphi 0, %s104
      %s122 = sphi 0, %s122
      %s124 = sphi 0, %s122
      %s125 = sphi 0, %s124
      %s139 = sphi 0, %s125
      %s143 = sphi 0, %s143
      %s145 = sphi 0, %s143
      %s146 = sphi 0, %s145
      %s160 = sphi 0, %s146
      %s164 = sphi 0, %s164
      %s166 = sphi 0, %s164
      %s167 = sphi 0, %s166
      %s181 = sphi 0, %s167
      %s185 = sphi 0, %s185
      %s187 = sphi 0, %s185
      %s188 = sphi 0, %s187
      %s202 = sphi 0, %s188
      %s206 = sphi 0, %s206
      %s208 = sphi 0, %s206
      %s209 = sphi 0, %s208
      %s223 = sphi 0, %s209
      %s227 = sphi 0, %s227
      %s229 = sphi 0, %s227
      %s230 = sphi 0, %s229
      %s244 = sphi 0, %s230
      %s250 = sphi 0, %s252
      %s253 = sphi 0, %s250
      %s254 = sphi 0, %s253
      %s270 = sphi 0, %s254
    $region4: #{tpu_custom_call.1} parent=1 // loop_header_branch
      %28 = sbr.rel (%p26) target = $region8
    $region5: #{tpu_custom_call.1} parent=1 // loop_body
      %s30 = ssub.s32 %s25, 1
      %s31 = ssub.s32 %s25, 2
      %s32 = sadd.s32 %s25, 1
      %s33 = ssub.s32 %s25, %s32
      %p34 = scmp.eq.s32.totalorder %s33, 0
      %s36 = sadd.s32 %s35, 1
      %s37 = scalar_select %p34, %s35, %s36
      %p40 = pneg %p34
      %p41 = scmp.eq.s32.totalorder %s25, 3
      %p42 = por %p40, %p41
      %p43 = scmp.ne.s32.totalorder %s35, %s38
      %p44 = scmp.eq.s32.totalorder %s25, 0
      %p45 = por %p43, %p44
      %p46 = scmp.ne.s32.totalorder %s35, %s38
      %p47 = scmp.eq.s32.totalorder %s30, 3
      %p48 = por %p46, %p47
      %p49 = scmp.ne.s32.totalorder %s38, %s39
      %p50 = scmp.eq.s32.totalorder %s30, 0
      %p51 = por %p49, %p50
      %p52 = scmp.ne.s32.totalorder %s38, %s39
      %p53 = scmp.eq.s32.totalorder %s31, 3
      %p54 = por %p52, %p53
      %p56 = scmp.ne.s32.totalorder %s39, %s55
      %p57 = scmp.eq.s32.totalorder %s31, 0
      %p58 = por %p56, %p57
      %s60 = sadd.s32 %s59, 1
      %p63 = scmp.eq.s32.totalorder %s25, 3
      %p64 = scmp.ne.s32.totalorder %s59, %s61
      %p65 = scmp.eq.s32.totalorder %s25, 0
      %p66 = por %p64, %p65
      %p67 = scmp.ne.s32.totalorder %s59, %s61
      %p68 = scmp.eq.s32.totalorder %s30, 3
      %p69 = por %p67, %p68
      %p70 = scmp.ne.s32.totalorder %s61, %s62
      %p71 = scmp.eq.s32.totalorder %s30, 0
      %p72 = por %p70, %p71
      %p73 = scmp.ne.s32.totalorder %s61, %s62
      %p74 = scmp.eq.s32.totalorder %s31, 3
      %p75 = por %p73, %p74
      %p77 = scmp.ne.s32.totalorder %s62, %s76
      %p78 = scmp.eq.s32.totalorder %s31, 0
      %p79 = por %p77, %p78
      %s81 = sadd.s32 %s80, 1
      %p84 = scmp.eq.s32.totalorder %s25, 3
      %p85 = scmp.ne.s32.totalorder %s80, %s82
      %p86 = scmp.eq.s32.totalorder %s25, 0
      %p87 = por %p85, %p86
      %p88 = scmp.ne.s32.totalorder %s80, %s82
      %p89 = scmp.eq.s32.totalorder %s30, 3
      %p90 = por %p88, %p89
      %p91 = scmp.ne.s32.totalorder %s82, %s83
      %p92 = scmp.eq.s32.totalorder %s30, 0
      %p93 = por %p91, %p92
      %p94 = scmp.ne.s32.totalorder %s82, %s83
      %p95 = scmp.eq.s32.totalorder %s31, 3
      %p96 = por %p94, %p95
      %p98 = scmp.ne.s32.totalorder %s83, %s97
      %p99 = scmp.eq.s32.totalorder %s31, 0
      %p100 = por %p98, %p99
      %s102 = sadd.s32 %s101, 1
      %p105 = scmp.eq.s32.totalorder %s25, 3
      %p106 = scmp.ne.s32.totalorder %s101, %s103
      %p107 = scmp.eq.s32.totalorder %s25, 0
      %p108 = por %p106, %p107
      %p109 = scmp.ne.s32.totalorder %s101, %s103
      %p110 = scmp.eq.s32.totalorder %s30, 3
      %p111 = por %p109, %p110
      %p112 = scmp.ne.s32.totalorder %s103, %s104
      %p113 = scmp.eq.s32.totalorder %s30, 0
      %p114 = por %p112, %p113
      %p115 = scmp.ne.s32.totalorder %s103, %s104
      %p116 = scmp.eq.s32.totalorder %s31, 3
      %p117 = por %p115, %p116
      %p119 = scmp.ne.s32.totalorder %s104, %s118
      %p120 = scmp.eq.s32.totalorder %s31, 0
      %p121 = por %p119, %p120
      %s123 = sadd.s32 %s122, 1
      %p126 = scmp.eq.s32.totalorder %s25, 3
      %p127 = scmp.ne.s32.totalorder %s122, %s124
      %p128 = scmp.eq.s32.totalorder %s25, 0
      %p129 = por %p127, %p128
      %p130 = scmp.ne.s32.totalorder %s122, %s124
      %p131 = scmp.eq.s32.totalorder %s30, 3
      %p132 = por %p130, %p131
      %p133 = scmp.ne.s32.totalorder %s124, %s125
      %p134 = scmp.eq.s32.totalorder %s30, 0
      %p135 = por %p133, %p134
      %p136 = scmp.ne.s32.totalorder %s124, %s125
      %p137 = scmp.eq.s32.totalorder %s31, 3
      %p138 = por %p136, %p137
      %p140 = scmp.ne.s32.totalorder %s125, %s139
      %p141 = scmp.eq.s32.totalorder %s31, 0
      %p142 = por %p140, %p141
      %s144 = sadd.s32 %s143, 1
      %p147 = scmp.eq.s32.totalorder %s25, 3
      %p148 = scmp.ne.s32.totalorder %s143, %s145
      %p149 = scmp.eq.s32.totalorder %s25, 0
      %p150 = por %p148, %p149
      %p151 = scmp.ne.s32.totalorder %s143, %s145
      %p152 = scmp.eq.s32.totalorder %s30, 3
      %p153 = por %p151, %p152
      %p154 = scmp.ne.s32.totalorder %s145, %s146
      %p155 = scmp.eq.s32.totalorder %s30, 0
      %p156 = por %p154, %p155
      %p157 = scmp.ne.s32.totalorder %s145, %s146
      %p158 = scmp.eq.s32.totalorder %s31, 3
      %p159 = por %p157, %p158
      %p161 = scmp.ne.s32.totalorder %s146, %s160
      %p162 = scmp.eq.s32.totalorder %s31, 0
      %p163 = por %p161, %p162
      %s165 = sadd.s32 %s164, 1
      %p168 = scmp.eq.s32.totalorder %s25, 3
      %p169 = scmp.ne.s32.totalorder %s164, %s166
      %p170 = scmp.eq.s32.totalorder %s25, 0
      %p171 = por %p169, %p170
      %p172 = scmp.ne.s32.totalorder %s164, %s166
      %p173 = scmp.eq.s32.totalorder %s30, 3
      %p174 = por %p172, %p173
      %p175 = scmp.ne.s32.totalorder %s166, %s167
      %p176 = scmp.eq.s32.totalorder %s30, 0
      %p177 = por %p175, %p176
      %p178 = scmp.ne.s32.totalorder %s166, %s167
      %p179 = scmp.eq.s32.totalorder %s31, 3
      %p180 = por %p178, %p179
      %p182 = scmp.ne.s32.totalorder %s167, %s181
      %p183 = scmp.eq.s32.totalorder %s31, 0
      %p184 = por %p182, %p183
      %s186 = sadd.s32 %s185, 1
      %p189 = scmp.eq.s32.totalorder %s25, 3
      %p190 = scmp.ne.s32.totalorder %s185, %s187
      %p191 = scmp.eq.s32.totalorder %s25, 0
      %p192 = por %p190, %p191
      %p193 = scmp.ne.s32.totalorder %s185, %s187
      %p194 = scmp.eq.s32.totalorder %s30, 3
      %p195 = por %p193, %p194
      %p196 = scmp.ne.s32.totalorder %s187, %s188
      %p197 = scmp.eq.s32.totalorder %s30, 0
      %p198 = por %p196, %p197
      %p199 = scmp.ne.s32.totalorder %s187, %s188
      %p200 = scmp.eq.s32.totalorder %s31, 3
      %p201 = por %p199, %p200
      %p203 = scmp.ne.s32.totalorder %s188, %s202
      %p204 = scmp.eq.s32.totalorder %s31, 0
      %p205 = por %p203, %p204
      %s207 = sadd.s32 %s206, 1
      %p210 = scmp.eq.s32.totalorder %s25, 3
      %p211 = scmp.ne.s32.totalorder %s206, %s208
      %p212 = scmp.eq.s32.totalorder %s25, 0
      %p213 = por %p211, %p212
      %p214 = scmp.ne.s32.totalorder %s206, %s208
      %p215 = scmp.eq.s32.totalorder %s30, 3
      %p216 = por %p214, %p215
      %p217 = scmp.ne.s32.totalorder %s208, %s209
      %p218 = scmp.eq.s32.totalorder %s30, 0
      %p219 = por %p217, %p218
      %p220 = scmp.ne.s32.totalorder %s208, %s209
      %p221 = scmp.eq.s32.totalorder %s31, 3
      %p222 = por %p220, %p221
      %p224 = scmp.ne.s32.totalorder %s209, %s223
      %p225 = scmp.eq.s32.totalorder %s31, 0
      %p226 = por %p224, %p225
      %s228 = sadd.s32 %s227, 1
      %p231 = scmp.eq.s32.totalorder %s25, 3
      %p232 = scmp.ne.s32.totalorder %s227, %s229
      %p233 = scmp.eq.s32.totalorder %s25, 0
      %p234 = por %p232, %p233
      %p235 = scmp.ne.s32.totalorder %s227, %s229
      %p236 = scmp.eq.s32.totalorder %s30, 3
      %p237 = por %p235, %p236
      %p238 = scmp.ne.s32.totalorder %s229, %s230
      %p239 = scmp.eq.s32.totalorder %s30, 0
      %p240 = por %p238, %p239
      %p241 = scmp.ne.s32.totalorder %s229, %s230
      %p242 = scmp.eq.s32.totalorder %s31, 3
      %p243 = por %p241, %p242
      %p245 = scmp.ne.s32.totalorder %s230, %s244
      %p246 = scmp.eq.s32.totalorder %s31, 0
      %p247 = por %p245, %p246
      %s248 = ssub.s32 %s25, %s32
      %p249 = scmp.eq.s32.totalorder %s248, 0
      %s251 = sadd.s32 %s250, 1
      %s252 = scalar_select %p249, %s250, %s251
      %p255 = pneg %p249
      %p256 = scmp.eq.s32.totalorder %s25, 3
      %p257 = por %p255, %p256
      %p258 = scmp.ne.s32.totalorder %s250, %s253
      %p259 = scmp.eq.s32.totalorder %s25, 0
      %p260 = por %p258, %p259
      %p261 = scmp.ne.s32.totalorder %s250, %s253
      %p262 = scmp.eq.s32.totalorder %s30, 3
      %p263 = por %p261, %p262
      %p264 = scmp.ne.s32.totalorder %s253, %s254
      %p265 = scmp.eq.s32.totalorder %s30, 0
      %p266 = por %p264, %p265
      %p267 = scmp.ne.s32.totalorder %s253, %s254
      %p268 = scmp.eq.s32.totalorder %s31, 3
      %p269 = por %p267, %p268
      %p271 = scmp.ne.s32.totalorder %s254, %s270
      %p272 = scmp.eq.s32.totalorder %s31, 0
      %p273 = por %p271, %p272
      %p274 = scmp.le.s32.totalorder 1, %s25
      %p275 = scmp.lt.s32.totalorder %s25, 5
      %p276 = pnand %p274, %p275
      %p277 = pneg %p276
      // Predicated region
      $region9: #{tpu_custom_call.1} parent=5 // pred_check
        _
      $region10: #{tpu_custom_call.1} parent=5 // pred_check_branch
        %279 = sbr.rel (%p276) target = $region12
      $region11: #{tpu_custom_call.1} parent=5 // pred_region
        %s280 = ssub.s32 %s25, 1
        // Predicated region
        $region13: #{tpu_custom_call.1} parent=11 // pred_check
          %p281 = pneg %p72
        $region14: #{tpu_custom_call.1} parent=11 // pred_check_branch
          %283 = sbr.rel (%p281) target = $region16
        $region15: #{tpu_custom_call.1} parent=11 // pred_region
          %285 = vsyncadd [#allocation6], 0
          %s286 = sshll.u32 %s1, 4
          %s287 = int_to_ptr.hbm [resolvable:$true] %s286
          %s288 = sshll.u32 [#allocation5], 4
          %s289 = int_to_ptr.vmem [resolvable:$true] %s288
          %294 = dma.hbm_to_vmem [thread:$0]  %s287, 1024, %s289, [#allocation6], 64, 64, 4
        $region16: #{tpu_custom_call.1} parent=11 // pred_fallthru
          _
        // Predicated region
        $region17: #{tpu_custom_call.1} parent=11 // pred_check
          %p295 = pneg %p93
        $region18: #{tpu_custom_call.1} parent=11 // pred_check_branch
          %297 = sbr.rel (%p295) target = $region20
        $region19: #{tpu_custom_call.1} parent=11 // pred_region
          %299 = vsyncadd [#allocation6], 0
          %s301 = sshll.u32 %s2, 4
          %s302 = int_to_ptr.hbm [resolvable:$true] %s301
          %s303 = sshll.u32 [#allocation7], 4
          %s304 = int_to_ptr.vmem [resolvable:$true] %s303
          %306 = dma.hbm_to_vmem [thread:$0]  %s302, 16, %s304, [#allocation6]
        $region20: #{tpu_custom_call.1} parent=11 // pred_fallthru
          _
        // Predicated region
        $region21: #{tpu_custom_call.1} parent=11 // pred_check
          %p307 = pneg %p114
        $region22: #{tpu_custom_call.1} parent=11 // pred_check_branch
          %309 = sbr.rel (%p307) target = $region24
        $region23: #{tpu_custom_call.1} parent=11 // pred_region
          %311 = vsyncadd [#allocation9], 0
          %s312 = sshll.u32 %s3, 4
          %s313 = int_to_ptr.hbm [resolvable:$true] %s312
          %s314 = sshll.u32 [#allocation8], 4
          %s315 = int_to_ptr.vmem [resolvable:$true] %s314
          %320 = dma.hbm_to_vmem [thread:$0]  %s313, 2048, %s315, [#allocation9], 128, 128, 8
        $region24: #{tpu_custom_call.1} parent=11 // pred_fallthru
          _
        // Predicated region
        $region25: #{tpu_custom_call.1} parent=11 // pred_check
          %p321 = pneg %p135
        $region26: #{tpu_custom_call.1} parent=11 // pred_check_branch
          %323 = sbr.rel (%p321) target = $region28
        $region27: #{tpu_custom_call.1} parent=11 // pred_region
          _
        $region28: #{tpu_custom_call.1} parent=11 // pred_fallthru
          _
        // Predicated region
        $region29: #{tpu_custom_call.1} parent=11 // pred_check
          %p324 = pneg %p156
        $region30: #{tpu_custom_call.1} parent=11 // pred_check_branch
          %326 = sbr.rel (%p324) target = $region32
        $region31: #{tpu_custom_call.1} parent=11 // pred_region
          %328 = vsyncadd [#allocation9], 0
          %s329 = sshll.u32 %s5, 4
          %s330 = int_to_ptr.hbm [resolvable:$true] %s329
          %s331 = sshll.u32 [#allocation10], 4
          %s332 = int_to_ptr.vmem [resolvable:$true] %s331
          %337 = dma.hbm_to_vmem [thread:$0]  %s330, 8192, %s332, [#allocation9], 256, 256, 16
        $region32: #{tpu_custom_call.1} parent=11 // pred_fallthru
          _
        // Predicated region
        $region33: #{tpu_custom_call.1} parent=11 // pred_check
          %p338 = pneg %p177
        $region34: #{tpu_custom_call.1} parent=11 // pred_check_branch
          %340 = sbr.rel (%p338) target = $region36
        $region35: #{tpu_custom_call.1} parent=11 // pred_region
          %342 = vsyncadd [#allocation12], 0
          %s343 = sshll.u32 %s6, 4
          %s344 = int_to_ptr.hbm [resolvable:$true] %s343
          %s345 = sshll.u32 [#allocation11], 4
          %s346 = int_to_ptr.vmem [resolvable:$true] %s345
          %351 = dma.hbm_to_vmem [thread:$0]  %s344, 8192, %s346, [#allocation12], 256, 256, 16
        $region36: #{tpu_custom_call.1} parent=11 // pred_fallthru
          _
        // Predicated region
        $region37: #{tpu_custom_call.1} parent=11 // pred_check
          %p352 = pneg %p198
        $region38: #{tpu_custom_call.1} parent=11 // pred_check_branch
          %354 = sbr.rel (%p352) target = $region40
        $region39: #{tpu_custom_call.1} parent=11 // pred_region
          _
        $region40: #{tpu_custom_call.1} parent=11 // pred_fallthru
          _
        // Predicated region
        $region41: #{tpu_custom_call.1} parent=11 // pred_check
          %p355 = pneg %p219
        $region42: #{tpu_custom_call.1} parent=11 // pred_check_branch
          %357 = sbr.rel (%p355) target = $region44
        $region43: #{tpu_custom_call.1} parent=11 // pred_region
          %359 = vsyncadd [#allocation12], 0
          %s360 = sshll.u32 %s8, 4
          %s361 = int_to_ptr.hbm [resolvable:$true] %s360
          %s362 = sshll.u32 [#allocation13], 4
          %s363 = int_to_ptr.vmem [resolvable:$true] %s362
          %368 = dma.hbm_to_vmem [thread:$0]  %s361, 4096, %s363, [#allocation12], 64, 64, 4
        $region44: #{tpu_custom_call.1} parent=11 // pred_fallthru
          _
        // Predicated region
        $region45: #{tpu_custom_call.1} parent=11 // pred_check
          %p369 = pneg %p240
        $region46: #{tpu_custom_call.1} parent=11 // pred_check_branch
          %371 = sbr.rel (%p369) target = $region48
        $region47: #{tpu_custom_call.1} parent=11 // pred_region
          _
        $region48: #{tpu_custom_call.1} parent=11 // pred_fallthru
          _
      $region12: #{tpu_custom_call.1} parent=5 // pred_fallthru
        _
      %p372 = scmp.lt.s32.totalorder %s25, 4
      // Predicated region
      $region49: #{tpu_custom_call.1} parent=5 // pred_check
        %p373 = pneg %p372
      $region50: #{tpu_custom_call.1} parent=5 // pred_check_branch
        %375 = sbr.rel (%p373) target = $region52
      $region51: #{tpu_custom_call.1} parent=5 // pred_region
        // Predicated region
        $region53: #{tpu_custom_call.1} parent=51 // pred_check
          %p376 = pneg %p45
        $region54: #{tpu_custom_call.1} parent=51 // pred_check_branch
          %378 = sbr.rel (%p376) target = $region56
        $region55: #{tpu_custom_call.1} parent=51 // pred_region
          %s379 = sand.u32 %s35, 1
          %s380 = scalar_lea.sflag [#allocation3], %s379
          %s381 = sand.u32 %s35, 1
          %s382 = smul.addr %s381, 512
          %s383 = scalar_lea.vmem [#allocation2], %s382
          %s384 = smul.u32 128, %s25
          %386 = vsyncadd %s380, 0
          %s387 = smul.addr %s384, 4
          %s388 = scalar_lea.hbm %s0, %s387
          %s389 = sshll.u32 %s388, 4
          %s390 = int_to_ptr.hbm [resolvable:$true] %s389
          %s391 = sshll.u32 %s383, 4
          %s392 = int_to_ptr.vmem [resolvable:$true] %s391
          %397 = dma.hbm_to_vmem [thread:$0]  %s390, 8192, %s392, %s380, 64, 64, 4
        $region56: #{tpu_custom_call.1} parent=51 // pred_fallthru
          _
      $region52: #{tpu_custom_call.1} parent=5 // pred_fallthru
        _
      %p398 = scmp.le.s32.totalorder 1, %s25
      %p399 = scmp.lt.s32.totalorder %s25, 5
      %p400 = pnand %p398, %p399
      %p401 = pneg %p400
      // Predicated region
      $region57: #{tpu_custom_call.1} parent=5 // pred_check
        _
      $region58: #{tpu_custom_call.1} parent=5 // pred_check_branch
        %403 = sbr.rel (%p400) target = $region60
      $region59: #{tpu_custom_call.1} parent=5 // pred_region
        %s404 = ssub.s32 %s25, 1
        %s405 = sand.u32 %s38, 1
        %s406 = scalar_lea.sflag [#allocation3], %s405
        %s407 = sand.u32 %s38, 1
        %s408 = smul.addr %s407, 512
        %s409 = scalar_lea.vmem [#allocation2], %s408
        // Predicated region
        $region61: #{tpu_custom_call.1} parent=59 // pred_check
          %p410 = pneg %p51
        $region62: #{tpu_custom_call.1} parent=59 // pred_check_branch
          %412 = sbr.rel (%p410) target = $region64
        $region63: #{tpu_custom_call.1} parent=59 // pred_region
          %414 = dma.done %s406, 8192
        $region64: #{tpu_custom_call.1} parent=59 // pred_fallthru
          _
        // Predicated region
        $region65: #{tpu_custom_call.1} parent=59 // pred_check
          %p415 = pneg %p72
        $region66: #{tpu_custom_call.1} parent=59 // pred_check_branch
          %417 = sbr.rel (%p415) target = $region68
        $region67: #{tpu_custom_call.1} parent=59 // pred_region
          %419 = dma.done [#allocation6], 1024
        $region68: #{tpu_custom_call.1} parent=59 // pred_fallthru
          _
        // Predicated region
        $region69: #{tpu_custom_call.1} parent=59 // pred_check
          %p420 = pneg %p93
        $region70: #{tpu_custom_call.1} parent=59 // pred_check_branch
          %422 = sbr.rel (%p420) target = $region72
        $region71: #{tpu_custom_call.1} parent=59 // pred_region
          %424 = dma.done [#allocation6], 16
        $region72: #{tpu_custom_call.1} parent=59 // pred_fallthru
          _
        // Predicated region
        $region73: #{tpu_custom_call.1} parent=59 // pred_check
          %p425 = pneg %p114
        $region74: #{tpu_custom_call.1} parent=59 // pred_check_branch
          %427 = sbr.rel (%p425) target = $region76
        $region75: #{tpu_custom_call.1} parent=59 // pred_region
          %429 = dma.done [#allocation9], 2048
        $region76: #{tpu_custom_call.1} parent=59 // pred_fallthru
          _
        // Predicated region
        $region77: #{tpu_custom_call.1} parent=59 // pred_check
          %p430 = pneg %p156
        $region78: #{tpu_custom_call.1} parent=59 // pred_check_branch
          %432 = sbr.rel (%p430) target = $region80
        $region79: #{tpu_custom_call.1} parent=59 // pred_region
          %434 = dma.done [#allocation9], 8192
        $region80: #{tpu_custom_call.1} parent=59 // pred_fallthru
          _
        // Predicated region
        $region81: #{tpu_custom_call.1} parent=59 // pred_check
          %p435 = pneg %p177
        $region82: #{tpu_custom_call.1} parent=59 // pred_check_branch
          %437 = sbr.rel (%p435) target = $region84
        $region83: #{tpu_custom_call.1} parent=59 // pred_region
          %439 = dma.done [#allocation12], 8192
        $region84: #{tpu_custom_call.1} parent=59 // pred_fallthru
          _
        // Predicated region
        $region85: #{tpu_custom_call.1} parent=59 // pred_check
          %p440 = pneg %p219
        $region86: #{tpu_custom_call.1} parent=59 // pred_check_branch
          %442 = sbr.rel (%p440) target = $region88
        $region87: #{tpu_custom_call.1} parent=59 // pred_region
          %444 = dma.done [#allocation12], 4096
        $region88: #{tpu_custom_call.1} parent=59 // pred_fallthru
          _
        %s445 = sand.u32 %s38, 1
        %s446 = scalar_lea.sflag [#allocation3], %s445
        %s447 = sand.u32 %s38, 1
        %s448 = smul.addr %s447, 512
        %s449 = scalar_lea.vmem [#allocation2], %s448
        %p450 = pneg %p51
        %p451 = pneg %p48
        %p452 = pneg %p72
        %p453 = pneg %p69
        %p454 = pneg %p93
        %p455 = pneg %p90
        %p456 = pneg %p114
        %p457 = pneg %p111
        %p458 = pneg %p135
        %p459 = pneg %p132
        %p460 = pneg %p156
        %p461 = pneg %p153
        %p462 = pneg %p177
        %p463 = pneg %p174
        %p464 = pneg %p198
        %p465 = pneg %p195
        %p466 = pneg %p219
        %p467 = pneg %p216
        %p468 = pneg %p240
        %p469 = pneg %p237
        %p470 = pneg %p266
        %p471 = pneg %p263
        %s472 = sand.u32 %s253, 1
        %s473 = scalar_lea.sflag [#allocation4], %s472
        %s474 = sand.u32 %s253, 1
        %s475 = smul.addr %s474, 8
        %s476 = scalar_lea.vmem [#allocation14], %s475
        %s477 = smul.u32 128, %s30
        %v478 = vld [vmem:[%s409] sm:$0xf]
        %v479 = vld [vmem:[%s409 + $0x4] sm:$0xf]
        %v480 = vld [vmem:[%s409 + $0x8] sm:$0xf]
        %v481 = vld [vmem:[%s409 + $0xc] sm:$0xf]
        %v482 = vld [vmem:[%s409 + $0x10] sm:$0xf]
        %v483 = vld [vmem:[%s409 + $0x14] sm:$0xf]
        %v484 = vld [vmem:[%s409 + $0x18] sm:$0xf]
        %v485 = vld [vmem:[%s409 + $0x1c] sm:$0xf]
        %v486 = vld [vmem:[%s409 + $0x20] sm:$0xf]
        %v487 = vld [vmem:[%s409 + $0x24] sm:$0xf]
        %v488 = vld [vmem:[%s409 + $0x28] sm:$0xf]
        %v489 = vld [vmem:[%s409 + $0x2c] sm:$0xf]
        %v490 = vld [vmem:[%s409 + $0x30] sm:$0xf]
        %v491 = vld [vmem:[%s409 + $0x34] sm:$0xf]
        %v492 = vld [vmem:[%s409 + $0x38] sm:$0xf]
        %v493 = vld [vmem:[%s409 + $0x3c] sm:$0xf]
        %v494 = vld [vmem:[%s409 + $0x40] sm:$0xf]
        %v495 = vld [vmem:[%s409 + $0x44] sm:$0xf]
        %v496 = vld [vmem:[%s409 + $0x48] sm:$0xf]
        %v497 = vld [vmem:[%s409 + $0x4c] sm:$0xf]
        %v498 = vld [vmem:[%s409 + $0x50] sm:$0xf]
        %v499 = vld [vmem:[%s409 + $0x54] sm:$0xf]
        %v500 = vld [vmem:[%s409 + $0x58] sm:$0xf]
        %v501 = vld [vmem:[%s409 + $0x5c] sm:$0xf]
        %v502 = vld [vmem:[%s409 + $0x60] sm:$0xf]
        %v503 = vld [vmem:[%s409 + $0x64] sm:$0xf]
        %v504 = vld [vmem:[%s409 + $0x68] sm:$0xf]
        %v505 = vld [vmem:[%s409 + $0x6c] sm:$0xf]
        %v506 = vld [vmem:[%s409 + $0x70] sm:$0xf]
        %v507 = vld [vmem:[%s409 + $0x74] sm:$0xf]
        %v508 = vld [vmem:[%s409 + $0x78] sm:$0xf]
        %v509 = vld [vmem:[%s409 + $0x7c] sm:$0xf]
        %v510 = vld [vmem:[%s409 + $0x80] sm:$0xf]
        %v511 = vld [vmem:[%s409 + $0x84] sm:$0xf]
        %v512 = vld [vmem:[%s409 + $0x88] sm:$0xf]
        %v513 = vld [vmem:[%s409 + $0x8c] sm:$0xf]
        %v514 = vld [vmem:[%s409 + $0x90] sm:$0xf]
        %v515 = vld [vmem:[%s409 + $0x94] sm:$0xf]
        %v516 = vld [vmem:[%s409 + $0x98] sm:$0xf]
        %v517 = vld [vmem:[%s409 + $0x9c] sm:$0xf]
        %v518 = vld [vmem:[%s409 + $0xa0] sm:$0xf]
        %v519 = vld [vmem:[%s409 + $0xa4] sm:$0xf]
        %v520 = vld [vmem:[%s409 + $0xa8] sm:$0xf]
        %v521 = vld [vmem:[%s409 + $0xac] sm:$0xf]
        %v522 = vld [vmem:[%s409 + $0xb0] sm:$0xf]
        %v523 = vld [vmem:[%s409 + $0xb4] sm:$0xf]
        %v524 = vld [vmem:[%s409 + $0xb8] sm:$0xf]
        %v525 = vld [vmem:[%s409 + $0xbc] sm:$0xf]
        %v526 = vld [vmem:[%s409 + $0xc0] sm:$0xf]
        %v527 = vld [vmem:[%s409 + $0xc4] sm:$0xf]
        %v528 = vld [vmem:[%s409 + $0xc8] sm:$0xf]
        %v529 = vld [vmem:[%s409 + $0xcc] sm:$0xf]
        %v530 = vld [vmem:[%s409 + $0xd0] sm:$0xf]
        %v531 = vld [vmem:[%s409 + $0xd4] sm:$0xf]
        %v532 = vld [vmem:[%s409 + $0xd8] sm:$0xf]
        %v533 = vld [vmem:[%s409 + $0xdc] sm:$0xf]
        %v534 = vld [vmem:[%s409 + $0xe0] sm:$0xf]
        %v535 = vld [vmem:[%s409 + $0xe4] sm:$0xf]
        %v536 = vld [vmem:[%s409 + $0xe8] sm:$0xf]
        %v537 = vld [vmem:[%s409 + $0xec] sm:$0xf]
        %v538 = vld [vmem:[%s409 + $0xf0] sm:$0xf]
        %v539 = vld [vmem:[%s409 + $0xf4] sm:$0xf]
        %v540 = vld [vmem:[%s409 + $0xf8] sm:$0xf]
        %v541 = vld [vmem:[%s409 + $0xfc] sm:$0xf]
        %v542 = vld [vmem:[%s409 + $0x100] sm:$0xf]
        %v543 = vld [vmem:[%s409 + $0x104] sm:$0xf]
        %v544 = vld [vmem:[%s409 + $0x108] sm:$0xf]
        %v545 = vld [vmem:[%s409 + $0x10c] sm:$0xf]
        %v546 = vld [vmem:[%s409 + $0x110] sm:$0xf]
        %v547 = vld [vmem:[%s409 + $0x114] sm:$0xf]
        %v548 = vld [vmem:[%s409 + $0x118] sm:$0xf]
        %v549 = vld [vmem:[%s409 + $0x11c] sm:$0xf]
        %v550 = vld [vmem:[%s409 + $0x120] sm:$0xf]
        %v551 = vld [vmem:[%s409 + $0x124] sm:$0xf]
        %v552 = vld [vmem:[%s409 + $0x128] sm:$0xf]
        %v553 = vld [vmem:[%s409 + $0x12c] sm:$0xf]
        %v554 = vld [vmem:[%s409 + $0x130] sm:$0xf]
        %v555 = vld [vmem:[%s409 + $0x134] sm:$0xf]
        %v556 = vld [vmem:[%s409 + $0x138] sm:$0xf]
        %v557 = vld [vmem:[%s409 + $0x13c] sm:$0xf]
        %v558 = vld [vmem:[%s409 + $0x140] sm:$0xf]
        %v559 = vld [vmem:[%s409 + $0x144] sm:$0xf]
        %v560 = vld [vmem:[%s409 + $0x148] sm:$0xf]
        %v561 = vld [vmem:[%s409 + $0x14c] sm:$0xf]
        %v562 = vld [vmem:[%s409 + $0x150] sm:$0xf]
        %v563 = vld [vmem:[%s409 + $0x154] sm:$0xf]
        %v564 = vld [vmem:[%s409 + $0x158] sm:$0xf]
        %v565 = vld [vmem:[%s409 + $0x15c] sm:$0xf]
        %v566 = vld [vmem:[%s409 + $0x160] sm:$0xf]
        %v567 = vld [vmem:[%s409 + $0x164] sm:$0xf]
        %v568 = vld [vmem:[%s409 + $0x168] sm:$0xf]
        %v569 = vld [vmem:[%s409 + $0x16c] sm:$0xf]
        %v570 = vld [vmem:[%s409 + $0x170] sm:$0xf]
        %v571 = vld [vmem:[%s409 + $0x174] sm:$0xf]
        %v572 = vld [vmem:[%s409 + $0x178] sm:$0xf]
        %v573 = vld [vmem:[%s409 + $0x17c] sm:$0xf]
        %v574 = vld [vmem:[%s409 + $0x180] sm:$0xf]
        %v575 = vld [vmem:[%s409 + $0x184] sm:$0xf]
        %v576 = vld [vmem:[%s409 + $0x188] sm:$0xf]
        %v577 = vld [vmem:[%s409 + $0x18c] sm:$0xf]
        %v578 = vld [vmem:[%s409 + $0x190] sm:$0xf]
        %v579 = vld [vmem:[%s409 + $0x194] sm:$0xf]
        %v580 = vld [vmem:[%s409 + $0x198] sm:$0xf]
        %v581 = vld [vmem:[%s409 + $0x19c] sm:$0xf]
        %v582 = vld [vmem:[%s409 + $0x1a0] sm:$0xf]
        %v583 = vld [vmem:[%s409 + $0x1a4] sm:$0xf]
        %v584 = vld [vmem:[%s409 + $0x1a8] sm:$0xf]
        %v585 = vld [vmem:[%s409 + $0x1ac] sm:$0xf]
        %v586 = vld [vmem:[%s409 + $0x1b0] sm:$0xf]
        %v587 = vld [vmem:[%s409 + $0x1b4] sm:$0xf]
        %v588 = vld [vmem:[%s409 + $0x1b8] sm:$0xf]
        %v589 = vld [vmem:[%s409 + $0x1bc] sm:$0xf]
        %v590 = vld [vmem:[%s409 + $0x1c0] sm:$0xf]
        %v591 = vld [vmem:[%s409 + $0x1c4] sm:$0xf]
        %v592 = vld [vmem:[%s409 + $0x1c8] sm:$0xf]
        %v593 = vld [vmem:[%s409 + $0x1cc] sm:$0xf]
        %v594 = vld [vmem:[%s409 + $0x1d0] sm:$0xf]
        %v595 = vld [vmem:[%s409 + $0x1d4] sm:$0xf]
        %v596 = vld [vmem:[%s409 + $0x1d8] sm:$0xf]
        %v597 = vld [vmem:[%s409 + $0x1dc] sm:$0xf]
        %v598 = vld [vmem:[%s409 + $0x1e0] sm:$0xf]
        %v599 = vld [vmem:[%s409 + $0x1e4] sm:$0xf]
        %v600 = vld [vmem:[%s409 + $0x1e8] sm:$0xf]
        %v601 = vld [vmem:[%s409 + $0x1ec] sm:$0xf]
        %v602 = vld [vmem:[%s409 + $0x1f0] sm:$0xf]
        %v603 = vld [vmem:[%s409 + $0x1f4] sm:$0xf]
        %v604 = vld [vmem:[%s409 + $0x1f8] sm:$0xf]
        %v605 = vld [vmem:[%s409 + $0x1fc] sm:$0xf]
        %v606 = vld [vmem:[#allocation5] sm:$0xf]
        %v607 = vld [vmem:[#allocation5 + $0x4] sm:$0xf]
        %v608 = vld [vmem:[#allocation5 + $0x8] sm:$0xf]
        %v609 = vld [vmem:[#allocation5 + $0xc] sm:$0xf]
        %v610 = vld [vmem:[#allocation5 + $0x10] sm:$0xf]
        %v611 = vld [vmem:[#allocation5 + $0x14] sm:$0xf]
        %v612 = vld [vmem:[#allocation5 + $0x18] sm:$0xf]
        %v613 = vld [vmem:[#allocation5 + $0x1c] sm:$0xf]
        %v614 = vld [vmem:[#allocation5 + $0x20] sm:$0xf]
        %v615 = vld [vmem:[#allocation5 + $0x24] sm:$0xf]
        %v616 = vld [vmem:[#allocation5 + $0x28] sm:$0xf]
        %v617 = vld [vmem:[#allocation5 + $0x2c] sm:$0xf]
        %v618 = vld [vmem:[#allocation5 + $0x30] sm:$0xf]
        %v619 = vld [vmem:[#allocation5 + $0x34] sm:$0xf]
        %v620 = vld [vmem:[#allocation5 + $0x38] sm:$0xf]
        %v621 = vld [vmem:[#allocation5 + $0x3c] sm:$0xf]
        %v622 = vld [vmem:[#allocation7] sm:$0x1]
        %v624 = vperm.slane %v622, 0
        %v754 = vunpack.c.l.b16 %v478
        %v755 = vunpack.c.l.b16 %v479
        %v756 = vunpack.c.l.b16 %v480
        %v757 = vunpack.c.l.b16 %v481
        %v758 = vunpack.c.l.b16 %v482
        %v759 = vunpack.c.l.b16 %v483
        %v760 = vunpack.c.l.b16 %v484
        %v761 = vunpack.c.l.b16 %v485
        %v762 = vunpack.c.l.b16 %v486
        %v763 = vunpack.c.l.b16 %v487
        %v764 = vunpack.c.l.b16 %v488
        %v765 = vunpack.c.l.b16 %v489
        %v766 = vunpack.c.l.b16 %v490
        %v767 = vunpack.c.l.b16 %v491
        %v768 = vunpack.c.l.b16 %v492
        %v769 = vunpack.c.l.b16 %v493
        %v770 = vunpack.c.l.b16 %v494
        %v771 = vunpack.c.l.b16 %v495
        %v772 = vunpack.c.l.b16 %v496
        %v773 = vunpack.c.l.b16 %v497
        %v774 = vunpack.c.l.b16 %v498
        %v775 = vunpack.c.l.b16 %v499
        %v776 = vunpack.c.l.b16 %v500
        %v777 = vunpack.c.l.b16 %v501
        %v778 = vunpack.c.l.b16 %v502
        %v779 = vunpack.c.l.b16 %v503
        %v780 = vunpack.c.l.b16 %v504
        %v781 = vunpack.c.l.b16 %v505
        %v782 = vunpack.c.l.b16 %v506
        %v783 = vunpack.c.l.b16 %v507
        %v784 = vunpack.c.l.b16 %v508
        %v785 = vunpack.c.l.b16 %v509
        %v786 = vunpack.c.l.b16 %v510
        %v787 = vunpack.c.l.b16 %v511
        %v788 = vunpack.c.l.b16 %v512
        %v789 = vunpack.c.l.b16 %v513
        %v790 = vunpack.c.l.b16 %v514
        %v791 = vunpack.c.l.b16 %v515
        %v792 = vunpack.c.l.b16 %v516
        %v793 = vunpack.c.l.b16 %v517
        %v794 = vunpack.c.l.b16 %v518
        %v795 = vunpack.c.l.b16 %v519
        %v796 = vunpack.c.l.b16 %v520
        %v797 = vunpack.c.l.b16 %v521
        %v798 = vunpack.c.l.b16 %v522
        %v799 = vunpack.c.l.b16 %v523
        %v800 = vunpack.c.l.b16 %v524
        %v801 = vunpack.c.l.b16 %v525
        %v802 = vunpack.c.l.b16 %v526
        %v803 = vunpack.c.l.b16 %v527
        %v804 = vunpack.c.l.b16 %v528
        %v805 = vunpack.c.l.b16 %v529
        %v806 = vunpack.c.l.b16 %v530
        %v807 = vunpack.c.l.b16 %v531
        %v808 = vunpack.c.l.b16 %v532
        %v809 = vunpack.c.l.b16 %v533
        %v810 = vunpack.c.l.b16 %v534
        %v811 = vunpack.c.l.b16 %v535
        %v812 = vunpack.c.l.b16 %v536
        %v813 = vunpack.c.l.b16 %v537
        %v814 = vunpack.c.l.b16 %v538
        %v815 = vunpack.c.l.b16 %v539
        %v816 = vunpack.c.l.b16 %v540
        %v817 = vunpack.c.l.b16 %v541
        %v818 = vunpack.c.l.b16 %v542
        %v819 = vunpack.c.l.b16 %v543
        %v820 = vunpack.c.l.b16 %v544
        %v821 = vunpack.c.l.b16 %v545
        %v822 = vunpack.c.l.b16 %v546
        %v823 = vunpack.c.l.b16 %v547
        %v824 = vunpack.c.l.b16 %v548
        %v825 = vunpack.c.l.b16 %v549
        %v826 = vunpack.c.l.b16 %v550
        %v827 = vunpack.c.l.b16 %v551
        %v828 = vunpack.c.l.b16 %v552
        %v829 = vunpack.c.l.b16 %v553
        %v830 = vunpack.c.l.b16 %v554
        %v831 = vunpack.c.l.b16 %v555
        %v832 = vunpack.c.l.b16 %v556
        %v833 = vunpack.c.l.b16 %v557
        %v834 = vunpack.c.l.b16 %v558
        %v835 = vunpack.c.l.b16 %v559
        %v836 = vunpack.c.l.b16 %v560
        %v837 = vunpack.c.l.b16 %v561
        %v838 = vunpack.c.l.b16 %v562
        %v839 = vunpack.c.l.b16 %v563
        %v840 = vunpack.c.l.b16 %v564
        %v841 = vunpack.c.l.b16 %v565
        %v842 = vunpack.c.l.b16 %v566
        %v843 = vunpack.c.l.b16 %v567
        %v844 = vunpack.c.l.b16 %v568
        %v845 = vunpack.c.l.b16 %v569
        %v846 = vunpack.c.l.b16 %v570
        %v847 = vunpack.c.l.b16 %v571
        %v848 = vunpack.c.l.b16 %v572
        %v849 = vunpack.c.l.b16 %v573
        %v850 = vunpack.c.l.b16 %v574
        %v851 = vunpack.c.l.b16 %v575
        %v852 = vunpack.c.l.b16 %v576
        %v853 = vunpack.c.l.b16 %v577
        %v854 = vunpack.c.l.b16 %v578
        %v855 = vunpack.c.l.b16 %v579
        %v856 = vunpack.c.l.b16 %v580
        %v857 = vunpack.c.l.b16 %v581
        %v858 = vunpack.c.l.b16 %v582
        %v859 = vunpack.c.l.b16 %v583
        %v860 = vunpack.c.l.b16 %v584
        %v861 = vunpack.c.l.b16 %v585
        %v862 = vunpack.c.l.b16 %v586
        %v863 = vunpack.c.l.b16 %v587
        %v864 = vunpack.c.l.b16 %v588
        %v865 = vunpack.c.l.b16 %v589
        %v866 = vunpack.c.l.b16 %v590
        %v867 = vunpack.c.l.b16 %v591
        %v868 = vunpack.c.l.b16 %v592
        %v869 = vunpack.c.l.b16 %v593
        %v870 = vunpack.c.l.b16 %v594
        %v871 = vunpack.c.l.b16 %v595
        %v872 = vunpack.c.l.b16 %v596
        %v873 = vunpack.c.l.b16 %v597
        %v874 = vunpack.c.l.b16 %v598
        %v875 = vunpack.c.l.b16 %v599
        %v876 = vunpack.c.l.b16 %v600
        %v877 = vunpack.c.l.b16 %v601
        %v878 = vunpack.c.l.b16 %v602
        %v879 = vunpack.c.l.b16 %v603
        %v880 = vunpack.c.l.b16 %v604
        %v881 = vunpack.c.l.b16 %v605
        %v882 = vpack.c.b16 %v755, %v754
        %v883 = vpack.c.b16 %v757, %v756
        %v884 = vpack.c.b16 %v759, %v758
        %v885 = vpack.c.b16 %v761, %v760
        %v886 = vpack.c.b16 %v763, %v762
        %v887 = vpack.c.b16 %v765, %v764
        %v888 = vpack.c.b16 %v767, %v766
        %v889 = vpack.c.b16 %v769, %v768
        %v890 = vpack.c.b16 %v771, %v770
        %v891 = vpack.c.b16 %v773, %v772
        %v892 = vpack.c.b16 %v775, %v774
        %v893 = vpack.c.b16 %v777, %v776
        %v894 = vpack.c.b16 %v779, %v778
        %v895 = vpack.c.b16 %v781, %v780
        %v896 = vpack.c.b16 %v783, %v782
        %v897 = vpack.c.b16 %v785, %v784
        %v898 = vpack.c.b16 %v787, %v786
        %v899 = vpack.c.b16 %v789, %v788
        %v900 = vpack.c.b16 %v791, %v790
        %v901 = vpack.c.b16 %v793, %v792
        %v902 = vpack.c.b16 %v795, %v794
        %v903 = vpack.c.b16 %v797, %v796
        %v904 = vpack.c.b16 %v799, %v798
        %v905 = vpack.c.b16 %v801, %v800
        %v906 = vpack.c.b16 %v803, %v802
        %v907 = vpack.c.b16 %v805, %v804
        %v908 = vpack.c.b16 %v807, %v806
        %v909 = vpack.c.b16 %v809, %v808
        %v910 = vpack.c.b16 %v811, %v810
        %v911 = vpack.c.b16 %v813, %v812
        %v912 = vpack.c.b16 %v815, %v814
        %v913 = vpack.c.b16 %v817, %v816
        %v914 = vpack.c.b16 %v819, %v818
        %v915 = vpack.c.b16 %v821, %v820
        %v916 = vpack.c.b16 %v823, %v822
        %v917 = vpack.c.b16 %v825, %v824
        %v918 = vpack.c.b16 %v827, %v826
        %v919 = vpack.c.b16 %v829, %v828
        %v920 = vpack.c.b16 %v831, %v830
        %v921 = vpack.c.b16 %v833, %v832
        %v922 = vpack.c.b16 %v835, %v834
        %v923 = vpack.c.b16 %v837, %v836
        %v924 = vpack.c.b16 %v839, %v838
        %v925 = vpack.c.b16 %v841, %v840
        %v926 = vpack.c.b16 %v843, %v842
        %v927 = vpack.c.b16 %v845, %v844
        %v928 = vpack.c.b16 %v847, %v846
        %v929 = vpack.c.b16 %v849, %v848
        %v930 = vpack.c.b16 %v851, %v850
        %v931 = vpack.c.b16 %v853, %v852
        %v932 = vpack.c.b16 %v855, %v854
        %v933 = vpack.c.b16 %v857, %v856
        %v934 = vpack.c.b16 %v859, %v858
        %v935 = vpack.c.b16 %v861, %v860
        %v936 = vpack.c.b16 %v863, %v862
        %v937 = vpack.c.b16 %v865, %v864
        %v938 = vpack.c.b16 %v867, %v866
        %v939 = vpack.c.b16 %v869, %v868
        %v940 = vpack.c.b16 %v871, %v870
        %v941 = vpack.c.b16 %v873, %v872
        %v942 = vpack.c.b16 %v875, %v874
        %v943 = vpack.c.b16 %v877, %v876
        %v944 = vpack.c.b16 %v879, %v878
        %v945 = vpack.c.b16 %v881, %v880
        %v1026 = vunpack.c.l.b16 %v606
        %v1027 = vunpack.c.l.b16 %v607
        %v1028 = vunpack.c.l.b16 %v608
        %v1029 = vunpack.c.l.b16 %v609
        %v1030 = vunpack.c.l.b16 %v610
        %v1031 = vunpack.c.l.b16 %v611
        %v1032 = vunpack.c.l.b16 %v612
        %v1033 = vunpack.c.l.b16 %v613
        %v1034 = vunpack.c.l.b16 %v614
        %v1035 = vunpack.c.l.b16 %v615
        %v1036 = vunpack.c.l.b16 %v616
        %v1037 = vunpack.c.l.b16 %v617
        %v1038 = vunpack.c.l.b16 %v618
        %v1039 = vunpack.c.l.b16 %v619
        %v1040 = vunpack.c.l.b16 %v620
        %v1041 = vunpack.c.l.b16 %v621
        %v1042 = vpack.c.b16 %v1027, %v1026
        %v1043 = vpack.c.b16 %v1029, %v1028
        %v1044 = vpack.c.b16 %v1031, %v1030
        %v1045 = vpack.c.b16 %v1033, %v1032
        %v1046 = vpack.c.b16 %v1035, %v1034
        %v1047 = vpack.c.b16 %v1037, %v1036
        %v1048 = vpack.c.b16 %v1039, %v1038
        %v1049 = vpack.c.b16 %v1041, %v1040
        %1058 = vmatpush.bf16.msra.mxu0 %v1049
        %1059 = vmatpush.bf16.msra.mxu0 %v1048
        %1060 = vmatpush.bf16.msra.mxu0 %v1047
        %1061 = vmatpush.bf16.msra.mxu0 %v1046
        %1062 = vmatpush.bf16.msra.mxu0 %v1045
        %1063 = vmatpush.bf16.msra.mxu0 %v1044
        %1064 = vmatpush.bf16.msra.mxu0 %v1043
        %1065 = vmatpush.bf16.msra.mxu0 %v1042
        %1066 = vmatmul.bf16.gmra.mxu0 %v882
        %v1067 = vpop.f32.mrf.mxu0
        %v1068 = vadd.f32 %v624, %v1067
        %v1069 = vpop.f32.mrf.mxu0
        %v1070 = vadd.f32 %v624, %v1069
        %1071 = vmatmul.bf16.gmra.mxu0 %v883
        %v1072 = vpop.f32.mrf.mxu0
        %v1073 = vadd.f32 %v624, %v1072
        %v1074 = vpop.f32.mrf.mxu0
        %v1075 = vadd.f32 %v624, %v1074
        %1076 = vmatmul.bf16.gmra.mxu0 %v884
        %v1077 = vpop.f32.mrf.mxu0
        %v1078 = vadd.f32 %v624, %v1077
        %v1079 = vpop.f32.mrf.mxu0
        %v1080 = vadd.f32 %v624, %v1079
        %1081 = vmatmul.bf16.gmra.mxu0 %v885
        %v1082 = vpop.f32.mrf.mxu0
        %v1083 = vadd.f32 %v624, %v1082
        %v1084 = vpop.f32.mrf.mxu0
        %v1085 = vadd.f32 %v624, %v1084
        %1086 = vmatmul.bf16.gmra.mxu0 %v886
        %v1087 = vpop.f32.mrf.mxu0
        %v1088 = vadd.f32 %v624, %v1087
        %v1089 = vpop.f32.mrf.mxu0
        %v1090 = vadd.f32 %v624, %v1089
        %1091 = vmatmul.bf16.gmra.mxu0 %v887
        %v1092 = vpop.f32.mrf.mxu0
        %v1093 = vadd.f32 %v624, %v1092
        %v1094 = vpop.f32.mrf.mxu0
        %v1095 = vadd.f32 %v624, %v1094
        %1096 = vmatmul.bf16.gmra.mxu0 %v888
        %v1097 = vpop.f32.mrf.mxu0
        %v1098 = vadd.f32 %v624, %v1097
        %v1099 = vpop.f32.mrf.mxu0
        %v1100 = vadd.f32 %v624, %v1099
        %1101 = vmatmul.bf16.gmra.mxu0 %v889
        %v1102 = vpop.f32.mrf.mxu0
        %v1103 = vadd.f32 %v624, %v1102
        %v1104 = vpop.f32.mrf.mxu0
        %v1105 = vadd.f32 %v624, %v1104
        %1106 = vmatmul.bf16.gmra.mxu0 %v890
        %v1107 = vpop.f32.mrf.mxu0
        %v1108 = vadd.f32 %v624, %v1107
        %v1109 = vpop.f32.mrf.mxu0
        %v1110 = vadd.f32 %v624, %v1109
        %1111 = vmatmul.bf16.gmra.mxu0 %v891
        %v1112 = vpop.f32.mrf.mxu0
        %v1113 = vadd.f32 %v624, %v1112
        %v1114 = vpop.f32.mrf.mxu0
        %v1115 = vadd.f32 %v624, %v1114
        %1116 = vmatmul.bf16.gmra.mxu0 %v892
        %v1117 = vpop.f32.mrf.mxu0
        %v1118 = vadd.f32 %v624, %v1117
        %v1119 = vpop.f32.mrf.mxu0
        %v1120 = vadd.f32 %v624, %v1119
        %1121 = vmatmul.bf16.gmra.mxu0 %v893
        %v1122 = vpop.f32.mrf.mxu0
        %v1123 = vadd.f32 %v624, %v1122
        %v1124 = vpop.f32.mrf.mxu0
        %v1125 = vadd.f32 %v624, %v1124
        %1126 = vmatmul.bf16.gmra.mxu0 %v894
        %v1127 = vpop.f32.mrf.mxu0
        %v1128 = vadd.f32 %v624, %v1127
        %v1129 = vpop.f32.mrf.mxu0
        %v1130 = vadd.f32 %v624, %v1129
        %1131 = vmatmul.bf16.gmra.mxu0 %v895
        %v1132 = vpop.f32.mrf.mxu0
        %v1133 = vadd.f32 %v624, %v1132
        %v1134 = vpop.f32.mrf.mxu0
        %v1135 = vadd.f32 %v624, %v1134
        %1136 = vmatmul.bf16.gmra.mxu0 %v896
        %v1137 = vpop.f32.mrf.mxu0
        %v1138 = vadd.f32 %v624, %v1137
        %v1139 = vpop.f32.mrf.mxu0
        %v1140 = vadd.f32 %v624, %v1139
        %1141 = vmatmul.bf16.gmra.mxu0 %v897
        %v1142 = vpop.f32.mrf.mxu0
        %v1143 = vadd.f32 %v624, %v1142
        %v1144 = vpop.f32.mrf.mxu0
        %v1145 = vadd.f32 %v624, %v1144
        %1146 = vmatmul.bf16.gmra.mxu0 %v898
        %v1147 = vpop.f32.mrf.mxu0
        %v1148 = vadd.f32 %v624, %v1147
        %v1149 = vpop.f32.mrf.mxu0
        %v1150 = vadd.f32 %v624, %v1149
        %1151 = vmatmul.bf16.gmra.mxu0 %v899
        %v1152 = vpop.f32.mrf.mxu0
        %v1153 = vadd.f32 %v624, %v1152
        %v1154 = vpop.f32.mrf.mxu0
        %v1155 = vadd.f32 %v624, %v1154
        %1156 = vmatmul.bf16.gmra.mxu0 %v900
        %v1157 = vpop.f32.mrf.mxu0
        %v1158 = vadd.f32 %v624, %v1157
        %v1159 = vpop.f32.mrf.mxu0
        %v1160 = vadd.f32 %v624, %v1159
        %1161 = vmatmul.bf16.gmra.mxu0 %v901
        %v1162 = vpop.f32.mrf.mxu0
        %v1163 = vadd.f32 %v624, %v1162
        %v1164 = vpop.f32.mrf.mxu0
        %v1165 = vadd.f32 %v624, %v1164
        %1166 = vmatmul.bf16.gmra.mxu0 %v902
        %v1167 = vpop.f32.mrf.mxu0
        %v1168 = vadd.f32 %v624, %v1167
        %v1169 = vpop.f32.mrf.mxu0
        %v1170 = vadd.f32 %v624, %v1169
        %1171 = vmatmul.bf16.gmra.mxu0 %v903
        %v1172 = vpop.f32.mrf.mxu0
        %v1173 = vadd.f32 %v624, %v1172
        %v1174 = vpop.f32.mrf.mxu0
        %v1175 = vadd.f32 %v624, %v1174
        %1176 = vmatmul.bf16.gmra.mxu0 %v904
        %v1177 = vpop.f32.mrf.mxu0
        %v1178 = vadd.f32 %v624, %v1177
        %v1179 = vpop.f32.mrf.mxu0
        %v1180 = vadd.f32 %v624, %v1179
        %1181 = vmatmul.bf16.gmra.mxu0 %v905
        %v1182 = vpop.f32.mrf.mxu0
        %v1183 = vadd.f32 %v624, %v1182
        %v1184 = vpop.f32.mrf.mxu0
        %v1185 = vadd.f32 %v624, %v1184
        %1186 = vmatmul.bf16.gmra.mxu0 %v906
        %v1187 = vpop.f32.mrf.mxu0
        %v1188 = vadd.f32 %v624, %v1187
        %v1189 = vpop.f32.mrf.mxu0
        %v1190 = vadd.f32 %v624, %v1189
        %1191 = vmatmul.bf16.gmra.mxu0 %v907
        %v1192 = vpop.f32.mrf.mxu0
        %v1193 = vadd.f32 %v624, %v1192
        %v1194 = vpop.f32.mrf.mxu0
        %v1195 = vadd.f32 %v624, %v1194
        %1196 = vmatmul.bf16.gmra.mxu0 %v908
        %v1197 = vpop.f32.mrf.mxu0
        %v1198 = vadd.f32 %v624, %v1197
        %v1199 = vpop.f32.mrf.mxu0
        %v1200 = vadd.f32 %v624, %v1199
        %1201 = vmatmul.bf16.gmra.mxu0 %v909
        %v1202 = vpop.f32.mrf.mxu0
        %v1203 = vadd.f32 %v624, %v1202
        %v1204 = vpop.f32.mrf.mxu0
        %v1205 = vadd.f32 %v624, %v1204
        %1206 = vmatmul.bf16.gmra.mxu0 %v910
        %v1207 = vpop.f32.mrf.mxu0
        %v1208 = vadd.f32 %v624, %v1207
        %v1209 = vpop.f32.mrf.mxu0
        %v1210 = vadd.f32 %v624, %v1209
        %1211 = vmatmul.bf16.gmra.mxu0 %v911
        %v1212 = vpop.f32.mrf.mxu0
        %v1213 = vadd.f32 %v624, %v1212
        %v1214 = vpop.f32.mrf.mxu0
        %v1215 = vadd.f32 %v624, %v1214
        %1216 = vmatmul.bf16.gmra.mxu0 %v912
        %v1217 = vpop.f32.mrf.mxu0
        %v1218 = vadd.f32 %v624, %v1217
        %v1219 = vpop.f32.mrf.mxu0
        %v1220 = vadd.f32 %v624, %v1219
        %1221 = vmatmul.bf16.gmra.mxu0 %v913
        %v1222 = vpop.f32.mrf.mxu0
        %v1223 = vadd.f32 %v624, %v1222
        %v1224 = vpop.f32.mrf.mxu0
        %v1225 = vadd.f32 %v624, %v1224
        %1226 = vmatmul.bf16.gmra.mxu0 %v914
        %v1227 = vpop.f32.mrf.mxu0
        %v1228 = vadd.f32 %v624, %v1227
        %v1229 = vpop.f32.mrf.mxu0
        %v1230 = vadd.f32 %v624, %v1229
        %1231 = vmatmul.bf16.gmra.mxu0 %v915
        %v1232 = vpop.f32.mrf.mxu0
        %v1233 = vadd.f32 %v624, %v1232
        %v1234 = vpop.f32.mrf.mxu0
        %v1235 = vadd.f32 %v624, %v1234
        %1236 = vmatmul.bf16.gmra.mxu0 %v916
        %v1237 = vpop.f32.mrf.mxu0
        %v1238 = vadd.f32 %v624, %v1237
        %v1239 = vpop.f32.mrf.mxu0
        %v1240 = vadd.f32 %v624, %v1239
        %1241 = vmatmul.bf16.gmra.mxu0 %v917
        %v1242 = vpop.f32.mrf.mxu0
        %v1243 = vadd.f32 %v624, %v1242
        %v1244 = vpop.f32.mrf.mxu0
        %v1245 = vadd.f32 %v624, %v1244
        %1246 = vmatmul.bf16.gmra.mxu0 %v918
        %v1247 = vpop.f32.mrf.mxu0
        %v1248 = vadd.f32 %v624, %v1247
        %v1249 = vpop.f32.mrf.mxu0
        %v1250 = vadd.f32 %v624, %v1249
        %1251 = vmatmul.bf16.gmra.mxu0 %v919
        %v1252 = vpop.f32.mrf.mxu0
        %v1253 = vadd.f32 %v624, %v1252
        %v1254 = vpop.f32.mrf.mxu0
        %v1255 = vadd.f32 %v624, %v1254
        %1256 = vmatmul.bf16.gmra.mxu0 %v920
        %v1257 = vpop.f32.mrf.mxu0
        %v1258 = vadd.f32 %v624, %v1257
        %v1259 = vpop.f32.mrf.mxu0
        %v1260 = vadd.f32 %v624, %v1259
        %1261 = vmatmul.bf16.gmra.mxu0 %v921
        %v1262 = vpop.f32.mrf.mxu0
        %v1263 = vadd.f32 %v624, %v1262
        %v1264 = vpop.f32.mrf.mxu0
        %v1265 = vadd.f32 %v624, %v1264
        %1266 = vmatmul.bf16.gmra.mxu0 %v922
        %v1267 = vpop.f32.mrf.mxu0
        %v1268 = vadd.f32 %v624, %v1267
        %v1269 = vpop.f32.mrf.mxu0
        %v1270 = vadd.f32 %v624, %v1269
        %1271 = vmatmul.bf16.gmra.mxu0 %v923
        %v1272 = vpop.f32.mrf.mxu0
        %v1273 = vadd.f32 %v624, %v1272
        %v1274 = vpop.f32.mrf.mxu0
        %v1275 = vadd.f32 %v624, %v1274
        %1276 = vmatmul.bf16.gmra.mxu0 %v924
        %v1277 = vpop.f32.mrf.mxu0
        %v1278 = vadd.f32 %v624, %v1277
        %v1279 = vpop.f32.mrf.mxu0
        %v1280 = vadd.f32 %v624, %v1279
        %1281 = vmatmul.bf16.gmra.mxu0 %v925
        %v1282 = vpop.f32.mrf.mxu0
        %v1283 = vadd.f32 %v624, %v1282
        %v1284 = vpop.f32.mrf.mxu0
        %v1285 = vadd.f32 %v624, %v1284
        %1286 = vmatmul.bf16.gmra.mxu0 %v926
        %v1287 = vpop.f32.mrf.mxu0
        %v1288 = vadd.f32 %v624, %v1287
        %v1289 = vpop.f32.mrf.mxu0
        %v1290 = vadd.f32 %v624, %v1289
        %1291 = vmatmul.bf16.gmra.mxu0 %v927
        %v1292 = vpop.f32.mrf.mxu0
        %v1293 = vadd.f32 %v624, %v1292
        %v1294 = vpop.f32.mrf.mxu0
        %v1295 = vadd.f32 %v624, %v1294
        %1296 = vmatmul.bf16.gmra.mxu0 %v928
        %v1297 = vpop.f32.mrf.mxu0
        %v1298 = vadd.f32 %v624, %v1297
        %v1299 = vpop.f32.mrf.mxu0
        %v1300 = vadd.f32 %v624, %v1299
        %1301 = vmatmul.bf16.gmra.mxu0 %v929
        %v1302 = vpop.f32.mrf.mxu0
        %v1303 = vadd.f32 %v624, %v1302
        %v1304 = vpop.f32.mrf.mxu0
        %v1305 = vadd.f32 %v624, %v1304
        %1306 = vmatmul.bf16.gmra.mxu0 %v930
        %v1307 = vpop.f32.mrf.mxu0
        %v1308 = vadd.f32 %v624, %v1307
        %v1309 = vpop.f32.mrf.mxu0
        %v1310 = vadd.f32 %v624, %v1309
        %1311 = vmatmul.bf16.gmra.mxu0 %v931
        %v1312 = vpop.f32.mrf.mxu0
        %v1313 = vadd.f32 %v624, %v1312
        %v1314 = vpop.f32.mrf.mxu0
        %v1315 = vadd.f32 %v624, %v1314
        %1316 = vmatmul.bf16.gmra.mxu0 %v932
        %v1317 = vpop.f32.mrf.mxu0
        %v1318 = vadd.f32 %v624, %v1317
        %v1319 = vpop.f32.mrf.mxu0
        %v1320 = vadd.f32 %v624, %v1319
        %1321 = vmatmul.bf16.gmra.mxu0 %v933
        %v1322 = vpop.f32.mrf.mxu0
        %v1323 = vadd.f32 %v624, %v1322
        %v1324 = vpop.f32.mrf.mxu0
        %v1325 = vadd.f32 %v624, %v1324
        %1326 = vmatmul.bf16.gmra.mxu0 %v934
        %v1327 = vpop.f32.mrf.mxu0
        %v1328 = vadd.f32 %v624, %v1327
        %v1329 = vpop.f32.mrf.mxu0
        %v1330 = vadd.f32 %v624, %v1329
        %1331 = vmatmul.bf16.gmra.mxu0 %v935
        %v1332 = vpop.f32.mrf.mxu0
        %v1333 = vadd.f32 %v624, %v1332
        %v1334 = vpop.f32.mrf.mxu0
        %v1335 = vadd.f32 %v624, %v1334
        %1336 = vmatmul.bf16.gmra.mxu0 %v936
        %v1337 = vpop.f32.mrf.mxu0
        %v1338 = vadd.f32 %v624, %v1337
        %v1339 = vpop.f32.mrf.mxu0
        %v1340 = vadd.f32 %v624, %v1339
        %1341 = vmatmul.bf16.gmra.mxu0 %v937
        %v1342 = vpop.f32.mrf.mxu0
        %v1343 = vadd.f32 %v624, %v1342
        %v1344 = vpop.f32.mrf.mxu0
        %v1345 = vadd.f32 %v624, %v1344
        %1346 = vmatmul.bf16.gmra.mxu0 %v938
        %v1347 = vpop.f32.mrf.mxu0
        %v1348 = vadd.f32 %v624, %v1347
        %v1349 = vpop.f32.mrf.mxu0
        %v1350 = vadd.f32 %v624, %v1349
        %1351 = vmatmul.bf16.gmra.mxu0 %v939
        %v1352 = vpop.f32.mrf.mxu0
        %v1353 = vadd.f32 %v624, %v1352
        %v1354 = vpop.f32.mrf.mxu0
        %v1355 = vadd.f32 %v624, %v1354
        %1356 = vmatmul.bf16.gmra.mxu0 %v940
        %v1357 = vpop.f32.mrf.mxu0
        %v1358 = vadd.f32 %v624, %v1357
        %v1359 = vpop.f32.mrf.mxu0
        %v1360 = vadd.f32 %v624, %v1359
        %1361 = vmatmul.bf16.gmra.mxu0 %v941
        %v1362 = vpop.f32.mrf.mxu0
        %v1363 = vadd.f32 %v624, %v1362
        %v1364 = vpop.f32.mrf.mxu0
        %v1365 = vadd.f32 %v624, %v1364
        %1366 = vmatmul.bf16.gmra.mxu0 %v942
        %v1367 = vpop.f32.mrf.mxu0
        %v1368 = vadd.f32 %v624, %v1367
        %v1369 = vpop.f32.mrf.mxu0
        %v1370 = vadd.f32 %v624, %v1369
        %1371 = vmatmul.bf16.gmra.mxu0 %v943
        %v1372 = vpop.f32.mrf.mxu0
        %v1373 = vadd.f32 %v624, %v1372
        %v1374 = vpop.f32.mrf.mxu0
        %v1375 = vadd.f32 %v624, %v1374
        %1376 = vmatmul.bf16.gmra.mxu0 %v944
        %v1377 = vpop.f32.mrf.mxu0
        %v1378 = vadd.f32 %v624, %v1377
        %v1379 = vpop.f32.mrf.mxu0
        %v1380 = vadd.f32 %v624, %v1379
        %1381 = vmatmul.bf16.gmra.mxu0 %v945
        %v1382 = vpop.f32.mrf.mxu0
        %v1383 = vadd.f32 %v624, %v1382
        %v1384 = vpop.f32.mrf.mxu0
        %v1385 = vadd.f32 %v624, %v1384
        %1386 = vdwg.mxu0
        %v1387 = vmax.f32 %v1068, 0.0
        %v1388 = vmax.f32 %v1070, 0.0
        %v1389 = vmax.f32 %v1073, 0.0
        %v1390 = vmax.f32 %v1075, 0.0
        %v1391 = vmax.f32 %v1078, 0.0
        %v1392 = vmax.f32 %v1080, 0.0
        %v1393 = vmax.f32 %v1083, 0.0
        %v1394 = vmax.f32 %v1085, 0.0
        %v1395 = vmax.f32 %v1088, 0.0
        %v1396 = vmax.f32 %v1090, 0.0
        %v1397 = vmax.f32 %v1093, 0.0
        %v1398 = vmax.f32 %v1095, 0.0
        %v1399 = vmax.f32 %v1098, 0.0
        %v1400 = vmax.f32 %v1100, 0.0
        %v1401 = vmax.f32 %v1103, 0.0
        %v1402 = vmax.f32 %v1105, 0.0
        %v1403 = vmax.f32 %v1108, 0.0
        %v1404 = vmax.f32 %v1110, 0.0
        %v1405 = vmax.f32 %v1113, 0.0
        %v1406 = vmax.f32 %v1115, 0.0
        %v1407 = vmax.f32 %v1118, 0.0
        %v1408 = vmax.f32 %v1120, 0.0
        %v1409 = vmax.f32 %v1123, 0.0
        %v1410 = vmax.f32 %v1125, 0.0
        %v1411 = vmax.f32 %v1128, 0.0
        %v1412 = vmax.f32 %v1130, 0.0
        %v1413 = vmax.f32 %v1133, 0.0
        %v1414 = vmax.f32 %v1135, 0.0
        %v1415 = vmax.f32 %v1138, 0.0
        %v1416 = vmax.f32 %v1140, 0.0
        %v1417 = vmax.f32 %v1143, 0.0
        %v1418 = vmax.f32 %v1145, 0.0
        %v1419 = vmax.f32 %v1148, 0.0
        %v1420 = vmax.f32 %v1150, 0.0
        %v1421 = vmax.f32 %v1153, 0.0
        %v1422 = vmax.f32 %v1155, 0.0
        %v1423 = vmax.f32 %v1158, 0.0
        %v1424 = vmax.f32 %v1160, 0.0
        %v1425 = vmax.f32 %v1163, 0.0
        %v1426 = vmax.f32 %v1165, 0.0
        %v1427 = vmax.f32 %v1168, 0.0
        %v1428 = vmax.f32 %v1170, 0.0
        %v1429 = vmax.f32 %v1173, 0.0
        %v1430 = vmax.f32 %v1175, 0.0
        %v1431 = vmax.f32 %v1178, 0.0
        %v1432 = vmax.f32 %v1180, 0.0
        %v1433 = vmax.f32 %v1183, 0.0
        %v1434 = vmax.f32 %v1185, 0.0
        %v1435 = vmax.f32 %v1188, 0.0
        %v1436 = vmax.f32 %v1190, 0.0
        %v1437 = vmax.f32 %v1193, 0.0
        %v1438 = vmax.f32 %v1195, 0.0
        %v1439 = vmax.f32 %v1198, 0.0
        %v1440 = vmax.f32 %v1200, 0.0
        %v1441 = vmax.f32 %v1203, 0.0
        %v1442 = vmax.f32 %v1205, 0.0
        %v1443 = vmax.f32 %v1208, 0.0
        %v1444 = vmax.f32 %v1210, 0.0
        %v1445 = vmax.f32 %v1213, 0.0
        %v1446 = vmax.f32 %v1215, 0.0
        %v1447 = vmax.f32 %v1218, 0.0
        %v1448 = vmax.f32 %v1220, 0.0
        %v1449 = vmax.f32 %v1223, 0.0
        %v1450 = vmax.f32 %v1225, 0.0
        %v1451 = vmax.f32 %v1228, 0.0
        %v1452 = vmax.f32 %v1230, 0.0
        %v1453 = vmax.f32 %v1233, 0.0
        %v1454 = vmax.f32 %v1235, 0.0
        %v1455 = vmax.f32 %v1238, 0.0
        %v1456 = vmax.f32 %v1240, 0.0
        %v1457 = vmax.f32 %v1243, 0.0
        %v1458 = vmax.f32 %v1245, 0.0
        %v1459 = vmax.f32 %v1248, 0.0
        %v1460 = vmax.f32 %v1250, 0.0
        %v1461 = vmax.f32 %v1253, 0.0
        %v1462 = vmax.f32 %v1255, 0.0
        %v1463 = vmax.f32 %v1258, 0.0
        %v1464 = vmax.f32 %v1260, 0.0
        %v1465 = vmax.f32 %v1263, 0.0
        %v1466 = vmax.f32 %v1265, 0.0
        %v1467 = vmax.f32 %v1268, 0.0
        %v1468 = vmax.f32 %v1270, 0.0
        %v1469 = vmax.f32 %v1273, 0.0
        %v1470 = vmax.f32 %v1275, 0.0
        %v1471 = vmax.f32 %v1278, 0.0
        %v1472 = vmax.f32 %v1280, 0.0
        %v1473 = vmax.f32 %v1283, 0.0
        %v1474 = vmax.f32 %v1285, 0.0
        %v1475 = vmax.f32 %v1288, 0.0
        %v1476 = vmax.f32 %v1290, 0.0
        %v1477 = vmax.f32 %v1293, 0.0
        %v1478 = vmax.f32 %v1295, 0.0
        %v1479 = vmax.f32 %v1298, 0.0
        %v1480 = vmax.f32 %v1300, 0.0
        %v1481 = vmax.f32 %v1303, 0.0
        %v1482 = vmax.f32 %v1305, 0.0
        %v1483 = vmax.f32 %v1308, 0.0
        %v1484 = vmax.f32 %v1310, 0.0
        %v1485 = vmax.f32 %v1313, 0.0
        %v1486 = vmax.f32 %v1315, 0.0
        %v1487 = vmax.f32 %v1318, 0.0
        %v1488 = vmax.f32 %v1320, 0.0
        %v1489 = vmax.f32 %v1323, 0.0
        %v1490 = vmax.f32 %v1325, 0.0
        %v1491 = vmax.f32 %v1328, 0.0
        %v1492 = vmax.f32 %v1330, 0.0
        %v1493 = vmax.f32 %v1333, 0.0
        %v1494 = vmax.f32 %v1335, 0.0
        %v1495 = vmax.f32 %v1338, 0.0
        %v1496 = vmax.f32 %v1340, 0.0
        %v1497 = vmax.f32 %v1343, 0.0
        %v1498 = vmax.f32 %v1345, 0.0
        %v1499 = vmax.f32 %v1348, 0.0
        %v1500 = vmax.f32 %v1350, 0.0
        %v1501 = vmax.f32 %v1353, 0.0
        %v1502 = vmax.f32 %v1355, 0.0
        %v1503 = vmax.f32 %v1358, 0.0
        %v1504 = vmax.f32 %v1360, 0.0
        %v1505 = vmax.f32 %v1363, 0.0
        %v1506 = vmax.f32 %v1365, 0.0
        %v1507 = vmax.f32 %v1368, 0.0
        %v1508 = vmax.f32 %v1370, 0.0
        %v1509 = vmax.f32 %v1373, 0.0
        %v1510 = vmax.f32 %v1375, 0.0
        %v1511 = vmax.f32 %v1378, 0.0
        %v1512 = vmax.f32 %v1380, 0.0
        %v1513 = vmax.f32 %v1383, 0.0
        %v1514 = vmax.f32 %v1385, 0.0
        %v1515 = vpack.c.bf16 %v1388, %v1387
        %v1516 = vpack.c.bf16 %v1390, %v1389
        %v1517 = vpack.c.bf16 %v1392, %v1391
        %v1518 = vpack.c.bf16 %v1394, %v1393
        %v1519 = vpack.c.bf16 %v1396, %v1395
        %v1520 = vpack.c.bf16 %v1398, %v1397
        %v1521 = vpack.c.bf16 %v1400, %v1399
        %v1522 = vpack.c.bf16 %v1402, %v1401
        %v1523 = vpack.c.bf16 %v1404, %v1403
        %v1524 = vpack.c.bf16 %v1406, %v1405
        %v1525 = vpack.c.bf16 %v1408, %v1407
        %v1526 = vpack.c.bf16 %v1410, %v1409
        %v1527 = vpack.c.bf16 %v1412, %v1411
        %v1528 = vpack.c.bf16 %v1414, %v1413
        %v1529 = vpack.c.bf16 %v1416, %v1415
        %v1530 = vpack.c.bf16 %v1418, %v1417
        %v1531 = vpack.c.bf16 %v1420, %v1419
        %v1532 = vpack.c.bf16 %v1422, %v1421
        %v1533 = vpack.c.bf16 %v1424, %v1423
        %v1534 = vpack.c.bf16 %v1426, %v1425
        %v1535 = vpack.c.bf16 %v1428, %v1427
        %v1536 = vpack.c.bf16 %v1430, %v1429
        %v1537 = vpack.c.bf16 %v1432, %v1431
        %v1538 = vpack.c.bf16 %v1434, %v1433
        %v1539 = vpack.c.bf16 %v1436, %v1435
        %v1540 = vpack.c.bf16 %v1438, %v1437
        %v1541 = vpack.c.bf16 %v1440, %v1439
        %v1542 = vpack.c.bf16 %v1442, %v1441
        %v1543 = vpack.c.bf16 %v1444, %v1443
        %v1544 = vpack.c.bf16 %v1446, %v1445
        %v1545 = vpack.c.bf16 %v1448, %v1447
        %v1546 = vpack.c.bf16 %v1450, %v1449
        %v1547 = vpack.c.bf16 %v1452, %v1451
        %v1548 = vpack.c.bf16 %v1454, %v1453
        %v1549 = vpack.c.bf16 %v1456, %v1455
        %v1550 = vpack.c.bf16 %v1458, %v1457
        %v1551 = vpack.c.bf16 %v1460, %v1459
        %v1552 = vpack.c.bf16 %v1462, %v1461
        %v1553 = vpack.c.bf16 %v1464, %v1463
        %v1554 = vpack.c.bf16 %v1466, %v1465
        %v1555 = vpack.c.bf16 %v1468, %v1467
        %v1556 = vpack.c.bf16 %v1470, %v1469
        %v1557 = vpack.c.bf16 %v1472, %v1471
        %v1558 = vpack.c.bf16 %v1474, %v1473
        %v1559 = vpack.c.bf16 %v1476, %v1475
        %v1560 = vpack.c.bf16 %v1478, %v1477
        %v1561 = vpack.c.bf16 %v1480, %v1479
        %v1562 = vpack.c.bf16 %v1482, %v1481
        %v1563 = vpack.c.bf16 %v1484, %v1483
        %v1564 = vpack.c.bf16 %v1486, %v1485
        %v1565 = vpack.c.bf16 %v1488, %v1487
        %v1566 = vpack.c.bf16 %v1490, %v1489
        %v1567 = vpack.c.bf16 %v1492, %v1491
        %v1568 = vpack.c.bf16 %v1494, %v1493
        %v1569 = vpack.c.bf16 %v1496, %v1495
        %v1570 = vpack.c.bf16 %v1498, %v1497
        %v1571 = vpack.c.bf16 %v1500, %v1499
        %v1572 = vpack.c.bf16 %v1502, %v1501
        %v1573 = vpack.c.bf16 %v1504, %v1503
        %v1574 = vpack.c.bf16 %v1506, %v1505
        %v1575 = vpack.c.bf16 %v1508, %v1507
        %v1576 = vpack.c.bf16 %v1510, %v1509
        %v1577 = vpack.c.bf16 %v1512, %v1511
        %v1578 = vpack.c.bf16 %v1514, %v1513
        %v1579 = vld [vmem:[#allocation8] sm:$0xff]
        %v1580 = vld [vmem:[#allocation8 + $0x8] sm:$0xff]
        %v1581 = vld [vmem:[#allocation8 + $0x10] sm:$0xff]
        %v1582 = vld [vmem:[#allocation8 + $0x18] sm:$0xff]
        %v1583 = vld [vmem:[#allocation8 + $0x20] sm:$0xff]
        %v1584 = vld [vmem:[#allocation8 + $0x28] sm:$0xff]
        %v1585 = vld [vmem:[#allocation8 + $0x30] sm:$0xff]
        %v1586 = vld [vmem:[#allocation8 + $0x38] sm:$0xff]
        %v1587 = vld [vmem:[#allocation8 + $0x40] sm:$0xff]
        %v1588 = vld [vmem:[#allocation8 + $0x48] sm:$0xff]
        %v1589 = vld [vmem:[#allocation8 + $0x50] sm:$0xff]
        %v1590 = vld [vmem:[#allocation8 + $0x58] sm:$0xff]
        %v1591 = vld [vmem:[#allocation8 + $0x60] sm:$0xff]
        %v1592 = vld [vmem:[#allocation8 + $0x68] sm:$0xff]
        %v1593 = vld [vmem:[#allocation8 + $0x70] sm:$0xff]
        %v1594 = vld [vmem:[#allocation8 + $0x78] sm:$0xff]
        %v1595 = vld [vmem:[%s4] sm:$0x3]
        %v1597 = vperm.slane %v1595, 0
        %v1598 = vperm.slane %v1595, 1
        %v1617 = vunpack.c.l.b16 %v1579
        %v1618 = vunpack.c.h.b16 %v1579
        %v1619 = vunpack.c.l.b16 %v1580
        %v1620 = vunpack.c.h.b16 %v1580
        %v1621 = vunpack.c.l.b16 %v1581
        %v1622 = vunpack.c.h.b16 %v1581
        %v1623 = vunpack.c.l.b16 %v1582
        %v1624 = vunpack.c.h.b16 %v1582
        %v1625 = vunpack.c.l.b16 %v1583
        %v1626 = vunpack.c.h.b16 %v1583
        %v1627 = vunpack.c.l.b16 %v1584
        %v1628 = vunpack.c.h.b16 %v1584
        %v1629 = vunpack.c.l.b16 %v1585
        %v1630 = vunpack.c.h.b16 %v1585
        %v1631 = vunpack.c.l.b16 %v1586
        %v1632 = vunpack.c.h.b16 %v1586
        %v1633 = vunpack.c.l.b16 %v1587
        %v1634 = vunpack.c.h.b16 %v1587
        %v1635 = vunpack.c.l.b16 %v1588
        %v1636 = vunpack.c.h.b16 %v1588
        %v1637 = vunpack.c.l.b16 %v1589
        %v1638 = vunpack.c.h.b16 %v1589
        %v1639 = vunpack.c.l.b16 %v1590
        %v1640 = vunpack.c.h.b16 %v1590
        %v1641 = vunpack.c.l.b16 %v1591
        %v1642 = vunpack.c.h.b16 %v1591
        %v1643 = vunpack.c.l.b16 %v1592
        %v1644 = vunpack.c.h.b16 %v1592
        %v1645 = vunpack.c.l.b16 %v1593
        %v1646 = vunpack.c.h.b16 %v1593
        %v1647 = vunpack.c.l.b16 %v1594
        %v1648 = vunpack.c.h.b16 %v1594
        %v1649 = vpack.c.b16 %v1619, %v1617
        %v1650 = vpack.c.b16 %v1620, %v1618
        %v1651 = vpack.c.b16 %v1623, %v1621
        %v1652 = vpack.c.b16 %v1624, %v1622
        %v1653 = vpack.c.b16 %v1627, %v1625
        %v1654 = vpack.c.b16 %v1628, %v1626
        %v1655 = vpack.c.b16 %v1631, %v1629
        %v1656 = vpack.c.b16 %v1632, %v1630
        %v1657 = vpack.c.b16 %v1635, %v1633
        %v1658 = vpack.c.b16 %v1636, %v1634
        %v1659 = vpack.c.b16 %v1639, %v1637
        %v1660 = vpack.c.b16 %v1640, %v1638
        %v1661 = vpack.c.b16 %v1643, %v1641
        %v1662 = vpack.c.b16 %v1644, %v1642
        %v1663 = vpack.c.b16 %v1647, %v1645
        %v1664 = vpack.c.b16 %v1648, %v1646
        %1681 = vmatpush.bf16.msra.mxu0 %v1663
        %1682 = vmatpush.bf16.msra.mxu0 %v1661
        %1683 = vmatpush.bf16.msra.mxu0 %v1659
        %1684 = vmatpush.bf16.msra.mxu0 %v1657
        %1685 = vmatpush.bf16.msra.mxu0 %v1655
        %1686 = vmatpush.bf16.msra.mxu0 %v1653
        %1687 = vmatpush.bf16.msra.mxu0 %v1651
        %1688 = vmatpush.bf16.msra.mxu0 %v1649
        %1689 = vmatmul.bf16.gmra.mxu0 %v1515
        %v1690 = vpop.f32.mrf.mxu0
        %v1691 = vadd.f32 %v1597, %v1690
        %v1692 = vpop.f32.mrf.mxu0
        %v1693 = vadd.f32 %v1597, %v1692
        %1694 = vmatmul.bf16.gmra.mxu0 %v1516
        %v1695 = vpop.f32.mrf.mxu0
        %v1696 = vadd.f32 %v1597, %v1695
        %v1697 = vpop.f32.mrf.mxu0
        %v1698 = vadd.f32 %v1597, %v1697
        %1699 = vmatmul.bf16.gmra.mxu0 %v1517
        %v1700 = vpop.f32.mrf.mxu0
        %v1701 = vadd.f32 %v1597, %v1700
        %v1702 = vpop.f32.mrf.mxu0
        %v1703 = vadd.f32 %v1597, %v1702
        %1704 = vmatmul.bf16.gmra.mxu0 %v1518
        %v1705 = vpop.f32.mrf.mxu0
        %v1706 = vadd.f32 %v1597, %v1705
        %v1707 = vpop.f32.mrf.mxu0
        %v1708 = vadd.f32 %v1597, %v1707
        %1709 = vmatmul.bf16.gmra.mxu0 %v1519
        %v1710 = vpop.f32.mrf.mxu0
        %v1711 = vadd.f32 %v1597, %v1710
        %v1712 = vpop.f32.mrf.mxu0
        %v1713 = vadd.f32 %v1597, %v1712
        %1714 = vmatmul.bf16.gmra.mxu0 %v1520
        %v1715 = vpop.f32.mrf.mxu0
        %v1716 = vadd.f32 %v1597, %v1715
        %v1717 = vpop.f32.mrf.mxu0
        %v1718 = vadd.f32 %v1597, %v1717
        %1719 = vmatmul.bf16.gmra.mxu0 %v1521
        %v1720 = vpop.f32.mrf.mxu0
        %v1721 = vadd.f32 %v1597, %v1720
        %v1722 = vpop.f32.mrf.mxu0
        %v1723 = vadd.f32 %v1597, %v1722
        %1724 = vmatmul.bf16.gmra.mxu0 %v1522
        %v1725 = vpop.f32.mrf.mxu0
        %v1726 = vadd.f32 %v1597, %v1725
        %v1727 = vpop.f32.mrf.mxu0
        %v1728 = vadd.f32 %v1597, %v1727
        %1729 = vmatmul.bf16.gmra.mxu0 %v1523
        %v1730 = vpop.f32.mrf.mxu0
        %v1731 = vadd.f32 %v1597, %v1730
        %v1732 = vpop.f32.mrf.mxu0
        %v1733 = vadd.f32 %v1597, %v1732
        %1734 = vmatmul.bf16.gmra.mxu0 %v1524
        %v1735 = vpop.f32.mrf.mxu0
        %v1736 = vadd.f32 %v1597, %v1735
        %v1737 = vpop.f32.mrf.mxu0
        %v1738 = vadd.f32 %v1597, %v1737
        %1739 = vmatmul.bf16.gmra.mxu0 %v1525
        %v1740 = vpop.f32.mrf.mxu0
        %v1741 = vadd.f32 %v1597, %v1740
        %v1742 = vpop.f32.mrf.mxu0
        %v1743 = vadd.f32 %v1597, %v1742
        %1744 = vmatmul.bf16.gmra.mxu0 %v1526
        %v1745 = vpop.f32.mrf.mxu0
        %v1746 = vadd.f32 %v1597, %v1745
        %v1747 = vpop.f32.mrf.mxu0
        %v1748 = vadd.f32 %v1597, %v1747
        %1749 = vmatmul.bf16.gmra.mxu0 %v1527
        %v1750 = vpop.f32.mrf.mxu0
        %v1751 = vadd.f32 %v1597, %v1750
        %v1752 = vpop.f32.mrf.mxu0
        %v1753 = vadd.f32 %v1597, %v1752
        %1754 = vmatmul.bf16.gmra.mxu0 %v1528
        %v1755 = vpop.f32.mrf.mxu0
        %v1756 = vadd.f32 %v1597, %v1755
        %v1757 = vpop.f32.mrf.mxu0
        %v1758 = vadd.f32 %v1597, %v1757
        %1759 = vmatmul.bf16.gmra.mxu0 %v1529
        %v1760 = vpop.f32.mrf.mxu0
        %v1761 = vadd.f32 %v1597, %v1760
        %v1762 = vpop.f32.mrf.mxu0
        %v1763 = vadd.f32 %v1597, %v1762
        %1764 = vmatmul.bf16.gmra.mxu0 %v1530
        %v1765 = vpop.f32.mrf.mxu0
        %v1766 = vadd.f32 %v1597, %v1765
        %v1767 = vpop.f32.mrf.mxu0
        %v1768 = vadd.f32 %v1597, %v1767
        %1769 = vmatmul.bf16.gmra.mxu0 %v1531
        %v1770 = vpop.f32.mrf.mxu0
        %v1771 = vadd.f32 %v1597, %v1770
        %v1772 = vpop.f32.mrf.mxu0
        %v1773 = vadd.f32 %v1597, %v1772
        %1774 = vmatmul.bf16.gmra.mxu0 %v1532
        %v1775 = vpop.f32.mrf.mxu0
        %v1776 = vadd.f32 %v1597, %v1775
        %v1777 = vpop.f32.mrf.mxu0
        %v1778 = vadd.f32 %v1597, %v1777
        %1779 = vmatmul.bf16.gmra.mxu0 %v1533
        %v1780 = vpop.f32.mrf.mxu0
        %v1781 = vadd.f32 %v1597, %v1780
        %v1782 = vpop.f32.mrf.mxu0
        %v1783 = vadd.f32 %v1597, %v1782
        %1784 = vmatmul.bf16.gmra.mxu0 %v1534
        %v1785 = vpop.f32.mrf.mxu0
        %v1786 = vadd.f32 %v1597, %v1785
        %v1787 = vpop.f32.mrf.mxu0
        %v1788 = vadd.f32 %v1597, %v1787
        %1789 = vmatmul.bf16.gmra.mxu0 %v1535
        %v1790 = vpop.f32.mrf.mxu0
        %v1791 = vadd.f32 %v1597, %v1790
        %v1792 = vpop.f32.mrf.mxu0
        %v1793 = vadd.f32 %v1597, %v1792
        %1794 = vmatmul.bf16.gmra.mxu0 %v1536
        %v1795 = vpop.f32.mrf.mxu0
        %v1796 = vadd.f32 %v1597, %v1795
        %v1797 = vpop.f32.mrf.mxu0
        %v1798 = vadd.f32 %v1597, %v1797
        %1799 = vmatmul.bf16.gmra.mxu0 %v1537
        %v1800 = vpop.f32.mrf.mxu0
        %v1801 = vadd.f32 %v1597, %v1800
        %v1802 = vpop.f32.mrf.mxu0
        %v1803 = vadd.f32 %v1597, %v1802
        %1804 = vmatmul.bf16.gmra.mxu0 %v1538
        %v1805 = vpop.f32.mrf.mxu0
        %v1806 = vadd.f32 %v1597, %v1805
        %v1807 = vpop.f32.mrf.mxu0
        %v1808 = vadd.f32 %v1597, %v1807
        %1809 = vmatmul.bf16.gmra.mxu0 %v1539
        %v1810 = vpop.f32.mrf.mxu0
        %v1811 = vadd.f32 %v1597, %v1810
        %v1812 = vpop.f32.mrf.mxu0
        %v1813 = vadd.f32 %v1597, %v1812
        %1814 = vmatmul.bf16.gmra.mxu0 %v1540
        %v1815 = vpop.f32.mrf.mxu0
        %v1816 = vadd.f32 %v1597, %v1815
        %v1817 = vpop.f32.mrf.mxu0
        %v1818 = vadd.f32 %v1597, %v1817
        %1819 = vmatmul.bf16.gmra.mxu0 %v1541
        %v1820 = vpop.f32.mrf.mxu0
        %v1821 = vadd.f32 %v1597, %v1820
        %v1822 = vpop.f32.mrf.mxu0
        %v1823 = vadd.f32 %v1597, %v1822
        %1824 = vmatmul.bf16.gmra.mxu0 %v1542
        %v1825 = vpop.f32.mrf.mxu0
        %v1826 = vadd.f32 %v1597, %v1825
        %v1827 = vpop.f32.mrf.mxu0
        %v1828 = vadd.f32 %v1597, %v1827
        %1829 = vmatmul.bf16.gmra.mxu0 %v1543
        %v1830 = vpop.f32.mrf.mxu0
        %v1831 = vadd.f32 %v1597, %v1830
        %v1832 = vpop.f32.mrf.mxu0
        %v1833 = vadd.f32 %v1597, %v1832
        %1834 = vmatmul.bf16.gmra.mxu0 %v1544
        %v1835 = vpop.f32.mrf.mxu0
        %v1836 = vadd.f32 %v1597, %v1835
        %v1837 = vpop.f32.mrf.mxu0
        %v1838 = vadd.f32 %v1597, %v1837
        %1839 = vmatmul.bf16.gmra.mxu0 %v1545
        %v1840 = vpop.f32.mrf.mxu0
        %v1841 = vadd.f32 %v1597, %v1840
        %v1842 = vpop.f32.mrf.mxu0
        %v1843 = vadd.f32 %v1597, %v1842
        %1844 = vmatmul.bf16.gmra.mxu0 %v1546
        %v1845 = vpop.f32.mrf.mxu0
        %v1846 = vadd.f32 %v1597, %v1845
        %v1847 = vpop.f32.mrf.mxu0
        %v1848 = vadd.f32 %v1597, %v1847
        %1849 = vmatmul.bf16.gmra.mxu0 %v1547
        %v1850 = vpop.f32.mrf.mxu0
        %v1851 = vadd.f32 %v1597, %v1850
        %v1852 = vpop.f32.mrf.mxu0
        %v1853 = vadd.f32 %v1597, %v1852
        %1854 = vmatmul.bf16.gmra.mxu0 %v1548
        %v1855 = vpop.f32.mrf.mxu0
        %v1856 = vadd.f32 %v1597, %v1855
        %v1857 = vpop.f32.mrf.mxu0
        %v1858 = vadd.f32 %v1597, %v1857
        %1859 = vmatmul.bf16.gmra.mxu0 %v1549
        %v1860 = vpop.f32.mrf.mxu0
        %v1861 = vadd.f32 %v1597, %v1860
        %v1862 = vpop.f32.mrf.mxu0
        %v1863 = vadd.f32 %v1597, %v1862
        %1864 = vmatmul.bf16.gmra.mxu0 %v1550
        %v1865 = vpop.f32.mrf.mxu0
        %v1866 = vadd.f32 %v1597, %v1865
        %v1867 = vpop.f32.mrf.mxu0
        %v1868 = vadd.f32 %v1597, %v1867
        %1869 = vmatmul.bf16.gmra.mxu0 %v1551
        %v1870 = vpop.f32.mrf.mxu0
        %v1871 = vadd.f32 %v1597, %v1870
        %v1872 = vpop.f32.mrf.mxu0
        %v1873 = vadd.f32 %v1597, %v1872
        %1874 = vmatmul.bf16.gmra.mxu0 %v1552
        %v1875 = vpop.f32.mrf.mxu0
        %v1876 = vadd.f32 %v1597, %v1875
        %v1877 = vpop.f32.mrf.mxu0
        %v1878 = vadd.f32 %v1597, %v1877
        %1879 = vmatmul.bf16.gmra.mxu0 %v1553
        %v1880 = vpop.f32.mrf.mxu0
        %v1881 = vadd.f32 %v1597, %v1880
        %v1882 = vpop.f32.mrf.mxu0
        %v1883 = vadd.f32 %v1597, %v1882
        %1884 = vmatmul.bf16.gmra.mxu0 %v1554
        %v1885 = vpop.f32.mrf.mxu0
        %v1886 = vadd.f32 %v1597, %v1885
        %v1887 = vpop.f32.mrf.mxu0
        %v1888 = vadd.f32 %v1597, %v1887
        %1889 = vmatmul.bf16.gmra.mxu0 %v1555
        %v1890 = vpop.f32.mrf.mxu0
        %v1891 = vadd.f32 %v1597, %v1890
        %v1892 = vpop.f32.mrf.mxu0
        %v1893 = vadd.f32 %v1597, %v1892
        %1894 = vmatmul.bf16.gmra.mxu0 %v1556
        %v1895 = vpop.f32.mrf.mxu0
        %v1896 = vadd.f32 %v1597, %v1895
        %v1897 = vpop.f32.mrf.mxu0
        %v1898 = vadd.f32 %v1597, %v1897
        %1899 = vmatmul.bf16.gmra.mxu0 %v1557
        %v1900 = vpop.f32.mrf.mxu0
        %v1901 = vadd.f32 %v1597, %v1900
        %v1902 = vpop.f32.mrf.mxu0
        %v1903 = vadd.f32 %v1597, %v1902
        %1904 = vmatmul.bf16.gmra.mxu0 %v1558
        %v1905 = vpop.f32.mrf.mxu0
        %v1906 = vadd.f32 %v1597, %v1905
        %v1907 = vpop.f32.mrf.mxu0
        %v1908 = vadd.f32 %v1597, %v1907
        %1909 = vmatmul.bf16.gmra.mxu0 %v1559
        %v1910 = vpop.f32.mrf.mxu0
        %v1911 = vadd.f32 %v1597, %v1910
        %v1912 = vpop.f32.mrf.mxu0
        %v1913 = vadd.f32 %v1597, %v1912
        %1914 = vmatmul.bf16.gmra.mxu0 %v1560
        %v1915 = vpop.f32.mrf.mxu0
        %v1916 = vadd.f32 %v1597, %v1915
        %v1917 = vpop.f32.mrf.mxu0
        %v1918 = vadd.f32 %v1597, %v1917
        %1919 = vmatmul.bf16.gmra.mxu0 %v1561
        %v1920 = vpop.f32.mrf.mxu0
        %v1921 = vadd.f32 %v1597, %v1920
        %v1922 = vpop.f32.mrf.mxu0
        %v1923 = vadd.f32 %v1597, %v1922
        %1924 = vmatmul.bf16.gmra.mxu0 %v1562
        %v1925 = vpop.f32.mrf.mxu0
        %v1926 = vadd.f32 %v1597, %v1925
        %v1927 = vpop.f32.mrf.mxu0
        %v1928 = vadd.f32 %v1597, %v1927
        %1929 = vmatmul.bf16.gmra.mxu0 %v1563
        %v1930 = vpop.f32.mrf.mxu0
        %v1931 = vadd.f32 %v1597, %v1930
        %v1932 = vpop.f32.mrf.mxu0
        %v1933 = vadd.f32 %v1597, %v1932
        %1934 = vmatmul.bf16.gmra.mxu0 %v1564
        %v1935 = vpop.f32.mrf.mxu0
        %v1936 = vadd.f32 %v1597, %v1935
        %v1937 = vpop.f32.mrf.mxu0
        %v1938 = vadd.f32 %v1597, %v1937
        %1939 = vmatmul.bf16.gmra.mxu0 %v1565
        %v1940 = vpop.f32.mrf.mxu0
        %v1941 = vadd.f32 %v1597, %v1940
        %v1942 = vpop.f32.mrf.mxu0
        %v1943 = vadd.f32 %v1597, %v1942
        %1944 = vmatmul.bf16.gmra.mxu0 %v1566
        %v1945 = vpop.f32.mrf.mxu0
        %v1946 = vadd.f32 %v1597, %v1945
        %v1947 = vpop.f32.mrf.mxu0
        %v1948 = vadd.f32 %v1597, %v1947
        %1949 = vmatmul.bf16.gmra.mxu0 %v1567
        %v1950 = vpop.f32.mrf.mxu0
        %v1951 = vadd.f32 %v1597, %v1950
        %v1952 = vpop.f32.mrf.mxu0
        %v1953 = vadd.f32 %v1597, %v1952
        %1954 = vmatmul.bf16.gmra.mxu0 %v1568
        %v1955 = vpop.f32.mrf.mxu0
        %v1956 = vadd.f32 %v1597, %v1955
        %v1957 = vpop.f32.mrf.mxu0
        %v1958 = vadd.f32 %v1597, %v1957
        %1959 = vmatmul.bf16.gmra.mxu0 %v1569
        %v1960 = vpop.f32.mrf.mxu0
        %v1961 = vadd.f32 %v1597, %v1960
        %v1962 = vpop.f32.mrf.mxu0
        %v1963 = vadd.f32 %v1597, %v1962
        %1964 = vmatmul.bf16.gmra.mxu0 %v1570
        %v1965 = vpop.f32.mrf.mxu0
        %v1966 = vadd.f32 %v1597, %v1965
        %v1967 = vpop.f32.mrf.mxu0
        %v1968 = vadd.f32 %v1597, %v1967
        %1969 = vmatmul.bf16.gmra.mxu0 %v1571
        %v1970 = vpop.f32.mrf.mxu0
        %v1971 = vadd.f32 %v1597, %v1970
        %v1972 = vpop.f32.mrf.mxu0
        %v1973 = vadd.f32 %v1597, %v1972
        %1974 = vmatmul.bf16.gmra.mxu0 %v1572
        %v1975 = vpop.f32.mrf.mxu0
        %v1976 = vadd.f32 %v1597, %v1975
        %v1977 = vpop.f32.mrf.mxu0
        %v1978 = vadd.f32 %v1597, %v1977
        %1979 = vmatmul.bf16.gmra.mxu0 %v1573
        %v1980 = vpop.f32.mrf.mxu0
        %v1981 = vadd.f32 %v1597, %v1980
        %v1982 = vpop.f32.mrf.mxu0
        %v1983 = vadd.f32 %v1597, %v1982
        %1984 = vmatmul.bf16.gmra.mxu0 %v1574
        %v1985 = vpop.f32.mrf.mxu0
        %v1986 = vadd.f32 %v1597, %v1985
        %v1987 = vpop.f32.mrf.mxu0
        %v1988 = vadd.f32 %v1597, %v1987
        %1989 = vmatmul.bf16.gmra.mxu0 %v1575
        %v1990 = vpop.f32.mrf.mxu0
        %v1991 = vadd.f32 %v1597, %v1990
        %v1992 = vpop.f32.mrf.mxu0
        %v1993 = vadd.f32 %v1597, %v1992
        %1994 = vmatmul.bf16.gmra.mxu0 %v1576
        %v1995 = vpop.f32.mrf.mxu0
        %v1996 = vadd.f32 %v1597, %v1995
        %v1997 = vpop.f32.mrf.mxu0
        %v1998 = vadd.f32 %v1597, %v1997
        %1999 = vmatmul.bf16.gmra.mxu0 %v1577
        %v2000 = vpop.f32.mrf.mxu0
        %v2001 = vadd.f32 %v1597, %v2000
        %v2002 = vpop.f32.mrf.mxu0
        %v2003 = vadd.f32 %v1597, %v2002
        %2004 = vmatmul.bf16.gmra.mxu0 %v1578
        %v2005 = vpop.f32.mrf.mxu0
        %v2006 = vadd.f32 %v1597, %v2005
        %v2007 = vpop.f32.mrf.mxu0
        %v2008 = vadd.f32 %v1597, %v2007
        %2009 = vdwg.mxu0
        %2010 = vmatpush.bf16.msra.mxu0 %v1664
        %2011 = vmatpush.bf16.msra.mxu0 %v1662
        %2012 = vmatpush.bf16.msra.mxu0 %v1660
        %2013 = vmatpush.bf16.msra.mxu0 %v1658
        %2014 = vmatpush.bf16.msra.mxu0 %v1656
        %2015 = vmatpush.bf16.msra.mxu0 %v1654
        %2016 = vmatpush.bf16.msra.mxu0 %v1652
        %2017 = vmatpush.bf16.msra.mxu0 %v1650
        %2018 = vmatmul.bf16.gmra.mxu0 %v1515
        %v2019 = vpop.f32.mrf.mxu0
        %v2020 = vadd.f32 %v1598, %v2019
        %v2021 = vpop.f32.mrf.mxu0
        %v2022 = vadd.f32 %v1598, %v2021
        %2023 = vmatmul.bf16.gmra.mxu0 %v1516
        %v2024 = vpop.f32.mrf.mxu0
        %v2025 = vadd.f32 %v1598, %v2024
        %v2026 = vpop.f32.mrf.mxu0
        %v2027 = vadd.f32 %v1598, %v2026
        %2028 = vmatmul.bf16.gmra.mxu0 %v1517
        %v2029 = vpop.f32.mrf.mxu0
        %v2030 = vadd.f32 %v1598, %v2029
        %v2031 = vpop.f32.mrf.mxu0
        %v2032 = vadd.f32 %v1598, %v2031
        %2033 = vmatmul.bf16.gmra.mxu0 %v1518
        %v2034 = vpop.f32.mrf.mxu0
        %v2035 = vadd.f32 %v1598, %v2034
        %v2036 = vpop.f32.mrf.mxu0
        %v2037 = vadd.f32 %v1598, %v2036
        %2038 = vmatmul.bf16.gmra.mxu0 %v1519
        %v2039 = vpop.f32.mrf.mxu0
        %v2040 = vadd.f32 %v1598, %v2039
        %v2041 = vpop.f32.mrf.mxu0
        %v2042 = vadd.f32 %v1598, %v2041
        %2043 = vmatmul.bf16.gmra.mxu0 %v1520
        %v2044 = vpop.f32.mrf.mxu0
        %v2045 = vadd.f32 %v1598, %v2044
        %v2046 = vpop.f32.mrf.mxu0
        %v2047 = vadd.f32 %v1598, %v2046
        %2048 = vmatmul.bf16.gmra.mxu0 %v1521
        %v2049 = vpop.f32.mrf.mxu0
        %v2050 = vadd.f32 %v1598, %v2049
        %v2051 = vpop.f32.mrf.mxu0
        %v2052 = vadd.f32 %v1598, %v2051
        %2053 = vmatmul.bf16.gmra.mxu0 %v1522
        %v2054 = vpop.f32.mrf.mxu0
        %v2055 = vadd.f32 %v1598, %v2054
        %v2056 = vpop.f32.mrf.mxu0
        %v2057 = vadd.f32 %v1598, %v2056
        %2058 = vmatmul.bf16.gmra.mxu0 %v1523
        %v2059 = vpop.f32.mrf.mxu0
        %v2060 = vadd.f32 %v1598, %v2059
        %v2061 = vpop.f32.mrf.mxu0
        %v2062 = vadd.f32 %v1598, %v2061
        %2063 = vmatmul.bf16.gmra.mxu0 %v1524
        %v2064 = vpop.f32.mrf.mxu0
        %v2065 = vadd.f32 %v1598, %v2064
        %v2066 = vpop.f32.mrf.mxu0
        %v2067 = vadd.f32 %v1598, %v2066
        %2068 = vmatmul.bf16.gmra.mxu0 %v1525
        %v2069 = vpop.f32.mrf.mxu0
        %v2070 = vadd.f32 %v1598, %v2069
        %v2071 = vpop.f32.mrf.mxu0
        %v2072 = vadd.f32 %v1598, %v2071
        %2073 = vmatmul.bf16.gmra.mxu0 %v1526
        %v2074 = vpop.f32.mrf.mxu0
        %v2075 = vadd.f32 %v1598, %v2074
        %v2076 = vpop.f32.mrf.mxu0
        %v2077 = vadd.f32 %v1598, %v2076
        %2078 = vmatmul.bf16.gmra.mxu0 %v1527
        %v2079 = vpop.f32.mrf.mxu0
        %v2080 = vadd.f32 %v1598, %v2079
        %v2081 = vpop.f32.mrf.mxu0
        %v2082 = vadd.f32 %v1598, %v2081
        %2083 = vmatmul.bf16.gmra.mxu0 %v1528
        %v2084 = vpop.f32.mrf.mxu0
        %v2085 = vadd.f32 %v1598, %v2084
        %v2086 = vpop.f32.mrf.mxu0
        %v2087 = vadd.f32 %v1598, %v2086
        %2088 = vmatmul.bf16.gmra.mxu0 %v1529
        %v2089 = vpop.f32.mrf.mxu0
        %v2090 = vadd.f32 %v1598, %v2089
        %v2091 = vpop.f32.mrf.mxu0
        %v2092 = vadd.f32 %v1598, %v2091
        %2093 = vmatmul.bf16.gmra.mxu0 %v1530
        %v2094 = vpop.f32.mrf.mxu0
        %v2095 = vadd.f32 %v1598, %v2094
        %v2096 = vpop.f32.mrf.mxu0
        %v2097 = vadd.f32 %v1598, %v2096
        %2098 = vmatmul.bf16.gmra.mxu0 %v1531
        %v2099 = vpop.f32.mrf.mxu0
        %v2100 = vadd.f32 %v1598, %v2099
        %v2101 = vpop.f32.mrf.mxu0
        %v2102 = vadd.f32 %v1598, %v2101
        %2103 = vmatmul.bf16.gmra.mxu0 %v1532
        %v2104 = vpop.f32.mrf.mxu0
        %v2105 = vadd.f32 %v1598, %v2104
        %v2106 = vpop.f32.mrf.mxu0
        %v2107 = vadd.f32 %v1598, %v2106
        %2108 = vmatmul.bf16.gmra.mxu0 %v1533
        %v2109 = vpop.f32.mrf.mxu0
        %v2110 = vadd.f32 %v1598, %v2109
        %v2111 = vpop.f32.mrf.mxu0
        %v2112 = vadd.f32 %v1598, %v2111
        %2113 = vmatmul.bf16.gmra.mxu0 %v1534
        %v2114 = vpop.f32.mrf.mxu0
        %v2115 = vadd.f32 %v1598, %v2114
        %v2116 = vpop.f32.mrf.mxu0
        %v2117 = vadd.f32 %v1598, %v2116
        %2118 = vmatmul.bf16.gmra.mxu0 %v1535
        %v2119 = vpop.f32.mrf.mxu0
        %v2120 = vadd.f32 %v1598, %v2119
        %v2121 = vpop.f32.mrf.mxu0
        %v2122 = vadd.f32 %v1598, %v2121
        %2123 = vmatmul.bf16.gmra.mxu0 %v1536
        %v2124 = vpop.f32.mrf.mxu0
        %v2125 = vadd.f32 %v1598, %v2124
        %v2126 = vpop.f32.mrf.mxu0
        %v2127 = vadd.f32 %v1598, %v2126
        %2128 = vmatmul.bf16.gmra.mxu0 %v1537
        %v2129 = vpop.f32.mrf.mxu0
        %v2130 = vadd.f32 %v1598, %v2129
        %v2131 = vpop.f32.mrf.mxu0
        %v2132 = vadd.f32 %v1598, %v2131
        %2133 = vmatmul.bf16.gmra.mxu0 %v1538
        %v2134 = vpop.f32.mrf.mxu0
        %v2135 = vadd.f32 %v1598, %v2134
        %v2136 = vpop.f32.mrf.mxu0
        %v2137 = vadd.f32 %v1598, %v2136
        %2138 = vmatmul.bf16.gmra.mxu0 %v1539
        %v2139 = vpop.f32.mrf.mxu0
        %v2140 = vadd.f32 %v1598, %v2139
        %v2141 = vpop.f32.mrf.mxu0
        %v2142 = vadd.f32 %v1598, %v2141
        %2143 = vmatmul.bf16.gmra.mxu0 %v1540
        %v2144 = vpop.f32.mrf.mxu0
        %v2145 = vadd.f32 %v1598, %v2144
        %v2146 = vpop.f32.mrf.mxu0
        %v2147 = vadd.f32 %v1598, %v2146
        %2148 = vmatmul.bf16.gmra.mxu0 %v1541
        %v2149 = vpop.f32.mrf.mxu0
        %v2150 = vadd.f32 %v1598, %v2149
        %v2151 = vpop.f32.mrf.mxu0
        %v2152 = vadd.f32 %v1598, %v2151
        %2153 = vmatmul.bf16.gmra.mxu0 %v1542
        %v2154 = vpop.f32.mrf.mxu0
        %v2155 = vadd.f32 %v1598, %v2154
        %v2156 = vpop.f32.mrf.mxu0
        %v2157 = vadd.f32 %v1598, %v2156
        %2158 = vmatmul.bf16.gmra.mxu0 %v1543
        %v2159 = vpop.f32.mrf.mxu0
        %v2160 = vadd.f32 %v1598, %v2159
        %v2161 = vpop.f32.mrf.mxu0
        %v2162 = vadd.f32 %v1598, %v2161
        %2163 = vmatmul.bf16.gmra.mxu0 %v1544
        %v2164 = vpop.f32.mrf.mxu0
        %v2165 = vadd.f32 %v1598, %v2164
        %v2166 = vpop.f32.mrf.mxu0
        %v2167 = vadd.f32 %v1598, %v2166
        %2168 = vmatmul.bf16.gmra.mxu0 %v1545
        %v2169 = vpop.f32.mrf.mxu0
        %v2170 = vadd.f32 %v1598, %v2169
        %v2171 = vpop.f32.mrf.mxu0
        %v2172 = vadd.f32 %v1598, %v2171
        %2173 = vmatmul.bf16.gmra.mxu0 %v1546
        %v2174 = vpop.f32.mrf.mxu0
        %v2175 = vadd.f32 %v1598, %v2174
        %v2176 = vpop.f32.mrf.mxu0
        %v2177 = vadd.f32 %v1598, %v2176
        %2178 = vmatmul.bf16.gmra.mxu0 %v1547
        %v2179 = vpop.f32.mrf.mxu0
        %v2180 = vadd.f32 %v1598, %v2179
        %v2181 = vpop.f32.mrf.mxu0
        %v2182 = vadd.f32 %v1598, %v2181
        %2183 = vmatmul.bf16.gmra.mxu0 %v1548
        %v2184 = vpop.f32.mrf.mxu0
        %v2185 = vadd.f32 %v1598, %v2184
        %v2186 = vpop.f32.mrf.mxu0
        %v2187 = vadd.f32 %v1598, %v2186
        %2188 = vmatmul.bf16.gmra.mxu0 %v1549
        %v2189 = vpop.f32.mrf.mxu0
        %v2190 = vadd.f32 %v1598, %v2189
        %v2191 = vpop.f32.mrf.mxu0
        %v2192 = vadd.f32 %v1598, %v2191
        %2193 = vmatmul.bf16.gmra.mxu0 %v1550
        %v2194 = vpop.f32.mrf.mxu0
        %v2195 = vadd.f32 %v1598, %v2194
        %v2196 = vpop.f32.mrf.mxu0
        %v2197 = vadd.f32 %v1598, %v2196
        %2198 = vmatmul.bf16.gmra.mxu0 %v1551
        %v2199 = vpop.f32.mrf.mxu0
        %v2200 = vadd.f32 %v1598, %v2199
        %v2201 = vpop.f32.mrf.mxu0
        %v2202 = vadd.f32 %v1598, %v2201
        %2203 = vmatmul.bf16.gmra.mxu0 %v1552
        %v2204 = vpop.f32.mrf.mxu0
        %v2205 = vadd.f32 %v1598, %v2204
        %v2206 = vpop.f32.mrf.mxu0
        %v2207 = vadd.f32 %v1598, %v2206
        %2208 = vmatmul.bf16.gmra.mxu0 %v1553
        %v2209 = vpop.f32.mrf.mxu0
        %v2210 = vadd.f32 %v1598, %v2209
        %v2211 = vpop.f32.mrf.mxu0
        %v2212 = vadd.f32 %v1598, %v2211
        %2213 = vmatmul.bf16.gmra.mxu0 %v1554
        %v2214 = vpop.f32.mrf.mxu0
        %v2215 = vadd.f32 %v1598, %v2214
        %v2216 = vpop.f32.mrf.mxu0
        %v2217 = vadd.f32 %v1598, %v2216
        %2218 = vmatmul.bf16.gmra.mxu0 %v1555
        %v2219 = vpop.f32.mrf.mxu0
        %v2220 = vadd.f32 %v1598, %v2219
        %v2221 = vpop.f32.mrf.mxu0
        %v2222 = vadd.f32 %v1598, %v2221
        %2223 = vmatmul.bf16.gmra.mxu0 %v1556
        %v2224 = vpop.f32.mrf.mxu0
        %v2225 = vadd.f32 %v1598, %v2224
        %v2226 = vpop.f32.mrf.mxu0
        %v2227 = vadd.f32 %v1598, %v2226
        %2228 = vmatmul.bf16.gmra.mxu0 %v1557
        %v2229 = vpop.f32.mrf.mxu0
        %v2230 = vadd.f32 %v1598, %v2229
        %v2231 = vpop.f32.mrf.mxu0
        %v2232 = vadd.f32 %v1598, %v2231
        %2233 = vmatmul.bf16.gmra.mxu0 %v1558
        %v2234 = vpop.f32.mrf.mxu0
        %v2235 = vadd.f32 %v1598, %v2234
        %v2236 = vpop.f32.mrf.mxu0
        %v2237 = vadd.f32 %v1598, %v2236
        %2238 = vmatmul.bf16.gmra.mxu0 %v1559
        %v2239 = vpop.f32.mrf.mxu0
        %v2240 = vadd.f32 %v1598, %v2239
        %v2241 = vpop.f32.mrf.mxu0
        %v2242 = vadd.f32 %v1598, %v2241
        %2243 = vmatmul.bf16.gmra.mxu0 %v1560
        %v2244 = vpop.f32.mrf.mxu0
        %v2245 = vadd.f32 %v1598, %v2244
        %v2246 = vpop.f32.mrf.mxu0
        %v2247 = vadd.f32 %v1598, %v2246
        %2248 = vmatmul.bf16.gmra.mxu0 %v1561
        %v2249 = vpop.f32.mrf.mxu0
        %v2250 = vadd.f32 %v1598, %v2249
        %v2251 = vpop.f32.mrf.mxu0
        %v2252 = vadd.f32 %v1598, %v2251
        %2253 = vmatmul.bf16.gmra.mxu0 %v1562
        %v2254 = vpop.f32.mrf.mxu0
        %v2255 = vadd.f32 %v1598, %v2254
        %v2256 = vpop.f32.mrf.mxu0
        %v2257 = vadd.f32 %v1598, %v2256
        %2258 = vmatmul.bf16.gmra.mxu0 %v1563
        %v2259 = vpop.f32.mrf.mxu0
        %v2260 = vadd.f32 %v1598, %v2259
        %v2261 = vpop.f32.mrf.mxu0
        %v2262 = vadd.f32 %v1598, %v2261
        %2263 = vmatmul.bf16.gmra.mxu0 %v1564
        %v2264 = vpop.f32.mrf.mxu0
        %v2265 = vadd.f32 %v1598, %v2264
        %v2266 = vpop.f32.mrf.mxu0
        %v2267 = vadd.f32 %v1598, %v2266
        %2268 = vmatmul.bf16.gmra.mxu0 %v1565
        %v2269 = vpop.f32.mrf.mxu0
        %v2270 = vadd.f32 %v1598, %v2269
        %v2271 = vpop.f32.mrf.mxu0
        %v2272 = vadd.f32 %v1598, %v2271
        %2273 = vmatmul.bf16.gmra.mxu0 %v1566
        %v2274 = vpop.f32.mrf.mxu0
        %v2275 = vadd.f32 %v1598, %v2274
        %v2276 = vpop.f32.mrf.mxu0
        %v2277 = vadd.f32 %v1598, %v2276
        %2278 = vmatmul.bf16.gmra.mxu0 %v1567
        %v2279 = vpop.f32.mrf.mxu0
        %v2280 = vadd.f32 %v1598, %v2279
        %v2281 = vpop.f32.mrf.mxu0
        %v2282 = vadd.f32 %v1598, %v2281
        %2283 = vmatmul.bf16.gmra.mxu0 %v1568
        %v2284 = vpop.f32.mrf.mxu0
        %v2285 = vadd.f32 %v1598, %v2284
        %v2286 = vpop.f32.mrf.mxu0
        %v2287 = vadd.f32 %v1598, %v2286
        %2288 = vmatmul.bf16.gmra.mxu0 %v1569
        %v2289 = vpop.f32.mrf.mxu0
        %v2290 = vadd.f32 %v1598, %v2289
        %v2291 = vpop.f32.mrf.mxu0
        %v2292 = vadd.f32 %v1598, %v2291
        %2293 = vmatmul.bf16.gmra.mxu0 %v1570
        %v2294 = vpop.f32.mrf.mxu0
        %v2295 = vadd.f32 %v1598, %v2294
        %v2296 = vpop.f32.mrf.mxu0
        %v2297 = vadd.f32 %v1598, %v2296
        %2298 = vmatmul.bf16.gmra.mxu0 %v1571
        %v2299 = vpop.f32.mrf.mxu0
        %v2300 = vadd.f32 %v1598, %v2299
        %v2301 = vpop.f32.mrf.mxu0
        %v2302 = vadd.f32 %v1598, %v2301
        %2303 = vmatmul.bf16.gmra.mxu0 %v1572
        %v2304 = vpop.f32.mrf.mxu0
        %v2305 = vadd.f32 %v1598, %v2304
        %v2306 = vpop.f32.mrf.mxu0
        %v2307 = vadd.f32 %v1598, %v2306
        %2308 = vmatmul.bf16.gmra.mxu0 %v1573
        %v2309 = vpop.f32.mrf.mxu0
        %v2310 = vadd.f32 %v1598, %v2309
        %v2311 = vpop.f32.mrf.mxu0
        %v2312 = vadd.f32 %v1598, %v2311
        %2313 = vmatmul.bf16.gmra.mxu0 %v1574
        %v2314 = vpop.f32.mrf.mxu0
        %v2315 = vadd.f32 %v1598, %v2314
        %v2316 = vpop.f32.mrf.mxu0
        %v2317 = vadd.f32 %v1598, %v2316
        %2318 = vmatmul.bf16.gmra.mxu0 %v1575
        %v2319 = vpop.f32.mrf.mxu0
        %v2320 = vadd.f32 %v1598, %v2319
        %v2321 = vpop.f32.mrf.mxu0
        %v2322 = vadd.f32 %v1598, %v2321
        %2323 = vmatmul.bf16.gmra.mxu0 %v1576
        %v2324 = vpop.f32.mrf.mxu0
        %v2325 = vadd.f32 %v1598, %v2324
        %v2326 = vpop.f32.mrf.mxu0
        %v2327 = vadd.f32 %v1598, %v2326
        %2328 = vmatmul.bf16.gmra.mxu0 %v1577
        %v2329 = vpop.f32.mrf.mxu0
        %v2330 = vadd.f32 %v1598, %v2329
        %v2331 = vpop.f32.mrf.mxu0
        %v2332 = vadd.f32 %v1598, %v2331
        %2333 = vmatmul.bf16.gmra.mxu0 %v1578
        %v2334 = vpop.f32.mrf.mxu0
        %v2335 = vadd.f32 %v1598, %v2334
        %v2336 = vpop.f32.mrf.mxu0
        %v2337 = vadd.f32 %v1598, %v2336
        %2338 = vdwg.mxu0
        %v2339 = vmax.f32 %v1691, 0.0
        %v2340 = vmax.f32 %v2020, 0.0
        %v2341 = vmax.f32 %v1693, 0.0
        %v2342 = vmax.f32 %v2022, 0.0
        %v2343 = vmax.f32 %v1696, 0.0
        %v2344 = vmax.f32 %v2025, 0.0
        %v2345 = vmax.f32 %v1698, 0.0
        %v2346 = vmax.f32 %v2027, 0.0
        %v2347 = vmax.f32 %v1701, 0.0
        %v2348 = vmax.f32 %v2030, 0.0
        %v2349 = vmax.f32 %v1703, 0.0
        %v2350 = vmax.f32 %v2032, 0.0
        %v2351 = vmax.f32 %v1706, 0.0
        %v2352 = vmax.f32 %v2035, 0.0
        %v2353 = vmax.f32 %v1708, 0.0
        %v2354 = vmax.f32 %v2037, 0.0
        %v2355 = vmax.f32 %v1711, 0.0
        %v2356 = vmax.f32 %v2040, 0.0
        %v2357 = vmax.f32 %v1713, 0.0
        %v2358 = vmax.f32 %v2042, 0.0
        %v2359 = vmax.f32 %v1716, 0.0
        %v2360 = vmax.f32 %v2045, 0.0
        %v2361 = vmax.f32 %v1718, 0.0
        %v2362 = vmax.f32 %v2047, 0.0
        %v2363 = vmax.f32 %v1721, 0.0
        %v2364 = vmax.f32 %v2050, 0.0
        %v2365 = vmax.f32 %v1723, 0.0
        %v2366 = vmax.f32 %v2052, 0.0
        %v2367 = vmax.f32 %v1726, 0.0
        %v2368 = vmax.f32 %v2055, 0.0
        %v2369 = vmax.f32 %v1728, 0.0
        %v2370 = vmax.f32 %v2057, 0.0
        %v2371 = vmax.f32 %v1731, 0.0
        %v2372 = vmax.f32 %v2060, 0.0
        %v2373 = vmax.f32 %v1733, 0.0
        %v2374 = vmax.f32 %v2062, 0.0
        %v2375 = vmax.f32 %v1736, 0.0
        %v2376 = vmax.f32 %v2065, 0.0
        %v2377 = vmax.f32 %v1738, 0.0
        %v2378 = vmax.f32 %v2067, 0.0
        %v2379 = vmax.f32 %v1741, 0.0
        %v2380 = vmax.f32 %v2070, 0.0
        %v2381 = vmax.f32 %v1743, 0.0
        %v2382 = vmax.f32 %v2072, 0.0
        %v2383 = vmax.f32 %v1746, 0.0
        %v2384 = vmax.f32 %v2075, 0.0
        %v2385 = vmax.f32 %v1748, 0.0
        %v2386 = vmax.f32 %v2077, 0.0
        %v2387 = vmax.f32 %v1751, 0.0
        %v2388 = vmax.f32 %v2080, 0.0
        %v2389 = vmax.f32 %v1753, 0.0
        %v2390 = vmax.f32 %v2082, 0.0
        %v2391 = vmax.f32 %v1756, 0.0
        %v2392 = vmax.f32 %v2085, 0.0
        %v2393 = vmax.f32 %v1758, 0.0
        %v2394 = vmax.f32 %v2087, 0.0
        %v2395 = vmax.f32 %v1761, 0.0
        %v2396 = vmax.f32 %v2090, 0.0
        %v2397 = vmax.f32 %v1763, 0.0
        %v2398 = vmax.f32 %v2092, 0.0
        %v2399 = vmax.f32 %v1766, 0.0
        %v2400 = vmax.f32 %v2095, 0.0
        %v2401 = vmax.f32 %v1768, 0.0
        %v2402 = vmax.f32 %v2097, 0.0
        %v2403 = vmax.f32 %v1771, 0.0
        %v2404 = vmax.f32 %v2100, 0.0
        %v2405 = vmax.f32 %v1773, 0.0
        %v2406 = vmax.f32 %v2102, 0.0
        %v2407 = vmax.f32 %v1776, 0.0
        %v2408 = vmax.f32 %v2105, 0.0
        %v2409 = vmax.f32 %v1778, 0.0
        %v2410 = vmax.f32 %v2107, 0.0
        %v2411 = vmax.f32 %v1781, 0.0
        %v2412 = vmax.f32 %v2110, 0.0
        %v2413 = vmax.f32 %v1783, 0.0
        %v2414 = vmax.f32 %v2112, 0.0
        %v2415 = vmax.f32 %v1786, 0.0
        %v2416 = vmax.f32 %v2115, 0.0
        %v2417 = vmax.f32 %v1788, 0.0
        %v2418 = vmax.f32 %v2117, 0.0
        %v2419 = vmax.f32 %v1791, 0.0
        %v2420 = vmax.f32 %v2120, 0.0
        %v2421 = vmax.f32 %v1793, 0.0
        %v2422 = vmax.f32 %v2122, 0.0
        %v2423 = vmax.f32 %v1796, 0.0
        %v2424 = vmax.f32 %v2125, 0.0
        %v2425 = vmax.f32 %v1798, 0.0
        %v2426 = vmax.f32 %v2127, 0.0
        %v2427 = vmax.f32 %v1801, 0.0
        %v2428 = vmax.f32 %v2130, 0.0
        %v2429 = vmax.f32 %v1803, 0.0
        %v2430 = vmax.f32 %v2132, 0.0
        %v2431 = vmax.f32 %v1806, 0.0
        %v2432 = vmax.f32 %v2135, 0.0
        %v2433 = vmax.f32 %v1808, 0.0
        %v2434 = vmax.f32 %v2137, 0.0
        %v2435 = vmax.f32 %v1811, 0.0
        %v2436 = vmax.f32 %v2140, 0.0
        %v2437 = vmax.f32 %v1813, 0.0
        %v2438 = vmax.f32 %v2142, 0.0
        %v2439 = vmax.f32 %v1816, 0.0
        %v2440 = vmax.f32 %v2145, 0.0
        %v2441 = vmax.f32 %v1818, 0.0
        %v2442 = vmax.f32 %v2147, 0.0
        %v2443 = vmax.f32 %v1821, 0.0
        %v2444 = vmax.f32 %v2150, 0.0
        %v2445 = vmax.f32 %v1823, 0.0
        %v2446 = vmax.f32 %v2152, 0.0
        %v2447 = vmax.f32 %v1826, 0.0
        %v2448 = vmax.f32 %v2155, 0.0
        %v2449 = vmax.f32 %v1828, 0.0
        %v2450 = vmax.f32 %v2157, 0.0
        %v2451 = vmax.f32 %v1831, 0.0
        %v2452 = vmax.f32 %v2160, 0.0
        %v2453 = vmax.f32 %v1833, 0.0
        %v2454 = vmax.f32 %v2162, 0.0
        %v2455 = vmax.f32 %v1836, 0.0
        %v2456 = vmax.f32 %v2165, 0.0
        %v2457 = vmax.f32 %v1838, 0.0
        %v2458 = vmax.f32 %v2167, 0.0
        %v2459 = vmax.f32 %v1841, 0.0
        %v2460 = vmax.f32 %v2170, 0.0
        %v2461 = vmax.f32 %v1843, 0.0
        %v2462 = vmax.f32 %v2172, 0.0
        %v2463 = vmax.f32 %v1846, 0.0
        %v2464 = vmax.f32 %v2175, 0.0
        %v2465 = vmax.f32 %v1848, 0.0
        %v2466 = vmax.f32 %v2177, 0.0
        %v2467 = vmax.f32 %v1851, 0.0
        %v2468 = vmax.f32 %v2180, 0.0
        %v2469 = vmax.f32 %v1853, 0.0
        %v2470 = vmax.f32 %v2182, 0.0
        %v2471 = vmax.f32 %v1856, 0.0
        %v2472 = vmax.f32 %v2185, 0.0
        %v2473 = vmax.f32 %v1858, 0.0
        %v2474 = vmax.f32 %v2187, 0.0
        %v2475 = vmax.f32 %v1861, 0.0
        %v2476 = vmax.f32 %v2190, 0.0
        %v2477 = vmax.f32 %v1863, 0.0
        %v2478 = vmax.f32 %v2192, 0.0
        %v2479 = vmax.f32 %v1866, 0.0
        %v2480 = vmax.f32 %v2195, 0.0
        %v2481 = vmax.f32 %v1868, 0.0
        %v2482 = vmax.f32 %v2197, 0.0
        %v2483 = vmax.f32 %v1871, 0.0
        %v2484 = vmax.f32 %v2200, 0.0
        %v2485 = vmax.f32 %v1873, 0.0
        %v2486 = vmax.f32 %v2202, 0.0
        %v2487 = vmax.f32 %v1876, 0.0
        %v2488 = vmax.f32 %v2205, 0.0
        %v2489 = vmax.f32 %v1878, 0.0
        %v2490 = vmax.f32 %v2207, 0.0
        %v2491 = vmax.f32 %v1881, 0.0
        %v2492 = vmax.f32 %v2210, 0.0
        %v2493 = vmax.f32 %v1883, 0.0
        %v2494 = vmax.f32 %v2212, 0.0
        %v2495 = vmax.f32 %v1886, 0.0
        %v2496 = vmax.f32 %v2215, 0.0
        %v2497 = vmax.f32 %v1888, 0.0
        %v2498 = vmax.f32 %v2217, 0.0
        %v2499 = vmax.f32 %v1891, 0.0
        %v2500 = vmax.f32 %v2220, 0.0
        %v2501 = vmax.f32 %v1893, 0.0
        %v2502 = vmax.f32 %v2222, 0.0
        %v2503 = vmax.f32 %v1896, 0.0
        %v2504 = vmax.f32 %v2225, 0.0
        %v2505 = vmax.f32 %v1898, 0.0
        %v2506 = vmax.f32 %v2227, 0.0
        %v2507 = vmax.f32 %v1901, 0.0
        %v2508 = vmax.f32 %v2230, 0.0
        %v2509 = vmax.f32 %v1903, 0.0
        %v2510 = vmax.f32 %v2232, 0.0
        %v2511 = vmax.f32 %v1906, 0.0
        %v2512 = vmax.f32 %v2235, 0.0
        %v2513 = vmax.f32 %v1908, 0.0
        %v2514 = vmax.f32 %v2237, 0.0
        %v2515 = vmax.f32 %v1911, 0.0
        %v2516 = vmax.f32 %v2240, 0.0
        %v2517 = vmax.f32 %v1913, 0.0
        %v2518 = vmax.f32 %v2242, 0.0
        %v2519 = vmax.f32 %v1916, 0.0
        %v2520 = vmax.f32 %v2245, 0.0
        %v2521 = vmax.f32 %v1918, 0.0
        %v2522 = vmax.f32 %v2247, 0.0
        %v2523 = vmax.f32 %v1921, 0.0
        %v2524 = vmax.f32 %v2250, 0.0
        %v2525 = vmax.f32 %v1923, 0.0
        %v2526 = vmax.f32 %v2252, 0.0
        %v2527 = vmax.f32 %v1926, 0.0
        %v2528 = vmax.f32 %v2255, 0.0
        %v2529 = vmax.f32 %v1928, 0.0
        %v2530 = vmax.f32 %v2257, 0.0
        %v2531 = vmax.f32 %v1931, 0.0
        %v2532 = vmax.f32 %v2260, 0.0
        %v2533 = vmax.f32 %v1933, 0.0
        %v2534 = vmax.f32 %v2262, 0.0
        %v2535 = vmax.f32 %v1936, 0.0
        %v2536 = vmax.f32 %v2265, 0.0
        %v2537 = vmax.f32 %v1938, 0.0
        %v2538 = vmax.f32 %v2267, 0.0
        %v2539 = vmax.f32 %v1941, 0.0
        %v2540 = vmax.f32 %v2270, 0.0
        %v2541 = vmax.f32 %v1943, 0.0
        %v2542 = vmax.f32 %v2272, 0.0
        %v2543 = vmax.f32 %v1946, 0.0
        %v2544 = vmax.f32 %v2275, 0.0
        %v2545 = vmax.f32 %v1948, 0.0
        %v2546 = vmax.f32 %v2277, 0.0
        %v2547 = vmax.f32 %v1951, 0.0
        %v2548 = vmax.f32 %v2280, 0.0
        %v2549 = vmax.f32 %v1953, 0.0
        %v2550 = vmax.f32 %v2282, 0.0
        %v2551 = vmax.f32 %v1956, 0.0
        %v2552 = vmax.f32 %v2285, 0.0
        %v2553 = vmax.f32 %v1958, 0.0
        %v2554 = vmax.f32 %v2287, 0.0
        %v2555 = vmax.f32 %v1961, 0.0
        %v2556 = vmax.f32 %v2290, 0.0
        %v2557 = vmax.f32 %v1963, 0.0
        %v2558 = vmax.f32 %v2292, 0.0
        %v2559 = vmax.f32 %v1966, 0.0
        %v2560 = vmax.f32 %v2295, 0.0
        %v2561 = vmax.f32 %v1968, 0.0
        %v2562 = vmax.f32 %v2297, 0.0
        %v2563 = vmax.f32 %v1971, 0.0
        %v2564 = vmax.f32 %v2300, 0.0
        %v2565 = vmax.f32 %v1973, 0.0
        %v2566 = vmax.f32 %v2302, 0.0
        %v2567 = vmax.f32 %v1976, 0.0
        %v2568 = vmax.f32 %v2305, 0.0
        %v2569 = vmax.f32 %v1978, 0.0
        %v2570 = vmax.f32 %v2307, 0.0
        %v2571 = vmax.f32 %v1981, 0.0
        %v2572 = vmax.f32 %v2310, 0.0
        %v2573 = vmax.f32 %v1983, 0.0
        %v2574 = vmax.f32 %v2312, 0.0
        %v2575 = vmax.f32 %v1986, 0.0
        %v2576 = vmax.f32 %v2315, 0.0
        %v2577 = vmax.f32 %v1988, 0.0
        %v2578 = vmax.f32 %v2317, 0.0
        %v2579 = vmax.f32 %v1991, 0.0
        %v2580 = vmax.f32 %v2320, 0.0
        %v2581 = vmax.f32 %v1993, 0.0
        %v2582 = vmax.f32 %v2322, 0.0
        %v2583 = vmax.f32 %v1996, 0.0
        %v2584 = vmax.f32 %v2325, 0.0
        %v2585 = vmax.f32 %v1998, 0.0
        %v2586 = vmax.f32 %v2327, 0.0
        %v2587 = vmax.f32 %v2001, 0.0
        %v2588 = vmax.f32 %v2330, 0.0
        %v2589 = vmax.f32 %v2003, 0.0
        %v2590 = vmax.f32 %v2332, 0.0
        %v2591 = vmax.f32 %v2006, 0.0
        %v2592 = vmax.f32 %v2335, 0.0
        %v2593 = vmax.f32 %v2008, 0.0
        %v2594 = vmax.f32 %v2337, 0.0
        %v2595 = vmax.f32 %v2339, %v2341
        %v2596 = vmax.f32 %v2595, %v2343
        %v2597 = vmax.f32 %v2596, %v2345
        %v2598 = vmax.f32 %v2597, %v2347
        %v2599 = vmax.f32 %v2598, %v2349
        %v2600 = vmax.f32 %v2599, %v2351
        %v2601 = vmax.f32 %v2600, %v2353
        %v2602 = vmax.f32 %v2601, %v2355
        %v2603 = vmax.f32 %v2602, %v2357
        %v2604 = vmax.f32 %v2603, %v2359
        %v2605 = vmax.f32 %v2604, %v2361
        %v2606 = vmax.f32 %v2605, %v2363
        %v2607 = vmax.f32 %v2606, %v2365
        %v2608 = vmax.f32 %v2607, %v2367
        %v2609 = vmax.f32 %v2608, %v2369
        %v2610 = vrot.slane %v2609, 4
        %v2611 = vmax.f32 %v2609, %v2610
        %v2612 = vrot.slane %v2611, 2
        %v2613 = vmax.f32 %v2611, %v2612
        %v2614 = vrot.slane %v2613, 1
        %v2615 = vmax.f32 %v2613, %v2614
        %v2616 = vmax.f32 %v2340, %v2342
        %v2617 = vmax.f32 %v2616, %v2344
        %v2618 = vmax.f32 %v2617, %v2346
        %v2619 = vmax.f32 %v2618, %v2348
        %v2620 = vmax.f32 %v2619, %v2350
        %v2621 = vmax.f32 %v2620, %v2352
        %v2622 = vmax.f32 %v2621, %v2354
        %v2623 = vmax.f32 %v2622, %v2356
        %v2624 = vmax.f32 %v2623, %v2358
        %v2625 = vmax.f32 %v2624, %v2360
        %v2626 = vmax.f32 %v2625, %v2362
        %v2627 = vmax.f32 %v2626, %v2364
        %v2628 = vmax.f32 %v2627, %v2366
        %v2629 = vmax.f32 %v2628, %v2368
        %v2630 = vmax.f32 %v2629, %v2370
        %v2631 = vrot.slane %v2630, 4
        %v2632 = vmax.f32 %v2630, %v2631
        %v2633 = vrot.slane %v2632, 2
        %v2634 = vmax.f32 %v2632, %v2633
        %v2635 = vrot.slane %v2634, 1
        %v2636 = vmax.f32 %v2634, %v2635
        %v2637 = vmax.f32 %v2371, %v2373
        %v2638 = vmax.f32 %v2637, %v2375
        %v2639 = vmax.f32 %v2638, %v2377
        %v2640 = vmax.f32 %v2639, %v2379
        %v2641 = vmax.f32 %v2640, %v2381
        %v2642 = vmax.f32 %v2641, %v2383
        %v2643 = vmax.f32 %v2642, %v2385
        %v2644 = vmax.f32 %v2643, %v2387
        %v2645 = vmax.f32 %v2644, %v2389
        %v2646 = vmax.f32 %v2645, %v2391
        %v2647 = vmax.f32 %v2646, %v2393
        %v2648 = vmax.f32 %v2647, %v2395
        %v2649 = vmax.f32 %v2648, %v2397
        %v2650 = vmax.f32 %v2649, %v2399
        %v2651 = vmax.f32 %v2650, %v2401
        %v2652 = vrot.slane %v2651, 4
        %v2653 = vmax.f32 %v2651, %v2652
        %v2654 = vrot.slane %v2653, 2
        %v2655 = vmax.f32 %v2653, %v2654
        %v2656 = vrot.slane %v2655, 1
        %v2657 = vmax.f32 %v2655, %v2656
        %v2658 = vmax.f32 %v2372, %v2374
        %v2659 = vmax.f32 %v2658, %v2376
        %v2660 = vmax.f32 %v2659, %v2378
        %v2661 = vmax.f32 %v2660, %v2380
        %v2662 = vmax.f32 %v2661, %v2382
        %v2663 = vmax.f32 %v2662, %v2384
        %v2664 = vmax.f32 %v2663, %v2386
        %v2665 = vmax.f32 %v2664, %v2388
        %v2666 = vmax.f32 %v2665, %v2390
        %v2667 = vmax.f32 %v2666, %v2392
        %v2668 = vmax.f32 %v2667, %v2394
        %v2669 = vmax.f32 %v2668, %v2396
        %v2670 = vmax.f32 %v2669, %v2398
        %v2671 = vmax.f32 %v2670, %v2400
        %v2672 = vmax.f32 %v2671, %v2402
        %v2673 = vrot.slane %v2672, 4
        %v2674 = vmax.f32 %v2672, %v2673
        %v2675 = vrot.slane %v2674, 2
        %v2676 = vmax.f32 %v2674, %v2675
        %v2677 = vrot.slane %v2676, 1
        %v2678 = vmax.f32 %v2676, %v2677
        %v2679 = vmax.f32 %v2403, %v2405
        %v2680 = vmax.f32 %v2679, %v2407
        %v2681 = vmax.f32 %v2680, %v2409
        %v2682 = vmax.f32 %v2681, %v2411
        %v2683 = vmax.f32 %v2682, %v2413
        %v2684 = vmax.f32 %v2683, %v2415
        %v2685 = vmax.f32 %v2684, %v2417
        %v2686 = vmax.f32 %v2685, %v2419
        %v2687 = vmax.f32 %v2686, %v2421
        %v2688 = vmax.f32 %v2687, %v2423
        %v2689 = vmax.f32 %v2688, %v2425
        %v2690 = vmax.f32 %v2689, %v2427
        %v2691 = vmax.f32 %v2690, %v2429
        %v2692 = vmax.f32 %v2691, %v2431
        %v2693 = vmax.f32 %v2692, %v2433
        %v2694 = vrot.slane %v2693, 4
        %v2695 = vmax.f32 %v2693, %v2694
        %v2696 = vrot.slane %v2695, 2
        %v2697 = vmax.f32 %v2695, %v2696
        %v2698 = vrot.slane %v2697, 1
        %v2699 = vmax.f32 %v2697, %v2698
        %v2700 = vmax.f32 %v2404, %v2406
        %v2701 = vmax.f32 %v2700, %v2408
        %v2702 = vmax.f32 %v2701, %v2410
        %v2703 = vmax.f32 %v2702, %v2412
        %v2704 = vmax.f32 %v2703, %v2414
        %v2705 = vmax.f32 %v2704, %v2416
        %v2706 = vmax.f32 %v2705, %v2418
        %v2707 = vmax.f32 %v2706, %v2420
        %v2708 = vmax.f32 %v2707, %v2422
        %v2709 = vmax.f32 %v2708, %v2424
        %v2710 = vmax.f32 %v2709, %v2426
        %v2711 = vmax.f32 %v2710, %v2428
        %v2712 = vmax.f32 %v2711, %v2430
        %v2713 = vmax.f32 %v2712, %v2432
        %v2714 = vmax.f32 %v2713, %v2434
        %v2715 = vrot.slane %v2714, 4
        %v2716 = vmax.f32 %v2714, %v2715
        %v2717 = vrot.slane %v2716, 2
        %v2718 = vmax.f32 %v2716, %v2717
        %v2719 = vrot.slane %v2718, 1
        %v2720 = vmax.f32 %v2718, %v2719
        %v2721 = vmax.f32 %v2435, %v2437
        %v2722 = vmax.f32 %v2721, %v2439
        %v2723 = vmax.f32 %v2722, %v2441
        %v2724 = vmax.f32 %v2723, %v2443
        %v2725 = vmax.f32 %v2724, %v2445
        %v2726 = vmax.f32 %v2725, %v2447
        %v2727 = vmax.f32 %v2726, %v2449
        %v2728 = vmax.f32 %v2727, %v2451
        %v2729 = vmax.f32 %v2728, %v2453
        %v2730 = vmax.f32 %v2729, %v2455
        %v2731 = vmax.f32 %v2730, %v2457
        %v2732 = vmax.f32 %v2731, %v2459
        %v2733 = vmax.f32 %v2732, %v2461
        %v2734 = vmax.f32 %v2733, %v2463
        %v2735 = vmax.f32 %v2734, %v2465
        %v2736 = vrot.slane %v2735, 4
        %v2737 = vmax.f32 %v2735, %v2736
        %v2738 = vrot.slane %v2737, 2
        %v2739 = vmax.f32 %v2737, %v2738
        %v2740 = vrot.slane %v2739, 1
        %v2741 = vmax.f32 %v2739, %v2740
        %v2742 = vmax.f32 %v2436, %v2438
        %v2743 = vmax.f32 %v2742, %v2440
        %v2744 = vmax.f32 %v2743, %v2442
        %v2745 = vmax.f32 %v2744, %v2444
        %v2746 = vmax.f32 %v2745, %v2446
        %v2747 = vmax.f32 %v2746, %v2448
        %v2748 = vmax.f32 %v2747, %v2450
        %v2749 = vmax.f32 %v2748, %v2452
        %v2750 = vmax.f32 %v2749, %v2454
        %v2751 = vmax.f32 %v2750, %v2456
        %v2752 = vmax.f32 %v2751, %v2458
        %v2753 = vmax.f32 %v2752, %v2460
        %v2754 = vmax.f32 %v2753, %v2462
        %v2755 = vmax.f32 %v2754, %v2464
        %v2756 = vmax.f32 %v2755, %v2466
        %v2757 = vrot.slane %v2756, 4
        %v2758 = vmax.f32 %v2756, %v2757
        %v2759 = vrot.slane %v2758, 2
        %v2760 = vmax.f32 %v2758, %v2759
        %v2761 = vrot.slane %v2760, 1
        %v2762 = vmax.f32 %v2760, %v2761
        %v2763 = vmax.f32 %v2467, %v2469
        %v2764 = vmax.f32 %v2763, %v2471
        %v2765 = vmax.f32 %v2764, %v2473
        %v2766 = vmax.f32 %v2765, %v2475
        %v2767 = vmax.f32 %v2766, %v2477
        %v2768 = vmax.f32 %v2767, %v2479
        %v2769 = vmax.f32 %v2768, %v2481
        %v2770 = vmax.f32 %v2769, %v2483
        %v2771 = vmax.f32 %v2770, %v2485
        %v2772 = vmax.f32 %v2771, %v2487
        %v2773 = vmax.f32 %v2772, %v2489
        %v2774 = vmax.f32 %v2773, %v2491
        %v2775 = vmax.f32 %v2774, %v2493
        %v2776 = vmax.f32 %v2775, %v2495
        %v2777 = vmax.f32 %v2776, %v2497
        %v2778 = vrot.slane %v2777, 4
        %v2779 = vmax.f32 %v2777, %v2778
        %v2780 = vrot.slane %v2779, 2
        %v2781 = vmax.f32 %v2779, %v2780
        %v2782 = vrot.slane %v2781, 1
        %v2783 = vmax.f32 %v2781, %v2782
        %v2784 = vmax.f32 %v2468, %v2470
        %v2785 = vmax.f32 %v2784, %v2472
        %v2786 = vmax.f32 %v2785, %v2474
        %v2787 = vmax.f32 %v2786, %v2476
        %v2788 = vmax.f32 %v2787, %v2478
        %v2789 = vmax.f32 %v2788, %v2480
        %v2790 = vmax.f32 %v2789, %v2482
        %v2791 = vmax.f32 %v2790, %v2484
        %v2792 = vmax.f32 %v2791, %v2486
        %v2793 = vmax.f32 %v2792, %v2488
        %v2794 = vmax.f32 %v2793, %v2490
        %v2795 = vmax.f32 %v2794, %v2492
        %v2796 = vmax.f32 %v2795, %v2494
        %v2797 = vmax.f32 %v2796, %v2496
        %v2798 = vmax.f32 %v2797, %v2498
        %v2799 = vrot.slane %v2798, 4
        %v2800 = vmax.f32 %v2798, %v2799
        %v2801 = vrot.slane %v2800, 2
        %v2802 = vmax.f32 %v2800, %v2801
        %v2803 = vrot.slane %v2802, 1
        %v2804 = vmax.f32 %v2802, %v2803
        %v2805 = vmax.f32 %v2499, %v2501
        %v2806 = vmax.f32 %v2805, %v2503
        %v2807 = vmax.f32 %v2806, %v2505
        %v2808 = vmax.f32 %v2807, %v2507
        %v2809 = vmax.f32 %v2808, %v2509
        %v2810 = vmax.f32 %v2809, %v2511
        %v2811 = vmax.f32 %v2810, %v2513
        %v2812 = vmax.f32 %v2811, %v2515
        %v2813 = vmax.f32 %v2812, %v2517
        %v2814 = vmax.f32 %v2813, %v2519
        %v2815 = vmax.f32 %v2814, %v2521
        %v2816 = vmax.f32 %v2815, %v2523
        %v2817 = vmax.f32 %v2816, %v2525
        %v2818 = vmax.f32 %v2817, %v2527
        %v2819 = vmax.f32 %v2818, %v2529
        %v2820 = vrot.slane %v2819, 4
        %v2821 = vmax.f32 %v2819, %v2820
        %v2822 = vrot.slane %v2821, 2
        %v2823 = vmax.f32 %v2821, %v2822
        %v2824 = vrot.slane %v2823, 1
        %v2825 = vmax.f32 %v2823, %v2824
        %v2826 = vmax.f32 %v2500, %v2502
        %v2827 = vmax.f32 %v2826, %v2504
        %v2828 = vmax.f32 %v2827, %v2506
        %v2829 = vmax.f32 %v2828, %v2508
        %v2830 = vmax.f32 %v2829, %v2510
        %v2831 = vmax.f32 %v2830, %v2512
        %v2832 = vmax.f32 %v2831, %v2514
        %v2833 = vmax.f32 %v2832, %v2516
        %v2834 = vmax.f32 %v2833, %v2518
        %v2835 = vmax.f32 %v2834, %v2520
        %v2836 = vmax.f32 %v2835, %v2522
        %v2837 = vmax.f32 %v2836, %v2524
        %v2838 = vmax.f32 %v2837, %v2526
        %v2839 = vmax.f32 %v2838, %v2528
        %v2840 = vmax.f32 %v2839, %v2530
        %v2841 = vrot.slane %v2840, 4
        %v2842 = vmax.f32 %v2840, %v2841
        %v2843 = vrot.slane %v2842, 2
        %v2844 = vmax.f32 %v2842, %v2843
        %v2845 = vrot.slane %v2844, 1
        %v2846 = vmax.f32 %v2844, %v2845
        %v2847 = vmax.f32 %v2531, %v2533
        %v2848 = vmax.f32 %v2847, %v2535
        %v2849 = vmax.f32 %v2848, %v2537
        %v2850 = vmax.f32 %v2849, %v2539
        %v2851 = vmax.f32 %v2850, %v2541
        %v2852 = vmax.f32 %v2851, %v2543
        %v2853 = vmax.f32 %v2852, %v2545
        %v2854 = vmax.f32 %v2853, %v2547
        %v2855 = vmax.f32 %v2854, %v2549
        %v2856 = vmax.f32 %v2855, %v2551
        %v2857 = vmax.f32 %v2856, %v2553
        %v2858 = vmax.f32 %v2857, %v2555
        %v2859 = vmax.f32 %v2858, %v2557
        %v2860 = vmax.f32 %v2859, %v2559
        %v2861 = vmax.f32 %v2860, %v2561
        %v2862 = vrot.slane %v2861, 4
        %v2863 = vmax.f32 %v2861, %v2862
        %v2864 = vrot.slane %v2863, 2
        %v2865 = vmax.f32 %v2863, %v2864
        %v2866 = vrot.slane %v2865, 1
        %v2867 = vmax.f32 %v2865, %v2866
        %v2868 = vmax.f32 %v2532, %v2534
        %v2869 = vmax.f32 %v2868, %v2536
        %v2870 = vmax.f32 %v2869, %v2538
        %v2871 = vmax.f32 %v2870, %v2540
        %v2872 = vmax.f32 %v2871, %v2542
        %v2873 = vmax.f32 %v2872, %v2544
        %v2874 = vmax.f32 %v2873, %v2546
        %v2875 = vmax.f32 %v2874, %v2548
        %v2876 = vmax.f32 %v2875, %v2550
        %v2877 = vmax.f32 %v2876, %v2552
        %v2878 = vmax.f32 %v2877, %v2554
        %v2879 = vmax.f32 %v2878, %v2556
        %v2880 = vmax.f32 %v2879, %v2558
        %v2881 = vmax.f32 %v2880, %v2560
        %v2882 = vmax.f32 %v2881, %v2562
        %v2883 = vrot.slane %v2882, 4
        %v2884 = vmax.f32 %v2882, %v2883
        %v2885 = vrot.slane %v2884, 2
        %v2886 = vmax.f32 %v2884, %v2885
        %v2887 = vrot.slane %v2886, 1
        %v2888 = vmax.f32 %v2886, %v2887
        %v2889 = vmax.f32 %v2563, %v2565
        %v2890 = vmax.f32 %v2889, %v2567
        %v2891 = vmax.f32 %v2890, %v2569
        %v2892 = vmax.f32 %v2891, %v2571
        %v2893 = vmax.f32 %v2892, %v2573
        %v2894 = vmax.f32 %v2893, %v2575
        %v2895 = vmax.f32 %v2894, %v2577
        %v2896 = vmax.f32 %v2895, %v2579
        %v2897 = vmax.f32 %v2896, %v2581
        %v2898 = vmax.f32 %v2897, %v2583
        %v2899 = vmax.f32 %v2898, %v2585
        %v2900 = vmax.f32 %v2899, %v2587
        %v2901 = vmax.f32 %v2900, %v2589
        %v2902 = vmax.f32 %v2901, %v2591
        %v2903 = vmax.f32 %v2902, %v2593
        %v2904 = vrot.slane %v2903, 4
        %v2905 = vmax.f32 %v2903, %v2904
        %v2906 = vrot.slane %v2905, 2
        %v2907 = vmax.f32 %v2905, %v2906
        %v2908 = vrot.slane %v2907, 1
        %v2909 = vmax.f32 %v2907, %v2908
        %v2910 = vmax.f32 %v2564, %v2566
        %v2911 = vmax.f32 %v2910, %v2568
        %v2912 = vmax.f32 %v2911, %v2570
        %v2913 = vmax.f32 %v2912, %v2572
        %v2914 = vmax.f32 %v2913, %v2574
        %v2915 = vmax.f32 %v2914, %v2576
        %v2916 = vmax.f32 %v2915, %v2578
        %v2917 = vmax.f32 %v2916, %v2580
        %v2918 = vmax.f32 %v2917, %v2582
        %v2919 = vmax.f32 %v2918, %v2584
        %v2920 = vmax.f32 %v2919, %v2586
        %v2921 = vmax.f32 %v2920, %v2588
        %v2922 = vmax.f32 %v2921, %v2590
        %v2923 = vmax.f32 %v2922, %v2592
        %v2924 = vmax.f32 %v2923, %v2594
        %v2925 = vrot.slane %v2924, 4
        %v2926 = vmax.f32 %v2924, %v2925
        %v2927 = vrot.slane %v2926, 2
        %v2928 = vmax.f32 %v2926, %v2927
        %v2929 = vrot.slane %v2928, 1
        %v2930 = vmax.f32 %v2928, %v2929
        %v2931 = vpack.c.bf16 %v2615, %v2615
        %v2932 = vpack.c.bf16 %v2636, %v2636
        %v2933 = vpack.c.bf16 %v2657, %v2657
        %v2934 = vpack.c.bf16 %v2678, %v2678
        %v2935 = vpack.c.bf16 %v2699, %v2699
        %v2936 = vpack.c.bf16 %v2720, %v2720
        %v2937 = vpack.c.bf16 %v2741, %v2741
        %v2938 = vpack.c.bf16 %v2762, %v2762
        %v2939 = vpack.c.bf16 %v2783, %v2783
        %v2940 = vpack.c.bf16 %v2804, %v2804
        %v2941 = vpack.c.bf16 %v2825, %v2825
        %v2942 = vpack.c.bf16 %v2846, %v2846
        %v2943 = vpack.c.bf16 %v2867, %v2867
        %v2944 = vpack.c.bf16 %v2888, %v2888
        %v2945 = vpack.c.bf16 %v2909, %v2909
        %v2946 = vpack.c.bf16 %v2930, %v2930
        %v2947 = vld [vmem:[#allocation10] sm:$0xff]
        %v2948 = vld [vmem:[#allocation10 + $0x8] sm:$0xff]
        %v2949 = vld [vmem:[#allocation10 + $0x10] sm:$0xff]
        %v2950 = vld [vmem:[#allocation10 + $0x18] sm:$0xff]
        %v2951 = vld [vmem:[#allocation10 + $0x20] sm:$0xff]
        %v2952 = vld [vmem:[#allocation10 + $0x28] sm:$0xff]
        %v2953 = vld [vmem:[#allocation10 + $0x30] sm:$0xff]
        %v2954 = vld [vmem:[#allocation10 + $0x38] sm:$0xff]
        %v2955 = vld [vmem:[#allocation10 + $0x40] sm:$0xff]
        %v2956 = vld [vmem:[#allocation10 + $0x48] sm:$0xff]
        %v2957 = vld [vmem:[#allocation10 + $0x50] sm:$0xff]
        %v2958 = vld [vmem:[#allocation10 + $0x58] sm:$0xff]
        %v2959 = vld [vmem:[#allocation10 + $0x60] sm:$0xff]
        %v2960 = vld [vmem:[#allocation10 + $0x68] sm:$0xff]
        %v2961 = vld [vmem:[#allocation10 + $0x70] sm:$0xff]
        %v2962 = vld [vmem:[#allocation10 + $0x78] sm:$0xff]
        %v2963 = vld [vmem:[#allocation10 + $0x80] sm:$0xff]
        %v2964 = vld [vmem:[#allocation10 + $0x88] sm:$0xff]
        %v2965 = vld [vmem:[#allocation10 + $0x90] sm:$0xff]
        %v2966 = vld [vmem:[#allocation10 + $0x98] sm:$0xff]
        %v2967 = vld [vmem:[#allocation10 + $0xa0] sm:$0xff]
        %v2968 = vld [vmem:[#allocation10 + $0xa8] sm:$0xff]
        %v2969 = vld [vmem:[#allocation10 + $0xb0] sm:$0xff]
        %v2970 = vld [vmem:[#allocation10 + $0xb8] sm:$0xff]
        %v2971 = vld [vmem:[#allocation10 + $0xc0] sm:$0xff]
        %v2972 = vld [vmem:[#allocation10 + $0xc8] sm:$0xff]
        %v2973 = vld [vmem:[#allocation10 + $0xd0] sm:$0xff]
        %v2974 = vld [vmem:[#allocation10 + $0xd8] sm:$0xff]
        %v2975 = vld [vmem:[#allocation10 + $0xe0] sm:$0xff]
        %v2976 = vld [vmem:[#allocation10 + $0xe8] sm:$0xff]
        %v2977 = vld [vmem:[#allocation10 + $0xf0] sm:$0xff]
        %v2978 = vld [vmem:[#allocation10 + $0xf8] sm:$0xff]
        %v2979 = vld [vmem:[#allocation10 + $0x100] sm:$0xff]
        %v2980 = vld [vmem:[#allocation10 + $0x108] sm:$0xff]
        %v2981 = vld [vmem:[#allocation10 + $0x110] sm:$0xff]
        %v2982 = vld [vmem:[#allocation10 + $0x118] sm:$0xff]
        %v2983 = vld [vmem:[#allocation10 + $0x120] sm:$0xff]
        %v2984 = vld [vmem:[#allocation10 + $0x128] sm:$0xff]
        %v2985 = vld [vmem:[#allocation10 + $0x130] sm:$0xff]
        %v2986 = vld [vmem:[#allocation10 + $0x138] sm:$0xff]
        %v2987 = vld [vmem:[#allocation10 + $0x140] sm:$0xff]
        %v2988 = vld [vmem:[#allocation10 + $0x148] sm:$0xff]
        %v2989 = vld [vmem:[#allocation10 + $0x150] sm:$0xff]
        %v2990 = vld [vmem:[#allocation10 + $0x158] sm:$0xff]
        %v2991 = vld [vmem:[#allocation10 + $0x160] sm:$0xff]
        %v2992 = vld [vmem:[#allocation10 + $0x168] sm:$0xff]
        %v2993 = vld [vmem:[#allocation10 + $0x170] sm:$0xff]
        %v2994 = vld [vmem:[#allocation10 + $0x178] sm:$0xff]
        %v2995 = vld [vmem:[#allocation10 + $0x180] sm:$0xff]
        %v2996 = vld [vmem:[#allocation10 + $0x188] sm:$0xff]
        %v2997 = vld [vmem:[#allocation10 + $0x190] sm:$0xff]
        %v2998 = vld [vmem:[#allocation10 + $0x198] sm:$0xff]
        %v2999 = vld [vmem:[#allocation10 + $0x1a0] sm:$0xff]
        %v3000 = vld [vmem:[#allocation10 + $0x1a8] sm:$0xff]
        %v3001 = vld [vmem:[#allocation10 + $0x1b0] sm:$0xff]
        %v3002 = vld [vmem:[#allocation10 + $0x1b8] sm:$0xff]
        %v3003 = vld [vmem:[#allocation10 + $0x1c0] sm:$0xff]
        %v3004 = vld [vmem:[#allocation10 + $0x1c8] sm:$0xff]
        %v3005 = vld [vmem:[#allocation10 + $0x1d0] sm:$0xff]
        %v3006 = vld [vmem:[#allocation10 + $0x1d8] sm:$0xff]
        %v3007 = vld [vmem:[#allocation10 + $0x1e0] sm:$0xff]
        %v3008 = vld [vmem:[#allocation10 + $0x1e8] sm:$0xff]
        %v3009 = vld [vmem:[#allocation10 + $0x1f0] sm:$0xff]
        %v3010 = vld [vmem:[#allocation10 + $0x1f8] sm:$0xff]
        %v3011 = vpack.c.bf16 %v2341, %v2339
        %v3012 = vpack.c.bf16 %v2342, %v2340
        %v3013 = vpack.c.bf16 %v2345, %v2343
        %v3014 = vpack.c.bf16 %v2346, %v2344
        %v3015 = vpack.c.bf16 %v2349, %v2347
        %v3016 = vpack.c.bf16 %v2350, %v2348
        %v3017 = vpack.c.bf16 %v2353, %v2351
        %v3018 = vpack.c.bf16 %v2354, %v2352
        %v3019 = vpack.c.bf16 %v2357, %v2355
        %v3020 = vpack.c.bf16 %v2358, %v2356
        %v3021 = vpack.c.bf16 %v2361, %v2359
        %v3022 = vpack.c.bf16 %v2362, %v2360
        %v3023 = vpack.c.bf16 %v2365, %v2363
        %v3024 = vpack.c.bf16 %v2366, %v2364
        %v3025 = vpack.c.bf16 %v2369, %v2367
        %v3026 = vpack.c.bf16 %v2370, %v2368
        %v3027 = vpack.c.bf16 %v2373, %v2371
        %v3028 = vpack.c.bf16 %v2374, %v2372
        %v3029 = vpack.c.bf16 %v2377, %v2375
        %v3030 = vpack.c.bf16 %v2378, %v2376
        %v3031 = vpack.c.bf16 %v2381, %v2379
        %v3032 = vpack.c.bf16 %v2382, %v2380
        %v3033 = vpack.c.bf16 %v2385, %v2383
        %v3034 = vpack.c.bf16 %v2386, %v2384
        %v3035 = vpack.c.bf16 %v2389, %v2387
        %v3036 = vpack.c.bf16 %v2390, %v2388
        %v3037 = vpack.c.bf16 %v2393, %v2391
        %v3038 = vpack.c.bf16 %v2394, %v2392
        %v3039 = vpack.c.bf16 %v2397, %v2395
        %v3040 = vpack.c.bf16 %v2398, %v2396
        %v3041 = vpack.c.bf16 %v2401, %v2399
        %v3042 = vpack.c.bf16 %v2402, %v2400
        %v3043 = vpack.c.bf16 %v2405, %v2403
        %v3044 = vpack.c.bf16 %v2406, %v2404
        %v3045 = vpack.c.bf16 %v2409, %v2407
        %v3046 = vpack.c.bf16 %v2410, %v2408
        %v3047 = vpack.c.bf16 %v2413, %v2411
        %v3048 = vpack.c.bf16 %v2414, %v2412
        %v3049 = vpack.c.bf16 %v2417, %v2415
        %v3050 = vpack.c.bf16 %v2418, %v2416
        %v3051 = vpack.c.bf16 %v2421, %v2419
        %v3052 = vpack.c.bf16 %v2422, %v2420
        %v3053 = vpack.c.bf16 %v2425, %v2423
        %v3054 = vpack.c.bf16 %v2426, %v2424
        %v3055 = vpack.c.bf16 %v2429, %v2427
        %v3056 = vpack.c.bf16 %v2430, %v2428
        %v3057 = vpack.c.bf16 %v2433, %v2431
        %v3058 = vpack.c.bf16 %v2434, %v2432
        %v3059 = vpack.c.bf16 %v2437, %v2435
        %v3060 = vpack.c.bf16 %v2438, %v2436
        %v3061 = vpack.c.bf16 %v2441, %v2439
        %v3062 = vpack.c.bf16 %v2442, %v2440
        %v3063 = vpack.c.bf16 %v2445, %v2443
        %v3064 = vpack.c.bf16 %v2446, %v2444
        %v3065 = vpack.c.bf16 %v2449, %v2447
        %v3066 = vpack.c.bf16 %v2450, %v2448
        %v3067 = vpack.c.bf16 %v2453, %v2451
        %v3068 = vpack.c.bf16 %v2454, %v2452
        %v3069 = vpack.c.bf16 %v2457, %v2455
        %v3070 = vpack.c.bf16 %v2458, %v2456
        %v3071 = vpack.c.bf16 %v2461, %v2459
        %v3072 = vpack.c.bf16 %v2462, %v2460
        %v3073 = vpack.c.bf16 %v2465, %v2463
        %v3074 = vpack.c.bf16 %v2466, %v2464
        %v3075 = vpack.c.bf16 %v2469, %v2467
        %v3076 = vpack.c.bf16 %v2470, %v2468
        %v3077 = vpack.c.bf16 %v2473, %v2471
        %v3078 = vpack.c.bf16 %v2474, %v2472
        %v3079 = vpack.c.bf16 %v2477, %v2475
        %v3080 = vpack.c.bf16 %v2478, %v2476
        %v3081 = vpack.c.bf16 %v2481, %v2479
        %v3082 = vpack.c.bf16 %v2482, %v2480
        %v3083 = vpack.c.bf16 %v2485, %v2483
        %v3084 = vpack.c.bf16 %v2486, %v2484
        %v3085 = vpack.c.bf16 %v2489, %v2487
        %v3086 = vpack.c.bf16 %v2490, %v2488
        %v3087 = vpack.c.bf16 %v2493, %v2491
        %v3088 = vpack.c.bf16 %v2494, %v2492
        %v3089 = vpack.c.bf16 %v2497, %v2495
        %v3090 = vpack.c.bf16 %v2498, %v2496
        %v3091 = vpack.c.bf16 %v2501, %v2499
        %v3092 = vpack.c.bf16 %v2502, %v2500
        %v3093 = vpack.c.bf16 %v2505, %v2503
        %v3094 = vpack.c.bf16 %v2506, %v2504
        %v3095 = vpack.c.bf16 %v2509, %v2507
        %v3096 = vpack.c.bf16 %v2510, %v2508
        %v3097 = vpack.c.bf16 %v2513, %v2511
        %v3098 = vpack.c.bf16 %v2514, %v2512
        %v3099 = vpack.c.bf16 %v2517, %v2515
        %v3100 = vpack.c.bf16 %v2518, %v2516
        %v3101 = vpack.c.bf16 %v2521, %v2519
        %v3102 = vpack.c.bf16 %v2522, %v2520
        %v3103 = vpack.c.bf16 %v2525, %v2523
        %v3104 = vpack.c.bf16 %v2526, %v2524
        %v3105 = vpack.c.bf16 %v2529, %v2527
        %v3106 = vpack.c.bf16 %v2530, %v2528
        %v3107 = vpack.c.bf16 %v2533, %v2531
        %v3108 = vpack.c.bf16 %v2534, %v2532
        %v3109 = vpack.c.bf16 %v2537, %v2535
        %v3110 = vpack.c.bf16 %v2538, %v2536
        %v3111 = vpack.c.bf16 %v2541, %v2539
        %v3112 = vpack.c.bf16 %v2542, %v2540
        %v3113 = vpack.c.bf16 %v2545, %v2543
        %v3114 = vpack.c.bf16 %v2546, %v2544
        %v3115 = vpack.c.bf16 %v2549, %v2547
        %v3116 = vpack.c.bf16 %v2550, %v2548
        %v3117 = vpack.c.bf16 %v2553, %v2551
        %v3118 = vpack.c.bf16 %v2554, %v2552
        %v3119 = vpack.c.bf16 %v2557, %v2555
        %v3120 = vpack.c.bf16 %v2558, %v2556
        %v3121 = vpack.c.bf16 %v2561, %v2559
        %v3122 = vpack.c.bf16 %v2562, %v2560
        %v3123 = vpack.c.bf16 %v2565, %v2563
        %v3124 = vpack.c.bf16 %v2566, %v2564
        %v3125 = vpack.c.bf16 %v2569, %v2567
        %v3126 = vpack.c.bf16 %v2570, %v2568
        %v3127 = vpack.c.bf16 %v2573, %v2571
        %v3128 = vpack.c.bf16 %v2574, %v2572
        %v3129 = vpack.c.bf16 %v2577, %v2575
        %v3130 = vpack.c.bf16 %v2578, %v2576
        %v3131 = vpack.c.bf16 %v2581, %v2579
        %v3132 = vpack.c.bf16 %v2582, %v2580
        %v3133 = vpack.c.bf16 %v2585, %v2583
        %v3134 = vpack.c.bf16 %v2586, %v2584
        %v3135 = vpack.c.bf16 %v2589, %v2587
        %v3136 = vpack.c.bf16 %v2590, %v2588
        %v3137 = vpack.c.bf16 %v2593, %v2591
        %v3138 = vpack.c.bf16 %v2594, %v2592
        %v3139 = vld [vmem:[#allocation11] sm:$0xff]
        %v3140 = vld [vmem:[#allocation11 + $0x8] sm:$0xff]
        %v3141 = vld [vmem:[#allocation11 + $0x10] sm:$0xff]
        %v3142 = vld [vmem:[#allocation11 + $0x18] sm:$0xff]
        %v3143 = vld [vmem:[#allocation11 + $0x20] sm:$0xff]
        %v3144 = vld [vmem:[#allocation11 + $0x28] sm:$0xff]
        %v3145 = vld [vmem:[#allocation11 + $0x30] sm:$0xff]
        %v3146 = vld [vmem:[#allocation11 + $0x38] sm:$0xff]
        %v3147 = vld [vmem:[#allocation11 + $0x40] sm:$0xff]
        %v3148 = vld [vmem:[#allocation11 + $0x48] sm:$0xff]
        %v3149 = vld [vmem:[#allocation11 + $0x50] sm:$0xff]
        %v3150 = vld [vmem:[#allocation11 + $0x58] sm:$0xff]
        %v3151 = vld [vmem:[#allocation11 + $0x60] sm:$0xff]
        %v3152 = vld [vmem:[#allocation11 + $0x68] sm:$0xff]
        %v3153 = vld [vmem:[#allocation11 + $0x70] sm:$0xff]
        %v3154 = vld [vmem:[#allocation11 + $0x78] sm:$0xff]
        %v3155 = vld [vmem:[#allocation11 + $0x80] sm:$0xff]
        %v3156 = vld [vmem:[#allocation11 + $0x88] sm:$0xff]
        %v3157 = vld [vmem:[#allocation11 + $0x90] sm:$0xff]
        %v3158 = vld [vmem:[#allocation11 + $0x98] sm:$0xff]
        %v3159 = vld [vmem:[#allocation11 + $0xa0] sm:$0xff]
        %v3160 = vld [vmem:[#allocation11 + $0xa8] sm:$0xff]
        %v3161 = vld [vmem:[#allocation11 + $0xb0] sm:$0xff]
        %v3162 = vld [vmem:[#allocation11 + $0xb8] sm:$0xff]
        %v3163 = vld [vmem:[#allocation11 + $0xc0] sm:$0xff]
        %v3164 = vld [vmem:[#allocation11 + $0xc8] sm:$0xff]
        %v3165 = vld [vmem:[#allocation11 + $0xd0] sm:$0xff]
        %v3166 = vld [vmem:[#allocation11 + $0xd8] sm:$0xff]
        %v3167 = vld [vmem:[#allocation11 + $0xe0] sm:$0xff]
        %v3168 = vld [vmem:[#allocation11 + $0xe8] sm:$0xff]
        %v3169 = vld [vmem:[#allocation11 + $0xf0] sm:$0xff]
        %v3170 = vld [vmem:[#allocation11 + $0xf8] sm:$0xff]
        %v3171 = vld [vmem:[#allocation11 + $0x100] sm:$0xff]
        %v3172 = vld [vmem:[#allocation11 + $0x108] sm:$0xff]
        %v3173 = vld [vmem:[#allocation11 + $0x110] sm:$0xff]
        %v3174 = vld [vmem:[#allocation11 + $0x118] sm:$0xff]
        %v3175 = vld [vmem:[#allocation11 + $0x120] sm:$0xff]
        %v3176 = vld [vmem:[#allocation11 + $0x128] sm:$0xff]
        %v3177 = vld [vmem:[#allocation11 + $0x130] sm:$0xff]
        %v3178 = vld [vmem:[#allocation11 + $0x138] sm:$0xff]
        %v3179 = vld [vmem:[#allocation11 + $0x140] sm:$0xff]
        %v3180 = vld [vmem:[#allocation11 + $0x148] sm:$0xff]
        %v3181 = vld [vmem:[#allocation11 + $0x150] sm:$0xff]
        %v3182 = vld [vmem:[#allocation11 + $0x158] sm:$0xff]
        %v3183 = vld [vmem:[#allocation11 + $0x160] sm:$0xff]
        %v3184 = vld [vmem:[#allocation11 + $0x168] sm:$0xff]
        %v3185 = vld [vmem:[#allocation11 + $0x170] sm:$0xff]
        %v3186 = vld [vmem:[#allocation11 + $0x178] sm:$0xff]
        %v3187 = vld [vmem:[#allocation11 + $0x180] sm:$0xff]
        %v3188 = vld [vmem:[#allocation11 + $0x188] sm:$0xff]
        %v3189 = vld [vmem:[#allocation11 + $0x190] sm:$0xff]
        %v3190 = vld [vmem:[#allocation11 + $0x198] sm:$0xff]
        %v3191 = vld [vmem:[#allocation11 + $0x1a0] sm:$0xff]
        %v3192 = vld [vmem:[#allocation11 + $0x1a8] sm:$0xff]
        %v3193 = vld [vmem:[#allocation11 + $0x1b0] sm:$0xff]
        %v3194 = vld [vmem:[#allocation11 + $0x1b8] sm:$0xff]
        %v3195 = vld [vmem:[#allocation11 + $0x1c0] sm:$0xff]
        %v3196 = vld [vmem:[#allocation11 + $0x1c8] sm:$0xff]
        %v3197 = vld [vmem:[#allocation11 + $0x1d0] sm:$0xff]
        %v3198 = vld [vmem:[#allocation11 + $0x1d8] sm:$0xff]
        %v3199 = vld [vmem:[#allocation11 + $0x1e0] sm:$0xff]
        %v3200 = vld [vmem:[#allocation11 + $0x1e8] sm:$0xff]
        %v3201 = vld [vmem:[#allocation11 + $0x1f0] sm:$0xff]
        %v3202 = vld [vmem:[#allocation11 + $0x1f8] sm:$0xff]
        %v3267 = vunpack.c.l.b16 %v3139
        %v3268 = vunpack.c.h.b16 %v3139
        %v3269 = vunpack.c.l.b16 %v3140
        %v3270 = vunpack.c.h.b16 %v3140
        %v3271 = vunpack.c.l.b16 %v3141
        %v3272 = vunpack.c.h.b16 %v3141
        %v3273 = vunpack.c.l.b16 %v3142
        %v3274 = vunpack.c.h.b16 %v3142
        %v3275 = vunpack.c.l.b16 %v3143
        %v3276 = vunpack.c.h.b16 %v3143
        %v3277 = vunpack.c.l.b16 %v3144
        %v3278 = vunpack.c.h.b16 %v3144
        %v3279 = vunpack.c.l.b16 %v3145
        %v3280 = vunpack.c.h.b16 %v3145
        %v3281 = vunpack.c.l.b16 %v3146
        %v3282 = vunpack.c.h.b16 %v3146
        %v3283 = vunpack.c.l.b16 %v3147
        %v3284 = vunpack.c.h.b16 %v3147
        %v3285 = vunpack.c.l.b16 %v3148
        %v3286 = vunpack.c.h.b16 %v3148
        %v3287 = vunpack.c.l.b16 %v3149
        %v3288 = vunpack.c.h.b16 %v3149
        %v3289 = vunpack.c.l.b16 %v3150
        %v3290 = vunpack.c.h.b16 %v3150
        %v3291 = vunpack.c.l.b16 %v3151
        %v3292 = vunpack.c.h.b16 %v3151
        %v3293 = vunpack.c.l.b16 %v3152
        %v3294 = vunpack.c.h.b16 %v3152
        %v3295 = vunpack.c.l.b16 %v3153
        %v3296 = vunpack.c.h.b16 %v3153
        %v3297 = vunpack.c.l.b16 %v3154
        %v3298 = vunpack.c.h.b16 %v3154
        %v3299 = vunpack.c.l.b16 %v3155
        %v3300 = vunpack.c.h.b16 %v3155
        %v3301 = vunpack.c.l.b16 %v3156
        %v3302 = vunpack.c.h.b16 %v3156
        %v3303 = vunpack.c.l.b16 %v3157
        %v3304 = vunpack.c.h.b16 %v3157
        %v3305 = vunpack.c.l.b16 %v3158
        %v3306 = vunpack.c.h.b16 %v3158
        %v3307 = vunpack.c.l.b16 %v3159
        %v3308 = vunpack.c.h.b16 %v3159
        %v3309 = vunpack.c.l.b16 %v3160
        %v3310 = vunpack.c.h.b16 %v3160
        %v3311 = vunpack.c.l.b16 %v3161
        %v3312 = vunpack.c.h.b16 %v3161
        %v3313 = vunpack.c.l.b16 %v3162
        %v3314 = vunpack.c.h.b16 %v3162
        %v3315 = vunpack.c.l.b16 %v3163
        %v3316 = vunpack.c.h.b16 %v3163
        %v3317 = vunpack.c.l.b16 %v3164
        %v3318 = vunpack.c.h.b16 %v3164
        %v3319 = vunpack.c.l.b16 %v3165
        %v3320 = vunpack.c.h.b16 %v3165
        %v3321 = vunpack.c.l.b16 %v3166
        %v3322 = vunpack.c.h.b16 %v3166
        %v3323 = vunpack.c.l.b16 %v3167
        %v3324 = vunpack.c.h.b16 %v3167
        %v3325 = vunpack.c.l.b16 %v3168
        %v3326 = vunpack.c.h.b16 %v3168
        %v3327 = vunpack.c.l.b16 %v3169
        %v3328 = vunpack.c.h.b16 %v3169
        %v3329 = vunpack.c.l.b16 %v3170
        %v3330 = vunpack.c.h.b16 %v3170
        %v3331 = vunpack.c.l.b16 %v3171
        %v3332 = vunpack.c.h.b16 %v3171
        %v3333 = vunpack.c.l.b16 %v3172
        %v3334 = vunpack.c.h.b16 %v3172
        %v3335 = vunpack.c.l.b16 %v3173
        %v3336 = vunpack.c.h.b16 %v3173
        %v3337 = vunpack.c.l.b16 %v3174
        %v3338 = vunpack.c.h.b16 %v3174
        %v3339 = vunpack.c.l.b16 %v3175
        %v3340 = vunpack.c.h.b16 %v3175
        %v3341 = vunpack.c.l.b16 %v3176
        %v3342 = vunpack.c.h.b16 %v3176
        %v3343 = vunpack.c.l.b16 %v3177
        %v3344 = vunpack.c.h.b16 %v3177
        %v3345 = vunpack.c.l.b16 %v3178
        %v3346 = vunpack.c.h.b16 %v3178
        %v3347 = vunpack.c.l.b16 %v3179
        %v3348 = vunpack.c.h.b16 %v3179
        %v3349 = vunpack.c.l.b16 %v3180
        %v3350 = vunpack.c.h.b16 %v3180
        %v3351 = vunpack.c.l.b16 %v3181
        %v3352 = vunpack.c.h.b16 %v3181
        %v3353 = vunpack.c.l.b16 %v3182
        %v3354 = vunpack.c.h.b16 %v3182
        %v3355 = vunpack.c.l.b16 %v3183
        %v3356 = vunpack.c.h.b16 %v3183
        %v3357 = vunpack.c.l.b16 %v3184
        %v3358 = vunpack.c.h.b16 %v3184
        %v3359 = vunpack.c.l.b16 %v3185
        %v3360 = vunpack.c.h.b16 %v3185
        %v3361 = vunpack.c.l.b16 %v3186
        %v3362 = vunpack.c.h.b16 %v3186
        %v3363 = vunpack.c.l.b16 %v3187
        %v3364 = vunpack.c.h.b16 %v3187
        %v3365 = vunpack.c.l.b16 %v3188
        %v3366 = vunpack.c.h.b16 %v3188
        %v3367 = vunpack.c.l.b16 %v3189
        %v3368 = vunpack.c.h.b16 %v3189
        %v3369 = vunpack.c.l.b16 %v3190
        %v3370 = vunpack.c.h.b16 %v3190
        %v3371 = vunpack.c.l.b16 %v3191
        %v3372 = vunpack.c.h.b16 %v3191
        %v3373 = vunpack.c.l.b16 %v3192
        %v3374 = vunpack.c.h.b16 %v3192
        %v3375 = vunpack.c.l.b16 %v3193
        %v3376 = vunpack.c.h.b16 %v3193
        %v3377 = vunpack.c.l.b16 %v3194
        %v3378 = vunpack.c.h.b16 %v3194
        %v3379 = vunpack.c.l.b16 %v3195
        %v3380 = vunpack.c.h.b16 %v3195
        %v3381 = vunpack.c.l.b16 %v3196
        %v3382 = vunpack.c.h.b16 %v3196
        %v3383 = vunpack.c.l.b16 %v3197
        %v3384 = vunpack.c.h.b16 %v3197
        %v3385 = vunpack.c.l.b16 %v3198
        %v3386 = vunpack.c.h.b16 %v3198
        %v3387 = vunpack.c.l.b16 %v3199
        %v3388 = vunpack.c.h.b16 %v3199
        %v3389 = vunpack.c.l.b16 %v3200
        %v3390 = vunpack.c.h.b16 %v3200
        %v3391 = vunpack.c.l.b16 %v3201
        %v3392 = vunpack.c.h.b16 %v3201
        %v3393 = vunpack.c.l.b16 %v3202
        %v3394 = vunpack.c.h.b16 %v3202
        %v3395 = vpack.c.b16 %v3271, %v3267
        %v3396 = vpack.c.b16 %v3272, %v3268
        %v3397 = vpack.c.b16 %v3273, %v3269
        %v3398 = vpack.c.b16 %v3274, %v3270
        %v3399 = vpack.c.b16 %v3279, %v3275
        %v3400 = vpack.c.b16 %v3280, %v3276
        %v3401 = vpack.c.b16 %v3281, %v3277
        %v3402 = vpack.c.b16 %v3282, %v3278
        %v3403 = vpack.c.b16 %v3287, %v3283
        %v3404 = vpack.c.b16 %v3288, %v3284
        %v3405 = vpack.c.b16 %v3289, %v3285
        %v3406 = vpack.c.b16 %v3290, %v3286
        %v3407 = vpack.c.b16 %v3295, %v3291
        %v3408 = vpack.c.b16 %v3296, %v3292
        %v3409 = vpack.c.b16 %v3297, %v3293
        %v3410 = vpack.c.b16 %v3298, %v3294
        %v3411 = vpack.c.b16 %v3303, %v3299
        %v3412 = vpack.c.b16 %v3304, %v3300
        %v3413 = vpack.c.b16 %v3305, %v3301
        %v3414 = vpack.c.b16 %v3306, %v3302
        %v3415 = vpack.c.b16 %v3311, %v3307
        %v3416 = vpack.c.b16 %v3312, %v3308
        %v3417 = vpack.c.b16 %v3313, %v3309
        %v3418 = vpack.c.b16 %v3314, %v3310
        %v3419 = vpack.c.b16 %v3319, %v3315
        %v3420 = vpack.c.b16 %v3320, %v3316
        %v3421 = vpack.c.b16 %v3321, %v3317
        %v3422 = vpack.c.b16 %v3322, %v3318
        %v3423 = vpack.c.b16 %v3327, %v3323
        %v3424 = vpack.c.b16 %v3328, %v3324
        %v3425 = vpack.c.b16 %v3329, %v3325
        %v3426 = vpack.c.b16 %v3330, %v3326
        %v3427 = vpack.c.b16 %v3335, %v3331
        %v3428 = vpack.c.b16 %v3336, %v3332
        %v3429 = vpack.c.b16 %v3337, %v3333
        %v3430 = vpack.c.b16 %v3338, %v3334
        %v3431 = vpack.c.b16 %v3343, %v3339
        %v3432 = vpack.c.b16 %v3344, %v3340
        %v3433 = vpack.c.b16 %v3345, %v3341
        %v3434 = vpack.c.b16 %v3346, %v3342
        %v3435 = vpack.c.b16 %v3351, %v3347
        %v3436 = vpack.c.b16 %v3352, %v3348
        %v3437 = vpack.c.b16 %v3353, %v3349
        %v3438 = vpack.c.b16 %v3354, %v3350
        %v3439 = vpack.c.b16 %v3359, %v3355
        %v3440 = vpack.c.b16 %v3360, %v3356
        %v3441 = vpack.c.b16 %v3361, %v3357
        %v3442 = vpack.c.b16 %v3362, %v3358
        %v3443 = vpack.c.b16 %v3367, %v3363
        %v3444 = vpack.c.b16 %v3368, %v3364
        %v3445 = vpack.c.b16 %v3369, %v3365
        %v3446 = vpack.c.b16 %v3370, %v3366
        %v3447 = vpack.c.b16 %v3375, %v3371
        %v3448 = vpack.c.b16 %v3376, %v3372
        %v3449 = vpack.c.b16 %v3377, %v3373
        %v3450 = vpack.c.b16 %v3378, %v3374
        %v3451 = vpack.c.b16 %v3383, %v3379
        %v3452 = vpack.c.b16 %v3384, %v3380
        %v3453 = vpack.c.b16 %v3385, %v3381
        %v3454 = vpack.c.b16 %v3386, %v3382
        %v3455 = vpack.c.b16 %v3391, %v3387
        %v3456 = vpack.c.b16 %v3392, %v3388
        %v3457 = vpack.c.b16 %v3393, %v3389
        %v3458 = vpack.c.b16 %v3394, %v3390
        %3523 = vmatpush.bf16.msra.mxu0 %v3423
        %3524 = vmatpush.bf16.msra.mxu0 %v3419
        %3525 = vmatpush.bf16.msra.mxu0 %v3415
        %3526 = vmatpush.bf16.msra.mxu0 %v3411
        %3527 = vmatpush.bf16.msra.mxu0 %v3407
        %3528 = vmatpush.bf16.msra.mxu0 %v3403
        %3529 = vmatpush.bf16.msra.mxu0 %v3399
        %3530 = vmatpush.bf16.msra.mxu0 %v3395
        %3531 = vmatmul.bf16.gmra.mxu0 %v3011
        %v3532 = vpop.f32.mrf.mxu0
        %v3533 = vadd.f32 0.0, %v3532
        %v3534 = vpop.f32.mrf.mxu0
        %v3535 = vadd.f32 0.0, %v3534
        %3536 = vmatmul.bf16.gmra.mxu0 %v3013
        %v3537 = vpop.f32.mrf.mxu0
        %v3538 = vadd.f32 0.0, %v3537
        %v3539 = vpop.f32.mrf.mxu0
        %v3540 = vadd.f32 0.0, %v3539
        %3541 = vmatmul.bf16.gmra.mxu0 %v3015
        %v3542 = vpop.f32.mrf.mxu0
        %v3543 = vadd.f32 0.0, %v3542
        %v3544 = vpop.f32.mrf.mxu0
        %v3545 = vadd.f32 0.0, %v3544
        %3546 = vmatmul.bf16.gmra.mxu0 %v3017
        %v3547 = vpop.f32.mrf.mxu0
        %v3548 = vadd.f32 0.0, %v3547
        %v3549 = vpop.f32.mrf.mxu0
        %v3550 = vadd.f32 0.0, %v3549
        %3551 = vmatmul.bf16.gmra.mxu0 %v3019
        %v3552 = vpop.f32.mrf.mxu0
        %v3553 = vadd.f32 0.0, %v3552
        %v3554 = vpop.f32.mrf.mxu0
        %v3555 = vadd.f32 0.0, %v3554
        %3556 = vmatmul.bf16.gmra.mxu0 %v3021
        %v3557 = vpop.f32.mrf.mxu0
        %v3558 = vadd.f32 0.0, %v3557
        %v3559 = vpop.f32.mrf.mxu0
        %v3560 = vadd.f32 0.0, %v3559
        %3561 = vmatmul.bf16.gmra.mxu0 %v3023
        %v3562 = vpop.f32.mrf.mxu0
        %v3563 = vadd.f32 0.0, %v3562
        %v3564 = vpop.f32.mrf.mxu0
        %v3565 = vadd.f32 0.0, %v3564
        %3566 = vmatmul.bf16.gmra.mxu0 %v3025
        %v3567 = vpop.f32.mrf.mxu0
        %v3568 = vadd.f32 0.0, %v3567
        %v3569 = vpop.f32.mrf.mxu0
        %v3570 = vadd.f32 0.0, %v3569
        %3571 = vmatmul.bf16.gmra.mxu0 %v3027
        %v3572 = vpop.f32.mrf.mxu0
        %v3573 = vadd.f32 0.0, %v3572
        %v3574 = vpop.f32.mrf.mxu0
        %v3575 = vadd.f32 0.0, %v3574
        %3576 = vmatmul.bf16.gmra.mxu0 %v3029
        %v3577 = vpop.f32.mrf.mxu0
        %v3578 = vadd.f32 0.0, %v3577
        %v3579 = vpop.f32.mrf.mxu0
        %v3580 = vadd.f32 0.0, %v3579
        %3581 = vmatmul.bf16.gmra.mxu0 %v3031
        %v3582 = vpop.f32.mrf.mxu0
        %v3583 = vadd.f32 0.0, %v3582
        %v3584 = vpop.f32.mrf.mxu0
        %v3585 = vadd.f32 0.0, %v3584
        %3586 = vmatmul.bf16.gmra.mxu0 %v3033
        %v3587 = vpop.f32.mrf.mxu0
        %v3588 = vadd.f32 0.0, %v3587
        %v3589 = vpop.f32.mrf.mxu0
        %v3590 = vadd.f32 0.0, %v3589
        %3591 = vmatmul.bf16.gmra.mxu0 %v3035
        %v3592 = vpop.f32.mrf.mxu0
        %v3593 = vadd.f32 0.0, %v3592
        %v3594 = vpop.f32.mrf.mxu0
        %v3595 = vadd.f32 0.0, %v3594
        %3596 = vmatmul.bf16.gmra.mxu0 %v3037
        %v3597 = vpop.f32.mrf.mxu0
        %v3598 = vadd.f32 0.0, %v3597
        %v3599 = vpop.f32.mrf.mxu0
        %v3600 = vadd.f32 0.0, %v3599
        %3601 = vmatmul.bf16.gmra.mxu0 %v3039
        %v3602 = vpop.f32.mrf.mxu0
        %v3603 = vadd.f32 0.0, %v3602
        %v3604 = vpop.f32.mrf.mxu0
        %v3605 = vadd.f32 0.0, %v3604
        %3606 = vmatmul.bf16.gmra.mxu0 %v3041
        %v3607 = vpop.f32.mrf.mxu0
        %v3608 = vadd.f32 0.0, %v3607
        %v3609 = vpop.f32.mrf.mxu0
        %v3610 = vadd.f32 0.0, %v3609
        %3611 = vmatmul.bf16.gmra.mxu0 %v3043
        %v3612 = vpop.f32.mrf.mxu0
        %v3613 = vadd.f32 0.0, %v3612
        %v3614 = vpop.f32.mrf.mxu0
        %v3615 = vadd.f32 0.0, %v3614
        %3616 = vmatmul.bf16.gmra.mxu0 %v3045
        %v3617 = vpop.f32.mrf.mxu0
        %v3618 = vadd.f32 0.0, %v3617
        %v3619 = vpop.f32.mrf.mxu0
        %v3620 = vadd.f32 0.0, %v3619
        %3621 = vmatmul.bf16.gmra.mxu0 %v3047
        %v3622 = vpop.f32.mrf.mxu0
        %v3623 = vadd.f32 0.0, %v3622
        %v3624 = vpop.f32.mrf.mxu0
        %v3625 = vadd.f32 0.0, %v3624
        %3626 = vmatmul.bf16.gmra.mxu0 %v3049
        %v3627 = vpop.f32.mrf.mxu0
        %v3628 = vadd.f32 0.0, %v3627
        %v3629 = vpop.f32.mrf.mxu0
        %v3630 = vadd.f32 0.0, %v3629
        %3631 = vmatmul.bf16.gmra.mxu0 %v3051
        %v3632 = vpop.f32.mrf.mxu0
        %v3633 = vadd.f32 0.0, %v3632
        %v3634 = vpop.f32.mrf.mxu0
        %v3635 = vadd.f32 0.0, %v3634
        %3636 = vmatmul.bf16.gmra.mxu0 %v3053
        %v3637 = vpop.f32.mrf.mxu0
        %v3638 = vadd.f32 0.0, %v3637
        %v3639 = vpop.f32.mrf.mxu0
        %v3640 = vadd.f32 0.0, %v3639
        %3641 = vmatmul.bf16.gmra.mxu0 %v3055
        %v3642 = vpop.f32.mrf.mxu0
        %v3643 = vadd.f32 0.0, %v3642
        %v3644 = vpop.f32.mrf.mxu0
        %v3645 = vadd.f32 0.0, %v3644
        %3646 = vmatmul.bf16.gmra.mxu0 %v3057
        %v3647 = vpop.f32.mrf.mxu0
        %v3648 = vadd.f32 0.0, %v3647
        %v3649 = vpop.f32.mrf.mxu0
        %v3650 = vadd.f32 0.0, %v3649
        %3651 = vmatmul.bf16.gmra.mxu0 %v3059
        %v3652 = vpop.f32.mrf.mxu0
        %v3653 = vadd.f32 0.0, %v3652
        %v3654 = vpop.f32.mrf.mxu0
        %v3655 = vadd.f32 0.0, %v3654
        %3656 = vmatmul.bf16.gmra.mxu0 %v3061
        %v3657 = vpop.f32.mrf.mxu0
        %v3658 = vadd.f32 0.0, %v3657
        %v3659 = vpop.f32.mrf.mxu0
        %v3660 = vadd.f32 0.0, %v3659
        %3661 = vmatmul.bf16.gmra.mxu0 %v3063
        %v3662 = vpop.f32.mrf.mxu0
        %v3663 = vadd.f32 0.0, %v3662
        %v3664 = vpop.f32.mrf.mxu0
        %v3665 = vadd.f32 0.0, %v3664
        %3666 = vmatmul.bf16.gmra.mxu0 %v3065
        %v3667 = vpop.f32.mrf.mxu0
        %v3668 = vadd.f32 0.0, %v3667
        %v3669 = vpop.f32.mrf.mxu0
        %v3670 = vadd.f32 0.0, %v3669
        %3671 = vmatmul.bf16.gmra.mxu0 %v3067
        %v3672 = vpop.f32.mrf.mxu0
        %v3673 = vadd.f32 0.0, %v3672
        %v3674 = vpop.f32.mrf.mxu0
        %v3675 = vadd.f32 0.0, %v3674
        %3676 = vmatmul.bf16.gmra.mxu0 %v3069
        %v3677 = vpop.f32.mrf.mxu0
        %v3678 = vadd.f32 0.0, %v3677
        %v3679 = vpop.f32.mrf.mxu0
        %v3680 = vadd.f32 0.0, %v3679
        %3681 = vmatmul.bf16.gmra.mxu0 %v3071
        %v3682 = vpop.f32.mrf.mxu0
        %v3683 = vadd.f32 0.0, %v3682
        %v3684 = vpop.f32.mrf.mxu0
        %v3685 = vadd.f32 0.0, %v3684
        %3686 = vmatmul.bf16.gmra.mxu0 %v3073
        %v3687 = vpop.f32.mrf.mxu0
        %v3688 = vadd.f32 0.0, %v3687
        %v3689 = vpop.f32.mrf.mxu0
        %v3690 = vadd.f32 0.0, %v3689
        %3691 = vmatmul.bf16.gmra.mxu0 %v3075
        %v3692 = vpop.f32.mrf.mxu0
        %v3693 = vadd.f32 0.0, %v3692
        %v3694 = vpop.f32.mrf.mxu0
        %v3695 = vadd.f32 0.0, %v3694
        %3696 = vmatmul.bf16.gmra.mxu0 %v3077
        %v3697 = vpop.f32.mrf.mxu0
        %v3698 = vadd.f32 0.0, %v3697
        %v3699 = vpop.f32.mrf.mxu0
        %v3700 = vadd.f32 0.0, %v3699
        %3701 = vmatmul.bf16.gmra.mxu0 %v3079
        %v3702 = vpop.f32.mrf.mxu0
        %v3703 = vadd.f32 0.0, %v3702
        %v3704 = vpop.f32.mrf.mxu0
        %v3705 = vadd.f32 0.0, %v3704
        %3706 = vmatmul.bf16.gmra.mxu0 %v3081
        %v3707 = vpop.f32.mrf.mxu0
        %v3708 = vadd.f32 0.0, %v3707
        %v3709 = vpop.f32.mrf.mxu0
        %v3710 = vadd.f32 0.0, %v3709
        %3711 = vmatmul.bf16.gmra.mxu0 %v3083
        %v3712 = vpop.f32.mrf.mxu0
        %v3713 = vadd.f32 0.0, %v3712
        %v3714 = vpop.f32.mrf.mxu0
        %v3715 = vadd.f32 0.0, %v3714
        %3716 = vmatmul.bf16.gmra.mxu0 %v3085
        %v3717 = vpop.f32.mrf.mxu0
        %v3718 = vadd.f32 0.0, %v3717
        %v3719 = vpop.f32.mrf.mxu0
        %v3720 = vadd.f32 0.0, %v3719
        %3721 = vmatmul.bf16.gmra.mxu0 %v3087
        %v3722 = vpop.f32.mrf.mxu0
        %v3723 = vadd.f32 0.0, %v3722
        %v3724 = vpop.f32.mrf.mxu0
        %v3725 = vadd.f32 0.0, %v3724
        %3726 = vmatmul.bf16.gmra.mxu0 %v3089
        %v3727 = vpop.f32.mrf.mxu0
        %v3728 = vadd.f32 0.0, %v3727
        %v3729 = vpop.f32.mrf.mxu0
        %v3730 = vadd.f32 0.0, %v3729
        %3731 = vmatmul.bf16.gmra.mxu0 %v3091
        %v3732 = vpop.f32.mrf.mxu0
        %v3733 = vadd.f32 0.0, %v3732
        %v3734 = vpop.f32.mrf.mxu0
        %v3735 = vadd.f32 0.0, %v3734
        %3736 = vmatmul.bf16.gmra.mxu0 %v3093
        %v3737 = vpop.f32.mrf.mxu0
        %v3738 = vadd.f32 0.0, %v3737
        %v3739 = vpop.f32.mrf.mxu0
        %v3740 = vadd.f32 0.0, %v3739
        %3741 = vmatmul.bf16.gmra.mxu0 %v3095
        %v3742 = vpop.f32.mrf.mxu0
        %v3743 = vadd.f32 0.0, %v3742
        %v3744 = vpop.f32.mrf.mxu0
        %v3745 = vadd.f32 0.0, %v3744
        %3746 = vmatmul.bf16.gmra.mxu0 %v3097
        %v3747 = vpop.f32.mrf.mxu0
        %v3748 = vadd.f32 0.0, %v3747
        %v3749 = vpop.f32.mrf.mxu0
        %v3750 = vadd.f32 0.0, %v3749
        %3751 = vmatmul.bf16.gmra.mxu0 %v3099
        %v3752 = vpop.f32.mrf.mxu0
        %v3753 = vadd.f32 0.0, %v3752
        %v3754 = vpop.f32.mrf.mxu0
        %v3755 = vadd.f32 0.0, %v3754
        %3756 = vmatmul.bf16.gmra.mxu0 %v3101
        %v3757 = vpop.f32.mrf.mxu0
        %v3758 = vadd.f32 0.0, %v3757
        %v3759 = vpop.f32.mrf.mxu0
        %v3760 = vadd.f32 0.0, %v3759
        %3761 = vmatmul.bf16.gmra.mxu0 %v3103
        %v3762 = vpop.f32.mrf.mxu0
        %v3763 = vadd.f32 0.0, %v3762
        %v3764 = vpop.f32.mrf.mxu0
        %v3765 = vadd.f32 0.0, %v3764
        %3766 = vmatmul.bf16.gmra.mxu0 %v3105
        %v3767 = vpop.f32.mrf.mxu0
        %v3768 = vadd.f32 0.0, %v3767
        %v3769 = vpop.f32.mrf.mxu0
        %v3770 = vadd.f32 0.0, %v3769
        %3771 = vmatmul.bf16.gmra.mxu0 %v3107
        %v3772 = vpop.f32.mrf.mxu0
        %v3773 = vadd.f32 0.0, %v3772
        %v3774 = vpop.f32.mrf.mxu0
        %v3775 = vadd.f32 0.0, %v3774
        %3776 = vmatmul.bf16.gmra.mxu0 %v3109
        %v3777 = vpop.f32.mrf.mxu0
        %v3778 = vadd.f32 0.0, %v3777
        %v3779 = vpop.f32.mrf.mxu0
        %v3780 = vadd.f32 0.0, %v3779
        %3781 = vmatmul.bf16.gmra.mxu0 %v3111
        %v3782 = vpop.f32.mrf.mxu0
        %v3783 = vadd.f32 0.0, %v3782
        %v3784 = vpop.f32.mrf.mxu0
        %v3785 = vadd.f32 0.0, %v3784
        %3786 = vmatmul.bf16.gmra.mxu0 %v3113
        %v3787 = vpop.f32.mrf.mxu0
        %v3788 = vadd.f32 0.0, %v3787
        %v3789 = vpop.f32.mrf.mxu0
        %v3790 = vadd.f32 0.0, %v3789
        %3791 = vmatmul.bf16.gmra.mxu0 %v3115
        %v3792 = vpop.f32.mrf.mxu0
        %v3793 = vadd.f32 0.0, %v3792
        %v3794 = vpop.f32.mrf.mxu0
        %v3795 = vadd.f32 0.0, %v3794
        %3796 = vmatmul.bf16.gmra.mxu0 %v3117
        %v3797 = vpop.f32.mrf.mxu0
        %v3798 = vadd.f32 0.0, %v3797
        %v3799 = vpop.f32.mrf.mxu0
        %v3800 = vadd.f32 0.0, %v3799
        %3801 = vmatmul.bf16.gmra.mxu0 %v3119
        %v3802 = vpop.f32.mrf.mxu0
        %v3803 = vadd.f32 0.0, %v3802
        %v3804 = vpop.f32.mrf.mxu0
        %v3805 = vadd.f32 0.0, %v3804
        %3806 = vmatmul.bf16.gmra.mxu0 %v3121
        %v3807 = vpop.f32.mrf.mxu0
        %v3808 = vadd.f32 0.0, %v3807
        %v3809 = vpop.f32.mrf.mxu0
        %v3810 = vadd.f32 0.0, %v3809
        %3811 = vmatmul.bf16.gmra.mxu0 %v3123
        %v3812 = vpop.f32.mrf.mxu0
        %v3813 = vadd.f32 0.0, %v3812
        %v3814 = vpop.f32.mrf.mxu0
        %v3815 = vadd.f32 0.0, %v3814
        %3816 = vmatmul.bf16.gmra.mxu0 %v3125
        %v3817 = vpop.f32.mrf.mxu0
        %v3818 = vadd.f32 0.0, %v3817
        %v3819 = vpop.f32.mrf.mxu0
        %v3820 = vadd.f32 0.0, %v3819
        %3821 = vmatmul.bf16.gmra.mxu0 %v3127
        %v3822 = vpop.f32.mrf.mxu0
        %v3823 = vadd.f32 0.0, %v3822
        %v3824 = vpop.f32.mrf.mxu0
        %v3825 = vadd.f32 0.0, %v3824
        %3826 = vmatmul.bf16.gmra.mxu0 %v3129
        %v3827 = vpop.f32.mrf.mxu0
        %v3828 = vadd.f32 0.0, %v3827
        %v3829 = vpop.f32.mrf.mxu0
        %v3830 = vadd.f32 0.0, %v3829
        %3831 = vmatmul.bf16.gmra.mxu0 %v3131
        %v3832 = vpop.f32.mrf.mxu0
        %v3833 = vadd.f32 0.0, %v3832
        %v3834 = vpop.f32.mrf.mxu0
        %v3835 = vadd.f32 0.0, %v3834
        %3836 = vmatmul.bf16.gmra.mxu0 %v3133
        %v3837 = vpop.f32.mrf.mxu0
        %v3838 = vadd.f32 0.0, %v3837
        %v3839 = vpop.f32.mrf.mxu0
        %v3840 = vadd.f32 0.0, %v3839
        %3841 = vmatmul.bf16.gmra.mxu0 %v3135
        %v3842 = vpop.f32.mrf.mxu0
        %v3843 = vadd.f32 0.0, %v3842
        %v3844 = vpop.f32.mrf.mxu0
        %v3845 = vadd.f32 0.0, %v3844
        %3846 = vmatmul.bf16.gmra.mxu0 %v3137
        %v3847 = vpop.f32.mrf.mxu0
        %v3848 = vadd.f32 0.0, %v3847
        %v3849 = vpop.f32.mrf.mxu0
        %v3850 = vadd.f32 0.0, %v3849
        %3851 = vdwg.mxu0
        %3852 = vmatpush.bf16.msra.mxu0 %v3455
        %3853 = vmatpush.bf16.msra.mxu0 %v3451
        %3854 = vmatpush.bf16.msra.mxu0 %v3447
        %3855 = vmatpush.bf16.msra.mxu0 %v3443
        %3856 = vmatpush.bf16.msra.mxu0 %v3439
        %3857 = vmatpush.bf16.msra.mxu0 %v3435
        %3858 = vmatpush.bf16.msra.mxu0 %v3431
        %3859 = vmatpush.bf16.msra.mxu0 %v3427
        %3860 = vmatmul.bf16.gmra.mxu0 %v3012
        %v3861 = vpop.f32.mrf.mxu0
        %v3862 = vadd.f32 %v3533, %v3861
        %v3863 = vpop.f32.mrf.mxu0
        %v3864 = vadd.f32 %v3535, %v3863
        %3865 = vmatmul.bf16.gmra.mxu0 %v3014
        %v3866 = vpop.f32.mrf.mxu0
        %v3867 = vadd.f32 %v3538, %v3866
        %v3868 = vpop.f32.mrf.mxu0
        %v3869 = vadd.f32 %v3540, %v3868
        %3870 = vmatmul.bf16.gmra.mxu0 %v3016
        %v3871 = vpop.f32.mrf.mxu0
        %v3872 = vadd.f32 %v3543, %v3871
        %v3873 = vpop.f32.mrf.mxu0
        %v3874 = vadd.f32 %v3545, %v3873
        %3875 = vmatmul.bf16.gmra.mxu0 %v3018
        %v3876 = vpop.f32.mrf.mxu0
        %v3877 = vadd.f32 %v3548, %v3876
        %v3878 = vpop.f32.mrf.mxu0
        %v3879 = vadd.f32 %v3550, %v3878
        %3880 = vmatmul.bf16.gmra.mxu0 %v3020
        %v3881 = vpop.f32.mrf.mxu0
        %v3882 = vadd.f32 %v3553, %v3881
        %v3883 = vpop.f32.mrf.mxu0
        %v3884 = vadd.f32 %v3555, %v3883
        %3885 = vmatmul.bf16.gmra.mxu0 %v3022
        %v3886 = vpop.f32.mrf.mxu0
        %v3887 = vadd.f32 %v3558, %v3886
        %v3888 = vpop.f32.mrf.mxu0
        %v3889 = vadd.f32 %v3560, %v3888
        %3890 = vmatmul.bf16.gmra.mxu0 %v3024
        %v3891 = vpop.f32.mrf.mxu0
        %v3892 = vadd.f32 %v3563, %v3891
        %v3893 = vpop.f32.mrf.mxu0
        %v3894 = vadd.f32 %v3565, %v3893
        %3895 = vmatmul.bf16.gmra.mxu0 %v3026
        %v3896 = vpop.f32.mrf.mxu0
        %v3897 = vadd.f32 %v3568, %v3896
        %v3898 = vpop.f32.mrf.mxu0
        %v3899 = vadd.f32 %v3570, %v3898
        %3900 = vmatmul.bf16.gmra.mxu0 %v3028
        %v3901 = vpop.f32.mrf.mxu0
        %v3902 = vadd.f32 %v3573, %v3901
        %v3903 = vpop.f32.mrf.mxu0
        %v3904 = vadd.f32 %v3575, %v3903
        %3905 = vmatmul.bf16.gmra.mxu0 %v3030
        %v3906 = vpop.f32.mrf.mxu0
        %v3907 = vadd.f32 %v3578, %v3906
        %v3908 = vpop.f32.mrf.mxu0
        %v3909 = vadd.f32 %v3580, %v3908
        %3910 = vmatmul.bf16.gmra.mxu0 %v3032
        %v3911 = vpop.f32.mrf.mxu0
        %v3912 = vadd.f32 %v3583, %v3911
        %v3913 = vpop.f32.mrf.mxu0
        %v3914 = vadd.f32 %v3585, %v3913
        %3915 = vmatmul.bf16.gmra.mxu0 %v3034
        %v3916 = vpop.f32.mrf.mxu0
        %v3917 = vadd.f32 %v3588, %v3916
        %v3918 = vpop.f32.mrf.mxu0
        %v3919 = vadd.f32 %v3590, %v3918
        %3920 = vmatmul.bf16.gmra.mxu0 %v3036
        %v3921 = vpop.f32.mrf.mxu0
        %v3922 = vadd.f32 %v3593, %v3921
        %v3923 = vpop.f32.mrf.mxu0
        %v3924 = vadd.f32 %v3595, %v3923
        %3925 = vmatmul.bf16.gmra.mxu0 %v3038
        %v3926 = vpop.f32.mrf.mxu0
        %v3927 = vadd.f32 %v3598, %v3926
        %v3928 = vpop.f32.mrf.mxu0
        %v3929 = vadd.f32 %v3600, %v3928
        %3930 = vmatmul.bf16.gmra.mxu0 %v3040
        %v3931 = vpop.f32.mrf.mxu0
        %v3932 = vadd.f32 %v3603, %v3931
        %v3933 = vpop.f32.mrf.mxu0
        %v3934 = vadd.f32 %v3605, %v3933
        %3935 = vmatmul.bf16.gmra.mxu0 %v3042
        %v3936 = vpop.f32.mrf.mxu0
        %v3937 = vadd.f32 %v3608, %v3936
        %v3938 = vpop.f32.mrf.mxu0
        %v3939 = vadd.f32 %v3610, %v3938
        %3940 = vmatmul.bf16.gmra.mxu0 %v3044
        %v3941 = vpop.f32.mrf.mxu0
        %v3942 = vadd.f32 %v3613, %v3941
        %v3943 = vpop.f32.mrf.mxu0
        %v3944 = vadd.f32 %v3615, %v3943
        %3945 = vmatmul.bf16.gmra.mxu0 %v3046
        %v3946 = vpop.f32.mrf.mxu0
        %v3947 = vadd.f32 %v3618, %v3946
        %v3948 = vpop.f32.mrf.mxu0
        %v3949 = vadd.f32 %v3620, %v3948
        %3950 = vmatmul.bf16.gmra.mxu0 %v3048
        %v3951 = vpop.f32.mrf.mxu0
        %v3952 = vadd.f32 %v3623, %v3951
        %v3953 = vpop.f32.mrf.mxu0
        %v3954 = vadd.f32 %v3625, %v3953
        %3955 = vmatmul.bf16.gmra.mxu0 %v3050
        %v3956 = vpop.f32.mrf.mxu0
        %v3957 = vadd.f32 %v3628, %v3956
        %v3958 = vpop.f32.mrf.mxu0
        %v3959 = vadd.f32 %v3630, %v3958
        %3960 = vmatmul.bf16.gmra.mxu0 %v3052
        %v3961 = vpop.f32.mrf.mxu0
        %v3962 = vadd.f32 %v3633, %v3961
        %v3963 = vpop.f32.mrf.mxu0
        %v3964 = vadd.f32 %v3635, %v3963
        %3965 = vmatmul.bf16.gmra.mxu0 %v3054
        %v3966 = vpop.f32.mrf.mxu0
        %v3967 = vadd.f32 %v3638, %v3966
        %v3968 = vpop.f32.mrf.mxu0
        %v3969 = vadd.f32 %v3640, %v3968
        %3970 = vmatmul.bf16.gmra.mxu0 %v3056
        %v3971 = vpop.f32.mrf.mxu0
        %v3972 = vadd.f32 %v3643, %v3971
        %v3973 = vpop.f32.mrf.mxu0
        %v3974 = vadd.f32 %v3645, %v3973
        %3975 = vmatmul.bf16.gmra.mxu0 %v3058
        %v3976 = vpop.f32.mrf.mxu0
        %v3977 = vadd.f32 %v3648, %v3976
        %v3978 = vpop.f32.mrf.mxu0
        %v3979 = vadd.f32 %v3650, %v3978
        %3980 = vmatmul.bf16.gmra.mxu0 %v3060
        %v3981 = vpop.f32.mrf.mxu0
        %v3982 = vadd.f32 %v3653, %v3981
        %v3983 = vpop.f32.mrf.mxu0
        %v3984 = vadd.f32 %v3655, %v3983
        %3985 = vmatmul.bf16.gmra.mxu0 %v3062
        %v3986 = vpop.f32.mrf.mxu0
        %v3987 = vadd.f32 %v3658, %v3986
        %v3988 = vpop.f32.mrf.mxu0
        %v3989 = vadd.f32 %v3660, %v3988
        %3990 = vmatmul.bf16.gmra.mxu0 %v3064
        %v3991 = vpop.f32.mrf.mxu0
        %v3992 = vadd.f32 %v3663, %v3991
        %v3993 = vpop.f32.mrf.mxu0
        %v3994 = vadd.f32 %v3665, %v3993
        %3995 = vmatmul.bf16.gmra.mxu0 %v3066
        %v3996 = vpop.f32.mrf.mxu0
        %v3997 = vadd.f32 %v3668, %v3996
        %v3998 = vpop.f32.mrf.mxu0
        %v3999 = vadd.f32 %v3670, %v3998
        %4000 = vmatmul.bf16.gmra.mxu0 %v3068
        %v4001 = vpop.f32.mrf.mxu0
        %v4002 = vadd.f32 %v3673, %v4001
        %v4003 = vpop.f32.mrf.mxu0
        %v4004 = vadd.f32 %v3675, %v4003
        %4005 = vmatmul.bf16.gmra.mxu0 %v3070
        %v4006 = vpop.f32.mrf.mxu0
        %v4007 = vadd.f32 %v3678, %v4006
        %v4008 = vpop.f32.mrf.mxu0
        %v4009 = vadd.f32 %v3680, %v4008
        %4010 = vmatmul.bf16.gmra.mxu0 %v3072
        %v4011 = vpop.f32.mrf.mxu0
        %v4012 = vadd.f32 %v3683, %v4011
        %v4013 = vpop.f32.mrf.mxu0
        %v4014 = vadd.f32 %v3685, %v4013
        %4015 = vmatmul.bf16.gmra.mxu0 %v3074
        %v4016 = vpop.f32.mrf.mxu0
        %v4017 = vadd.f32 %v3688, %v4016
        %v4018 = vpop.f32.mrf.mxu0
        %v4019 = vadd.f32 %v3690, %v4018
        %4020 = vmatmul.bf16.gmra.mxu0 %v3076
        %v4021 = vpop.f32.mrf.mxu0
        %v4022 = vadd.f32 %v3693, %v4021
        %v4023 = vpop.f32.mrf.mxu0
        %v4024 = vadd.f32 %v3695, %v4023
        %4025 = vmatmul.bf16.gmra.mxu0 %v3078
        %v4026 = vpop.f32.mrf.mxu0
        %v4027 = vadd.f32 %v3698, %v4026
        %v4028 = vpop.f32.mrf.mxu0
        %v4029 = vadd.f32 %v3700, %v4028
        %4030 = vmatmul.bf16.gmra.mxu0 %v3080
        %v4031 = vpop.f32.mrf.mxu0
        %v4032 = vadd.f32 %v3703, %v4031
        %v4033 = vpop.f32.mrf.mxu0
        %v4034 = vadd.f32 %v3705, %v4033
        %4035 = vmatmul.bf16.gmra.mxu0 %v3082
        %v4036 = vpop.f32.mrf.mxu0
        %v4037 = vadd.f32 %v3708, %v4036
        %v4038 = vpop.f32.mrf.mxu0
        %v4039 = vadd.f32 %v3710, %v4038
        %4040 = vmatmul.bf16.gmra.mxu0 %v3084
        %v4041 = vpop.f32.mrf.mxu0
        %v4042 = vadd.f32 %v3713, %v4041
        %v4043 = vpop.f32.mrf.mxu0
        %v4044 = vadd.f32 %v3715, %v4043
        %4045 = vmatmul.bf16.gmra.mxu0 %v3086
        %v4046 = vpop.f32.mrf.mxu0
        %v4047 = vadd.f32 %v3718, %v4046
        %v4048 = vpop.f32.mrf.mxu0
        %v4049 = vadd.f32 %v3720, %v4048
        %4050 = vmatmul.bf16.gmra.mxu0 %v3088
        %v4051 = vpop.f32.mrf.mxu0
        %v4052 = vadd.f32 %v3723, %v4051
        %v4053 = vpop.f32.mrf.mxu0
        %v4054 = vadd.f32 %v3725, %v4053
        %4055 = vmatmul.bf16.gmra.mxu0 %v3090
        %v4056 = vpop.f32.mrf.mxu0
        %v4057 = vadd.f32 %v3728, %v4056
        %v4058 = vpop.f32.mrf.mxu0
        %v4059 = vadd.f32 %v3730, %v4058
        %4060 = vmatmul.bf16.gmra.mxu0 %v3092
        %v4061 = vpop.f32.mrf.mxu0
        %v4062 = vadd.f32 %v3733, %v4061
        %v4063 = vpop.f32.mrf.mxu0
        %v4064 = vadd.f32 %v3735, %v4063
        %4065 = vmatmul.bf16.gmra.mxu0 %v3094
        %v4066 = vpop.f32.mrf.mxu0
        %v4067 = vadd.f32 %v3738, %v4066
        %v4068 = vpop.f32.mrf.mxu0
        %v4069 = vadd.f32 %v3740, %v4068
        %4070 = vmatmul.bf16.gmra.mxu0 %v3096
        %v4071 = vpop.f32.mrf.mxu0
        %v4072 = vadd.f32 %v3743, %v4071
        %v4073 = vpop.f32.mrf.mxu0
        %v4074 = vadd.f32 %v3745, %v4073
        %4075 = vmatmul.bf16.gmra.mxu0 %v3098
        %v4076 = vpop.f32.mrf.mxu0
        %v4077 = vadd.f32 %v3748, %v4076
        %v4078 = vpop.f32.mrf.mxu0
        %v4079 = vadd.f32 %v3750, %v4078
        %4080 = vmatmul.bf16.gmra.mxu0 %v3100
        %v4081 = vpop.f32.mrf.mxu0
        %v4082 = vadd.f32 %v3753, %v4081
        %v4083 = vpop.f32.mrf.mxu0
        %v4084 = vadd.f32 %v3755, %v4083
        %4085 = vmatmul.bf16.gmra.mxu0 %v3102
        %v4086 = vpop.f32.mrf.mxu0
        %v4087 = vadd.f32 %v3758, %v4086
        %v4088 = vpop.f32.mrf.mxu0
        %v4089 = vadd.f32 %v3760, %v4088
        %4090 = vmatmul.bf16.gmra.mxu0 %v3104
        %v4091 = vpop.f32.mrf.mxu0
        %v4092 = vadd.f32 %v3763, %v4091
        %v4093 = vpop.f32.mrf.mxu0
        %v4094 = vadd.f32 %v3765, %v4093
        %4095 = vmatmul.bf16.gmra.mxu0 %v3106
        %v4096 = vpop.f32.mrf.mxu0
        %v4097 = vadd.f32 %v3768, %v4096
        %v4098 = vpop.f32.mrf.mxu0
        %v4099 = vadd.f32 %v3770, %v4098
        %4100 = vmatmul.bf16.gmra.mxu0 %v3108
        %v4101 = vpop.f32.mrf.mxu0
        %v4102 = vadd.f32 %v3773, %v4101
        %v4103 = vpop.f32.mrf.mxu0
        %v4104 = vadd.f32 %v3775, %v4103
        %4105 = vmatmul.bf16.gmra.mxu0 %v3110
        %v4106 = vpop.f32.mrf.mxu0
        %v4107 = vadd.f32 %v3778, %v4106
        %v4108 = vpop.f32.mrf.mxu0
        %v4109 = vadd.f32 %v3780, %v4108
        %4110 = vmatmul.bf16.gmra.mxu0 %v3112
        %v4111 = vpop.f32.mrf.mxu0
        %v4112 = vadd.f32 %v3783, %v4111
        %v4113 = vpop.f32.mrf.mxu0
        %v4114 = vadd.f32 %v3785, %v4113
        %4115 = vmatmul.bf16.gmra.mxu0 %v3114
        %v4116 = vpop.f32.mrf.mxu0
        %v4117 = vadd.f32 %v3788, %v4116
        %v4118 = vpop.f32.mrf.mxu0
        %v4119 = vadd.f32 %v3790, %v4118
        %4120 = vmatmul.bf16.gmra.mxu0 %v3116
        %v4121 = vpop.f32.mrf.mxu0
        %v4122 = vadd.f32 %v3793, %v4121
        %v4123 = vpop.f32.mrf.mxu0
        %v4124 = vadd.f32 %v3795, %v4123
        %4125 = vmatmul.bf16.gmra.mxu0 %v3118
        %v4126 = vpop.f32.mrf.mxu0
        %v4127 = vadd.f32 %v3798, %v4126
        %v4128 = vpop.f32.mrf.mxu0
        %v4129 = vadd.f32 %v3800, %v4128
        %4130 = vmatmul.bf16.gmra.mxu0 %v3120
        %v4131 = vpop.f32.mrf.mxu0
        %v4132 = vadd.f32 %v3803, %v4131
        %v4133 = vpop.f32.mrf.mxu0
        %v4134 = vadd.f32 %v3805, %v4133
        %4135 = vmatmul.bf16.gmra.mxu0 %v3122
        %v4136 = vpop.f32.mrf.mxu0
        %v4137 = vadd.f32 %v3808, %v4136
        %v4138 = vpop.f32.mrf.mxu0
        %v4139 = vadd.f32 %v3810, %v4138
        %4140 = vmatmul.bf16.gmra.mxu0 %v3124
        %v4141 = vpop.f32.mrf.mxu0
        %v4142 = vadd.f32 %v3813, %v4141
        %v4143 = vpop.f32.mrf.mxu0
        %v4144 = vadd.f32 %v3815, %v4143
        %4145 = vmatmul.bf16.gmra.mxu0 %v3126
        %v4146 = vpop.f32.mrf.mxu0
        %v4147 = vadd.f32 %v3818, %v4146
        %v4148 = vpop.f32.mrf.mxu0
        %v4149 = vadd.f32 %v3820, %v4148
        %4150 = vmatmul.bf16.gmra.mxu0 %v3128
        %v4151 = vpop.f32.mrf.mxu0
        %v4152 = vadd.f32 %v3823, %v4151
        %v4153 = vpop.f32.mrf.mxu0
        %v4154 = vadd.f32 %v3825, %v4153
        %4155 = vmatmul.bf16.gmra.mxu0 %v3130
        %v4156 = vpop.f32.mrf.mxu0
        %v4157 = vadd.f32 %v3828, %v4156
        %v4158 = vpop.f32.mrf.mxu0
        %v4159 = vadd.f32 %v3830, %v4158
        %4160 = vmatmul.bf16.gmra.mxu0 %v3132
        %v4161 = vpop.f32.mrf.mxu0
        %v4162 = vadd.f32 %v3833, %v4161
        %v4163 = vpop.f32.mrf.mxu0
        %v4164 = vadd.f32 %v3835, %v4163
        %4165 = vmatmul.bf16.gmra.mxu0 %v3134
        %v4166 = vpop.f32.mrf.mxu0
        %v4167 = vadd.f32 %v3838, %v4166
        %v4168 = vpop.f32.mrf.mxu0
        %v4169 = vadd.f32 %v3840, %v4168
        %4170 = vmatmul.bf16.gmra.mxu0 %v3136
        %v4171 = vpop.f32.mrf.mxu0
        %v4172 = vadd.f32 %v3843, %v4171
        %v4173 = vpop.f32.mrf.mxu0
        %v4174 = vadd.f32 %v3845, %v4173
        %4175 = vmatmul.bf16.gmra.mxu0 %v3138
        %v4176 = vpop.f32.mrf.mxu0
        %v4177 = vadd.f32 %v3848, %v4176
        %v4178 = vpop.f32.mrf.mxu0
        %v4179 = vadd.f32 %v3850, %v4178
        %4180 = vdwg.mxu0
        %4181 = vmatpush.bf16.msra.mxu0 %v3424
        %4182 = vmatpush.bf16.msra.mxu0 %v3420
        %4183 = vmatpush.bf16.msra.mxu0 %v3416
        %4184 = vmatpush.bf16.msra.mxu0 %v3412
        %4185 = vmatpush.bf16.msra.mxu0 %v3408
        %4186 = vmatpush.bf16.msra.mxu0 %v3404
        %4187 = vmatpush.bf16.msra.mxu0 %v3400
        %4188 = vmatpush.bf16.msra.mxu0 %v3396
        %4189 = vmatmul.bf16.gmra.mxu0 %v3011
        %v4190 = vpop.f32.mrf.mxu0
        %v4191 = vadd.f32 0.0, %v4190
        %v4192 = vpop.f32.mrf.mxu0
        %v4193 = vadd.f32 0.0, %v4192
        %4194 = vmatmul.bf16.gmra.mxu0 %v3013
        %v4195 = vpop.f32.mrf.mxu0
        %v4196 = vadd.f32 0.0, %v4195
        %v4197 = vpop.f32.mrf.mxu0
        %v4198 = vadd.f32 0.0, %v4197
        %4199 = vmatmul.bf16.gmra.mxu0 %v3015
        %v4200 = vpop.f32.mrf.mxu0
        %v4201 = vadd.f32 0.0, %v4200
        %v4202 = vpop.f32.mrf.mxu0
        %v4203 = vadd.f32 0.0, %v4202
        %4204 = vmatmul.bf16.gmra.mxu0 %v3017
        %v4205 = vpop.f32.mrf.mxu0
        %v4206 = vadd.f32 0.0, %v4205
        %v4207 = vpop.f32.mrf.mxu0
        %v4208 = vadd.f32 0.0, %v4207
        %4209 = vmatmul.bf16.gmra.mxu0 %v3019
        %v4210 = vpop.f32.mrf.mxu0
        %v4211 = vadd.f32 0.0, %v4210
        %v4212 = vpop.f32.mrf.mxu0
        %v4213 = vadd.f32 0.0, %v4212
        %4214 = vmatmul.bf16.gmra.mxu0 %v3021
        %v4215 = vpop.f32.mrf.mxu0
        %v4216 = vadd.f32 0.0, %v4215
        %v4217 = vpop.f32.mrf.mxu0
        %v4218 = vadd.f32 0.0, %v4217
        %4219 = vmatmul.bf16.gmra.mxu0 %v3023
        %v4220 = vpop.f32.mrf.mxu0
        %v4221 = vadd.f32 0.0, %v4220
        %v4222 = vpop.f32.mrf.mxu0
        %v4223 = vadd.f32 0.0, %v4222
        %4224 = vmatmul.bf16.gmra.mxu0 %v3025
        %v4225 = vpop.f32.mrf.mxu0
        %v4226 = vadd.f32 0.0, %v4225
        %v4227 = vpop.f32.mrf.mxu0
        %v4228 = vadd.f32 0.0, %v4227
        %4229 = vmatmul.bf16.gmra.mxu0 %v3027
        %v4230 = vpop.f32.mrf.mxu0
        %v4231 = vadd.f32 0.0, %v4230
        %v4232 = vpop.f32.mrf.mxu0
        %v4233 = vadd.f32 0.0, %v4232
        %4234 = vmatmul.bf16.gmra.mxu0 %v3029
        %v4235 = vpop.f32.mrf.mxu0
        %v4236 = vadd.f32 0.0, %v4235
        %v4237 = vpop.f32.mrf.mxu0
        %v4238 = vadd.f32 0.0, %v4237
        %4239 = vmatmul.bf16.gmra.mxu0 %v3031
        %v4240 = vpop.f32.mrf.mxu0
        %v4241 = vadd.f32 0.0, %v4240
        %v4242 = vpop.f32.mrf.mxu0
        %v4243 = vadd.f32 0.0, %v4242
        %4244 = vmatmul.bf16.gmra.mxu0 %v3033
        %v4245 = vpop.f32.mrf.mxu0
        %v4246 = vadd.f32 0.0, %v4245
        %v4247 = vpop.f32.mrf.mxu0
        %v4248 = vadd.f32 0.0, %v4247
        %4249 = vmatmul.bf16.gmra.mxu0 %v3035
        %v4250 = vpop.f32.mrf.mxu0
        %v4251 = vadd.f32 0.0, %v4250
        %v4252 = vpop.f32.mrf.mxu0
        %v4253 = vadd.f32 0.0, %v4252
        %4254 = vmatmul.bf16.gmra.mxu0 %v3037
        %v4255 = vpop.f32.mrf.mxu0
        %v4256 = vadd.f32 0.0, %v4255
        %v4257 = vpop.f32.mrf.mxu0
        %v4258 = vadd.f32 0.0, %v4257
        %4259 = vmatmul.bf16.gmra.mxu0 %v3039
        %v4260 = vpop.f32.mrf.mxu0
        %v4261 = vadd.f32 0.0, %v4260
        %v4262 = vpop.f32.mrf.mxu0
        %v4263 = vadd.f32 0.0, %v4262
        %4264 = vmatmul.bf16.gmra.mxu0 %v3041
        %v4265 = vpop.f32.mrf.mxu0
        %v4266 = vadd.f32 0.0, %v4265
        %v4267 = vpop.f32.mrf.mxu0
        %v4268 = vadd.f32 0.0, %v4267
        %4269 = vmatmul.bf16.gmra.mxu0 %v3043
        %v4270 = vpop.f32.mrf.mxu0
        %v4271 = vadd.f32 0.0, %v4270
        %v4272 = vpop.f32.mrf.mxu0
        %v4273 = vadd.f32 0.0, %v4272
        %4274 = vmatmul.bf16.gmra.mxu0 %v3045
        %v4275 = vpop.f32.mrf.mxu0
        %v4276 = vadd.f32 0.0, %v4275
        %v4277 = vpop.f32.mrf.mxu0
        %v4278 = vadd.f32 0.0, %v4277
        %4279 = vmatmul.bf16.gmra.mxu0 %v3047
        %v4280 = vpop.f32.mrf.mxu0
        %v4281 = vadd.f32 0.0, %v4280
        %v4282 = vpop.f32.mrf.mxu0
        %v4283 = vadd.f32 0.0, %v4282
        %4284 = vmatmul.bf16.gmra.mxu0 %v3049
        %v4285 = vpop.f32.mrf.mxu0
        %v4286 = vadd.f32 0.0, %v4285
        %v4287 = vpop.f32.mrf.mxu0
        %v4288 = vadd.f32 0.0, %v4287
        %4289 = vmatmul.bf16.gmra.mxu0 %v3051
        %v4290 = vpop.f32.mrf.mxu0
        %v4291 = vadd.f32 0.0, %v4290
        %v4292 = vpop.f32.mrf.mxu0
        %v4293 = vadd.f32 0.0, %v4292
        %4294 = vmatmul.bf16.gmra.mxu0 %v3053
        %v4295 = vpop.f32.mrf.mxu0
        %v4296 = vadd.f32 0.0, %v4295
        %v4297 = vpop.f32.mrf.mxu0
        %v4298 = vadd.f32 0.0, %v4297
        %4299 = vmatmul.bf16.gmra.mxu0 %v3055
        %v4300 = vpop.f32.mrf.mxu0
        %v4301 = vadd.f32 0.0, %v4300
        %v4302 = vpop.f32.mrf.mxu0
        %v4303 = vadd.f32 0.0, %v4302
        %4304 = vmatmul.bf16.gmra.mxu0 %v3057
        %v4305 = vpop.f32.mrf.mxu0
        %v4306 = vadd.f32 0.0, %v4305
        %v4307 = vpop.f32.mrf.mxu0
        %v4308 = vadd.f32 0.0, %v4307
        %4309 = vmatmul.bf16.gmra.mxu0 %v3059
        %v4310 = vpop.f32.mrf.mxu0
        %v4311 = vadd.f32 0.0, %v4310
        %v4312 = vpop.f32.mrf.mxu0
        %v4313 = vadd.f32 0.0, %v4312
        %4314 = vmatmul.bf16.gmra.mxu0 %v3061
        %v4315 = vpop.f32.mrf.mxu0
        %v4316 = vadd.f32 0.0, %v4315
        %v4317 = vpop.f32.mrf.mxu0
        %v4318 = vadd.f32 0.0, %v4317
        %4319 = vmatmul.bf16.gmra.mxu0 %v3063
        %v4320 = vpop.f32.mrf.mxu0
        %v4321 = vadd.f32 0.0, %v4320
        %v4322 = vpop.f32.mrf.mxu0
        %v4323 = vadd.f32 0.0, %v4322
        %4324 = vmatmul.bf16.gmra.mxu0 %v3065
        %v4325 = vpop.f32.mrf.mxu0
        %v4326 = vadd.f32 0.0, %v4325
        %v4327 = vpop.f32.mrf.mxu0
        %v4328 = vadd.f32 0.0, %v4327
        %4329 = vmatmul.bf16.gmra.mxu0 %v3067
        %v4330 = vpop.f32.mrf.mxu0
        %v4331 = vadd.f32 0.0, %v4330
        %v4332 = vpop.f32.mrf.mxu0
        %v4333 = vadd.f32 0.0, %v4332
        %4334 = vmatmul.bf16.gmra.mxu0 %v3069
        %v4335 = vpop.f32.mrf.mxu0
        %v4336 = vadd.f32 0.0, %v4335
        %v4337 = vpop.f32.mrf.mxu0
        %v4338 = vadd.f32 0.0, %v4337
        %4339 = vmatmul.bf16.gmra.mxu0 %v3071
        %v4340 = vpop.f32.mrf.mxu0
        %v4341 = vadd.f32 0.0, %v4340
        %v4342 = vpop.f32.mrf.mxu0
        %v4343 = vadd.f32 0.0, %v4342
        %4344 = vmatmul.bf16.gmra.mxu0 %v3073
        %v4345 = vpop.f32.mrf.mxu0
        %v4346 = vadd.f32 0.0, %v4345
        %v4347 = vpop.f32.mrf.mxu0
        %v4348 = vadd.f32 0.0, %v4347
        %4349 = vmatmul.bf16.gmra.mxu0 %v3075
        %v4350 = vpop.f32.mrf.mxu0
        %v4351 = vadd.f32 0.0, %v4350
        %v4352 = vpop.f32.mrf.mxu0
        %v4353 = vadd.f32 0.0, %v4352
        %4354 = vmatmul.bf16.gmra.mxu0 %v3077
        %v4355 = vpop.f32.mrf.mxu0
        %v4356 = vadd.f32 0.0, %v4355
        %v4357 = vpop.f32.mrf.mxu0
        %v4358 = vadd.f32 0.0, %v4357
        %4359 = vmatmul.bf16.gmra.mxu0 %v3079
        %v4360 = vpop.f32.mrf.mxu0
        %v4361 = vadd.f32 0.0, %v4360
        %v4362 = vpop.f32.mrf.mxu0
        %v4363 = vadd.f32 0.0, %v4362
        %4364 = vmatmul.bf16.gmra.mxu0 %v3081
        %v4365 = vpop.f32.mrf.mxu0
        %v4366 = vadd.f32 0.0, %v4365
        %v4367 = vpop.f32.mrf.mxu0
        %v4368 = vadd.f32 0.0, %v4367
        %4369 = vmatmul.bf16.gmra.mxu0 %v3083
        %v4370 = vpop.f32.mrf.mxu0
        %v4371 = vadd.f32 0.0, %v4370
        %v4372 = vpop.f32.mrf.mxu0
        %v4373 = vadd.f32 0.0, %v4372
        %4374 = vmatmul.bf16.gmra.mxu0 %v3085
        %v4375 = vpop.f32.mrf.mxu0
        %v4376 = vadd.f32 0.0, %v4375
        %v4377 = vpop.f32.mrf.mxu0
        %v4378 = vadd.f32 0.0, %v4377
        %4379 = vmatmul.bf16.gmra.mxu0 %v3087
        %v4380 = vpop.f32.mrf.mxu0
        %v4381 = vadd.f32 0.0, %v4380
        %v4382 = vpop.f32.mrf.mxu0
        %v4383 = vadd.f32 0.0, %v4382
        %4384 = vmatmul.bf16.gmra.mxu0 %v3089
        %v4385 = vpop.f32.mrf.mxu0
        %v4386 = vadd.f32 0.0, %v4385
        %v4387 = vpop.f32.mrf.mxu0
        %v4388 = vadd.f32 0.0, %v4387
        %4389 = vmatmul.bf16.gmra.mxu0 %v3091
        %v4390 = vpop.f32.mrf.mxu0
        %v4391 = vadd.f32 0.0, %v4390
        %v4392 = vpop.f32.mrf.mxu0
        %v4393 = vadd.f32 0.0, %v4392
        %4394 = vmatmul.bf16.gmra.mxu0 %v3093
        %v4395 = vpop.f32.mrf.mxu0
        %v4396 = vadd.f32 0.0, %v4395
        %v4397 = vpop.f32.mrf.mxu0
        %v4398 = vadd.f32 0.0, %v4397
        %4399 = vmatmul.bf16.gmra.mxu0 %v3095
        %v4400 = vpop.f32.mrf.mxu0
        %v4401 = vadd.f32 0.0, %v4400
        %v4402 = vpop.f32.mrf.mxu0
        %v4403 = vadd.f32 0.0, %v4402
        %4404 = vmatmul.bf16.gmra.mxu0 %v3097
        %v4405 = vpop.f32.mrf.mxu0
        %v4406 = vadd.f32 0.0, %v4405
        %v4407 = vpop.f32.mrf.mxu0
        %v4408 = vadd.f32 0.0, %v4407
        %4409 = vmatmul.bf16.gmra.mxu0 %v3099
        %v4410 = vpop.f32.mrf.mxu0
        %v4411 = vadd.f32 0.0, %v4410
        %v4412 = vpop.f32.mrf.mxu0
        %v4413 = vadd.f32 0.0, %v4412
        %4414 = vmatmul.bf16.gmra.mxu0 %v3101
        %v4415 = vpop.f32.mrf.mxu0
        %v4416 = vadd.f32 0.0, %v4415
        %v4417 = vpop.f32.mrf.mxu0
        %v4418 = vadd.f32 0.0, %v4417
        %4419 = vmatmul.bf16.gmra.mxu0 %v3103
        %v4420 = vpop.f32.mrf.mxu0
        %v4421 = vadd.f32 0.0, %v4420
        %v4422 = vpop.f32.mrf.mxu0
        %v4423 = vadd.f32 0.0, %v4422
        %4424 = vmatmul.bf16.gmra.mxu0 %v3105
        %v4425 = vpop.f32.mrf.mxu0
        %v4426 = vadd.f32 0.0, %v4425
        %v4427 = vpop.f32.mrf.mxu0
        %v4428 = vadd.f32 0.0, %v4427
        %4429 = vmatmul.bf16.gmra.mxu0 %v3107
        %v4430 = vpop.f32.mrf.mxu0
        %v4431 = vadd.f32 0.0, %v4430
        %v4432 = vpop.f32.mrf.mxu0
        %v4433 = vadd.f32 0.0, %v4432
        %4434 = vmatmul.bf16.gmra.mxu0 %v3109
        %v4435 = vpop.f32.mrf.mxu0
        %v4436 = vadd.f32 0.0, %v4435
        %v4437 = vpop.f32.mrf.mxu0
        %v4438 = vadd.f32 0.0, %v4437
        %4439 = vmatmul.bf16.gmra.mxu0 %v3111
        %v4440 = vpop.f32.mrf.mxu0
        %v4441 = vadd.f32 0.0, %v4440
        %v4442 = vpop.f32.mrf.mxu0
        %v4443 = vadd.f32 0.0, %v4442
        %4444 = vmatmul.bf16.gmra.mxu0 %v3113
        %v4445 = vpop.f32.mrf.mxu0
        %v4446 = vadd.f32 0.0, %v4445
        %v4447 = vpop.f32.mrf.mxu0
        %v4448 = vadd.f32 0.0, %v4447
        %4449 = vmatmul.bf16.gmra.mxu0 %v3115
        %v4450 = vpop.f32.mrf.mxu0
        %v4451 = vadd.f32 0.0, %v4450
        %v4452 = vpop.f32.mrf.mxu0
        %v4453 = vadd.f32 0.0, %v4452
        %4454 = vmatmul.bf16.gmra.mxu0 %v3117
        %v4455 = vpop.f32.mrf.mxu0
        %v4456 = vadd.f32 0.0, %v4455
        %v4457 = vpop.f32.mrf.mxu0
        %v4458 = vadd.f32 0.0, %v4457
        %4459 = vmatmul.bf16.gmra.mxu0 %v3119
        %v4460 = vpop.f32.mrf.mxu0
        %v4461 = vadd.f32 0.0, %v4460
        %v4462 = vpop.f32.mrf.mxu0
        %v4463 = vadd.f32 0.0, %v4462
        %4464 = vmatmul.bf16.gmra.mxu0 %v3121
        %v4465 = vpop.f32.mrf.mxu0
        %v4466 = vadd.f32 0.0, %v4465
        %v4467 = vpop.f32.mrf.mxu0
        %v4468 = vadd.f32 0.0, %v4467
        %4469 = vmatmul.bf16.gmra.mxu0 %v3123
        %v4470 = vpop.f32.mrf.mxu0
        %v4471 = vadd.f32 0.0, %v4470
        %v4472 = vpop.f32.mrf.mxu0
        %v4473 = vadd.f32 0.0, %v4472
        %4474 = vmatmul.bf16.gmra.mxu0 %v3125
        %v4475 = vpop.f32.mrf.mxu0
        %v4476 = vadd.f32 0.0, %v4475
        %v4477 = vpop.f32.mrf.mxu0
        %v4478 = vadd.f32 0.0, %v4477
        %4479 = vmatmul.bf16.gmra.mxu0 %v3127
        %v4480 = vpop.f32.mrf.mxu0
        %v4481 = vadd.f32 0.0, %v4480
        %v4482 = vpop.f32.mrf.mxu0
        %v4483 = vadd.f32 0.0, %v4482
        %4484 = vmatmul.bf16.gmra.mxu0 %v3129
        %v4485 = vpop.f32.mrf.mxu0
        %v4486 = vadd.f32 0.0, %v4485
        %v4487 = vpop.f32.mrf.mxu0
        %v4488 = vadd.f32 0.0, %v4487
        %4489 = vmatmul.bf16.gmra.mxu0 %v3131
        %v4490 = vpop.f32.mrf.mxu0
        %v4491 = vadd.f32 0.0, %v4490
        %v4492 = vpop.f32.mrf.mxu0
        %v4493 = vadd.f32 0.0, %v4492
        %4494 = vmatmul.bf16.gmra.mxu0 %v3133
        %v4495 = vpop.f32.mrf.mxu0
        %v4496 = vadd.f32 0.0, %v4495
        %v4497 = vpop.f32.mrf.mxu0
        %v4498 = vadd.f32 0.0, %v4497
        %4499 = vmatmul.bf16.gmra.mxu0 %v3135
        %v4500 = vpop.f32.mrf.mxu0
        %v4501 = vadd.f32 0.0, %v4500
        %v4502 = vpop.f32.mrf.mxu0
        %v4503 = vadd.f32 0.0, %v4502
        %4504 = vmatmul.bf16.gmra.mxu0 %v3137
        %v4505 = vpop.f32.mrf.mxu0
        %v4506 = vadd.f32 0.0, %v4505
        %v4507 = vpop.f32.mrf.mxu0
        %v4508 = vadd.f32 0.0, %v4507
        %4509 = vdwg.mxu0
        %4510 = vmatpush.bf16.msra.mxu0 %v3456
        %4511 = vmatpush.bf16.msra.mxu0 %v3452
        %4512 = vmatpush.bf16.msra.mxu0 %v3448
        %4513 = vmatpush.bf16.msra.mxu0 %v3444
        %4514 = vmatpush.bf16.msra.mxu0 %v3440
        %4515 = vmatpush.bf16.msra.mxu0 %v3436
        %4516 = vmatpush.bf16.msra.mxu0 %v3432
        %4517 = vmatpush.bf16.msra.mxu0 %v3428
        %4518 = vmatmul.bf16.gmra.mxu0 %v3012
        %v4519 = vpop.f32.mrf.mxu0
        %v4520 = vadd.f32 %v4191, %v4519
        %v4521 = vpop.f32.mrf.mxu0
        %v4522 = vadd.f32 %v4193, %v4521
        %4523 = vmatmul.bf16.gmra.mxu0 %v3014
        %v4524 = vpop.f32.mrf.mxu0
        %v4525 = vadd.f32 %v4196, %v4524
        %v4526 = vpop.f32.mrf.mxu0
        %v4527 = vadd.f32 %v4198, %v4526
        %4528 = vmatmul.bf16.gmra.mxu0 %v3016
        %v4529 = vpop.f32.mrf.mxu0
        %v4530 = vadd.f32 %v4201, %v4529
        %v4531 = vpop.f32.mrf.mxu0
        %v4532 = vadd.f32 %v4203, %v4531
        %4533 = vmatmul.bf16.gmra.mxu0 %v3018
        %v4534 = vpop.f32.mrf.mxu0
        %v4535 = vadd.f32 %v4206, %v4534
        %v4536 = vpop.f32.mrf.mxu0
        %v4537 = vadd.f32 %v4208, %v4536
        %4538 = vmatmul.bf16.gmra.mxu0 %v3020
        %v4539 = vpop.f32.mrf.mxu0
        %v4540 = vadd.f32 %v4211, %v4539
        %v4541 = vpop.f32.mrf.mxu0
        %v4542 = vadd.f32 %v4213, %v4541
        %4543 = vmatmul.bf16.gmra.mxu0 %v3022
        %v4544 = vpop.f32.mrf.mxu0
        %v4545 = vadd.f32 %v4216, %v4544
        %v4546 = vpop.f32.mrf.mxu0
        %v4547 = vadd.f32 %v4218, %v4546
        %4548 = vmatmul.bf16.gmra.mxu0 %v3024
        %v4549 = vpop.f32.mrf.mxu0
        %v4550 = vadd.f32 %v4221, %v4549
        %v4551 = vpop.f32.mrf.mxu0
        %v4552 = vadd.f32 %v4223, %v4551
        %4553 = vmatmul.bf16.gmra.mxu0 %v3026
        %v4554 = vpop.f32.mrf.mxu0
        %v4555 = vadd.f32 %v4226, %v4554
        %v4556 = vpop.f32.mrf.mxu0
        %v4557 = vadd.f32 %v4228, %v4556
        %4558 = vmatmul.bf16.gmra.mxu0 %v3028
        %v4559 = vpop.f32.mrf.mxu0
        %v4560 = vadd.f32 %v4231, %v4559
        %v4561 = vpop.f32.mrf.mxu0
        %v4562 = vadd.f32 %v4233, %v4561
        %4563 = vmatmul.bf16.gmra.mxu0 %v3030
        %v4564 = vpop.f32.mrf.mxu0
        %v4565 = vadd.f32 %v4236, %v4564
        %v4566 = vpop.f32.mrf.mxu0
        %v4567 = vadd.f32 %v4238, %v4566
        %4568 = vmatmul.bf16.gmra.mxu0 %v3032
        %v4569 = vpop.f32.mrf.mxu0
        %v4570 = vadd.f32 %v4241, %v4569
        %v4571 = vpop.f32.mrf.mxu0
        %v4572 = vadd.f32 %v4243, %v4571
        %4573 = vmatmul.bf16.gmra.mxu0 %v3034
        %v4574 = vpop.f32.mrf.mxu0
        %v4575 = vadd.f32 %v4246, %v4574
        %v4576 = vpop.f32.mrf.mxu0
        %v4577 = vadd.f32 %v4248, %v4576
        %4578 = vmatmul.bf16.gmra.mxu0 %v3036
        %v4579 = vpop.f32.mrf.mxu0
        %v4580 = vadd.f32 %v4251, %v4579
        %v4581 = vpop.f32.mrf.mxu0
        %v4582 = vadd.f32 %v4253, %v4581
        %4583 = vmatmul.bf16.gmra.mxu0 %v3038
        %v4584 = vpop.f32.mrf.mxu0
        %v4585 = vadd.f32 %v4256, %v4584
        %v4586 = vpop.f32.mrf.mxu0
        %v4587 = vadd.f32 %v4258, %v4586
        %4588 = vmatmul.bf16.gmra.mxu0 %v3040
        %v4589 = vpop.f32.mrf.mxu0
        %v4590 = vadd.f32 %v4261, %v4589
        %v4591 = vpop.f32.mrf.mxu0
        %v4592 = vadd.f32 %v4263, %v4591
        %4593 = vmatmul.bf16.gmra.mxu0 %v3042
        %v4594 = vpop.f32.mrf.mxu0
        %v4595 = vadd.f32 %v4266, %v4594
        %v4596 = vpop.f32.mrf.mxu0
        %v4597 = vadd.f32 %v4268, %v4596
        %4598 = vmatmul.bf16.gmra.mxu0 %v3044
        %v4599 = vpop.f32.mrf.mxu0
        %v4600 = vadd.f32 %v4271, %v4599
        %v4601 = vpop.f32.mrf.mxu0
        %v4602 = vadd.f32 %v4273, %v4601
        %4603 = vmatmul.bf16.gmra.mxu0 %v3046
        %v4604 = vpop.f32.mrf.mxu0
        %v4605 = vadd.f32 %v4276, %v4604
        %v4606 = vpop.f32.mrf.mxu0
        %v4607 = vadd.f32 %v4278, %v4606
        %4608 = vmatmul.bf16.gmra.mxu0 %v3048
        %v4609 = vpop.f32.mrf.mxu0
        %v4610 = vadd.f32 %v4281, %v4609
        %v4611 = vpop.f32.mrf.mxu0
        %v4612 = vadd.f32 %v4283, %v4611
        %4613 = vmatmul.bf16.gmra.mxu0 %v3050
        %v4614 = vpop.f32.mrf.mxu0
        %v4615 = vadd.f32 %v4286, %v4614
        %v4616 = vpop.f32.mrf.mxu0
        %v4617 = vadd.f32 %v4288, %v4616
        %4618 = vmatmul.bf16.gmra.mxu0 %v3052
        %v4619 = vpop.f32.mrf.mxu0
        %v4620 = vadd.f32 %v4291, %v4619
        %v4621 = vpop.f32.mrf.mxu0
        %v4622 = vadd.f32 %v4293, %v4621
        %4623 = vmatmul.bf16.gmra.mxu0 %v3054
        %v4624 = vpop.f32.mrf.mxu0
        %v4625 = vadd.f32 %v4296, %v4624
        %v4626 = vpop.f32.mrf.mxu0
        %v4627 = vadd.f32 %v4298, %v4626
        %4628 = vmatmul.bf16.gmra.mxu0 %v3056
        %v4629 = vpop.f32.mrf.mxu0
        %v4630 = vadd.f32 %v4301, %v4629
        %v4631 = vpop.f32.mrf.mxu0
        %v4632 = vadd.f32 %v4303, %v4631
        %4633 = vmatmul.bf16.gmra.mxu0 %v3058
        %v4634 = vpop.f32.mrf.mxu0
        %v4635 = vadd.f32 %v4306, %v4634
        %v4636 = vpop.f32.mrf.mxu0
        %v4637 = vadd.f32 %v4308, %v4636
        %4638 = vmatmul.bf16.gmra.mxu0 %v3060
        %v4639 = vpop.f32.mrf.mxu0
        %v4640 = vadd.f32 %v4311, %v4639
        %v4641 = vpop.f32.mrf.mxu0
        %v4642 = vadd.f32 %v4313, %v4641
        %4643 = vmatmul.bf16.gmra.mxu0 %v3062
        %v4644 = vpop.f32.mrf.mxu0
        %v4645 = vadd.f32 %v4316, %v4644
        %v4646 = vpop.f32.mrf.mxu0
        %v4647 = vadd.f32 %v4318, %v4646
        %4648 = vmatmul.bf16.gmra.mxu0 %v3064
        %v4649 = vpop.f32.mrf.mxu0
        %v4650 = vadd.f32 %v4321, %v4649
        %v4651 = vpop.f32.mrf.mxu0
        %v4652 = vadd.f32 %v4323, %v4651
        %4653 = vmatmul.bf16.gmra.mxu0 %v3066
        %v4654 = vpop.f32.mrf.mxu0
        %v4655 = vadd.f32 %v4326, %v4654
        %v4656 = vpop.f32.mrf.mxu0
        %v4657 = vadd.f32 %v4328, %v4656
        %4658 = vmatmul.bf16.gmra.mxu0 %v3068
        %v4659 = vpop.f32.mrf.mxu0
        %v4660 = vadd.f32 %v4331, %v4659
        %v4661 = vpop.f32.mrf.mxu0
        %v4662 = vadd.f32 %v4333, %v4661
        %4663 = vmatmul.bf16.gmra.mxu0 %v3070
        %v4664 = vpop.f32.mrf.mxu0
        %v4665 = vadd.f32 %v4336, %v4664
        %v4666 = vpop.f32.mrf.mxu0
        %v4667 = vadd.f32 %v4338, %v4666
        %4668 = vmatmul.bf16.gmra.mxu0 %v3072
        %v4669 = vpop.f32.mrf.mxu0
        %v4670 = vadd.f32 %v4341, %v4669
        %v4671 = vpop.f32.mrf.mxu0
        %v4672 = vadd.f32 %v4343, %v4671
        %4673 = vmatmul.bf16.gmra.mxu0 %v3074
        %v4674 = vpop.f32.mrf.mxu0
        %v4675 = vadd.f32 %v4346, %v4674
        %v4676 = vpop.f32.mrf.mxu0
        %v4677 = vadd.f32 %v4348, %v4676
        %4678 = vmatmul.bf16.gmra.mxu0 %v3076
        %v4679 = vpop.f32.mrf.mxu0
        %v4680 = vadd.f32 %v4351, %v4679
        %v4681 = vpop.f32.mrf.mxu0
        %v4682 = vadd.f32 %v4353, %v4681
        %4683 = vmatmul.bf16.gmra.mxu0 %v3078
        %v4684 = vpop.f32.mrf.mxu0
        %v4685 = vadd.f32 %v4356, %v4684
        %v4686 = vpop.f32.mrf.mxu0
        %v4687 = vadd.f32 %v4358, %v4686
        %4688 = vmatmul.bf16.gmra.mxu0 %v3080
        %v4689 = vpop.f32.mrf.mxu0
        %v4690 = vadd.f32 %v4361, %v4689
        %v4691 = vpop.f32.mrf.mxu0
        %v4692 = vadd.f32 %v4363, %v4691
        %4693 = vmatmul.bf16.gmra.mxu0 %v3082
        %v4694 = vpop.f32.mrf.mxu0
        %v4695 = vadd.f32 %v4366, %v4694
        %v4696 = vpop.f32.mrf.mxu0
        %v4697 = vadd.f32 %v4368, %v4696
        %4698 = vmatmul.bf16.gmra.mxu0 %v3084
        %v4699 = vpop.f32.mrf.mxu0
        %v4700 = vadd.f32 %v4371, %v4699
        %v4701 = vpop.f32.mrf.mxu0
        %v4702 = vadd.f32 %v4373, %v4701
        %4703 = vmatmul.bf16.gmra.mxu0 %v3086
        %v4704 = vpop.f32.mrf.mxu0
        %v4705 = vadd.f32 %v4376, %v4704
        %v4706 = vpop.f32.mrf.mxu0
        %v4707 = vadd.f32 %v4378, %v4706
        %4708 = vmatmul.bf16.gmra.mxu0 %v3088
        %v4709 = vpop.f32.mrf.mxu0
        %v4710 = vadd.f32 %v4381, %v4709
        %v4711 = vpop.f32.mrf.mxu0
        %v4712 = vadd.f32 %v4383, %v4711
        %4713 = vmatmul.bf16.gmra.mxu0 %v3090
        %v4714 = vpop.f32.mrf.mxu0
        %v4715 = vadd.f32 %v4386, %v4714
        %v4716 = vpop.f32.mrf.mxu0
        %v4717 = vadd.f32 %v4388, %v4716
        %4718 = vmatmul.bf16.gmra.mxu0 %v3092
        %v4719 = vpop.f32.mrf.mxu0
        %v4720 = vadd.f32 %v4391, %v4719
        %v4721 = vpop.f32.mrf.mxu0
        %v4722 = vadd.f32 %v4393, %v4721
        %4723 = vmatmul.bf16.gmra.mxu0 %v3094
        %v4724 = vpop.f32.mrf.mxu0
        %v4725 = vadd.f32 %v4396, %v4724
        %v4726 = vpop.f32.mrf.mxu0
        %v4727 = vadd.f32 %v4398, %v4726
        %4728 = vmatmul.bf16.gmra.mxu0 %v3096
        %v4729 = vpop.f32.mrf.mxu0
        %v4730 = vadd.f32 %v4401, %v4729
        %v4731 = vpop.f32.mrf.mxu0
        %v4732 = vadd.f32 %v4403, %v4731
        %4733 = vmatmul.bf16.gmra.mxu0 %v3098
        %v4734 = vpop.f32.mrf.mxu0
        %v4735 = vadd.f32 %v4406, %v4734
        %v4736 = vpop.f32.mrf.mxu0
        %v4737 = vadd.f32 %v4408, %v4736
        %4738 = vmatmul.bf16.gmra.mxu0 %v3100
        %v4739 = vpop.f32.mrf.mxu0
        %v4740 = vadd.f32 %v4411, %v4739
        %v4741 = vpop.f32.mrf.mxu0
        %v4742 = vadd.f32 %v4413, %v4741
        %4743 = vmatmul.bf16.gmra.mxu0 %v3102
        %v4744 = vpop.f32.mrf.mxu0
        %v4745 = vadd.f32 %v4416, %v4744
        %v4746 = vpop.f32.mrf.mxu0
        %v4747 = vadd.f32 %v4418, %v4746
        %4748 = vmatmul.bf16.gmra.mxu0 %v3104
        %v4749 = vpop.f32.mrf.mxu0
        %v4750 = vadd.f32 %v4421, %v4749
        %v4751 = vpop.f32.mrf.mxu0
        %v4752 = vadd.f32 %v4423, %v4751
        %4753 = vmatmul.bf16.gmra.mxu0 %v3106
        %v4754 = vpop.f32.mrf.mxu0
        %v4755 = vadd.f32 %v4426, %v4754
        %v4756 = vpop.f32.mrf.mxu0
        %v4757 = vadd.f32 %v4428, %v4756
        %4758 = vmatmul.bf16.gmra.mxu0 %v3108
        %v4759 = vpop.f32.mrf.mxu0
        %v4760 = vadd.f32 %v4431, %v4759
        %v4761 = vpop.f32.mrf.mxu0
        %v4762 = vadd.f32 %v4433, %v4761
        %4763 = vmatmul.bf16.gmra.mxu0 %v3110
        %v4764 = vpop.f32.mrf.mxu0
        %v4765 = vadd.f32 %v4436, %v4764
        %v4766 = vpop.f32.mrf.mxu0
        %v4767 = vadd.f32 %v4438, %v4766
        %4768 = vmatmul.bf16.gmra.mxu0 %v3112
        %v4769 = vpop.f32.mrf.mxu0
        %v4770 = vadd.f32 %v4441, %v4769
        %v4771 = vpop.f32.mrf.mxu0
        %v4772 = vadd.f32 %v4443, %v4771
        %4773 = vmatmul.bf16.gmra.mxu0 %v3114
        %v4774 = vpop.f32.mrf.mxu0
        %v4775 = vadd.f32 %v4446, %v4774
        %v4776 = vpop.f32.mrf.mxu0
        %v4777 = vadd.f32 %v4448, %v4776
        %4778 = vmatmul.bf16.gmra.mxu0 %v3116
        %v4779 = vpop.f32.mrf.mxu0
        %v4780 = vadd.f32 %v4451, %v4779
        %v4781 = vpop.f32.mrf.mxu0
        %v4782 = vadd.f32 %v4453, %v4781
        %4783 = vmatmul.bf16.gmra.mxu0 %v3118
        %v4784 = vpop.f32.mrf.mxu0
        %v4785 = vadd.f32 %v4456, %v4784
        %v4786 = vpop.f32.mrf.mxu0
        %v4787 = vadd.f32 %v4458, %v4786
        %4788 = vmatmul.bf16.gmra.mxu0 %v3120
        %v4789 = vpop.f32.mrf.mxu0
        %v4790 = vadd.f32 %v4461, %v4789
        %v4791 = vpop.f32.mrf.mxu0
        %v4792 = vadd.f32 %v4463, %v4791
        %4793 = vmatmul.bf16.gmra.mxu0 %v3122
        %v4794 = vpop.f32.mrf.mxu0
        %v4795 = vadd.f32 %v4466, %v4794
        %v4796 = vpop.f32.mrf.mxu0
        %v4797 = vadd.f32 %v4468, %v4796
        %4798 = vmatmul.bf16.gmra.mxu0 %v3124
        %v4799 = vpop.f32.mrf.mxu0
        %v4800 = vadd.f32 %v4471, %v4799
        %v4801 = vpop.f32.mrf.mxu0
        %v4802 = vadd.f32 %v4473, %v4801
        %4803 = vmatmul.bf16.gmra.mxu0 %v3126
        %v4804 = vpop.f32.mrf.mxu0
        %v4805 = vadd.f32 %v4476, %v4804
        %v4806 = vpop.f32.mrf.mxu0
        %v4807 = vadd.f32 %v4478, %v4806
        %4808 = vmatmul.bf16.gmra.mxu0 %v3128
        %v4809 = vpop.f32.mrf.mxu0
        %v4810 = vadd.f32 %v4481, %v4809
        %v4811 = vpop.f32.mrf.mxu0
        %v4812 = vadd.f32 %v4483, %v4811
        %4813 = vmatmul.bf16.gmra.mxu0 %v3130
        %v4814 = vpop.f32.mrf.mxu0
        %v4815 = vadd.f32 %v4486, %v4814
        %v4816 = vpop.f32.mrf.mxu0
        %v4817 = vadd.f32 %v4488, %v4816
        %4818 = vmatmul.bf16.gmra.mxu0 %v3132
        %v4819 = vpop.f32.mrf.mxu0
        %v4820 = vadd.f32 %v4491, %v4819
        %v4821 = vpop.f32.mrf.mxu0
        %v4822 = vadd.f32 %v4493, %v4821
        %4823 = vmatmul.bf16.gmra.mxu0 %v3134
        %v4824 = vpop.f32.mrf.mxu0
        %v4825 = vadd.f32 %v4496, %v4824
        %v4826 = vpop.f32.mrf.mxu0
        %v4827 = vadd.f32 %v4498, %v4826
        %4828 = vmatmul.bf16.gmra.mxu0 %v3136
        %v4829 = vpop.f32.mrf.mxu0
        %v4830 = vadd.f32 %v4501, %v4829
        %v4831 = vpop.f32.mrf.mxu0
        %v4832 = vadd.f32 %v4503, %v4831
        %4833 = vmatmul.bf16.gmra.mxu0 %v3138
        %v4834 = vpop.f32.mrf.mxu0
        %v4835 = vadd.f32 %v4506, %v4834
        %v4836 = vpop.f32.mrf.mxu0
        %v4837 = vadd.f32 %v4508, %v4836
        %4838 = vdwg.mxu0
        %4839 = vmatpush.bf16.msra.mxu0 %v3425
        %4840 = vmatpush.bf16.msra.mxu0 %v3421
        %4841 = vmatpush.bf16.msra.mxu0 %v3417
        %4842 = vmatpush.bf16.msra.mxu0 %v3413
        %4843 = vmatpush.bf16.msra.mxu0 %v3409
        %4844 = vmatpush.bf16.msra.mxu0 %v3405
        %4845 = vmatpush.bf16.msra.mxu0 %v3401
        %4846 = vmatpush.bf16.msra.mxu0 %v3397
        %4847 = vmatmul.bf16.gmra.mxu0 %v3011
        %v4848 = vpop.f32.mrf.mxu0
        %v4849 = vadd.f32 0.0, %v4848
        %v4850 = vpop.f32.mrf.mxu0
        %v4851 = vadd.f32 0.0, %v4850
        %4852 = vmatmul.bf16.gmra.mxu0 %v3013
        %v4853 = vpop.f32.mrf.mxu0
        %v4854 = vadd.f32 0.0, %v4853
        %v4855 = vpop.f32.mrf.mxu0
        %v4856 = vadd.f32 0.0, %v4855
        %4857 = vmatmul.bf16.gmra.mxu0 %v3015
        %v4858 = vpop.f32.mrf.mxu0
        %v4859 = vadd.f32 0.0, %v4858
        %v4860 = vpop.f32.mrf.mxu0
        %v4861 = vadd.f32 0.0, %v4860
        %4862 = vmatmul.bf16.gmra.mxu0 %v3017
        %v4863 = vpop.f32.mrf.mxu0
        %v4864 = vadd.f32 0.0, %v4863
        %v4865 = vpop.f32.mrf.mxu0
        %v4866 = vadd.f32 0.0, %v4865
        %4867 = vmatmul.bf16.gmra.mxu0 %v3019
        %v4868 = vpop.f32.mrf.mxu0
        %v4869 = vadd.f32 0.0, %v4868
        %v4870 = vpop.f32.mrf.mxu0
        %v4871 = vadd.f32 0.0, %v4870
        %4872 = vmatmul.bf16.gmra.mxu0 %v3021
        %v4873 = vpop.f32.mrf.mxu0
        %v4874 = vadd.f32 0.0, %v4873
        %v4875 = vpop.f32.mrf.mxu0
        %v4876 = vadd.f32 0.0, %v4875
        %4877 = vmatmul.bf16.gmra.mxu0 %v3023
        %v4878 = vpop.f32.mrf.mxu0
        %v4879 = vadd.f32 0.0, %v4878
        %v4880 = vpop.f32.mrf.mxu0
        %v4881 = vadd.f32 0.0, %v4880
        %4882 = vmatmul.bf16.gmra.mxu0 %v3025
        %v4883 = vpop.f32.mrf.mxu0
        %v4884 = vadd.f32 0.0, %v4883
        %v4885 = vpop.f32.mrf.mxu0
        %v4886 = vadd.f32 0.0, %v4885
        %4887 = vmatmul.bf16.gmra.mxu0 %v3027
        %v4888 = vpop.f32.mrf.mxu0
        %v4889 = vadd.f32 0.0, %v4888
        %v4890 = vpop.f32.mrf.mxu0
        %v4891 = vadd.f32 0.0, %v4890
        %4892 = vmatmul.bf16.gmra.mxu0 %v3029
        %v4893 = vpop.f32.mrf.mxu0
        %v4894 = vadd.f32 0.0, %v4893
        %v4895 = vpop.f32.mrf.mxu0
        %v4896 = vadd.f32 0.0, %v4895
        %4897 = vmatmul.bf16.gmra.mxu0 %v3031
        %v4898 = vpop.f32.mrf.mxu0
        %v4899 = vadd.f32 0.0, %v4898
        %v4900 = vpop.f32.mrf.mxu0
        %v4901 = vadd.f32 0.0, %v4900
        %4902 = vmatmul.bf16.gmra.mxu0 %v3033
        %v4903 = vpop.f32.mrf.mxu0
        %v4904 = vadd.f32 0.0, %v4903
        %v4905 = vpop.f32.mrf.mxu0
        %v4906 = vadd.f32 0.0, %v4905
        %4907 = vmatmul.bf16.gmra.mxu0 %v3035
        %v4908 = vpop.f32.mrf.mxu0
        %v4909 = vadd.f32 0.0, %v4908
        %v4910 = vpop.f32.mrf.mxu0
        %v4911 = vadd.f32 0.0, %v4910
        %4912 = vmatmul.bf16.gmra.mxu0 %v3037
        %v4913 = vpop.f32.mrf.mxu0
        %v4914 = vadd.f32 0.0, %v4913
        %v4915 = vpop.f32.mrf.mxu0
        %v4916 = vadd.f32 0.0, %v4915
        %4917 = vmatmul.bf16.gmra.mxu0 %v3039
        %v4918 = vpop.f32.mrf.mxu0
        %v4919 = vadd.f32 0.0, %v4918
        %v4920 = vpop.f32.mrf.mxu0
        %v4921 = vadd.f32 0.0, %v4920
        %4922 = vmatmul.bf16.gmra.mxu0 %v3041
        %v4923 = vpop.f32.mrf.mxu0
        %v4924 = vadd.f32 0.0, %v4923
        %v4925 = vpop.f32.mrf.mxu0
        %v4926 = vadd.f32 0.0, %v4925
        %4927 = vmatmul.bf16.gmra.mxu0 %v3043
        %v4928 = vpop.f32.mrf.mxu0
        %v4929 = vadd.f32 0.0, %v4928
        %v4930 = vpop.f32.mrf.mxu0
        %v4931 = vadd.f32 0.0, %v4930
        %4932 = vmatmul.bf16.gmra.mxu0 %v3045
        %v4933 = vpop.f32.mrf.mxu0
        %v4934 = vadd.f32 0.0, %v4933
        %v4935 = vpop.f32.mrf.mxu0
        %v4936 = vadd.f32 0.0, %v4935
        %4937 = vmatmul.bf16.gmra.mxu0 %v3047
        %v4938 = vpop.f32.mrf.mxu0
        %v4939 = vadd.f32 0.0, %v4938
        %v4940 = vpop.f32.mrf.mxu0
        %v4941 = vadd.f32 0.0, %v4940
        %4942 = vmatmul.bf16.gmra.mxu0 %v3049
        %v4943 = vpop.f32.mrf.mxu0
        %v4944 = vadd.f32 0.0, %v4943
        %v4945 = vpop.f32.mrf.mxu0
        %v4946 = vadd.f32 0.0, %v4945
        %4947 = vmatmul.bf16.gmra.mxu0 %v3051
        %v4948 = vpop.f32.mrf.mxu0
        %v4949 = vadd.f32 0.0, %v4948
        %v4950 = vpop.f32.mrf.mxu0
        %v4951 = vadd.f32 0.0, %v4950
        %4952 = vmatmul.bf16.gmra.mxu0 %v3053
        %v4953 = vpop.f32.mrf.mxu0
        %v4954 = vadd.f32 0.0, %v4953
        %v4955 = vpop.f32.mrf.mxu0
        %v4956 = vadd.f32 0.0, %v4955
        %4957 = vmatmul.bf16.gmra.mxu0 %v3055
        %v4958 = vpop.f32.mrf.mxu0
        %v4959 = vadd.f32 0.0, %v4958
        %v4960 = vpop.f32.mrf.mxu0
        %v4961 = vadd.f32 0.0, %v4960
        %4962 = vmatmul.bf16.gmra.mxu0 %v3057
        %v4963 = vpop.f32.mrf.mxu0
        %v4964 = vadd.f32 0.0, %v4963
        %v4965 = vpop.f32.mrf.mxu0
        %v4966 = vadd.f32 0.0, %v4965
        %4967 = vmatmul.bf16.gmra.mxu0 %v3059
        %v4968 = vpop.f32.mrf.mxu0
        %v4969 = vadd.f32 0.0, %v4968
        %v4970 = vpop.f32.mrf.mxu0
        %v4971 = vadd.f32 0.0, %v4970
        %4972 = vmatmul.bf16.gmra.mxu0 %v3061
        %v4973 = vpop.f32.mrf.mxu0
        %v4974 = vadd.f32 0.0, %v4973
        %v4975 = vpop.f32.mrf.mxu0
        %v4976 = vadd.f32 0.0, %v4975
        %4977 = vmatmul.bf16.gmra.mxu0 %v3063
        %v4978 = vpop.f32.mrf.mxu0
        %v4979 = vadd.f32 0.0, %v4978
        %v4980 = vpop.f32.mrf.mxu0
        %v4981 = vadd.f32 0.0, %v4980
        %4982 = vmatmul.bf16.gmra.mxu0 %v3065
        %v4983 = vpop.f32.mrf.mxu0
        %v4984 = vadd.f32 0.0, %v4983
        %v4985 = vpop.f32.mrf.mxu0
        %v4986 = vadd.f32 0.0, %v4985
        %4987 = vmatmul.bf16.gmra.mxu0 %v3067
        %v4988 = vpop.f32.mrf.mxu0
        %v4989 = vadd.f32 0.0, %v4988
        %v4990 = vpop.f32.mrf.mxu0
        %v4991 = vadd.f32 0.0, %v4990
        %4992 = vmatmul.bf16.gmra.mxu0 %v3069
        %v4993 = vpop.f32.mrf.mxu0
        %v4994 = vadd.f32 0.0, %v4993
        %v4995 = vpop.f32.mrf.mxu0
        %v4996 = vadd.f32 0.0, %v4995
        %4997 = vmatmul.bf16.gmra.mxu0 %v3071
        %v4998 = vpop.f32.mrf.mxu0
        %v4999 = vadd.f32 0.0, %v4998
        %v5000 = vpop.f32.mrf.mxu0
        %v5001 = vadd.f32 0.0, %v5000
        %5002 = vmatmul.bf16.gmra.mxu0 %v3073
        %v5003 = vpop.f32.mrf.mxu0
        %v5004 = vadd.f32 0.0, %v5003
        %v5005 = vpop.f32.mrf.mxu0
        %v5006 = vadd.f32 0.0, %v5005
        %5007 = vmatmul.bf16.gmra.mxu0 %v3075
        %v5008 = vpop.f32.mrf.mxu0
        %v5009 = vadd.f32 0.0, %v5008
        %v5010 = vpop.f32.mrf.mxu0
        %v5011 = vadd.f32 0.0, %v5010
        %5012 = vmatmul.bf16.gmra.mxu0 %v3077
        %v5013 = vpop.f32.mrf.mxu0
        %v5014 = vadd.f32 0.0, %v5013
        %v5015 = vpop.f32.mrf.mxu0
        %v5016 = vadd.f32 0.0, %v5015
        %5017 = vmatmul.bf16.gmra.mxu0 %v3079
        %v5018 = vpop.f32.mrf.mxu0
        %v5019 = vadd.f32 0.0, %v5018
        %v5020 = vpop.f32.mrf.mxu0
        %v5021 = vadd.f32 0.0, %v5020
        %5022 = vmatmul.bf16.gmra.mxu0 %v3081
        %v5023 = vpop.f32.mrf.mxu0
        %v5024 = vadd.f32 0.0, %v5023
        %v5025 = vpop.f32.mrf.mxu0
        %v5026 = vadd.f32 0.0, %v5025
        %5027 = vmatmul.bf16.gmra.mxu0 %v3083
        %v5028 = vpop.f32.mrf.mxu0
        %v5029 = vadd.f32 0.0, %v5028
        %v5030 = vpop.f32.mrf.mxu0
        %v5031 = vadd.f32 0.0, %v5030
        %5032 = vmatmul.bf16.gmra.mxu0 %v3085
        %v5033 = vpop.f32.mrf.mxu0
        %v5034 = vadd.f32 0.0, %v5033
        %v5035 = vpop.f32.mrf.mxu0
        %v5036 = vadd.f32 0.0, %v5035
        %5037 = vmatmul.bf16.gmra.mxu0 %v3087
        %v5038 = vpop.f32.mrf.mxu0
        %v5039 = vadd.f32 0.0, %v5038
        %v5040 = vpop.f32.mrf.mxu0
        %v5041 = vadd.f32 0.0, %v5040
        %5042 = vmatmul.bf16.gmra.mxu0 %v3089
        %v5043 = vpop.f32.mrf.mxu0
        %v5044 = vadd.f32 0.0, %v5043
        %v5045 = vpop.f32.mrf.mxu0
        %v5046 = vadd.f32 0.0, %v5045
        %5047 = vmatmul.bf16.gmra.mxu0 %v3091
        %v5048 = vpop.f32.mrf.mxu0
        %v5049 = vadd.f32 0.0, %v5048
        %v5050 = vpop.f32.mrf.mxu0
        %v5051 = vadd.f32 0.0, %v5050
        %5052 = vmatmul.bf16.gmra.mxu0 %v3093
        %v5053 = vpop.f32.mrf.mxu0
        %v5054 = vadd.f32 0.0, %v5053
        %v5055 = vpop.f32.mrf.mxu0
        %v5056 = vadd.f32 0.0, %v5055
        %5057 = vmatmul.bf16.gmra.mxu0 %v3095
        %v5058 = vpop.f32.mrf.mxu0
        %v5059 = vadd.f32 0.0, %v5058
        %v5060 = vpop.f32.mrf.mxu0
        %v5061 = vadd.f32 0.0, %v5060
        %5062 = vmatmul.bf16.gmra.mxu0 %v3097
        %v5063 = vpop.f32.mrf.mxu0
        %v5064 = vadd.f32 0.0, %v5063
        %v5065 = vpop.f32.mrf.mxu0
        %v5066 = vadd.f32 0.0, %v5065
        %5067 = vmatmul.bf16.gmra.mxu0 %v3099
        %v5068 = vpop.f32.mrf.mxu0
        %v5069 = vadd.f32 0.0, %v5068
        %v5070 = vpop.f32.mrf.mxu0
        %v5071 = vadd.f32 0.0, %v5070
        %5072 = vmatmul.bf16.gmra.mxu0 %v3101
        %v5073 = vpop.f32.mrf.mxu0
        %v5074 = vadd.f32 0.0, %v5073
        %v5075 = vpop.f32.mrf.mxu0
        %v5076 = vadd.f32 0.0, %v5075
        %5077 = vmatmul.bf16.gmra.mxu0 %v3103
        %v5078 = vpop.f32.mrf.mxu0
        %v5079 = vadd.f32 0.0, %v5078
        %v5080 = vpop.f32.mrf.mxu0
        %v5081 = vadd.f32 0.0, %v5080
        %5082 = vmatmul.bf16.gmra.mxu0 %v3105
        %v5083 = vpop.f32.mrf.mxu0
        %v5084 = vadd.f32 0.0, %v5083
        %v5085 = vpop.f32.mrf.mxu0
        %v5086 = vadd.f32 0.0, %v5085
        %5087 = vmatmul.bf16.gmra.mxu0 %v3107
        %v5088 = vpop.f32.mrf.mxu0
        %v5089 = vadd.f32 0.0, %v5088
        %v5090 = vpop.f32.mrf.mxu0
        %v5091 = vadd.f32 0.0, %v5090
        %5092 = vmatmul.bf16.gmra.mxu0 %v3109
        %v5093 = vpop.f32.mrf.mxu0
        %v5094 = vadd.f32 0.0, %v5093
        %v5095 = vpop.f32.mrf.mxu0
        %v5096 = vadd.f32 0.0, %v5095
        %5097 = vmatmul.bf16.gmra.mxu0 %v3111
        %v5098 = vpop.f32.mrf.mxu0
        %v5099 = vadd.f32 0.0, %v5098
        %v5100 = vpop.f32.mrf.mxu0
        %v5101 = vadd.f32 0.0, %v5100
        %5102 = vmatmul.bf16.gmra.mxu0 %v3113
        %v5103 = vpop.f32.mrf.mxu0
        %v5104 = vadd.f32 0.0, %v5103
        %v5105 = vpop.f32.mrf.mxu0
        %v5106 = vadd.f32 0.0, %v5105
        %5107 = vmatmul.bf16.gmra.mxu0 %v3115
        %v5108 = vpop.f32.mrf.mxu0
        %v5109 = vadd.f32 0.0, %v5108
        %v5110 = vpop.f32.mrf.mxu0
        %v5111 = vadd.f32 0.0, %v5110
        %5112 = vmatmul.bf16.gmra.mxu0 %v3117
        %v5113 = vpop.f32.mrf.mxu0
        %v5114 = vadd.f32 0.0, %v5113
        %v5115 = vpop.f32.mrf.mxu0
        %v5116 = vadd.f32 0.0, %v5115
        %5117 = vmatmul.bf16.gmra.mxu0 %v3119
        %v5118 = vpop.f32.mrf.mxu0
        %v5119 = vadd.f32 0.0, %v5118
        %v5120 = vpop.f32.mrf.mxu0
        %v5121 = vadd.f32 0.0, %v5120
        %5122 = vmatmul.bf16.gmra.mxu0 %v3121
        %v5123 = vpop.f32.mrf.mxu0
        %v5124 = vadd.f32 0.0, %v5123
        %v5125 = vpop.f32.mrf.mxu0
        %v5126 = vadd.f32 0.0, %v5125
        %5127 = vmatmul.bf16.gmra.mxu0 %v3123
        %v5128 = vpop.f32.mrf.mxu0
        %v5129 = vadd.f32 0.0, %v5128
        %v5130 = vpop.f32.mrf.mxu0
        %v5131 = vadd.f32 0.0, %v5130
        %5132 = vmatmul.bf16.gmra.mxu0 %v3125
        %v5133 = vpop.f32.mrf.mxu0
        %v5134 = vadd.f32 0.0, %v5133
        %v5135 = vpop.f32.mrf.mxu0
        %v5136 = vadd.f32 0.0, %v5135
        %5137 = vmatmul.bf16.gmra.mxu0 %v3127
        %v5138 = vpop.f32.mrf.mxu0
        %v5139 = vadd.f32 0.0, %v5138
        %v5140 = vpop.f32.mrf.mxu0
        %v5141 = vadd.f32 0.0, %v5140
        %5142 = vmatmul.bf16.gmra.mxu0 %v3129
        %v5143 = vpop.f32.mrf.mxu0
        %v5144 = vadd.f32 0.0, %v5143
        %v5145 = vpop.f32.mrf.mxu0
        %v5146 = vadd.f32 0.0, %v5145
        %5147 = vmatmul.bf16.gmra.mxu0 %v3131
        %v5148 = vpop.f32.mrf.mxu0
        %v5149 = vadd.f32 0.0, %v5148
        %v5150 = vpop.f32.mrf.mxu0
        %v5151 = vadd.f32 0.0, %v5150
        %5152 = vmatmul.bf16.gmra.mxu0 %v3133
        %v5153 = vpop.f32.mrf.mxu0
        %v5154 = vadd.f32 0.0, %v5153
        %v5155 = vpop.f32.mrf.mxu0
        %v5156 = vadd.f32 0.0, %v5155
        %5157 = vmatmul.bf16.gmra.mxu0 %v3135
        %v5158 = vpop.f32.mrf.mxu0
        %v5159 = vadd.f32 0.0, %v5158
        %v5160 = vpop.f32.mrf.mxu0
        %v5161 = vadd.f32 0.0, %v5160
        %5162 = vmatmul.bf16.gmra.mxu0 %v3137
        %v5163 = vpop.f32.mrf.mxu0
        %v5164 = vadd.f32 0.0, %v5163
        %v5165 = vpop.f32.mrf.mxu0
        %v5166 = vadd.f32 0.0, %v5165
        %5167 = vdwg.mxu0
        %5168 = vmatpush.bf16.msra.mxu0 %v3457
        %5169 = vmatpush.bf16.msra.mxu0 %v3453
        %5170 = vmatpush.bf16.msra.mxu0 %v3449
        %5171 = vmatpush.bf16.msra.mxu0 %v3445
        %5172 = vmatpush.bf16.msra.mxu0 %v3441
        %5173 = vmatpush.bf16.msra.mxu0 %v3437
        %5174 = vmatpush.bf16.msra.mxu0 %v3433
        %5175 = vmatpush.bf16.msra.mxu0 %v3429
        %5176 = vmatmul.bf16.gmra.mxu0 %v3012
        %v5177 = vpop.f32.mrf.mxu0
        %v5178 = vadd.f32 %v4849, %v5177
        %v5179 = vpop.f32.mrf.mxu0
        %v5180 = vadd.f32 %v4851, %v5179
        %5181 = vmatmul.bf16.gmra.mxu0 %v3014
        %v5182 = vpop.f32.mrf.mxu0
        %v5183 = vadd.f32 %v4854, %v5182
        %v5184 = vpop.f32.mrf.mxu0
        %v5185 = vadd.f32 %v4856, %v5184
        %5186 = vmatmul.bf16.gmra.mxu0 %v3016
        %v5187 = vpop.f32.mrf.mxu0
        %v5188 = vadd.f32 %v4859, %v5187
        %v5189 = vpop.f32.mrf.mxu0
        %v5190 = vadd.f32 %v4861, %v5189
        %5191 = vmatmul.bf16.gmra.mxu0 %v3018
        %v5192 = vpop.f32.mrf.mxu0
        %v5193 = vadd.f32 %v4864, %v5192
        %v5194 = vpop.f32.mrf.mxu0
        %v5195 = vadd.f32 %v4866, %v5194
        %5196 = vmatmul.bf16.gmra.mxu0 %v3020
        %v5197 = vpop.f32.mrf.mxu0
        %v5198 = vadd.f32 %v4869, %v5197
        %v5199 = vpop.f32.mrf.mxu0
        %v5200 = vadd.f32 %v4871, %v5199
        %5201 = vmatmul.bf16.gmra.mxu0 %v3022
        %v5202 = vpop.f32.mrf.mxu0
        %v5203 = vadd.f32 %v4874, %v5202
        %v5204 = vpop.f32.mrf.mxu0
        %v5205 = vadd.f32 %v4876, %v5204
        %5206 = vmatmul.bf16.gmra.mxu0 %v3024
        %v5207 = vpop.f32.mrf.mxu0
        %v5208 = vadd.f32 %v4879, %v5207
        %v5209 = vpop.f32.mrf.mxu0
        %v5210 = vadd.f32 %v4881, %v5209
        %5211 = vmatmul.bf16.gmra.mxu0 %v3026
        %v5212 = vpop.f32.mrf.mxu0
        %v5213 = vadd.f32 %v4884, %v5212
        %v5214 = vpop.f32.mrf.mxu0
        %v5215 = vadd.f32 %v4886, %v5214
        %5216 = vmatmul.bf16.gmra.mxu0 %v3028
        %v5217 = vpop.f32.mrf.mxu0
        %v5218 = vadd.f32 %v4889, %v5217
        %v5219 = vpop.f32.mrf.mxu0
        %v5220 = vadd.f32 %v4891, %v5219
        %5221 = vmatmul.bf16.gmra.mxu0 %v3030
        %v5222 = vpop.f32.mrf.mxu0
        %v5223 = vadd.f32 %v4894, %v5222
        %v5224 = vpop.f32.mrf.mxu0
        %v5225 = vadd.f32 %v4896, %v5224
        %5226 = vmatmul.bf16.gmra.mxu0 %v3032
        %v5227 = vpop.f32.mrf.mxu0
        %v5228 = vadd.f32 %v4899, %v5227
        %v5229 = vpop.f32.mrf.mxu0
        %v5230 = vadd.f32 %v4901, %v5229
        %5231 = vmatmul.bf16.gmra.mxu0 %v3034
        %v5232 = vpop.f32.mrf.mxu0
        %v5233 = vadd.f32 %v4904, %v5232
        %v5234 = vpop.f32.mrf.mxu0
        %v5235 = vadd.f32 %v4906, %v5234
        %5236 = vmatmul.bf16.gmra.mxu0 %v3036
        %v5237 = vpop.f32.mrf.mxu0
        %v5238 = vadd.f32 %v4909, %v5237
        %v5239 = vpop.f32.mrf.mxu0
        %v5240 = vadd.f32 %v4911, %v5239
        %5241 = vmatmul.bf16.gmra.mxu0 %v3038
        %v5242 = vpop.f32.mrf.mxu0
        %v5243 = vadd.f32 %v4914, %v5242
        %v5244 = vpop.f32.mrf.mxu0
        %v5245 = vadd.f32 %v4916, %v5244
        %5246 = vmatmul.bf16.gmra.mxu0 %v3040
        %v5247 = vpop.f32.mrf.mxu0
        %v5248 = vadd.f32 %v4919, %v5247
        %v5249 = vpop.f32.mrf.mxu0
        %v5250 = vadd.f32 %v4921, %v5249
        %5251 = vmatmul.bf16.gmra.mxu0 %v3042
        %v5252 = vpop.f32.mrf.mxu0
        %v5253 = vadd.f32 %v4924, %v5252
        %v5254 = vpop.f32.mrf.mxu0
        %v5255 = vadd.f32 %v4926, %v5254
        %5256 = vmatmul.bf16.gmra.mxu0 %v3044
        %v5257 = vpop.f32.mrf.mxu0
        %v5258 = vadd.f32 %v4929, %v5257
        %v5259 = vpop.f32.mrf.mxu0
        %v5260 = vadd.f32 %v4931, %v5259
        %5261 = vmatmul.bf16.gmra.mxu0 %v3046
        %v5262 = vpop.f32.mrf.mxu0
        %v5263 = vadd.f32 %v4934, %v5262
        %v5264 = vpop.f32.mrf.mxu0
        %v5265 = vadd.f32 %v4936, %v5264
        %5266 = vmatmul.bf16.gmra.mxu0 %v3048
        %v5267 = vpop.f32.mrf.mxu0
        %v5268 = vadd.f32 %v4939, %v5267
        %v5269 = vpop.f32.mrf.mxu0
        %v5270 = vadd.f32 %v4941, %v5269
        %5271 = vmatmul.bf16.gmra.mxu0 %v3050
        %v5272 = vpop.f32.mrf.mxu0
        %v5273 = vadd.f32 %v4944, %v5272
        %v5274 = vpop.f32.mrf.mxu0
        %v5275 = vadd.f32 %v4946, %v5274
        %5276 = vmatmul.bf16.gmra.mxu0 %v3052
        %v5277 = vpop.f32.mrf.mxu0
        %v5278 = vadd.f32 %v4949, %v5277
        %v5279 = vpop.f32.mrf.mxu0
        %v5280 = vadd.f32 %v4951, %v5279
        %5281 = vmatmul.bf16.gmra.mxu0 %v3054
        %v5282 = vpop.f32.mrf.mxu0
        %v5283 = vadd.f32 %v4954, %v5282
        %v5284 = vpop.f32.mrf.mxu0
        %v5285 = vadd.f32 %v4956, %v5284
        %5286 = vmatmul.bf16.gmra.mxu0 %v3056
        %v5287 = vpop.f32.mrf.mxu0
        %v5288 = vadd.f32 %v4959, %v5287
        %v5289 = vpop.f32.mrf.mxu0
        %v5290 = vadd.f32 %v4961, %v5289
        %5291 = vmatmul.bf16.gmra.mxu0 %v3058
        %v5292 = vpop.f32.mrf.mxu0
        %v5293 = vadd.f32 %v4964, %v5292
        %v5294 = vpop.f32.mrf.mxu0
        %v5295 = vadd.f32 %v4966, %v5294
        %5296 = vmatmul.bf16.gmra.mxu0 %v3060
        %v5297 = vpop.f32.mrf.mxu0
        %v5298 = vadd.f32 %v4969, %v5297
        %v5299 = vpop.f32.mrf.mxu0
        %v5300 = vadd.f32 %v4971, %v5299
        %5301 = vmatmul.bf16.gmra.mxu0 %v3062
        %v5302 = vpop.f32.mrf.mxu0
        %v5303 = vadd.f32 %v4974, %v5302
        %v5304 = vpop.f32.mrf.mxu0
        %v5305 = vadd.f32 %v4976, %v5304
        %5306 = vmatmul.bf16.gmra.mxu0 %v3064
        %v5307 = vpop.f32.mrf.mxu0
        %v5308 = vadd.f32 %v4979, %v5307
        %v5309 = vpop.f32.mrf.mxu0
        %v5310 = vadd.f32 %v4981, %v5309
        %5311 = vmatmul.bf16.gmra.mxu0 %v3066
        %v5312 = vpop.f32.mrf.mxu0
        %v5313 = vadd.f32 %v4984, %v5312
        %v5314 = vpop.f32.mrf.mxu0
        %v5315 = vadd.f32 %v4986, %v5314
        %5316 = vmatmul.bf16.gmra.mxu0 %v3068
        %v5317 = vpop.f32.mrf.mxu0
        %v5318 = vadd.f32 %v4989, %v5317
        %v5319 = vpop.f32.mrf.mxu0
        %v5320 = vadd.f32 %v4991, %v5319
        %5321 = vmatmul.bf16.gmra.mxu0 %v3070
        %v5322 = vpop.f32.mrf.mxu0
        %v5323 = vadd.f32 %v4994, %v5322
        %v5324 = vpop.f32.mrf.mxu0
        %v5325 = vadd.f32 %v4996, %v5324
        %5326 = vmatmul.bf16.gmra.mxu0 %v3072
        %v5327 = vpop.f32.mrf.mxu0
        %v5328 = vadd.f32 %v4999, %v5327
        %v5329 = vpop.f32.mrf.mxu0
        %v5330 = vadd.f32 %v5001, %v5329
        %5331 = vmatmul.bf16.gmra.mxu0 %v3074
        %v5332 = vpop.f32.mrf.mxu0
        %v5333 = vadd.f32 %v5004, %v5332
        %v5334 = vpop.f32.mrf.mxu0
        %v5335 = vadd.f32 %v5006, %v5334
        %5336 = vmatmul.bf16.gmra.mxu0 %v3076
        %v5337 = vpop.f32.mrf.mxu0
        %v5338 = vadd.f32 %v5009, %v5337
        %v5339 = vpop.f32.mrf.mxu0
        %v5340 = vadd.f32 %v5011, %v5339
        %5341 = vmatmul.bf16.gmra.mxu0 %v3078
        %v5342 = vpop.f32.mrf.mxu0
        %v5343 = vadd.f32 %v5014, %v5342
        %v5344 = vpop.f32.mrf.mxu0
        %v5345 = vadd.f32 %v5016, %v5344
        %5346 = vmatmul.bf16.gmra.mxu0 %v3080
        %v5347 = vpop.f32.mrf.mxu0
        %v5348 = vadd.f32 %v5019, %v5347
        %v5349 = vpop.f32.mrf.mxu0
        %v5350 = vadd.f32 %v5021, %v5349
        %5351 = vmatmul.bf16.gmra.mxu0 %v3082
        %v5352 = vpop.f32.mrf.mxu0
        %v5353 = vadd.f32 %v5024, %v5352
        %v5354 = vpop.f32.mrf.mxu0
        %v5355 = vadd.f32 %v5026, %v5354
        %5356 = vmatmul.bf16.gmra.mxu0 %v3084
        %v5357 = vpop.f32.mrf.mxu0
        %v5358 = vadd.f32 %v5029, %v5357
        %v5359 = vpop.f32.mrf.mxu0
        %v5360 = vadd.f32 %v5031, %v5359
        %5361 = vmatmul.bf16.gmra.mxu0 %v3086
        %v5362 = vpop.f32.mrf.mxu0
        %v5363 = vadd.f32 %v5034, %v5362
        %v5364 = vpop.f32.mrf.mxu0
        %v5365 = vadd.f32 %v5036, %v5364
        %5366 = vmatmul.bf16.gmra.mxu0 %v3088
        %v5367 = vpop.f32.mrf.mxu0
        %v5368 = vadd.f32 %v5039, %v5367
        %v5369 = vpop.f32.mrf.mxu0
        %v5370 = vadd.f32 %v5041, %v5369
        %5371 = vmatmul.bf16.gmra.mxu0 %v3090
        %v5372 = vpop.f32.mrf.mxu0
        %v5373 = vadd.f32 %v5044, %v5372
        %v5374 = vpop.f32.mrf.mxu0
        %v5375 = vadd.f32 %v5046, %v5374
        %5376 = vmatmul.bf16.gmra.mxu0 %v3092
        %v5377 = vpop.f32.mrf.mxu0
        %v5378 = vadd.f32 %v5049, %v5377
        %v5379 = vpop.f32.mrf.mxu0
        %v5380 = vadd.f32 %v5051, %v5379
        %5381 = vmatmul.bf16.gmra.mxu0 %v3094
        %v5382 = vpop.f32.mrf.mxu0
        %v5383 = vadd.f32 %v5054, %v5382
        %v5384 = vpop.f32.mrf.mxu0
        %v5385 = vadd.f32 %v5056, %v5384
        %5386 = vmatmul.bf16.gmra.mxu0 %v3096
        %v5387 = vpop.f32.mrf.mxu0
        %v5388 = vadd.f32 %v5059, %v5387
        %v5389 = vpop.f32.mrf.mxu0
        %v5390 = vadd.f32 %v5061, %v5389
        %5391 = vmatmul.bf16.gmra.mxu0 %v3098
        %v5392 = vpop.f32.mrf.mxu0
        %v5393 = vadd.f32 %v5064, %v5392
        %v5394 = vpop.f32.mrf.mxu0
        %v5395 = vadd.f32 %v5066, %v5394
        %5396 = vmatmul.bf16.gmra.mxu0 %v3100
        %v5397 = vpop.f32.mrf.mxu0
        %v5398 = vadd.f32 %v5069, %v5397
        %v5399 = vpop.f32.mrf.mxu0
        %v5400 = vadd.f32 %v5071, %v5399
        %5401 = vmatmul.bf16.gmra.mxu0 %v3102
        %v5402 = vpop.f32.mrf.mxu0
        %v5403 = vadd.f32 %v5074, %v5402
        %v5404 = vpop.f32.mrf.mxu0
        %v5405 = vadd.f32 %v5076, %v5404
        %5406 = vmatmul.bf16.gmra.mxu0 %v3104
        %v5407 = vpop.f32.mrf.mxu0
        %v5408 = vadd.f32 %v5079, %v5407
        %v5409 = vpop.f32.mrf.mxu0
        %v5410 = vadd.f32 %v5081, %v5409
        %5411 = vmatmul.bf16.gmra.mxu0 %v3106
        %v5412 = vpop.f32.mrf.mxu0
        %v5413 = vadd.f32 %v5084, %v5412
        %v5414 = vpop.f32.mrf.mxu0
        %v5415 = vadd.f32 %v5086, %v5414
        %5416 = vmatmul.bf16.gmra.mxu0 %v3108
        %v5417 = vpop.f32.mrf.mxu0
        %v5418 = vadd.f32 %v5089, %v5417
        %v5419 = vpop.f32.mrf.mxu0
        %v5420 = vadd.f32 %v5091, %v5419
        %5421 = vmatmul.bf16.gmra.mxu0 %v3110
        %v5422 = vpop.f32.mrf.mxu0
        %v5423 = vadd.f32 %v5094, %v5422
        %v5424 = vpop.f32.mrf.mxu0
        %v5425 = vadd.f32 %v5096, %v5424
        %5426 = vmatmul.bf16.gmra.mxu0 %v3112
        %v5427 = vpop.f32.mrf.mxu0
        %v5428 = vadd.f32 %v5099, %v5427
        %v5429 = vpop.f32.mrf.mxu0
        %v5430 = vadd.f32 %v5101, %v5429
        %5431 = vmatmul.bf16.gmra.mxu0 %v3114
        %v5432 = vpop.f32.mrf.mxu0
        %v5433 = vadd.f32 %v5104, %v5432
        %v5434 = vpop.f32.mrf.mxu0
        %v5435 = vadd.f32 %v5106, %v5434
        %5436 = vmatmul.bf16.gmra.mxu0 %v3116
        %v5437 = vpop.f32.mrf.mxu0
        %v5438 = vadd.f32 %v5109, %v5437
        %v5439 = vpop.f32.mrf.mxu0
        %v5440 = vadd.f32 %v5111, %v5439
        %5441 = vmatmul.bf16.gmra.mxu0 %v3118
        %v5442 = vpop.f32.mrf.mxu0
        %v5443 = vadd.f32 %v5114, %v5442
        %v5444 = vpop.f32.mrf.mxu0
        %v5445 = vadd.f32 %v5116, %v5444
        %5446 = vmatmul.bf16.gmra.mxu0 %v3120
        %v5447 = vpop.f32.mrf.mxu0
        %v5448 = vadd.f32 %v5119, %v5447
        %v5449 = vpop.f32.mrf.mxu0
        %v5450 = vadd.f32 %v5121, %v5449
        %5451 = vmatmul.bf16.gmra.mxu0 %v3122
        %v5452 = vpop.f32.mrf.mxu0
        %v5453 = vadd.f32 %v5124, %v5452
        %v5454 = vpop.f32.mrf.mxu0
        %v5455 = vadd.f32 %v5126, %v5454
        %5456 = vmatmul.bf16.gmra.mxu0 %v3124
        %v5457 = vpop.f32.mrf.mxu0
        %v5458 = vadd.f32 %v5129, %v5457
        %v5459 = vpop.f32.mrf.mxu0
        %v5460 = vadd.f32 %v5131, %v5459
        %5461 = vmatmul.bf16.gmra.mxu0 %v3126
        %v5462 = vpop.f32.mrf.mxu0
        %v5463 = vadd.f32 %v5134, %v5462
        %v5464 = vpop.f32.mrf.mxu0
        %v5465 = vadd.f32 %v5136, %v5464
        %5466 = vmatmul.bf16.gmra.mxu0 %v3128
        %v5467 = vpop.f32.mrf.mxu0
        %v5468 = vadd.f32 %v5139, %v5467
        %v5469 = vpop.f32.mrf.mxu0
        %v5470 = vadd.f32 %v5141, %v5469
        %5471 = vmatmul.bf16.gmra.mxu0 %v3130
        %v5472 = vpop.f32.mrf.mxu0
        %v5473 = vadd.f32 %v5144, %v5472
        %v5474 = vpop.f32.mrf.mxu0
        %v5475 = vadd.f32 %v5146, %v5474
        %5476 = vmatmul.bf16.gmra.mxu0 %v3132
        %v5477 = vpop.f32.mrf.mxu0
        %v5478 = vadd.f32 %v5149, %v5477
        %v5479 = vpop.f32.mrf.mxu0
        %v5480 = vadd.f32 %v5151, %v5479
        %5481 = vmatmul.bf16.gmra.mxu0 %v3134
        %v5482 = vpop.f32.mrf.mxu0
        %v5483 = vadd.f32 %v5154, %v5482
        %v5484 = vpop.f32.mrf.mxu0
        %v5485 = vadd.f32 %v5156, %v5484
        %5486 = vmatmul.bf16.gmra.mxu0 %v3136
        %v5487 = vpop.f32.mrf.mxu0
        %v5488 = vadd.f32 %v5159, %v5487
        %v5489 = vpop.f32.mrf.mxu0
        %v5490 = vadd.f32 %v5161, %v5489
        %5491 = vmatmul.bf16.gmra.mxu0 %v3138
        %v5492 = vpop.f32.mrf.mxu0
        %v5493 = vadd.f32 %v5164, %v5492
        %v5494 = vpop.f32.mrf.mxu0
        %v5495 = vadd.f32 %v5166, %v5494
        %5496 = vdwg.mxu0
        %5497 = vmatpush.bf16.msra.mxu0 %v3426
        %5498 = vmatpush.bf16.msra.mxu0 %v3422
        %5499 = vmatpush.bf16.msra.mxu0 %v3418
        %5500 = vmatpush.bf16.msra.mxu0 %v3414
        %5501 = vmatpush.bf16.msra.mxu0 %v3410
        %5502 = vmatpush.bf16.msra.mxu0 %v3406
        %5503 = vmatpush.bf16.msra.mxu0 %v3402
        %5504 = vmatpush.bf16.msra.mxu0 %v3398
        %5505 = vmatmul.bf16.gmra.mxu0 %v3011
        %v5506 = vpop.f32.mrf.mxu0
        %v5507 = vadd.f32 0.0, %v5506
        %v5508 = vpop.f32.mrf.mxu0
        %v5509 = vadd.f32 0.0, %v5508
        %5510 = vmatmul.bf16.gmra.mxu0 %v3013
        %v5511 = vpop.f32.mrf.mxu0
        %v5512 = vadd.f32 0.0, %v5511
        %v5513 = vpop.f32.mrf.mxu0
        %v5514 = vadd.f32 0.0, %v5513
        %5515 = vmatmul.bf16.gmra.mxu0 %v3015
        %v5516 = vpop.f32.mrf.mxu0
        %v5517 = vadd.f32 0.0, %v5516
        %v5518 = vpop.f32.mrf.mxu0
        %v5519 = vadd.f32 0.0, %v5518
        %5520 = vmatmul.bf16.gmra.mxu0 %v3017
        %v5521 = vpop.f32.mrf.mxu0
        %v5522 = vadd.f32 0.0, %v5521
        %v5523 = vpop.f32.mrf.mxu0
        %v5524 = vadd.f32 0.0, %v5523
        %5525 = vmatmul.bf16.gmra.mxu0 %v3019
        %v5526 = vpop.f32.mrf.mxu0
        %v5527 = vadd.f32 0.0, %v5526
        %v5528 = vpop.f32.mrf.mxu0
        %v5529 = vadd.f32 0.0, %v5528
        %5530 = vmatmul.bf16.gmra.mxu0 %v3021
        %v5531 = vpop.f32.mrf.mxu0
        %v5532 = vadd.f32 0.0, %v5531
        %v5533 = vpop.f32.mrf.mxu0
        %v5534 = vadd.f32 0.0, %v5533
        %5535 = vmatmul.bf16.gmra.mxu0 %v3023
        %v5536 = vpop.f32.mrf.mxu0
        %v5537 = vadd.f32 0.0, %v5536
        %v5538 = vpop.f32.mrf.mxu0
        %v5539 = vadd.f32 0.0, %v5538
        %5540 = vmatmul.bf16.gmra.mxu0 %v3025
        %v5541 = vpop.f32.mrf.mxu0
        %v5542 = vadd.f32 0.0, %v5541
        %v5543 = vpop.f32.mrf.mxu0
        %v5544 = vadd.f32 0.0, %v5543
        %5545 = vmatmul.bf16.gmra.mxu0 %v3027
        %v5546 = vpop.f32.mrf.mxu0
        %v5547 = vadd.f32 0.0, %v5546
        %v5548 = vpop.f32.mrf.mxu0
        %v5549 = vadd.f32 0.0, %v5548
        %5550 = vmatmul.bf16.gmra.mxu0 %v3029
        %v5551 = vpop.f32.mrf.mxu0
        %v5552 = vadd.f32 0.0, %v5551
        %v5553 = vpop.f32.mrf.mxu0
        %v5554 = vadd.f32 0.0, %v5553
        %5555 = vmatmul.bf16.gmra.mxu0 %v3031
        %v5556 = vpop.f32.mrf.mxu0
        %v5557 = vadd.f32 0.0, %v5556
        %v5558 = vpop.f32.mrf.mxu0
        %v5559 = vadd.f32 0.0, %v5558
        %5560 = vmatmul.bf16.gmra.mxu0 %v3033
        %v5561 = vpop.f32.mrf.mxu0
        %v5562 = vadd.f32 0.0, %v5561
        %v5563 = vpop.f32.mrf.mxu0
        %v5564 = vadd.f32 0.0, %v5563
        %5565 = vmatmul.bf16.gmra.mxu0 %v3035
        %v5566 = vpop.f32.mrf.mxu0
        %v5567 = vadd.f32 0.0, %v5566
        %v5568 = vpop.f32.mrf.mxu0
        %v5569 = vadd.f32 0.0, %v5568
        %5570 = vmatmul.bf16.gmra.mxu0 %v3037
        %v5571 = vpop.f32.mrf.mxu0
        %v5572 = vadd.f32 0.0, %v5571
        %v5573 = vpop.f32.mrf.mxu0
        %v5574 = vadd.f32 0.0, %v5573
        %5575 = vmatmul.bf16.gmra.mxu0 %v3039
        %v5576 = vpop.f32.mrf.mxu0
        %v5577 = vadd.f32 0.0, %v5576
        %v5578 = vpop.f32.mrf.mxu0
        %v5579 = vadd.f32 0.0, %v5578
        %5580 = vmatmul.bf16.gmra.mxu0 %v3041
        %v5581 = vpop.f32.mrf.mxu0
        %v5582 = vadd.f32 0.0, %v5581
        %v5583 = vpop.f32.mrf.mxu0
        %v5584 = vadd.f32 0.0, %v5583
        %5585 = vmatmul.bf16.gmra.mxu0 %v3043
        %v5586 = vpop.f32.mrf.mxu0
        %v5587 = vadd.f32 0.0, %v5586
        %v5588 = vpop.f32.mrf.mxu0
        %v5589 = vadd.f32 0.0, %v5588
        %5590 = vmatmul.bf16.gmra.mxu0 %v3045
        %v5591 = vpop.f32.mrf.mxu0
        %v5592 = vadd.f32 0.0, %v5591
        %v5593 = vpop.f32.mrf.mxu0
        %v5594 = vadd.f32 0.0, %v5593
        %5595 = vmatmul.bf16.gmra.mxu0 %v3047
        %v5596 = vpop.f32.mrf.mxu0
        %v5597 = vadd.f32 0.0, %v5596
        %v5598 = vpop.f32.mrf.mxu0
        %v5599 = vadd.f32 0.0, %v5598
        %5600 = vmatmul.bf16.gmra.mxu0 %v3049
        %v5601 = vpop.f32.mrf.mxu0
        %v5602 = vadd.f32 0.0, %v5601
        %v5603 = vpop.f32.mrf.mxu0
        %v5604 = vadd.f32 0.0, %v5603
        %5605 = vmatmul.bf16.gmra.mxu0 %v3051
        %v5606 = vpop.f32.mrf.mxu0
        %v5607 = vadd.f32 0.0, %v5606
        %v5608 = vpop.f32.mrf.mxu0
        %v5609 = vadd.f32 0.0, %v5608
        %5610 = vmatmul.bf16.gmra.mxu0 %v3053
        %v5611 = vpop.f32.mrf.mxu0
        %v5612 = vadd.f32 0.0, %v5611
        %v5613 = vpop.f32.mrf.mxu0
        %v5614 = vadd.f32 0.0, %v5613
        %5615 = vmatmul.bf16.gmra.mxu0 %v3055
        %v5616 = vpop.f32.mrf.mxu0
        %v5617 = vadd.f32 0.0, %v5616
        %v5618 = vpop.f32.mrf.mxu0
        %v5619 = vadd.f32 0.0, %v5618
        %5620 = vmatmul.bf16.gmra.mxu0 %v3057
        %v5621 = vpop.f32.mrf.mxu0
        %v5622 = vadd.f32 0.0, %v5621
        %v5623 = vpop.f32.mrf.mxu0
        %v5624 = vadd.f32 0.0, %v5623
        %5625 = vmatmul.bf16.gmra.mxu0 %v3059
        %v5626 = vpop.f32.mrf.mxu0
        %v5627 = vadd.f32 0.0, %v5626
        %v5628 = vpop.f32.mrf.mxu0
        %v5629 = vadd.f32 0.0, %v5628
        %5630 = vmatmul.bf16.gmra.mxu0 %v3061
        %v5631 = vpop.f32.mrf.mxu0
        %v5632 = vadd.f32 0.0, %v5631
        %v5633 = vpop.f32.mrf.mxu0
        %v5634 = vadd.f32 0.0, %v5633
        %5635 = vmatmul.bf16.gmra.mxu0 %v3063
        %v5636 = vpop.f32.mrf.mxu0
        %v5637 = vadd.f32 0.0, %v5636
        %v5638 = vpop.f32.mrf.mxu0
        %v5639 = vadd.f32 0.0, %v5638
        %5640 = vmatmul.bf16.gmra.mxu0 %v3065
        %v5641 = vpop.f32.mrf.mxu0
        %v5642 = vadd.f32 0.0, %v5641
        %v5643 = vpop.f32.mrf.mxu0
        %v5644 = vadd.f32 0.0, %v5643
        %5645 = vmatmul.bf16.gmra.mxu0 %v3067
        %v5646 = vpop.f32.mrf.mxu0
        %v5647 = vadd.f32 0.0, %v5646
        %v5648 = vpop.f32.mrf.mxu0
        %v5649 = vadd.f32 0.0, %v5648
        %5650 = vmatmul.bf16.gmra.mxu0 %v3069
        %v5651 = vpop.f32.mrf.mxu0
        %v5652 = vadd.f32 0.0, %v5651
        %v5653 = vpop.f32.mrf.mxu0
        %v5654 = vadd.f32 0.0, %v5653
        %5655 = vmatmul.bf16.gmra.mxu0 %v3071
        %v5656 = vpop.f32.mrf.mxu0
        %v5657 = vadd.f32 0.0, %v5656
        %v5658 = vpop.f32.mrf.mxu0
        %v5659 = vadd.f32 0.0, %v5658
        %5660 = vmatmul.bf16.gmra.mxu0 %v3073
        %v5661 = vpop.f32.mrf.mxu0
        %v5662 = vadd.f32 0.0, %v5661
        %v5663 = vpop.f32.mrf.mxu0
        %v5664 = vadd.f32 0.0, %v5663
        %5665 = vmatmul.bf16.gmra.mxu0 %v3075
        %v5666 = vpop.f32.mrf.mxu0
        %v5667 = vadd.f32 0.0, %v5666
        %v5668 = vpop.f32.mrf.mxu0
        %v5669 = vadd.f32 0.0, %v5668
        %5670 = vmatmul.bf16.gmra.mxu0 %v3077
        %v5671 = vpop.f32.mrf.mxu0
        %v5672 = vadd.f32 0.0, %v5671
        %v5673 = vpop.f32.mrf.mxu0
        %v5674 = vadd.f32 0.0, %v5673
        %5675 = vmatmul.bf16.gmra.mxu0 %v3079
        %v5676 = vpop.f32.mrf.mxu0
        %v5677 = vadd.f32 0.0, %v5676
        %v5678 = vpop.f32.mrf.mxu0
        %v5679 = vadd.f32 0.0, %v5678
        %5680 = vmatmul.bf16.gmra.mxu0 %v3081
        %v5681 = vpop.f32.mrf.mxu0
        %v5682 = vadd.f32 0.0, %v5681
        %v5683 = vpop.f32.mrf.mxu0
        %v5684 = vadd.f32 0.0, %v5683
        %5685 = vmatmul.bf16.gmra.mxu0 %v3083
        %v5686 = vpop.f32.mrf.mxu0
        %v5687 = vadd.f32 0.0, %v5686
        %v5688 = vpop.f32.mrf.mxu0
        %v5689 = vadd.f32 0.0, %v5688
        %5690 = vmatmul.bf16.gmra.mxu0 %v3085
        %v5691 = vpop.f32.mrf.mxu0
        %v5692 = vadd.f32 0.0, %v5691
        %v5693 = vpop.f32.mrf.mxu0
        %v5694 = vadd.f32 0.0, %v5693
        %5695 = vmatmul.bf16.gmra.mxu0 %v3087
        %v5696 = vpop.f32.mrf.mxu0
        %v5697 = vadd.f32 0.0, %v5696
        %v5698 = vpop.f32.mrf.mxu0
        %v5699 = vadd.f32 0.0, %v5698
        %5700 = vmatmul.bf16.gmra.mxu0 %v3089
        %v5701 = vpop.f32.mrf.mxu0
        %v5702 = vadd.f32 0.0, %v5701
        %v5703 = vpop.f32.mrf.mxu0
        %v5704 = vadd.f32 0.0, %v5703
        %5705 = vmatmul.bf16.gmra.mxu0 %v3091
        %v5706 = vpop.f32.mrf.mxu0
        %v5707 = vadd.f32 0.0, %v5706
        %v5708 = vpop.f32.mrf.mxu0
        %v5709 = vadd.f32 0.0, %v5708
        %5710 = vmatmul.bf16.gmra.mxu0 %v3093
        %v5711 = vpop.f32.mrf.mxu0
        %v5712 = vadd.f32 0.0, %v5711
        %v5713 = vpop.f32.mrf.mxu0
        %v5714 = vadd.f32 0.0, %v5713
        %5715 = vmatmul.bf16.gmra.mxu0 %v3095
        %v5716 = vpop.f32.mrf.mxu0
        %v5717 = vadd.f32 0.0, %v5716
        %v5718 = vpop.f32.mrf.mxu0
        %v5719 = vadd.f32 0.0, %v5718
        %5720 = vmatmul.bf16.gmra.mxu0 %v3097
        %v5721 = vpop.f32.mrf.mxu0
        %v5722 = vadd.f32 0.0, %v5721
        %v5723 = vpop.f32.mrf.mxu0
        %v5724 = vadd.f32 0.0, %v5723
        %5725 = vmatmul.bf16.gmra.mxu0 %v3099
        %v5726 = vpop.f32.mrf.mxu0
        %v5727 = vadd.f32 0.0, %v5726
        %v5728 = vpop.f32.mrf.mxu0
        %v5729 = vadd.f32 0.0, %v5728
        %5730 = vmatmul.bf16.gmra.mxu0 %v3101
        %v5731 = vpop.f32.mrf.mxu0
        %v5732 = vadd.f32 0.0, %v5731
        %v5733 = vpop.f32.mrf.mxu0
        %v5734 = vadd.f32 0.0, %v5733
        %5735 = vmatmul.bf16.gmra.mxu0 %v3103
        %v5736 = vpop.f32.mrf.mxu0
        %v5737 = vadd.f32 0.0, %v5736
        %v5738 = vpop.f32.mrf.mxu0
        %v5739 = vadd.f32 0.0, %v5738
        %5740 = vmatmul.bf16.gmra.mxu0 %v3105
        %v5741 = vpop.f32.mrf.mxu0
        %v5742 = vadd.f32 0.0, %v5741
        %v5743 = vpop.f32.mrf.mxu0
        %v5744 = vadd.f32 0.0, %v5743
        %5745 = vmatmul.bf16.gmra.mxu0 %v3107
        %v5746 = vpop.f32.mrf.mxu0
        %v5747 = vadd.f32 0.0, %v5746
        %v5748 = vpop.f32.mrf.mxu0
        %v5749 = vadd.f32 0.0, %v5748
        %5750 = vmatmul.bf16.gmra.mxu0 %v3109
        %v5751 = vpop.f32.mrf.mxu0
        %v5752 = vadd.f32 0.0, %v5751
        %v5753 = vpop.f32.mrf.mxu0
        %v5754 = vadd.f32 0.0, %v5753
        %5755 = vmatmul.bf16.gmra.mxu0 %v3111
        %v5756 = vpop.f32.mrf.mxu0
        %v5757 = vadd.f32 0.0, %v5756
        %v5758 = vpop.f32.mrf.mxu0
        %v5759 = vadd.f32 0.0, %v5758
        %5760 = vmatmul.bf16.gmra.mxu0 %v3113
        %v5761 = vpop.f32.mrf.mxu0
        %v5762 = vadd.f32 0.0, %v5761
        %v5763 = vpop.f32.mrf.mxu0
        %v5764 = vadd.f32 0.0, %v5763
        %5765 = vmatmul.bf16.gmra.mxu0 %v3115
        %v5766 = vpop.f32.mrf.mxu0
        %v5767 = vadd.f32 0.0, %v5766
        %v5768 = vpop.f32.mrf.mxu0
        %v5769 = vadd.f32 0.0, %v5768
        %5770 = vmatmul.bf16.gmra.mxu0 %v3117
        %v5771 = vpop.f32.mrf.mxu0
        %v5772 = vadd.f32 0.0, %v5771
        %v5773 = vpop.f32.mrf.mxu0
        %v5774 = vadd.f32 0.0, %v5773
        %5775 = vmatmul.bf16.gmra.mxu0 %v3119
        %v5776 = vpop.f32.mrf.mxu0
        %v5777 = vadd.f32 0.0, %v5776
        %v5778 = vpop.f32.mrf.mxu0
        %v5779 = vadd.f32 0.0, %v5778
        %5780 = vmatmul.bf16.gmra.mxu0 %v3121
        %v5781 = vpop.f32.mrf.mxu0
        %v5782 = vadd.f32 0.0, %v5781
        %v5783 = vpop.f32.mrf.mxu0
        %v5784 = vadd.f32 0.0, %v5783
        %5785 = vmatmul.bf16.gmra.mxu0 %v3123
        %v5786 = vpop.f32.mrf.mxu0
        %v5787 = vadd.f32 0.0, %v5786
        %v5788 = vpop.f32.mrf.mxu0
        %v5789 = vadd.f32 0.0, %v5788
        %5790 = vmatmul.bf16.gmra.mxu0 %v3125
        %v5791 = vpop.f32.mrf.mxu0
        %v5792 = vadd.f32 0.0, %v5791
        %v5793 = vpop.f32.mrf.mxu0
        %v5794 = vadd.f32 0.0, %v5793
        %5795 = vmatmul.bf16.gmra.mxu0 %v3127
        %v5796 = vpop.f32.mrf.mxu0
        %v5797 = vadd.f32 0.0, %v5796
        %v5798 = vpop.f32.mrf.mxu0
        %v5799 = vadd.f32 0.0, %v5798
        %5800 = vmatmul.bf16.gmra.mxu0 %v3129
        %v5801 = vpop.f32.mrf.mxu0
        %v5802 = vadd.f32 0.0, %v5801
        %v5803 = vpop.f32.mrf.mxu0
        %v5804 = vadd.f32 0.0, %v5803
        %5805 = vmatmul.bf16.gmra.mxu0 %v3131
        %v5806 = vpop.f32.mrf.mxu0
        %v5807 = vadd.f32 0.0, %v5806
        %v5808 = vpop.f32.mrf.mxu0
        %v5809 = vadd.f32 0.0, %v5808
        %5810 = vmatmul.bf16.gmra.mxu0 %v3133
        %v5811 = vpop.f32.mrf.mxu0
        %v5812 = vadd.f32 0.0, %v5811
        %v5813 = vpop.f32.mrf.mxu0
        %v5814 = vadd.f32 0.0, %v5813
        %5815 = vmatmul.bf16.gmra.mxu0 %v3135
        %v5816 = vpop.f32.mrf.mxu0
        %v5817 = vadd.f32 0.0, %v5816
        %v5818 = vpop.f32.mrf.mxu0
        %v5819 = vadd.f32 0.0, %v5818
        %5820 = vmatmul.bf16.gmra.mxu0 %v3137
        %v5821 = vpop.f32.mrf.mxu0
        %v5822 = vadd.f32 0.0, %v5821
        %v5823 = vpop.f32.mrf.mxu0
        %v5824 = vadd.f32 0.0, %v5823
        %5825 = vdwg.mxu0
        %5826 = vmatpush.bf16.msra.mxu0 %v3458
        %5827 = vmatpush.bf16.msra.mxu0 %v3454
        %5828 = vmatpush.bf16.msra.mxu0 %v3450
        %5829 = vmatpush.bf16.msra.mxu0 %v3446
        %5830 = vmatpush.bf16.msra.mxu0 %v3442
        %5831 = vmatpush.bf16.msra.mxu0 %v3438
        %5832 = vmatpush.bf16.msra.mxu0 %v3434
        %5833 = vmatpush.bf16.msra.mxu0 %v3430
        %5834 = vmatmul.bf16.gmra.mxu0 %v3012
        %v5835 = vpop.f32.mrf.mxu0
        %v5836 = vadd.f32 %v5507, %v5835
        %v5837 = vpop.f32.mrf.mxu0
        %v5838 = vadd.f32 %v5509, %v5837
        %5839 = vmatmul.bf16.gmra.mxu0 %v3014
        %v5840 = vpop.f32.mrf.mxu0
        %v5841 = vadd.f32 %v5512, %v5840
        %v5842 = vpop.f32.mrf.mxu0
        %v5843 = vadd.f32 %v5514, %v5842
        %5844 = vmatmul.bf16.gmra.mxu0 %v3016
        %v5845 = vpop.f32.mrf.mxu0
        %v5846 = vadd.f32 %v5517, %v5845
        %v5847 = vpop.f32.mrf.mxu0
        %v5848 = vadd.f32 %v5519, %v5847
        %5849 = vmatmul.bf16.gmra.mxu0 %v3018
        %v5850 = vpop.f32.mrf.mxu0
        %v5851 = vadd.f32 %v5522, %v5850
        %v5852 = vpop.f32.mrf.mxu0
        %v5853 = vadd.f32 %v5524, %v5852
        %5854 = vmatmul.bf16.gmra.mxu0 %v3020
        %v5855 = vpop.f32.mrf.mxu0
        %v5856 = vadd.f32 %v5527, %v5855
        %v5857 = vpop.f32.mrf.mxu0
        %v5858 = vadd.f32 %v5529, %v5857
        %5859 = vmatmul.bf16.gmra.mxu0 %v3022
        %v5860 = vpop.f32.mrf.mxu0
        %v5861 = vadd.f32 %v5532, %v5860
        %v5862 = vpop.f32.mrf.mxu0
        %v5863 = vadd.f32 %v5534, %v5862
        %5864 = vmatmul.bf16.gmra.mxu0 %v3024
        %v5865 = vpop.f32.mrf.mxu0
        %v5866 = vadd.f32 %v5537, %v5865
        %v5867 = vpop.f32.mrf.mxu0
        %v5868 = vadd.f32 %v5539, %v5867
        %5869 = vmatmul.bf16.gmra.mxu0 %v3026
        %v5870 = vpop.f32.mrf.mxu0
        %v5871 = vadd.f32 %v5542, %v5870
        %v5872 = vpop.f32.mrf.mxu0
        %v5873 = vadd.f32 %v5544, %v5872
        %5874 = vmatmul.bf16.gmra.mxu0 %v3028
        %v5875 = vpop.f32.mrf.mxu0
        %v5876 = vadd.f32 %v5547, %v5875
        %v5877 = vpop.f32.mrf.mxu0
        %v5878 = vadd.f32 %v5549, %v5877
        %5879 = vmatmul.bf16.gmra.mxu0 %v3030
        %v5880 = vpop.f32.mrf.mxu0
        %v5881 = vadd.f32 %v5552, %v5880
        %v5882 = vpop.f32.mrf.mxu0
        %v5883 = vadd.f32 %v5554, %v5882
        %5884 = vmatmul.bf16.gmra.mxu0 %v3032
        %v5885 = vpop.f32.mrf.mxu0
        %v5886 = vadd.f32 %v5557, %v5885
        %v5887 = vpop.f32.mrf.mxu0
        %v5888 = vadd.f32 %v5559, %v5887
        %5889 = vmatmul.bf16.gmra.mxu0 %v3034
        %v5890 = vpop.f32.mrf.mxu0
        %v5891 = vadd.f32 %v5562, %v5890
        %v5892 = vpop.f32.mrf.mxu0
        %v5893 = vadd.f32 %v5564, %v5892
        %5894 = vmatmul.bf16.gmra.mxu0 %v3036
        %v5895 = vpop.f32.mrf.mxu0
        %v5896 = vadd.f32 %v5567, %v5895
        %v5897 = vpop.f32.mrf.mxu0
        %v5898 = vadd.f32 %v5569, %v5897
        %5899 = vmatmul.bf16.gmra.mxu0 %v3038
        %v5900 = vpop.f32.mrf.mxu0
        %v5901 = vadd.f32 %v5572, %v5900
        %v5902 = vpop.f32.mrf.mxu0
        %v5903 = vadd.f32 %v5574, %v5902
        %5904 = vmatmul.bf16.gmra.mxu0 %v3040
        %v5905 = vpop.f32.mrf.mxu0
        %v5906 = vadd.f32 %v5577, %v5905
        %v5907 = vpop.f32.mrf.mxu0
        %v5908 = vadd.f32 %v5579, %v5907
        %5909 = vmatmul.bf16.gmra.mxu0 %v3042
        %v5910 = vpop.f32.mrf.mxu0
        %v5911 = vadd.f32 %v5582, %v5910
        %v5912 = vpop.f32.mrf.mxu0
        %v5913 = vadd.f32 %v5584, %v5912
        %5914 = vmatmul.bf16.gmra.mxu0 %v3044
        %v5915 = vpop.f32.mrf.mxu0
        %v5916 = vadd.f32 %v5587, %v5915
        %v5917 = vpop.f32.mrf.mxu0
        %v5918 = vadd.f32 %v5589, %v5917
        %5919 = vmatmul.bf16.gmra.mxu0 %v3046
        %v5920 = vpop.f32.mrf.mxu0
        %v5921 = vadd.f32 %v5592, %v5920
        %v5922 = vpop.f32.mrf.mxu0
        %v5923 = vadd.f32 %v5594, %v5922
        %5924 = vmatmul.bf16.gmra.mxu0 %v3048
        %v5925 = vpop.f32.mrf.mxu0
        %v5926 = vadd.f32 %v5597, %v5925
        %v5927 = vpop.f32.mrf.mxu0
        %v5928 = vadd.f32 %v5599, %v5927
        %5929 = vmatmul.bf16.gmra.mxu0 %v3050
        %v5930 = vpop.f32.mrf.mxu0
        %v5931 = vadd.f32 %v5602, %v5930
        %v5932 = vpop.f32.mrf.mxu0
        %v5933 = vadd.f32 %v5604, %v5932
        %5934 = vmatmul.bf16.gmra.mxu0 %v3052
        %v5935 = vpop.f32.mrf.mxu0
        %v5936 = vadd.f32 %v5607, %v5935
        %v5937 = vpop.f32.mrf.mxu0
        %v5938 = vadd.f32 %v5609, %v5937
        %5939 = vmatmul.bf16.gmra.mxu0 %v3054
        %v5940 = vpop.f32.mrf.mxu0
        %v5941 = vadd.f32 %v5612, %v5940
        %v5942 = vpop.f32.mrf.mxu0
        %v5943 = vadd.f32 %v5614, %v5942
        %5944 = vmatmul.bf16.gmra.mxu0 %v3056
        %v5945 = vpop.f32.mrf.mxu0
        %v5946 = vadd.f32 %v5617, %v5945
        %v5947 = vpop.f32.mrf.mxu0
        %v5948 = vadd.f32 %v5619, %v5947
        %5949 = vmatmul.bf16.gmra.mxu0 %v3058
        %v5950 = vpop.f32.mrf.mxu0
        %v5951 = vadd.f32 %v5622, %v5950
        %v5952 = vpop.f32.mrf.mxu0
        %v5953 = vadd.f32 %v5624, %v5952
        %5954 = vmatmul.bf16.gmra.mxu0 %v3060
        %v5955 = vpop.f32.mrf.mxu0
        %v5956 = vadd.f32 %v5627, %v5955
        %v5957 = vpop.f32.mrf.mxu0
        %v5958 = vadd.f32 %v5629, %v5957
        %5959 = vmatmul.bf16.gmra.mxu0 %v3062
        %v5960 = vpop.f32.mrf.mxu0
        %v5961 = vadd.f32 %v5632, %v5960
        %v5962 = vpop.f32.mrf.mxu0
        %v5963 = vadd.f32 %v5634, %v5962
        %5964 = vmatmul.bf16.gmra.mxu0 %v3064
        %v5965 = vpop.f32.mrf.mxu0
        %v5966 = vadd.f32 %v5637, %v5965
        %v5967 = vpop.f32.mrf.mxu0
        %v5968 = vadd.f32 %v5639, %v5967
        %5969 = vmatmul.bf16.gmra.mxu0 %v3066
        %v5970 = vpop.f32.mrf.mxu0
        %v5971 = vadd.f32 %v5642, %v5970
        %v5972 = vpop.f32.mrf.mxu0
        %v5973 = vadd.f32 %v5644, %v5972
        %5974 = vmatmul.bf16.gmra.mxu0 %v3068
        %v5975 = vpop.f32.mrf.mxu0
        %v5976 = vadd.f32 %v5647, %v5975
        %v5977 = vpop.f32.mrf.mxu0
        %v5978 = vadd.f32 %v5649, %v5977
        %5979 = vmatmul.bf16.gmra.mxu0 %v3070
        %v5980 = vpop.f32.mrf.mxu0
        %v5981 = vadd.f32 %v5652, %v5980
        %v5982 = vpop.f32.mrf.mxu0
        %v5983 = vadd.f32 %v5654, %v5982
        %5984 = vmatmul.bf16.gmra.mxu0 %v3072
        %v5985 = vpop.f32.mrf.mxu0
        %v5986 = vadd.f32 %v5657, %v5985
        %v5987 = vpop.f32.mrf.mxu0
        %v5988 = vadd.f32 %v5659, %v5987
        %5989 = vmatmul.bf16.gmra.mxu0 %v3074
        %v5990 = vpop.f32.mrf.mxu0
        %v5991 = vadd.f32 %v5662, %v5990
        %v5992 = vpop.f32.mrf.mxu0
        %v5993 = vadd.f32 %v5664, %v5992
        %5994 = vmatmul.bf16.gmra.mxu0 %v3076
        %v5995 = vpop.f32.mrf.mxu0
        %v5996 = vadd.f32 %v5667, %v5995
        %v5997 = vpop.f32.mrf.mxu0
        %v5998 = vadd.f32 %v5669, %v5997
        %5999 = vmatmul.bf16.gmra.mxu0 %v3078
        %v6000 = vpop.f32.mrf.mxu0
        %v6001 = vadd.f32 %v5672, %v6000
        %v6002 = vpop.f32.mrf.mxu0
        %v6003 = vadd.f32 %v5674, %v6002
        %6004 = vmatmul.bf16.gmra.mxu0 %v3080
        %v6005 = vpop.f32.mrf.mxu0
        %v6006 = vadd.f32 %v5677, %v6005
        %v6007 = vpop.f32.mrf.mxu0
        %v6008 = vadd.f32 %v5679, %v6007
        %6009 = vmatmul.bf16.gmra.mxu0 %v3082
        %v6010 = vpop.f32.mrf.mxu0
        %v6011 = vadd.f32 %v5682, %v6010
        %v6012 = vpop.f32.mrf.mxu0
        %v6013 = vadd.f32 %v5684, %v6012
        %6014 = vmatmul.bf16.gmra.mxu0 %v3084
        %v6015 = vpop.f32.mrf.mxu0
        %v6016 = vadd.f32 %v5687, %v6015
        %v6017 = vpop.f32.mrf.mxu0
        %v6018 = vadd.f32 %v5689, %v6017
        %6019 = vmatmul.bf16.gmra.mxu0 %v3086
        %v6020 = vpop.f32.mrf.mxu0
        %v6021 = vadd.f32 %v5692, %v6020
        %v6022 = vpop.f32.mrf.mxu0
        %v6023 = vadd.f32 %v5694, %v6022
        %6024 = vmatmul.bf16.gmra.mxu0 %v3088
        %v6025 = vpop.f32.mrf.mxu0
        %v6026 = vadd.f32 %v5697, %v6025
        %v6027 = vpop.f32.mrf.mxu0
        %v6028 = vadd.f32 %v5699, %v6027
        %6029 = vmatmul.bf16.gmra.mxu0 %v3090
        %v6030 = vpop.f32.mrf.mxu0
        %v6031 = vadd.f32 %v5702, %v6030
        %v6032 = vpop.f32.mrf.mxu0
        %v6033 = vadd.f32 %v5704, %v6032
        %6034 = vmatmul.bf16.gmra.mxu0 %v3092
        %v6035 = vpop.f32.mrf.mxu0
        %v6036 = vadd.f32 %v5707, %v6035
        %v6037 = vpop.f32.mrf.mxu0
        %v6038 = vadd.f32 %v5709, %v6037
        %6039 = vmatmul.bf16.gmra.mxu0 %v3094
        %v6040 = vpop.f32.mrf.mxu0
        %v6041 = vadd.f32 %v5712, %v6040
        %v6042 = vpop.f32.mrf.mxu0
        %v6043 = vadd.f32 %v5714, %v6042
        %6044 = vmatmul.bf16.gmra.mxu0 %v3096
        %v6045 = vpop.f32.mrf.mxu0
        %v6046 = vadd.f32 %v5717, %v6045
        %v6047 = vpop.f32.mrf.mxu0
        %v6048 = vadd.f32 %v5719, %v6047
        %6049 = vmatmul.bf16.gmra.mxu0 %v3098
        %v6050 = vpop.f32.mrf.mxu0
        %v6051 = vadd.f32 %v5722, %v6050
        %v6052 = vpop.f32.mrf.mxu0
        %v6053 = vadd.f32 %v5724, %v6052
        %6054 = vmatmul.bf16.gmra.mxu0 %v3100
        %v6055 = vpop.f32.mrf.mxu0
        %v6056 = vadd.f32 %v5727, %v6055
        %v6057 = vpop.f32.mrf.mxu0
        %v6058 = vadd.f32 %v5729, %v6057
        %6059 = vmatmul.bf16.gmra.mxu0 %v3102
        %v6060 = vpop.f32.mrf.mxu0
        %v6061 = vadd.f32 %v5732, %v6060
        %v6062 = vpop.f32.mrf.mxu0
        %v6063 = vadd.f32 %v5734, %v6062
        %6064 = vmatmul.bf16.gmra.mxu0 %v3104
        %v6065 = vpop.f32.mrf.mxu0
        %v6066 = vadd.f32 %v5737, %v6065
        %v6067 = vpop.f32.mrf.mxu0
        %v6068 = vadd.f32 %v5739, %v6067
        %6069 = vmatmul.bf16.gmra.mxu0 %v3106
        %v6070 = vpop.f32.mrf.mxu0
        %v6071 = vadd.f32 %v5742, %v6070
        %v6072 = vpop.f32.mrf.mxu0
        %v6073 = vadd.f32 %v5744, %v6072
        %6074 = vmatmul.bf16.gmra.mxu0 %v3108
        %v6075 = vpop.f32.mrf.mxu0
        %v6076 = vadd.f32 %v5747, %v6075
        %v6077 = vpop.f32.mrf.mxu0
        %v6078 = vadd.f32 %v5749, %v6077
        %6079 = vmatmul.bf16.gmra.mxu0 %v3110
        %v6080 = vpop.f32.mrf.mxu0
        %v6081 = vadd.f32 %v5752, %v6080
        %v6082 = vpop.f32.mrf.mxu0
        %v6083 = vadd.f32 %v5754, %v6082
        %6084 = vmatmul.bf16.gmra.mxu0 %v3112
        %v6085 = vpop.f32.mrf.mxu0
        %v6086 = vadd.f32 %v5757, %v6085
        %v6087 = vpop.f32.mrf.mxu0
        %v6088 = vadd.f32 %v5759, %v6087
        %6089 = vmatmul.bf16.gmra.mxu0 %v3114
        %v6090 = vpop.f32.mrf.mxu0
        %v6091 = vadd.f32 %v5762, %v6090
        %v6092 = vpop.f32.mrf.mxu0
        %v6093 = vadd.f32 %v5764, %v6092
        %6094 = vmatmul.bf16.gmra.mxu0 %v3116
        %v6095 = vpop.f32.mrf.mxu0
        %v6096 = vadd.f32 %v5767, %v6095
        %v6097 = vpop.f32.mrf.mxu0
        %v6098 = vadd.f32 %v5769, %v6097
        %6099 = vmatmul.bf16.gmra.mxu0 %v3118
        %v6100 = vpop.f32.mrf.mxu0
        %v6101 = vadd.f32 %v5772, %v6100
        %v6102 = vpop.f32.mrf.mxu0
        %v6103 = vadd.f32 %v5774, %v6102
        %6104 = vmatmul.bf16.gmra.mxu0 %v3120
        %v6105 = vpop.f32.mrf.mxu0
        %v6106 = vadd.f32 %v5777, %v6105
        %v6107 = vpop.f32.mrf.mxu0
        %v6108 = vadd.f32 %v5779, %v6107
        %6109 = vmatmul.bf16.gmra.mxu0 %v3122
        %v6110 = vpop.f32.mrf.mxu0
        %v6111 = vadd.f32 %v5782, %v6110
        %v6112 = vpop.f32.mrf.mxu0
        %v6113 = vadd.f32 %v5784, %v6112
        %6114 = vmatmul.bf16.gmra.mxu0 %v3124
        %v6115 = vpop.f32.mrf.mxu0
        %v6116 = vadd.f32 %v5787, %v6115
        %v6117 = vpop.f32.mrf.mxu0
        %v6118 = vadd.f32 %v5789, %v6117
        %6119 = vmatmul.bf16.gmra.mxu0 %v3126
        %v6120 = vpop.f32.mrf.mxu0
        %v6121 = vadd.f32 %v5792, %v6120
        %v6122 = vpop.f32.mrf.mxu0
        %v6123 = vadd.f32 %v5794, %v6122
        %6124 = vmatmul.bf16.gmra.mxu0 %v3128
        %v6125 = vpop.f32.mrf.mxu0
        %v6126 = vadd.f32 %v5797, %v6125
        %v6127 = vpop.f32.mrf.mxu0
        %v6128 = vadd.f32 %v5799, %v6127
        %6129 = vmatmul.bf16.gmra.mxu0 %v3130
        %v6130 = vpop.f32.mrf.mxu0
        %v6131 = vadd.f32 %v5802, %v6130
        %v6132 = vpop.f32.mrf.mxu0
        %v6133 = vadd.f32 %v5804, %v6132
        %6134 = vmatmul.bf16.gmra.mxu0 %v3132
        %v6135 = vpop.f32.mrf.mxu0
        %v6136 = vadd.f32 %v5807, %v6135
        %v6137 = vpop.f32.mrf.mxu0
        %v6138 = vadd.f32 %v5809, %v6137
        %6139 = vmatmul.bf16.gmra.mxu0 %v3134
        %v6140 = vpop.f32.mrf.mxu0
        %v6141 = vadd.f32 %v5812, %v6140
        %v6142 = vpop.f32.mrf.mxu0
        %v6143 = vadd.f32 %v5814, %v6142
        %6144 = vmatmul.bf16.gmra.mxu0 %v3136
        %v6145 = vpop.f32.mrf.mxu0
        %v6146 = vadd.f32 %v5817, %v6145
        %v6147 = vpop.f32.mrf.mxu0
        %v6148 = vadd.f32 %v5819, %v6147
        %6149 = vmatmul.bf16.gmra.mxu0 %v3138
        %v6150 = vpop.f32.mrf.mxu0
        %v6151 = vadd.f32 %v5822, %v6150
        %v6152 = vpop.f32.mrf.mxu0
        %v6153 = vadd.f32 %v5824, %v6152
        %6154 = vdwg.mxu0
        %v6155 = vld [vmem:[%s7] sm:$0xf]
        %v6157 = vperm.slane %v6155, 0
        %v6158 = vperm.slane %v6155, 1
        %v6159 = vperm.slane %v6155, 2
        %v6160 = vperm.slane %v6155, 3
        %v6181 = vunpack.c.l.b16 %v2931
        %v6182 = vunpack.c.l.b16 %v2932
        %v6183 = vunpack.c.l.b16 %v2933
        %v6184 = vunpack.c.l.b16 %v2934
        %v6185 = vunpack.c.l.b16 %v2935
        %v6186 = vunpack.c.l.b16 %v2936
        %v6187 = vunpack.c.l.b16 %v2937
        %v6188 = vunpack.c.l.b16 %v2938
        %v6189 = vunpack.c.l.b16 %v2939
        %v6190 = vunpack.c.l.b16 %v2940
        %v6191 = vunpack.c.l.b16 %v2941
        %v6192 = vunpack.c.l.b16 %v2942
        %v6193 = vunpack.c.l.b16 %v2943
        %v6194 = vunpack.c.l.b16 %v2944
        %v6195 = vunpack.c.l.b16 %v2945
        %v6196 = vunpack.c.l.b16 %v2946
        %vm6197 = vcmask 1041409
        %v6198 = vsel %vm6197, %v6183, %v6181
        %vm6199 = vcmask 1042434
        %v6200 = vsel %vm6199, %v6185, %v6198
        %vm6201 = vcmask 1043459
        %v6202 = vsel %vm6201, %v6187, %v6200
        %vm6203 = vcmask 1044484
        %v6204 = vsel %vm6203, %v6189, %v6202
        %vm6205 = vcmask 1045509
        %v6206 = vsel %vm6205, %v6191, %v6204
        %vm6207 = vcmask 1046534
        %v6208 = vsel %vm6207, %v6193, %v6206
        %vm6209 = vcmask 1047559
        %v6210 = vsel %vm6209, %v6195, %v6208
        %v6211 = vsel %vm6197, %v6184, %v6182
        %v6212 = vsel %vm6199, %v6186, %v6211
        %v6213 = vsel %vm6201, %v6188, %v6212
        %v6214 = vsel %vm6203, %v6190, %v6213
        %v6215 = vsel %vm6205, %v6192, %v6214
        %v6216 = vsel %vm6207, %v6194, %v6215
        %v6217 = vsel %vm6209, %v6196, %v6216
        %v6218 = vpack.c.b16 %v6210, %v6210
        %v6219 = vpack.c.b16 %v6217, %v6217
        %v6286 = vunpack.c.l.b16 %v2947
        %v6287 = vunpack.c.h.b16 %v2947
        %v6288 = vunpack.c.l.b16 %v2948
        %v6289 = vunpack.c.h.b16 %v2948
        %v6290 = vunpack.c.l.b16 %v2949
        %v6291 = vunpack.c.h.b16 %v2949
        %v6292 = vunpack.c.l.b16 %v2950
        %v6293 = vunpack.c.h.b16 %v2950
        %v6294 = vunpack.c.l.b16 %v2951
        %v6295 = vunpack.c.h.b16 %v2951
        %v6296 = vunpack.c.l.b16 %v2952
        %v6297 = vunpack.c.h.b16 %v2952
        %v6298 = vunpack.c.l.b16 %v2953
        %v6299 = vunpack.c.h.b16 %v2953
        %v6300 = vunpack.c.l.b16 %v2954
        %v6301 = vunpack.c.h.b16 %v2954
        %v6302 = vunpack.c.l.b16 %v2955
        %v6303 = vunpack.c.h.b16 %v2955
        %v6304 = vunpack.c.l.b16 %v2956
        %v6305 = vunpack.c.h.b16 %v2956
        %v6306 = vunpack.c.l.b16 %v2957
        %v6307 = vunpack.c.h.b16 %v2957
        %v6308 = vunpack.c.l.b16 %v2958
        %v6309 = vunpack.c.h.b16 %v2958
        %v6310 = vunpack.c.l.b16 %v2959
        %v6311 = vunpack.c.h.b16 %v2959
        %v6312 = vunpack.c.l.b16 %v2960
        %v6313 = vunpack.c.h.b16 %v2960
        %v6314 = vunpack.c.l.b16 %v2961
        %v6315 = vunpack.c.h.b16 %v2961
        %v6316 = vunpack.c.l.b16 %v2962
        %v6317 = vunpack.c.h.b16 %v2962
        %v6318 = vunpack.c.l.b16 %v2963
        %v6319 = vunpack.c.h.b16 %v2963
        %v6320 = vunpack.c.l.b16 %v2964
        %v6321 = vunpack.c.h.b16 %v2964
        %v6322 = vunpack.c.l.b16 %v2965
        %v6323 = vunpack.c.h.b16 %v2965
        %v6324 = vunpack.c.l.b16 %v2966
        %v6325 = vunpack.c.h.b16 %v2966
        %v6326 = vunpack.c.l.b16 %v2967
        %v6327 = vunpack.c.h.b16 %v2967
        %v6328 = vunpack.c.l.b16 %v2968
        %v6329 = vunpack.c.h.b16 %v2968
        %v6330 = vunpack.c.l.b16 %v2969
        %v6331 = vunpack.c.h.b16 %v2969
        %v6332 = vunpack.c.l.b16 %v2970
        %v6333 = vunpack.c.h.b16 %v2970
        %v6334 = vunpack.c.l.b16 %v2971
        %v6335 = vunpack.c.h.b16 %v2971
        %v6336 = vunpack.c.l.b16 %v2972
        %v6337 = vunpack.c.h.b16 %v2972
        %v6338 = vunpack.c.l.b16 %v2973
        %v6339 = vunpack.c.h.b16 %v2973
        %v6340 = vunpack.c.l.b16 %v2974
        %v6341 = vunpack.c.h.b16 %v2974
        %v6342 = vunpack.c.l.b16 %v2975
        %v6343 = vunpack.c.h.b16 %v2975
        %v6344 = vunpack.c.l.b16 %v2976
        %v6345 = vunpack.c.h.b16 %v2976
        %v6346 = vunpack.c.l.b16 %v2977
        %v6347 = vunpack.c.h.b16 %v2977
        %v6348 = vunpack.c.l.b16 %v2978
        %v6349 = vunpack.c.h.b16 %v2978
        %v6350 = vunpack.c.l.b16 %v2979
        %v6351 = vunpack.c.h.b16 %v2979
        %v6352 = vunpack.c.l.b16 %v2980
        %v6353 = vunpack.c.h.b16 %v2980
        %v6354 = vunpack.c.l.b16 %v2981
        %v6355 = vunpack.c.h.b16 %v2981
        %v6356 = vunpack.c.l.b16 %v2982
        %v6357 = vunpack.c.h.b16 %v2982
        %v6358 = vunpack.c.l.b16 %v2983
        %v6359 = vunpack.c.h.b16 %v2983
        %v6360 = vunpack.c.l.b16 %v2984
        %v6361 = vunpack.c.h.b16 %v2984
        %v6362 = vunpack.c.l.b16 %v2985
        %v6363 = vunpack.c.h.b16 %v2985
        %v6364 = vunpack.c.l.b16 %v2986
        %v6365 = vunpack.c.h.b16 %v2986
        %v6366 = vunpack.c.l.b16 %v2987
        %v6367 = vunpack.c.h.b16 %v2987
        %v6368 = vunpack.c.l.b16 %v2988
        %v6369 = vunpack.c.h.b16 %v2988
        %v6370 = vunpack.c.l.b16 %v2989
        %v6371 = vunpack.c.h.b16 %v2989
        %v6372 = vunpack.c.l.b16 %v2990
        %v6373 = vunpack.c.h.b16 %v2990
        %v6374 = vunpack.c.l.b16 %v2991
        %v6375 = vunpack.c.h.b16 %v2991
        %v6376 = vunpack.c.l.b16 %v2992
        %v6377 = vunpack.c.h.b16 %v2992
        %v6378 = vunpack.c.l.b16 %v2993
        %v6379 = vunpack.c.h.b16 %v2993
        %v6380 = vunpack.c.l.b16 %v2994
        %v6381 = vunpack.c.h.b16 %v2994
        %v6382 = vunpack.c.l.b16 %v2995
        %v6383 = vunpack.c.h.b16 %v2995
        %v6384 = vunpack.c.l.b16 %v2996
        %v6385 = vunpack.c.h.b16 %v2996
        %v6386 = vunpack.c.l.b16 %v2997
        %v6387 = vunpack.c.h.b16 %v2997
        %v6388 = vunpack.c.l.b16 %v2998
        %v6389 = vunpack.c.h.b16 %v2998
        %v6390 = vunpack.c.l.b16 %v2999
        %v6391 = vunpack.c.h.b16 %v2999
        %v6392 = vunpack.c.l.b16 %v3000
        %v6393 = vunpack.c.h.b16 %v3000
        %v6394 = vunpack.c.l.b16 %v3001
        %v6395 = vunpack.c.h.b16 %v3001
        %v6396 = vunpack.c.l.b16 %v3002
        %v6397 = vunpack.c.h.b16 %v3002
        %v6398 = vunpack.c.l.b16 %v3003
        %v6399 = vunpack.c.h.b16 %v3003
        %v6400 = vunpack.c.l.b16 %v3004
        %v6401 = vunpack.c.h.b16 %v3004
        %v6402 = vunpack.c.l.b16 %v3005
        %v6403 = vunpack.c.h.b16 %v3005
        %v6404 = vunpack.c.l.b16 %v3006
        %v6405 = vunpack.c.h.b16 %v3006
        %v6406 = vunpack.c.l.b16 %v3007
        %v6407 = vunpack.c.h.b16 %v3007
        %v6408 = vunpack.c.l.b16 %v3008
        %v6409 = vunpack.c.h.b16 %v3008
        %v6410 = vunpack.c.l.b16 %v3009
        %v6411 = vunpack.c.h.b16 %v3009
        %v6412 = vunpack.c.l.b16 %v3010
        %v6413 = vunpack.c.h.b16 %v3010
        %v6414 = vpack.c.b16 %v6290, %v6286
        %v6415 = vpack.c.b16 %v6291, %v6287
        %v6416 = vpack.c.b16 %v6292, %v6288
        %v6417 = vpack.c.b16 %v6293, %v6289
        %v6418 = vpack.c.b16 %v6298, %v6294
        %v6419 = vpack.c.b16 %v6299, %v6295
        %v6420 = vpack.c.b16 %v6300, %v6296
        %v6421 = vpack.c.b16 %v6301, %v6297
        %v6422 = vpack.c.b16 %v6306, %v6302
        %v6423 = vpack.c.b16 %v6307, %v6303
        %v6424 = vpack.c.b16 %v6308, %v6304
        %v6425 = vpack.c.b16 %v6309, %v6305
        %v6426 = vpack.c.b16 %v6314, %v6310
        %v6427 = vpack.c.b16 %v6315, %v6311
        %v6428 = vpack.c.b16 %v6316, %v6312
        %v6429 = vpack.c.b16 %v6317, %v6313
        %v6430 = vpack.c.b16 %v6322, %v6318
        %v6431 = vpack.c.b16 %v6323, %v6319
        %v6432 = vpack.c.b16 %v6324, %v6320
        %v6433 = vpack.c.b16 %v6325, %v6321
        %v6434 = vpack.c.b16 %v6330, %v6326
        %v6435 = vpack.c.b16 %v6331, %v6327
        %v6436 = vpack.c.b16 %v6332, %v6328
        %v6437 = vpack.c.b16 %v6333, %v6329
        %v6438 = vpack.c.b16 %v6338, %v6334
        %v6439 = vpack.c.b16 %v6339, %v6335
        %v6440 = vpack.c.b16 %v6340, %v6336
        %v6441 = vpack.c.b16 %v6341, %v6337
        %v6442 = vpack.c.b16 %v6346, %v6342
        %v6443 = vpack.c.b16 %v6347, %v6343
        %v6444 = vpack.c.b16 %v6348, %v6344
        %v6445 = vpack.c.b16 %v6349, %v6345
        %v6446 = vpack.c.b16 %v6354, %v6350
        %v6447 = vpack.c.b16 %v6355, %v6351
        %v6448 = vpack.c.b16 %v6356, %v6352
        %v6449 = vpack.c.b16 %v6357, %v6353
        %v6450 = vpack.c.b16 %v6362, %v6358
        %v6451 = vpack.c.b16 %v6363, %v6359
        %v6452 = vpack.c.b16 %v6364, %v6360
        %v6453 = vpack.c.b16 %v6365, %v6361
        %v6454 = vpack.c.b16 %v6370, %v6366
        %v6455 = vpack.c.b16 %v6371, %v6367
        %v6456 = vpack.c.b16 %v6372, %v6368
        %v6457 = vpack.c.b16 %v6373, %v6369
        %v6458 = vpack.c.b16 %v6378, %v6374
        %v6459 = vpack.c.b16 %v6379, %v6375
        %v6460 = vpack.c.b16 %v6380, %v6376
        %v6461 = vpack.c.b16 %v6381, %v6377
        %v6462 = vpack.c.b16 %v6386, %v6382
        %v6463 = vpack.c.b16 %v6387, %v6383
        %v6464 = vpack.c.b16 %v6388, %v6384
        %v6465 = vpack.c.b16 %v6389, %v6385
        %v6466 = vpack.c.b16 %v6394, %v6390
        %v6467 = vpack.c.b16 %v6395, %v6391
        %v6468 = vpack.c.b16 %v6396, %v6392
        %v6469 = vpack.c.b16 %v6397, %v6393
        %v6470 = vpack.c.b16 %v6402, %v6398
        %v6471 = vpack.c.b16 %v6403, %v6399
        %v6472 = vpack.c.b16 %v6404, %v6400
        %v6473 = vpack.c.b16 %v6405, %v6401
        %v6474 = vpack.c.b16 %v6410, %v6406
        %v6475 = vpack.c.b16 %v6411, %v6407
        %v6476 = vpack.c.b16 %v6412, %v6408
        %v6477 = vpack.c.b16 %v6413, %v6409
        %6542 = vmatpush.bf16.msra.mxu0 %v6442
        %6543 = vmatpush.bf16.msra.mxu0 %v6438
        %6544 = vmatpush.bf16.msra.mxu0 %v6434
        %6545 = vmatpush.bf16.msra.mxu0 %v6430
        %6546 = vmatpush.bf16.msra.mxu0 %v6426
        %6547 = vmatpush.bf16.msra.mxu0 %v6422
        %6548 = vmatpush.bf16.msra.mxu0 %v6418
        %6549 = vmatpush.bf16.msra.mxu0 %v6414
        %6550 = vmatmul.bf16.gmra.mxu0 %v6218
        %v6551 = vpop.f32.mrf.mxu0
        %v6552 = vadd.f32 %v6157, %v6551
        %v6553 = vpop.f32.mrf.mxu0
        %6554 = vdwg.mxu0
        %6555 = vmatpush.bf16.msra.mxu0 %v6474
        %6556 = vmatpush.bf16.msra.mxu0 %v6470
        %6557 = vmatpush.bf16.msra.mxu0 %v6466
        %6558 = vmatpush.bf16.msra.mxu0 %v6462
        %6559 = vmatpush.bf16.msra.mxu0 %v6458
        %6560 = vmatpush.bf16.msra.mxu0 %v6454
        %6561 = vmatpush.bf16.msra.mxu0 %v6450
        %6562 = vmatpush.bf16.msra.mxu0 %v6446
        %6563 = vmatmul.bf16.gmra.mxu0 %v6219
        %v6564 = vpop.f32.mrf.mxu0
        %v6565 = vadd.f32 %v6552, %v6564
        %v6566 = vpop.f32.mrf.mxu0
        %6567 = vdwg.mxu0
        %6568 = vmatpush.bf16.msra.mxu0 %v6443
        %6569 = vmatpush.bf16.msra.mxu0 %v6439
        %6570 = vmatpush.bf16.msra.mxu0 %v6435
        %6571 = vmatpush.bf16.msra.mxu0 %v6431
        %6572 = vmatpush.bf16.msra.mxu0 %v6427
        %6573 = vmatpush.bf16.msra.mxu0 %v6423
        %6574 = vmatpush.bf16.msra.mxu0 %v6419
        %6575 = vmatpush.bf16.msra.mxu0 %v6415
        %6576 = vmatmul.bf16.gmra.mxu0 %v6218
        %v6577 = vpop.f32.mrf.mxu0
        %v6578 = vadd.f32 %v6158, %v6577
        %v6579 = vpop.f32.mrf.mxu0
        %6580 = vdwg.mxu0
        %6581 = vmatpush.bf16.msra.mxu0 %v6475
        %6582 = vmatpush.bf16.msra.mxu0 %v6471
        %6583 = vmatpush.bf16.msra.mxu0 %v6467
        %6584 = vmatpush.bf16.msra.mxu0 %v6463
        %6585 = vmatpush.bf16.msra.mxu0 %v6459
        %6586 = vmatpush.bf16.msra.mxu0 %v6455
        %6587 = vmatpush.bf16.msra.mxu0 %v6451
        %6588 = vmatpush.bf16.msra.mxu0 %v6447
        %6589 = vmatmul.bf16.gmra.mxu0 %v6219
        %v6590 = vpop.f32.mrf.mxu0
        %v6591 = vadd.f32 %v6578, %v6590
        %v6592 = vpop.f32.mrf.mxu0
        %6593 = vdwg.mxu0
        %6594 = vmatpush.bf16.msra.mxu0 %v6444
        %6595 = vmatpush.bf16.msra.mxu0 %v6440
        %6596 = vmatpush.bf16.msra.mxu0 %v6436
        %6597 = vmatpush.bf16.msra.mxu0 %v6432
        %6598 = vmatpush.bf16.msra.mxu0 %v6428
        %6599 = vmatpush.bf16.msra.mxu0 %v6424
        %6600 = vmatpush.bf16.msra.mxu0 %v6420
        %6601 = vmatpush.bf16.msra.mxu0 %v6416
        %6602 = vmatmul.bf16.gmra.mxu0 %v6218
        %v6603 = vpop.f32.mrf.mxu0
        %v6604 = vadd.f32 %v6159, %v6603
        %v6605 = vpop.f32.mrf.mxu0
        %6606 = vdwg.mxu0
        %6607 = vmatpush.bf16.msra.mxu0 %v6476
        %6608 = vmatpush.bf16.msra.mxu0 %v6472
        %6609 = vmatpush.bf16.msra.mxu0 %v6468
        %6610 = vmatpush.bf16.msra.mxu0 %v6464
        %6611 = vmatpush.bf16.msra.mxu0 %v6460
        %6612 = vmatpush.bf16.msra.mxu0 %v6456
        %6613 = vmatpush.bf16.msra.mxu0 %v6452
        %6614 = vmatpush.bf16.msra.mxu0 %v6448
        %6615 = vmatmul.bf16.gmra.mxu0 %v6219
        %v6616 = vpop.f32.mrf.mxu0
        %v6617 = vadd.f32 %v6604, %v6616
        %v6618 = vpop.f32.mrf.mxu0
        %6619 = vdwg.mxu0
        %6620 = vmatpush.bf16.msra.mxu0 %v6445
        %6621 = vmatpush.bf16.msra.mxu0 %v6441
        %6622 = vmatpush.bf16.msra.mxu0 %v6437
        %6623 = vmatpush.bf16.msra.mxu0 %v6433
        %6624 = vmatpush.bf16.msra.mxu0 %v6429
        %6625 = vmatpush.bf16.msra.mxu0 %v6425
        %6626 = vmatpush.bf16.msra.mxu0 %v6421
        %6627 = vmatpush.bf16.msra.mxu0 %v6417
        %6628 = vmatmul.bf16.gmra.mxu0 %v6218
        %v6629 = vpop.f32.mrf.mxu0
        %v6630 = vadd.f32 %v6160, %v6629
        %v6631 = vpop.f32.mrf.mxu0
        %6632 = vdwg.mxu0
        %6633 = vmatpush.bf16.msra.mxu0 %v6477
        %6634 = vmatpush.bf16.msra.mxu0 %v6473
        %6635 = vmatpush.bf16.msra.mxu0 %v6469
        %6636 = vmatpush.bf16.msra.mxu0 %v6465
        %6637 = vmatpush.bf16.msra.mxu0 %v6461
        %6638 = vmatpush.bf16.msra.mxu0 %v6457
        %6639 = vmatpush.bf16.msra.mxu0 %v6453
        %6640 = vmatpush.bf16.msra.mxu0 %v6449
        %6641 = vmatmul.bf16.gmra.mxu0 %v6219
        %v6642 = vpop.f32.mrf.mxu0
        %v6643 = vadd.f32 %v6630, %v6642
        %v6644 = vpop.f32.mrf.mxu0
        %6645 = vdwg.mxu0
        %v6650 = vrot.slane %v6591, 7
        %v6651 = vrot.slane %v6617, 6
        %v6652 = vrot.slane %v6643, 5
        %vm6653 = vcmask 1040384
        %v6654 = vsel %vm6653, %v6565, %v6650
        %v6655 = vsel %vm6199, %v6651, %v6652
        %vm6656 = vcmask 1041408
        %v6657 = vsel %vm6656, %v6654, %v6655
        %v6658 = vsel %vm6197, %v6565, %v6650
        %v6659 = vsel %vm6201, %v6651, %v6652
        %vm6660 = vcmask 1042433
        %v6661 = vsel %vm6660, %v6658, %v6659
        %v6662 = vrot.slane %v6661, 1
        %v6663 = vsel %vm6199, %v6565, %v6650
        %v6664 = vsel %vm6203, %v6651, %v6652
        %vm6665 = vcmask 1043458
        %v6666 = vsel %vm6665, %v6663, %v6664
        %v6667 = vrot.slane %v6666, 2
        %v6668 = vsel %vm6201, %v6565, %v6650
        %v6669 = vsel %vm6205, %v6651, %v6652
        %vm6670 = vcmask 1044483
        %v6671 = vsel %vm6670, %v6668, %v6669
        %v6672 = vrot.slane %v6671, 3
        %v6673 = vsel %vm6203, %v6565, %v6650
        %v6674 = vsel %vm6207, %v6651, %v6652
        %vm6675 = vcmask 1045508
        %v6676 = vsel %vm6675, %v6673, %v6674
        %v6677 = vrot.slane %v6676, 4
        %v6678 = vsel %vm6205, %v6565, %v6650
        %vm6679 = vcmask 1046528
        %v6680 = vsel %vm6679, %v6652, %v6651
        %vm6681 = vcmask 1046533
        %v6682 = vsel %vm6681, %v6678, %v6680
        %v6683 = vrot.slane %v6682, 5
        %v6684 = vsel %vm6207, %v6565, %v6650
        %v6685 = vsel %vm6653, %v6651, %v6652
        %vm6686 = vcmask 1045504
        %v6687 = vsel %vm6686, %v6685, %v6684
        %v6688 = vrot.slane %v6687, 6
        %v6689 = vsel %vm6679, %v6650, %v6565
        %v6690 = vsel %vm6197, %v6651, %v6652
        %vm6691 = vcmask 1046529
        %v6692 = vsel %vm6691, %v6690, %v6689
        %v6693 = vrot.slane %v6692, 7
        %v6694 = vperm.slane %v6657, 0
        %v6695 = vperm.slane %v6657, 1
        %v6696 = vperm.slane %v6657, 2
        %v6697 = vperm.slane %v6657, 3
        %v6698 = vperm.slane %v6662, 0
        %v6699 = vperm.slane %v6662, 1
        %v6700 = vperm.slane %v6662, 2
        %v6701 = vperm.slane %v6662, 3
        %v6702 = vperm.slane %v6667, 0
        %v6703 = vperm.slane %v6667, 1
        %v6704 = vperm.slane %v6667, 2
        %v6705 = vperm.slane %v6667, 3
        %v6706 = vperm.slane %v6672, 0
        %v6707 = vperm.slane %v6672, 1
        %v6708 = vperm.slane %v6672, 2
        %v6709 = vperm.slane %v6672, 3
        %v6710 = vperm.slane %v6677, 0
        %v6711 = vperm.slane %v6677, 1
        %v6712 = vperm.slane %v6677, 2
        %v6713 = vperm.slane %v6677, 3
        %v6714 = vperm.slane %v6683, 0
        %v6715 = vperm.slane %v6683, 1
        %v6716 = vperm.slane %v6683, 2
        %v6717 = vperm.slane %v6683, 3
        %v6718 = vperm.slane %v6688, 0
        %v6719 = vperm.slane %v6688, 1
        %v6720 = vperm.slane %v6688, 2
        %v6721 = vperm.slane %v6688, 3
        %v6722 = vperm.slane %v6693, 0
        %v6723 = vperm.slane %v6693, 1
        %v6724 = vperm.slane %v6693, 2
        %v6725 = vperm.slane %v6693, 3
        %v6758 = vadd.f32 %v3862, %v6694
        %v6759 = vadd.f32 %v4520, %v6695
        %v6760 = vadd.f32 %v5178, %v6696
        %v6761 = vadd.f32 %v5836, %v6697
        %v6762 = vadd.f32 %v3864, %v6694
        %v6763 = vadd.f32 %v4522, %v6695
        %v6764 = vadd.f32 %v5180, %v6696
        %v6765 = vadd.f32 %v5838, %v6697
        %v6766 = vadd.f32 %v3867, %v6694
        %v6767 = vadd.f32 %v4525, %v6695
        %v6768 = vadd.f32 %v5183, %v6696
        %v6769 = vadd.f32 %v5841, %v6697
        %v6770 = vadd.f32 %v3869, %v6694
        %v6771 = vadd.f32 %v4527, %v6695
        %v6772 = vadd.f32 %v5185, %v6696
        %v6773 = vadd.f32 %v5843, %v6697
        %v6774 = vadd.f32 %v3872, %v6694
        %v6775 = vadd.f32 %v4530, %v6695
        %v6776 = vadd.f32 %v5188, %v6696
        %v6777 = vadd.f32 %v5846, %v6697
        %v6778 = vadd.f32 %v3874, %v6694
        %v6779 = vadd.f32 %v4532, %v6695
        %v6780 = vadd.f32 %v5190, %v6696
        %v6781 = vadd.f32 %v5848, %v6697
        %v6782 = vadd.f32 %v3877, %v6694
        %v6783 = vadd.f32 %v4535, %v6695
        %v6784 = vadd.f32 %v5193, %v6696
        %v6785 = vadd.f32 %v5851, %v6697
        %v6786 = vadd.f32 %v3879, %v6694
        %v6787 = vadd.f32 %v4537, %v6695
        %v6788 = vadd.f32 %v5195, %v6696
        %v6789 = vadd.f32 %v5853, %v6697
        %v6790 = vadd.f32 %v3882, %v6694
        %v6791 = vadd.f32 %v4540, %v6695
        %v6792 = vadd.f32 %v5198, %v6696
        %v6793 = vadd.f32 %v5856, %v6697
        %v6794 = vadd.f32 %v3884, %v6694
        %v6795 = vadd.f32 %v4542, %v6695
        %v6796 = vadd.f32 %v5200, %v6696
        %v6797 = vadd.f32 %v5858, %v6697
        %v6798 = vadd.f32 %v3887, %v6694
        %v6799 = vadd.f32 %v4545, %v6695
        %v6800 = vadd.f32 %v5203, %v6696
        %v6801 = vadd.f32 %v5861, %v6697
        %v6802 = vadd.f32 %v3889, %v6694
        %v6803 = vadd.f32 %v4547, %v6695
        %v6804 = vadd.f32 %v5205, %v6696
        %v6805 = vadd.f32 %v5863, %v6697
        %v6806 = vadd.f32 %v3892, %v6694
        %v6807 = vadd.f32 %v4550, %v6695
        %v6808 = vadd.f32 %v5208, %v6696
        %v6809 = vadd.f32 %v5866, %v6697
        %v6810 = vadd.f32 %v3894, %v6694
        %v6811 = vadd.f32 %v4552, %v6695
        %v6812 = vadd.f32 %v5210, %v6696
        %v6813 = vadd.f32 %v5868, %v6697
        %v6814 = vadd.f32 %v3897, %v6694
        %v6815 = vadd.f32 %v4555, %v6695
        %v6816 = vadd.f32 %v5213, %v6696
        %v6817 = vadd.f32 %v5871, %v6697
        %v6818 = vadd.f32 %v3899, %v6694
        %v6819 = vadd.f32 %v4557, %v6695
        %v6820 = vadd.f32 %v5215, %v6696
        %v6821 = vadd.f32 %v5873, %v6697
        %v6822 = vadd.f32 %v3902, %v6698
        %v6823 = vadd.f32 %v4560, %v6699
        %v6824 = vadd.f32 %v5218, %v6700
        %v6825 = vadd.f32 %v5876, %v6701
        %v6826 = vadd.f32 %v3904, %v6698
        %v6827 = vadd.f32 %v4562, %v6699
        %v6828 = vadd.f32 %v5220, %v6700
        %v6829 = vadd.f32 %v5878, %v6701
        %v6830 = vadd.f32 %v3907, %v6698
        %v6831 = vadd.f32 %v4565, %v6699
        %v6832 = vadd.f32 %v5223, %v6700
        %v6833 = vadd.f32 %v5881, %v6701
        %v6834 = vadd.f32 %v3909, %v6698
        %v6835 = vadd.f32 %v4567, %v6699
        %v6836 = vadd.f32 %v5225, %v6700
        %v6837 = vadd.f32 %v5883, %v6701
        %v6838 = vadd.f32 %v3912, %v6698
        %v6839 = vadd.f32 %v4570, %v6699
        %v6840 = vadd.f32 %v5228, %v6700
        %v6841 = vadd.f32 %v5886, %v6701
        %v6842 = vadd.f32 %v3914, %v6698
        %v6843 = vadd.f32 %v4572, %v6699
        %v6844 = vadd.f32 %v5230, %v6700
        %v6845 = vadd.f32 %v5888, %v6701
        %v6846 = vadd.f32 %v3917, %v6698
        %v6847 = vadd.f32 %v4575, %v6699
        %v6848 = vadd.f32 %v5233, %v6700
        %v6849 = vadd.f32 %v5891, %v6701
        %v6850 = vadd.f32 %v3919, %v6698
        %v6851 = vadd.f32 %v4577, %v6699
        %v6852 = vadd.f32 %v5235, %v6700
        %v6853 = vadd.f32 %v5893, %v6701
        %v6854 = vadd.f32 %v3922, %v6698
        %v6855 = vadd.f32 %v4580, %v6699
        %v6856 = vadd.f32 %v5238, %v6700
        %v6857 = vadd.f32 %v5896, %v6701
        %v6858 = vadd.f32 %v3924, %v6698
        %v6859 = vadd.f32 %v4582, %v6699
        %v6860 = vadd.f32 %v5240, %v6700
        %v6861 = vadd.f32 %v5898, %v6701
        %v6862 = vadd.f32 %v3927, %v6698
        %v6863 = vadd.f32 %v4585, %v6699
        %v6864 = vadd.f32 %v5243, %v6700
        %v6865 = vadd.f32 %v5901, %v6701
        %v6866 = vadd.f32 %v3929, %v6698
        %v6867 = vadd.f32 %v4587, %v6699
        %v6868 = vadd.f32 %v5245, %v6700
        %v6869 = vadd.f32 %v5903, %v6701
        %v6870 = vadd.f32 %v3932, %v6698
        %v6871 = vadd.f32 %v4590, %v6699
        %v6872 = vadd.f32 %v5248, %v6700
        %v6873 = vadd.f32 %v5906, %v6701
        %v6874 = vadd.f32 %v3934, %v6698
        %v6875 = vadd.f32 %v4592, %v6699
        %v6876 = vadd.f32 %v5250, %v6700
        %v6877 = vadd.f32 %v5908, %v6701
        %v6878 = vadd.f32 %v3937, %v6698
        %v6879 = vadd.f32 %v4595, %v6699
        %v6880 = vadd.f32 %v5253, %v6700
        %v6881 = vadd.f32 %v5911, %v6701
        %v6882 = vadd.f32 %v3939, %v6698
        %v6883 = vadd.f32 %v4597, %v6699
        %v6884 = vadd.f32 %v5255, %v6700
        %v6885 = vadd.f32 %v5913, %v6701
        %v6886 = vadd.f32 %v3942, %v6702
        %v6887 = vadd.f32 %v4600, %v6703
        %v6888 = vadd.f32 %v5258, %v6704
        %v6889 = vadd.f32 %v5916, %v6705
        %v6890 = vadd.f32 %v3944, %v6702
        %v6891 = vadd.f32 %v4602, %v6703
        %v6892 = vadd.f32 %v5260, %v6704
        %v6893 = vadd.f32 %v5918, %v6705
        %v6894 = vadd.f32 %v3947, %v6702
        %v6895 = vadd.f32 %v4605, %v6703
        %v6896 = vadd.f32 %v5263, %v6704
        %v6897 = vadd.f32 %v5921, %v6705
        %v6898 = vadd.f32 %v3949, %v6702
        %v6899 = vadd.f32 %v4607, %v6703
        %v6900 = vadd.f32 %v5265, %v6704
        %v6901 = vadd.f32 %v5923, %v6705
        %v6902 = vadd.f32 %v3952, %v6702
        %v6903 = vadd.f32 %v4610, %v6703
        %v6904 = vadd.f32 %v5268, %v6704
        %v6905 = vadd.f32 %v5926, %v6705
        %v6906 = vadd.f32 %v3954, %v6702
        %v6907 = vadd.f32 %v4612, %v6703
        %v6908 = vadd.f32 %v5270, %v6704
        %v6909 = vadd.f32 %v5928, %v6705
        %v6910 = vadd.f32 %v3957, %v6702
        %v6911 = vadd.f32 %v4615, %v6703
        %v6912 = vadd.f32 %v5273, %v6704
        %v6913 = vadd.f32 %v5931, %v6705
        %v6914 = vadd.f32 %v3959, %v6702
        %v6915 = vadd.f32 %v4617, %v6703
        %v6916 = vadd.f32 %v5275, %v6704
        %v6917 = vadd.f32 %v5933, %v6705
        %v6918 = vadd.f32 %v3962, %v6702
        %v6919 = vadd.f32 %v4620, %v6703
        %v6920 = vadd.f32 %v5278, %v6704
        %v6921 = vadd.f32 %v5936, %v6705
        %v6922 = vadd.f32 %v3964, %v6702
        %v6923 = vadd.f32 %v4622, %v6703
        %v6924 = vadd.f32 %v5280, %v6704
        %v6925 = vadd.f32 %v5938, %v6705
        %v6926 = vadd.f32 %v3967, %v6702
        %v6927 = vadd.f32 %v4625, %v6703
        %v6928 = vadd.f32 %v5283, %v6704
        %v6929 = vadd.f32 %v5941, %v6705
        %v6930 = vadd.f32 %v3969, %v6702
        %v6931 = vadd.f32 %v4627, %v6703
        %v6932 = vadd.f32 %v5285, %v6704
        %v6933 = vadd.f32 %v5943, %v6705
        %v6934 = vadd.f32 %v3972, %v6702
        %v6935 = vadd.f32 %v4630, %v6703
        %v6936 = vadd.f32 %v5288, %v6704
        %v6937 = vadd.f32 %v5946, %v6705
        %v6938 = vadd.f32 %v3974, %v6702
        %v6939 = vadd.f32 %v4632, %v6703
        %v6940 = vadd.f32 %v5290, %v6704
        %v6941 = vadd.f32 %v5948, %v6705
        %v6942 = vadd.f32 %v3977, %v6702
        %v6943 = vadd.f32 %v4635, %v6703
        %v6944 = vadd.f32 %v5293, %v6704
        %v6945 = vadd.f32 %v5951, %v6705
        %v6946 = vadd.f32 %v3979, %v6702
        %v6947 = vadd.f32 %v4637, %v6703
        %v6948 = vadd.f32 %v5295, %v6704
        %v6949 = vadd.f32 %v5953, %v6705
        %v6950 = vadd.f32 %v3982, %v6706
        %v6951 = vadd.f32 %v4640, %v6707
        %v6952 = vadd.f32 %v5298, %v6708
        %v6953 = vadd.f32 %v5956, %v6709
        %v6954 = vadd.f32 %v3984, %v6706
        %v6955 = vadd.f32 %v4642, %v6707
        %v6956 = vadd.f32 %v5300, %v6708
        %v6957 = vadd.f32 %v5958, %v6709
        %v6958 = vadd.f32 %v3987, %v6706
        %v6959 = vadd.f32 %v4645, %v6707
        %v6960 = vadd.f32 %v5303, %v6708
        %v6961 = vadd.f32 %v5961, %v6709
        %v6962 = vadd.f32 %v3989, %v6706
        %v6963 = vadd.f32 %v4647, %v6707
        %v6964 = vadd.f32 %v5305, %v6708
        %v6965 = vadd.f32 %v5963, %v6709
        %v6966 = vadd.f32 %v3992, %v6706
        %v6967 = vadd.f32 %v4650, %v6707
        %v6968 = vadd.f32 %v5308, %v6708
        %v6969 = vadd.f32 %v5966, %v6709
        %v6970 = vadd.f32 %v3994, %v6706
        %v6971 = vadd.f32 %v4652, %v6707
        %v6972 = vadd.f32 %v5310, %v6708
        %v6973 = vadd.f32 %v5968, %v6709
        %v6974 = vadd.f32 %v3997, %v6706
        %v6975 = vadd.f32 %v4655, %v6707
        %v6976 = vadd.f32 %v5313, %v6708
        %v6977 = vadd.f32 %v5971, %v6709
        %v6978 = vadd.f32 %v3999, %v6706
        %v6979 = vadd.f32 %v4657, %v6707
        %v6980 = vadd.f32 %v5315, %v6708
        %v6981 = vadd.f32 %v5973, %v6709
        %v6982 = vadd.f32 %v4002, %v6706
        %v6983 = vadd.f32 %v4660, %v6707
        %v6984 = vadd.f32 %v5318, %v6708
        %v6985 = vadd.f32 %v5976, %v6709
        %v6986 = vadd.f32 %v4004, %v6706
        %v6987 = vadd.f32 %v4662, %v6707
        %v6988 = vadd.f32 %v5320, %v6708
        %v6989 = vadd.f32 %v5978, %v6709
        %v6990 = vadd.f32 %v4007, %v6706
        %v6991 = vadd.f32 %v4665, %v6707
        %v6992 = vadd.f32 %v5323, %v6708
        %v6993 = vadd.f32 %v5981, %v6709
        %v6994 = vadd.f32 %v4009, %v6706
        %v6995 = vadd.f32 %v4667, %v6707
        %v6996 = vadd.f32 %v5325, %v6708
        %v6997 = vadd.f32 %v5983, %v6709
        %v6998 = vadd.f32 %v4012, %v6706
        %v6999 = vadd.f32 %v4670, %v6707
        %v7000 = vadd.f32 %v5328, %v6708
        %v7001 = vadd.f32 %v5986, %v6709
        %v7002 = vadd.f32 %v4014, %v6706
        %v7003 = vadd.f32 %v4672, %v6707
        %v7004 = vadd.f32 %v5330, %v6708
        %v7005 = vadd.f32 %v5988, %v6709
        %v7006 = vadd.f32 %v4017, %v6706
        %v7007 = vadd.f32 %v4675, %v6707
        %v7008 = vadd.f32 %v5333, %v6708
        %v7009 = vadd.f32 %v5991, %v6709
        %v7010 = vadd.f32 %v4019, %v6706
        %v7011 = vadd.f32 %v4677, %v6707
        %v7012 = vadd.f32 %v5335, %v6708
        %v7013 = vadd.f32 %v5993, %v6709
        %v7014 = vadd.f32 %v4022, %v6710
        %v7015 = vadd.f32 %v4680, %v6711
        %v7016 = vadd.f32 %v5338, %v6712
        %v7017 = vadd.f32 %v5996, %v6713
        %v7018 = vadd.f32 %v4024, %v6710
        %v7019 = vadd.f32 %v4682, %v6711
        %v7020 = vadd.f32 %v5340, %v6712
        %v7021 = vadd.f32 %v5998, %v6713
        %v7022 = vadd.f32 %v4027, %v6710
        %v7023 = vadd.f32 %v4685, %v6711
        %v7024 = vadd.f32 %v5343, %v6712
        %v7025 = vadd.f32 %v6001, %v6713
        %v7026 = vadd.f32 %v4029, %v6710
        %v7027 = vadd.f32 %v4687, %v6711
        %v7028 = vadd.f32 %v5345, %v6712
        %v7029 = vadd.f32 %v6003, %v6713
        %v7030 = vadd.f32 %v4032, %v6710
        %v7031 = vadd.f32 %v4690, %v6711
        %v7032 = vadd.f32 %v5348, %v6712
        %v7033 = vadd.f32 %v6006, %v6713
        %v7034 = vadd.f32 %v4034, %v6710
        %v7035 = vadd.f32 %v4692, %v6711
        %v7036 = vadd.f32 %v5350, %v6712
        %v7037 = vadd.f32 %v6008, %v6713
        %v7038 = vadd.f32 %v4037, %v6710
        %v7039 = vadd.f32 %v4695, %v6711
        %v7040 = vadd.f32 %v5353, %v6712
        %v7041 = vadd.f32 %v6011, %v6713
        %v7042 = vadd.f32 %v4039, %v6710
        %v7043 = vadd.f32 %v4697, %v6711
        %v7044 = vadd.f32 %v5355, %v6712
        %v7045 = vadd.f32 %v6013, %v6713
        %v7046 = vadd.f32 %v4042, %v6710
        %v7047 = vadd.f32 %v4700, %v6711
        %v7048 = vadd.f32 %v5358, %v6712
        %v7049 = vadd.f32 %v6016, %v6713
        %v7050 = vadd.f32 %v4044, %v6710
        %v7051 = vadd.f32 %v4702, %v6711
        %v7052 = vadd.f32 %v5360, %v6712
        %v7053 = vadd.f32 %v6018, %v6713
        %v7054 = vadd.f32 %v4047, %v6710
        %v7055 = vadd.f32 %v4705, %v6711
        %v7056 = vadd.f32 %v5363, %v6712
        %v7057 = vadd.f32 %v6021, %v6713
        %v7058 = vadd.f32 %v4049, %v6710
        %v7059 = vadd.f32 %v4707, %v6711
        %v7060 = vadd.f32 %v5365, %v6712
        %v7061 = vadd.f32 %v6023, %v6713
        %v7062 = vadd.f32 %v4052, %v6710
        %v7063 = vadd.f32 %v4710, %v6711
        %v7064 = vadd.f32 %v5368, %v6712
        %v7065 = vadd.f32 %v6026, %v6713
        %v7066 = vadd.f32 %v4054, %v6710
        %v7067 = vadd.f32 %v4712, %v6711
        %v7068 = vadd.f32 %v5370, %v6712
        %v7069 = vadd.f32 %v6028, %v6713
        %v7070 = vadd.f32 %v4057, %v6710
        %v7071 = vadd.f32 %v4715, %v6711
        %v7072 = vadd.f32 %v5373, %v6712
        %v7073 = vadd.f32 %v6031, %v6713
        %v7074 = vadd.f32 %v4059, %v6710
        %v7075 = vadd.f32 %v4717, %v6711
        %v7076 = vadd.f32 %v5375, %v6712
        %v7077 = vadd.f32 %v6033, %v6713
        %v7078 = vadd.f32 %v4062, %v6714
        %v7079 = vadd.f32 %v4720, %v6715
        %v7080 = vadd.f32 %v5378, %v6716
        %v7081 = vadd.f32 %v6036, %v6717
        %v7082 = vadd.f32 %v4064, %v6714
        %v7083 = vadd.f32 %v4722, %v6715
        %v7084 = vadd.f32 %v5380, %v6716
        %v7085 = vadd.f32 %v6038, %v6717
        %v7086 = vadd.f32 %v4067, %v6714
        %v7087 = vadd.f32 %v4725, %v6715
        %v7088 = vadd.f32 %v5383, %v6716
        %v7089 = vadd.f32 %v6041, %v6717
        %v7090 = vadd.f32 %v4069, %v6714
        %v7091 = vadd.f32 %v4727, %v6715
        %v7092 = vadd.f32 %v5385, %v6716
        %v7093 = vadd.f32 %v6043, %v6717
        %v7094 = vadd.f32 %v4072, %v6714
        %v7095 = vadd.f32 %v4730, %v6715
        %v7096 = vadd.f32 %v5388, %v6716
        %v7097 = vadd.f32 %v6046, %v6717
        %v7098 = vadd.f32 %v4074, %v6714
        %v7099 = vadd.f32 %v4732, %v6715
        %v7100 = vadd.f32 %v5390, %v6716
        %v7101 = vadd.f32 %v6048, %v6717
        %v7102 = vadd.f32 %v4077, %v6714
        %v7103 = vadd.f32 %v4735, %v6715
        %v7104 = vadd.f32 %v5393, %v6716
        %v7105 = vadd.f32 %v6051, %v6717
        %v7106 = vadd.f32 %v4079, %v6714
        %v7107 = vadd.f32 %v4737, %v6715
        %v7108 = vadd.f32 %v5395, %v6716
        %v7109 = vadd.f32 %v6053, %v6717
        %v7110 = vadd.f32 %v4082, %v6714
        %v7111 = vadd.f32 %v4740, %v6715
        %v7112 = vadd.f32 %v5398, %v6716
        %v7113 = vadd.f32 %v6056, %v6717
        %v7114 = vadd.f32 %v4084, %v6714
        %v7115 = vadd.f32 %v4742, %v6715
        %v7116 = vadd.f32 %v5400, %v6716
        %v7117 = vadd.f32 %v6058, %v6717
        %v7118 = vadd.f32 %v4087, %v6714
        %v7119 = vadd.f32 %v4745, %v6715
        %v7120 = vadd.f32 %v5403, %v6716
        %v7121 = vadd.f32 %v6061, %v6717
        %v7122 = vadd.f32 %v4089, %v6714
        %v7123 = vadd.f32 %v4747, %v6715
        %v7124 = vadd.f32 %v5405, %v6716
        %v7125 = vadd.f32 %v6063, %v6717
        %v7126 = vadd.f32 %v4092, %v6714
        %v7127 = vadd.f32 %v4750, %v6715
        %v7128 = vadd.f32 %v5408, %v6716
        %v7129 = vadd.f32 %v6066, %v6717
        %v7130 = vadd.f32 %v4094, %v6714
        %v7131 = vadd.f32 %v4752, %v6715
        %v7132 = vadd.f32 %v5410, %v6716
        %v7133 = vadd.f32 %v6068, %v6717
        %v7134 = vadd.f32 %v4097, %v6714
        %v7135 = vadd.f32 %v4755, %v6715
        %v7136 = vadd.f32 %v5413, %v6716
        %v7137 = vadd.f32 %v6071, %v6717
        %v7138 = vadd.f32 %v4099, %v6714
        %v7139 = vadd.f32 %v4757, %v6715
        %v7140 = vadd.f32 %v5415, %v6716
        %v7141 = vadd.f32 %v6073, %v6717
        %v7142 = vadd.f32 %v4102, %v6718
        %v7143 = vadd.f32 %v4760, %v6719
        %v7144 = vadd.f32 %v5418, %v6720
        %v7145 = vadd.f32 %v6076, %v6721
        %v7146 = vadd.f32 %v4104, %v6718
        %v7147 = vadd.f32 %v4762, %v6719
        %v7148 = vadd.f32 %v5420, %v6720
        %v7149 = vadd.f32 %v6078, %v6721
        %v7150 = vadd.f32 %v4107, %v6718
        %v7151 = vadd.f32 %v4765, %v6719
        %v7152 = vadd.f32 %v5423, %v6720
        %v7153 = vadd.f32 %v6081, %v6721
        %v7154 = vadd.f32 %v4109, %v6718
        %v7155 = vadd.f32 %v4767, %v6719
        %v7156 = vadd.f32 %v5425, %v6720
        %v7157 = vadd.f32 %v6083, %v6721
        %v7158 = vadd.f32 %v4112, %v6718
        %v7159 = vadd.f32 %v4770, %v6719
        %v7160 = vadd.f32 %v5428, %v6720
        %v7161 = vadd.f32 %v6086, %v6721
        %v7162 = vadd.f32 %v4114, %v6718
        %v7163 = vadd.f32 %v4772, %v6719
        %v7164 = vadd.f32 %v5430, %v6720
        %v7165 = vadd.f32 %v6088, %v6721
        %v7166 = vadd.f32 %v4117, %v6718
        %v7167 = vadd.f32 %v4775, %v6719
        %v7168 = vadd.f32 %v5433, %v6720
        %v7169 = vadd.f32 %v6091, %v6721
        %v7170 = vadd.f32 %v4119, %v6718
        %v7171 = vadd.f32 %v4777, %v6719
        %v7172 = vadd.f32 %v5435, %v6720
        %v7173 = vadd.f32 %v6093, %v6721
        %v7174 = vadd.f32 %v4122, %v6718
        %v7175 = vadd.f32 %v4780, %v6719
        %v7176 = vadd.f32 %v5438, %v6720
        %v7177 = vadd.f32 %v6096, %v6721
        %v7178 = vadd.f32 %v4124, %v6718
        %v7179 = vadd.f32 %v4782, %v6719
        %v7180 = vadd.f32 %v5440, %v6720
        %v7181 = vadd.f32 %v6098, %v6721
        %v7182 = vadd.f32 %v4127, %v6718
        %v7183 = vadd.f32 %v4785, %v6719
        %v7184 = vadd.f32 %v5443, %v6720
        %v7185 = vadd.f32 %v6101, %v6721
        %v7186 = vadd.f32 %v4129, %v6718
        %v7187 = vadd.f32 %v4787, %v6719
        %v7188 = vadd.f32 %v5445, %v6720
        %v7189 = vadd.f32 %v6103, %v6721
        %v7190 = vadd.f32 %v4132, %v6718
        %v7191 = vadd.f32 %v4790, %v6719
        %v7192 = vadd.f32 %v5448, %v6720
        %v7193 = vadd.f32 %v6106, %v6721
        %v7194 = vadd.f32 %v4134, %v6718
        %v7195 = vadd.f32 %v4792, %v6719
        %v7196 = vadd.f32 %v5450, %v6720
        %v7197 = vadd.f32 %v6108, %v6721
        %v7198 = vadd.f32 %v4137, %v6718
        %v7199 = vadd.f32 %v4795, %v6719
        %v7200 = vadd.f32 %v5453, %v6720
        %v7201 = vadd.f32 %v6111, %v6721
        %v7202 = vadd.f32 %v4139, %v6718
        %v7203 = vadd.f32 %v4797, %v6719
        %v7204 = vadd.f32 %v5455, %v6720
        %v7205 = vadd.f32 %v6113, %v6721
        %v7206 = vadd.f32 %v4142, %v6722
        %v7207 = vadd.f32 %v4800, %v6723
        %v7208 = vadd.f32 %v5458, %v6724
        %v7209 = vadd.f32 %v6116, %v6725
        %v7210 = vadd.f32 %v4144, %v6722
        %v7211 = vadd.f32 %v4802, %v6723
        %v7212 = vadd.f32 %v5460, %v6724
        %v7213 = vadd.f32 %v6118, %v6725
        %v7214 = vadd.f32 %v4147, %v6722
        %v7215 = vadd.f32 %v4805, %v6723
        %v7216 = vadd.f32 %v5463, %v6724
        %v7217 = vadd.f32 %v6121, %v6725
        %v7218 = vadd.f32 %v4149, %v6722
        %v7219 = vadd.f32 %v4807, %v6723
        %v7220 = vadd.f32 %v5465, %v6724
        %v7221 = vadd.f32 %v6123, %v6725
        %v7222 = vadd.f32 %v4152, %v6722
        %v7223 = vadd.f32 %v4810, %v6723
        %v7224 = vadd.f32 %v5468, %v6724
        %v7225 = vadd.f32 %v6126, %v6725
        %v7226 = vadd.f32 %v4154, %v6722
        %v7227 = vadd.f32 %v4812, %v6723
        %v7228 = vadd.f32 %v5470, %v6724
        %v7229 = vadd.f32 %v6128, %v6725
        %v7230 = vadd.f32 %v4157, %v6722
        %v7231 = vadd.f32 %v4815, %v6723
        %v7232 = vadd.f32 %v5473, %v6724
        %v7233 = vadd.f32 %v6131, %v6725
        %v7234 = vadd.f32 %v4159, %v6722
        %v7235 = vadd.f32 %v4817, %v6723
        %v7236 = vadd.f32 %v5475, %v6724
        %v7237 = vadd.f32 %v6133, %v6725
        %v7238 = vadd.f32 %v4162, %v6722
        %v7239 = vadd.f32 %v4820, %v6723
        %v7240 = vadd.f32 %v5478, %v6724
        %v7241 = vadd.f32 %v6136, %v6725
        %v7242 = vadd.f32 %v4164, %v6722
        %v7243 = vadd.f32 %v4822, %v6723
        %v7244 = vadd.f32 %v5480, %v6724
        %v7245 = vadd.f32 %v6138, %v6725
        %v7246 = vadd.f32 %v4167, %v6722
        %v7247 = vadd.f32 %v4825, %v6723
        %v7248 = vadd.f32 %v5483, %v6724
        %v7249 = vadd.f32 %v6141, %v6725
        %v7250 = vadd.f32 %v4169, %v6722
        %v7251 = vadd.f32 %v4827, %v6723
        %v7252 = vadd.f32 %v5485, %v6724
        %v7253 = vadd.f32 %v6143, %v6725
        %v7254 = vadd.f32 %v4172, %v6722
        %v7255 = vadd.f32 %v4830, %v6723
        %v7256 = vadd.f32 %v5488, %v6724
        %v7257 = vadd.f32 %v6146, %v6725
        %v7258 = vadd.f32 %v4174, %v6722
        %v7259 = vadd.f32 %v4832, %v6723
        %v7260 = vadd.f32 %v5490, %v6724
        %v7261 = vadd.f32 %v6148, %v6725
        %v7262 = vadd.f32 %v4177, %v6722
        %v7263 = vadd.f32 %v4835, %v6723
        %v7264 = vadd.f32 %v5493, %v6724
        %v7265 = vadd.f32 %v6151, %v6725
        %v7266 = vadd.f32 %v4179, %v6722
        %v7267 = vadd.f32 %v4837, %v6723
        %v7268 = vadd.f32 %v5495, %v6724
        %v7269 = vadd.f32 %v6153, %v6725
        %v7270 = vmax.f32 %v6758, 0.0
        %v7271 = vmax.f32 %v6759, 0.0
        %v7272 = vmax.f32 %v6760, 0.0
        %v7273 = vmax.f32 %v6761, 0.0
        %v7274 = vmax.f32 %v6762, 0.0
        %v7275 = vmax.f32 %v6763, 0.0
        %v7276 = vmax.f32 %v6764, 0.0
        %v7277 = vmax.f32 %v6765, 0.0
        %v7278 = vmax.f32 %v6766, 0.0
        %v7279 = vmax.f32 %v6767, 0.0
        %v7280 = vmax.f32 %v6768, 0.0
        %v7281 = vmax.f32 %v6769, 0.0
        %v7282 = vmax.f32 %v6770, 0.0
        %v7283 = vmax.f32 %v6771, 0.0
        %v7284 = vmax.f32 %v6772, 0.0
        %v7285 = vmax.f32 %v6773, 0.0
        %v7286 = vmax.f32 %v6774, 0.0
        %v7287 = vmax.f32 %v6775, 0.0
        %v7288 = vmax.f32 %v6776, 0.0
        %v7289 = vmax.f32 %v6777, 0.0
        %v7290 = vmax.f32 %v6778, 0.0
        %v7291 = vmax.f32 %v6779, 0.0
        %v7292 = vmax.f32 %v6780, 0.0
        %v7293 = vmax.f32 %v6781, 0.0
        %v7294 = vmax.f32 %v6782, 0.0
        %v7295 = vmax.f32 %v6783, 0.0
        %v7296 = vmax.f32 %v6784, 0.0
        %v7297 = vmax.f32 %v6785, 0.0
        %v7298 = vmax.f32 %v6786, 0.0
        %v7299 = vmax.f32 %v6787, 0.0
        %v7300 = vmax.f32 %v6788, 0.0
        %v7301 = vmax.f32 %v6789, 0.0
        %v7302 = vmax.f32 %v6790, 0.0
        %v7303 = vmax.f32 %v6791, 0.0
        %v7304 = vmax.f32 %v6792, 0.0
        %v7305 = vmax.f32 %v6793, 0.0
        %v7306 = vmax.f32 %v6794, 0.0
        %v7307 = vmax.f32 %v6795, 0.0
        %v7308 = vmax.f32 %v6796, 0.0
        %v7309 = vmax.f32 %v6797, 0.0
        %v7310 = vmax.f32 %v6798, 0.0
        %v7311 = vmax.f32 %v6799, 0.0
        %v7312 = vmax.f32 %v6800, 0.0
        %v7313 = vmax.f32 %v6801, 0.0
        %v7314 = vmax.f32 %v6802, 0.0
        %v7315 = vmax.f32 %v6803, 0.0
        %v7316 = vmax.f32 %v6804, 0.0
        %v7317 = vmax.f32 %v6805, 0.0
        %v7318 = vmax.f32 %v6806, 0.0
        %v7319 = vmax.f32 %v6807, 0.0
        %v7320 = vmax.f32 %v6808, 0.0
        %v7321 = vmax.f32 %v6809, 0.0
        %v7322 = vmax.f32 %v6810, 0.0
        %v7323 = vmax.f32 %v6811, 0.0
        %v7324 = vmax.f32 %v6812, 0.0
        %v7325 = vmax.f32 %v6813, 0.0
        %v7326 = vmax.f32 %v6814, 0.0
        %v7327 = vmax.f32 %v6815, 0.0
        %v7328 = vmax.f32 %v6816, 0.0
        %v7329 = vmax.f32 %v6817, 0.0
        %v7330 = vmax.f32 %v6818, 0.0
        %v7331 = vmax.f32 %v6819, 0.0
        %v7332 = vmax.f32 %v6820, 0.0
        %v7333 = vmax.f32 %v6821, 0.0
        %v7334 = vmax.f32 %v6822, 0.0
        %v7335 = vmax.f32 %v6823, 0.0
        %v7336 = vmax.f32 %v6824, 0.0
        %v7337 = vmax.f32 %v6825, 0.0
        %v7338 = vmax.f32 %v6826, 0.0
        %v7339 = vmax.f32 %v6827, 0.0
        %v7340 = vmax.f32 %v6828, 0.0
        %v7341 = vmax.f32 %v6829, 0.0
        %v7342 = vmax.f32 %v6830, 0.0
        %v7343 = vmax.f32 %v6831, 0.0
        %v7344 = vmax.f32 %v6832, 0.0
        %v7345 = vmax.f32 %v6833, 0.0
        %v7346 = vmax.f32 %v6834, 0.0
        %v7347 = vmax.f32 %v6835, 0.0
        %v7348 = vmax.f32 %v6836, 0.0
        %v7349 = vmax.f32 %v6837, 0.0
        %v7350 = vmax.f32 %v6838, 0.0
        %v7351 = vmax.f32 %v6839, 0.0
        %v7352 = vmax.f32 %v6840, 0.0
        %v7353 = vmax.f32 %v6841, 0.0
        %v7354 = vmax.f32 %v6842, 0.0
        %v7355 = vmax.f32 %v6843, 0.0
        %v7356 = vmax.f32 %v6844, 0.0
        %v7357 = vmax.f32 %v6845, 0.0
        %v7358 = vmax.f32 %v6846, 0.0
        %v7359 = vmax.f32 %v6847, 0.0
        %v7360 = vmax.f32 %v6848, 0.0
        %v7361 = vmax.f32 %v6849, 0.0
        %v7362 = vmax.f32 %v6850, 0.0
        %v7363 = vmax.f32 %v6851, 0.0
        %v7364 = vmax.f32 %v6852, 0.0
        %v7365 = vmax.f32 %v6853, 0.0
        %v7366 = vmax.f32 %v6854, 0.0
        %v7367 = vmax.f32 %v6855, 0.0
        %v7368 = vmax.f32 %v6856, 0.0
        %v7369 = vmax.f32 %v6857, 0.0
        %v7370 = vmax.f32 %v6858, 0.0
        %v7371 = vmax.f32 %v6859, 0.0
        %v7372 = vmax.f32 %v6860, 0.0
        %v7373 = vmax.f32 %v6861, 0.0
        %v7374 = vmax.f32 %v6862, 0.0
        %v7375 = vmax.f32 %v6863, 0.0
        %v7376 = vmax.f32 %v6864, 0.0
        %v7377 = vmax.f32 %v6865, 0.0
        %v7378 = vmax.f32 %v6866, 0.0
        %v7379 = vmax.f32 %v6867, 0.0
        %v7380 = vmax.f32 %v6868, 0.0
        %v7381 = vmax.f32 %v6869, 0.0
        %v7382 = vmax.f32 %v6870, 0.0
        %v7383 = vmax.f32 %v6871, 0.0
        %v7384 = vmax.f32 %v6872, 0.0
        %v7385 = vmax.f32 %v6873, 0.0
        %v7386 = vmax.f32 %v6874, 0.0
        %v7387 = vmax.f32 %v6875, 0.0
        %v7388 = vmax.f32 %v6876, 0.0
        %v7389 = vmax.f32 %v6877, 0.0
        %v7390 = vmax.f32 %v6878, 0.0
        %v7391 = vmax.f32 %v6879, 0.0
        %v7392 = vmax.f32 %v6880, 0.0
        %v7393 = vmax.f32 %v6881, 0.0
        %v7394 = vmax.f32 %v6882, 0.0
        %v7395 = vmax.f32 %v6883, 0.0
        %v7396 = vmax.f32 %v6884, 0.0
        %v7397 = vmax.f32 %v6885, 0.0
        %v7398 = vmax.f32 %v6886, 0.0
        %v7399 = vmax.f32 %v6887, 0.0
        %v7400 = vmax.f32 %v6888, 0.0
        %v7401 = vmax.f32 %v6889, 0.0
        %v7402 = vmax.f32 %v6890, 0.0
        %v7403 = vmax.f32 %v6891, 0.0
        %v7404 = vmax.f32 %v6892, 0.0
        %v7405 = vmax.f32 %v6893, 0.0
        %v7406 = vmax.f32 %v6894, 0.0
        %v7407 = vmax.f32 %v6895, 0.0
        %v7408 = vmax.f32 %v6896, 0.0
        %v7409 = vmax.f32 %v6897, 0.0
        %v7410 = vmax.f32 %v6898, 0.0
        %v7411 = vmax.f32 %v6899, 0.0
        %v7412 = vmax.f32 %v6900, 0.0
        %v7413 = vmax.f32 %v6901, 0.0
        %v7414 = vmax.f32 %v6902, 0.0
        %v7415 = vmax.f32 %v6903, 0.0
        %v7416 = vmax.f32 %v6904, 0.0
        %v7417 = vmax.f32 %v6905, 0.0
        %v7418 = vmax.f32 %v6906, 0.0
        %v7419 = vmax.f32 %v6907, 0.0
        %v7420 = vmax.f32 %v6908, 0.0
        %v7421 = vmax.f32 %v6909, 0.0
        %v7422 = vmax.f32 %v6910, 0.0
        %v7423 = vmax.f32 %v6911, 0.0
        %v7424 = vmax.f32 %v6912, 0.0
        %v7425 = vmax.f32 %v6913, 0.0
        %v7426 = vmax.f32 %v6914, 0.0
        %v7427 = vmax.f32 %v6915, 0.0
        %v7428 = vmax.f32 %v6916, 0.0
        %v7429 = vmax.f32 %v6917, 0.0
        %v7430 = vmax.f32 %v6918, 0.0
        %v7431 = vmax.f32 %v6919, 0.0
        %v7432 = vmax.f32 %v6920, 0.0
        %v7433 = vmax.f32 %v6921, 0.0
        %v7434 = vmax.f32 %v6922, 0.0
        %v7435 = vmax.f32 %v6923, 0.0
        %v7436 = vmax.f32 %v6924, 0.0
        %v7437 = vmax.f32 %v6925, 0.0
        %v7438 = vmax.f32 %v6926, 0.0
        %v7439 = vmax.f32 %v6927, 0.0
        %v7440 = vmax.f32 %v6928, 0.0
        %v7441 = vmax.f32 %v6929, 0.0
        %v7442 = vmax.f32 %v6930, 0.0
        %v7443 = vmax.f32 %v6931, 0.0
        %v7444 = vmax.f32 %v6932, 0.0
        %v7445 = vmax.f32 %v6933, 0.0
        %v7446 = vmax.f32 %v6934, 0.0
        %v7447 = vmax.f32 %v6935, 0.0
        %v7448 = vmax.f32 %v6936, 0.0
        %v7449 = vmax.f32 %v6937, 0.0
        %v7450 = vmax.f32 %v6938, 0.0
        %v7451 = vmax.f32 %v6939, 0.0
        %v7452 = vmax.f32 %v6940, 0.0
        %v7453 = vmax.f32 %v6941, 0.0
        %v7454 = vmax.f32 %v6942, 0.0
        %v7455 = vmax.f32 %v6943, 0.0
        %v7456 = vmax.f32 %v6944, 0.0
        %v7457 = vmax.f32 %v6945, 0.0
        %v7458 = vmax.f32 %v6946, 0.0
        %v7459 = vmax.f32 %v6947, 0.0
        %v7460 = vmax.f32 %v6948, 0.0
        %v7461 = vmax.f32 %v6949, 0.0
        %v7462 = vmax.f32 %v6950, 0.0
        %v7463 = vmax.f32 %v6951, 0.0
        %v7464 = vmax.f32 %v6952, 0.0
        %v7465 = vmax.f32 %v6953, 0.0
        %v7466 = vmax.f32 %v6954, 0.0
        %v7467 = vmax.f32 %v6955, 0.0
        %v7468 = vmax.f32 %v6956, 0.0
        %v7469 = vmax.f32 %v6957, 0.0
        %v7470 = vmax.f32 %v6958, 0.0
        %v7471 = vmax.f32 %v6959, 0.0
        %v7472 = vmax.f32 %v6960, 0.0
        %v7473 = vmax.f32 %v6961, 0.0
        %v7474 = vmax.f32 %v6962, 0.0
        %v7475 = vmax.f32 %v6963, 0.0
        %v7476 = vmax.f32 %v6964, 0.0
        %v7477 = vmax.f32 %v6965, 0.0
        %v7478 = vmax.f32 %v6966, 0.0
        %v7479 = vmax.f32 %v6967, 0.0
        %v7480 = vmax.f32 %v6968, 0.0
        %v7481 = vmax.f32 %v6969, 0.0
        %v7482 = vmax.f32 %v6970, 0.0
        %v7483 = vmax.f32 %v6971, 0.0
        %v7484 = vmax.f32 %v6972, 0.0
        %v7485 = vmax.f32 %v6973, 0.0
        %v7486 = vmax.f32 %v6974, 0.0
        %v7487 = vmax.f32 %v6975, 0.0
        %v7488 = vmax.f32 %v6976, 0.0
        %v7489 = vmax.f32 %v6977, 0.0
        %v7490 = vmax.f32 %v6978, 0.0
        %v7491 = vmax.f32 %v6979, 0.0
        %v7492 = vmax.f32 %v6980, 0.0
        %v7493 = vmax.f32 %v6981, 0.0
        %v7494 = vmax.f32 %v6982, 0.0
        %v7495 = vmax.f32 %v6983, 0.0
        %v7496 = vmax.f32 %v6984, 0.0
        %v7497 = vmax.f32 %v6985, 0.0
        %v7498 = vmax.f32 %v6986, 0.0
        %v7499 = vmax.f32 %v6987, 0.0
        %v7500 = vmax.f32 %v6988, 0.0
        %v7501 = vmax.f32 %v6989, 0.0
        %v7502 = vmax.f32 %v6990, 0.0
        %v7503 = vmax.f32 %v6991, 0.0
        %v7504 = vmax.f32 %v6992, 0.0
        %v7505 = vmax.f32 %v6993, 0.0
        %v7506 = vmax.f32 %v6994, 0.0
        %v7507 = vmax.f32 %v6995, 0.0
        %v7508 = vmax.f32 %v6996, 0.0
        %v7509 = vmax.f32 %v6997, 0.0
        %v7510 = vmax.f32 %v6998, 0.0
        %v7511 = vmax.f32 %v6999, 0.0
        %v7512 = vmax.f32 %v7000, 0.0
        %v7513 = vmax.f32 %v7001, 0.0
        %v7514 = vmax.f32 %v7002, 0.0
        %v7515 = vmax.f32 %v7003, 0.0
        %v7516 = vmax.f32 %v7004, 0.0
        %v7517 = vmax.f32 %v7005, 0.0
        %v7518 = vmax.f32 %v7006, 0.0
        %v7519 = vmax.f32 %v7007, 0.0
        %v7520 = vmax.f32 %v7008, 0.0
        %v7521 = vmax.f32 %v7009, 0.0
        %v7522 = vmax.f32 %v7010, 0.0
        %v7523 = vmax.f32 %v7011, 0.0
        %v7524 = vmax.f32 %v7012, 0.0
        %v7525 = vmax.f32 %v7013, 0.0
        %v7526 = vmax.f32 %v7014, 0.0
        %v7527 = vmax.f32 %v7015, 0.0
        %v7528 = vmax.f32 %v7016, 0.0
        %v7529 = vmax.f32 %v7017, 0.0
        %v7530 = vmax.f32 %v7018, 0.0
        %v7531 = vmax.f32 %v7019, 0.0
        %v7532 = vmax.f32 %v7020, 0.0
        %v7533 = vmax.f32 %v7021, 0.0
        %v7534 = vmax.f32 %v7022, 0.0
        %v7535 = vmax.f32 %v7023, 0.0
        %v7536 = vmax.f32 %v7024, 0.0
        %v7537 = vmax.f32 %v7025, 0.0
        %v7538 = vmax.f32 %v7026, 0.0
        %v7539 = vmax.f32 %v7027, 0.0
        %v7540 = vmax.f32 %v7028, 0.0
        %v7541 = vmax.f32 %v7029, 0.0
        %v7542 = vmax.f32 %v7030, 0.0
        %v7543 = vmax.f32 %v7031, 0.0
        %v7544 = vmax.f32 %v7032, 0.0
        %v7545 = vmax.f32 %v7033, 0.0
        %v7546 = vmax.f32 %v7034, 0.0
        %v7547 = vmax.f32 %v7035, 0.0
        %v7548 = vmax.f32 %v7036, 0.0
        %v7549 = vmax.f32 %v7037, 0.0
        %v7550 = vmax.f32 %v7038, 0.0
        %v7551 = vmax.f32 %v7039, 0.0
        %v7552 = vmax.f32 %v7040, 0.0
        %v7553 = vmax.f32 %v7041, 0.0
        %v7554 = vmax.f32 %v7042, 0.0
        %v7555 = vmax.f32 %v7043, 0.0
        %v7556 = vmax.f32 %v7044, 0.0
        %v7557 = vmax.f32 %v7045, 0.0
        %v7558 = vmax.f32 %v7046, 0.0
        %v7559 = vmax.f32 %v7047, 0.0
        %v7560 = vmax.f32 %v7048, 0.0
        %v7561 = vmax.f32 %v7049, 0.0
        %v7562 = vmax.f32 %v7050, 0.0
        %v7563 = vmax.f32 %v7051, 0.0
        %v7564 = vmax.f32 %v7052, 0.0
        %v7565 = vmax.f32 %v7053, 0.0
        %v7566 = vmax.f32 %v7054, 0.0
        %v7567 = vmax.f32 %v7055, 0.0
        %v7568 = vmax.f32 %v7056, 0.0
        %v7569 = vmax.f32 %v7057, 0.0
        %v7570 = vmax.f32 %v7058, 0.0
        %v7571 = vmax.f32 %v7059, 0.0
        %v7572 = vmax.f32 %v7060, 0.0
        %v7573 = vmax.f32 %v7061, 0.0
        %v7574 = vmax.f32 %v7062, 0.0
        %v7575 = vmax.f32 %v7063, 0.0
        %v7576 = vmax.f32 %v7064, 0.0
        %v7577 = vmax.f32 %v7065, 0.0
        %v7578 = vmax.f32 %v7066, 0.0
        %v7579 = vmax.f32 %v7067, 0.0
        %v7580 = vmax.f32 %v7068, 0.0
        %v7581 = vmax.f32 %v7069, 0.0
        %v7582 = vmax.f32 %v7070, 0.0
        %v7583 = vmax.f32 %v7071, 0.0
        %v7584 = vmax.f32 %v7072, 0.0
        %v7585 = vmax.f32 %v7073, 0.0
        %v7586 = vmax.f32 %v7074, 0.0
        %v7587 = vmax.f32 %v7075, 0.0
        %v7588 = vmax.f32 %v7076, 0.0
        %v7589 = vmax.f32 %v7077, 0.0
        %v7590 = vmax.f32 %v7078, 0.0
        %v7591 = vmax.f32 %v7079, 0.0
        %v7592 = vmax.f32 %v7080, 0.0
        %v7593 = vmax.f32 %v7081, 0.0
        %v7594 = vmax.f32 %v7082, 0.0
        %v7595 = vmax.f32 %v7083, 0.0
        %v7596 = vmax.f32 %v7084, 0.0
        %v7597 = vmax.f32 %v7085, 0.0
        %v7598 = vmax.f32 %v7086, 0.0
        %v7599 = vmax.f32 %v7087, 0.0
        %v7600 = vmax.f32 %v7088, 0.0
        %v7601 = vmax.f32 %v7089, 0.0
        %v7602 = vmax.f32 %v7090, 0.0
        %v7603 = vmax.f32 %v7091, 0.0
        %v7604 = vmax.f32 %v7092, 0.0
        %v7605 = vmax.f32 %v7093, 0.0
        %v7606 = vmax.f32 %v7094, 0.0
        %v7607 = vmax.f32 %v7095, 0.0
        %v7608 = vmax.f32 %v7096, 0.0
        %v7609 = vmax.f32 %v7097, 0.0
        %v7610 = vmax.f32 %v7098, 0.0
        %v7611 = vmax.f32 %v7099, 0.0
        %v7612 = vmax.f32 %v7100, 0.0
        %v7613 = vmax.f32 %v7101, 0.0
        %v7614 = vmax.f32 %v7102, 0.0
        %v7615 = vmax.f32 %v7103, 0.0
        %v7616 = vmax.f32 %v7104, 0.0
        %v7617 = vmax.f32 %v7105, 0.0
        %v7618 = vmax.f32 %v7106, 0.0
        %v7619 = vmax.f32 %v7107, 0.0
        %v7620 = vmax.f32 %v7108, 0.0
        %v7621 = vmax.f32 %v7109, 0.0
        %v7622 = vmax.f32 %v7110, 0.0
        %v7623 = vmax.f32 %v7111, 0.0
        %v7624 = vmax.f32 %v7112, 0.0
        %v7625 = vmax.f32 %v7113, 0.0
        %v7626 = vmax.f32 %v7114, 0.0
        %v7627 = vmax.f32 %v7115, 0.0
        %v7628 = vmax.f32 %v7116, 0.0
        %v7629 = vmax.f32 %v7117, 0.0
        %v7630 = vmax.f32 %v7118, 0.0
        %v7631 = vmax.f32 %v7119, 0.0
        %v7632 = vmax.f32 %v7120, 0.0
        %v7633 = vmax.f32 %v7121, 0.0
        %v7634 = vmax.f32 %v7122, 0.0
        %v7635 = vmax.f32 %v7123, 0.0
        %v7636 = vmax.f32 %v7124, 0.0
        %v7637 = vmax.f32 %v7125, 0.0
        %v7638 = vmax.f32 %v7126, 0.0
        %v7639 = vmax.f32 %v7127, 0.0
        %v7640 = vmax.f32 %v7128, 0.0
        %v7641 = vmax.f32 %v7129, 0.0
        %v7642 = vmax.f32 %v7130, 0.0
        %v7643 = vmax.f32 %v7131, 0.0
        %v7644 = vmax.f32 %v7132, 0.0
        %v7645 = vmax.f32 %v7133, 0.0
        %v7646 = vmax.f32 %v7134, 0.0
        %v7647 = vmax.f32 %v7135, 0.0
        %v7648 = vmax.f32 %v7136, 0.0
        %v7649 = vmax.f32 %v7137, 0.0
        %v7650 = vmax.f32 %v7138, 0.0
        %v7651 = vmax.f32 %v7139, 0.0
        %v7652 = vmax.f32 %v7140, 0.0
        %v7653 = vmax.f32 %v7141, 0.0
        %v7654 = vmax.f32 %v7142, 0.0
        %v7655 = vmax.f32 %v7143, 0.0
        %v7656 = vmax.f32 %v7144, 0.0
        %v7657 = vmax.f32 %v7145, 0.0
        %v7658 = vmax.f32 %v7146, 0.0
        %v7659 = vmax.f32 %v7147, 0.0
        %v7660 = vmax.f32 %v7148, 0.0
        %v7661 = vmax.f32 %v7149, 0.0
        %v7662 = vmax.f32 %v7150, 0.0
        %v7663 = vmax.f32 %v7151, 0.0
        %v7664 = vmax.f32 %v7152, 0.0
        %v7665 = vmax.f32 %v7153, 0.0
        %v7666 = vmax.f32 %v7154, 0.0
        %v7667 = vmax.f32 %v7155, 0.0
        %v7668 = vmax.f32 %v7156, 0.0
        %v7669 = vmax.f32 %v7157, 0.0
        %v7670 = vmax.f32 %v7158, 0.0
        %v7671 = vmax.f32 %v7159, 0.0
        %v7672 = vmax.f32 %v7160, 0.0
        %v7673 = vmax.f32 %v7161, 0.0
        %v7674 = vmax.f32 %v7162, 0.0
        %v7675 = vmax.f32 %v7163, 0.0
        %v7676 = vmax.f32 %v7164, 0.0
        %v7677 = vmax.f32 %v7165, 0.0
        %v7678 = vmax.f32 %v7166, 0.0
        %v7679 = vmax.f32 %v7167, 0.0
        %v7680 = vmax.f32 %v7168, 0.0
        %v7681 = vmax.f32 %v7169, 0.0
        %v7682 = vmax.f32 %v7170, 0.0
        %v7683 = vmax.f32 %v7171, 0.0
        %v7684 = vmax.f32 %v7172, 0.0
        %v7685 = vmax.f32 %v7173, 0.0
        %v7686 = vmax.f32 %v7174, 0.0
        %v7687 = vmax.f32 %v7175, 0.0
        %v7688 = vmax.f32 %v7176, 0.0
        %v7689 = vmax.f32 %v7177, 0.0
        %v7690 = vmax.f32 %v7178, 0.0
        %v7691 = vmax.f32 %v7179, 0.0
        %v7692 = vmax.f32 %v7180, 0.0
        %v7693 = vmax.f32 %v7181, 0.0
        %v7694 = vmax.f32 %v7182, 0.0
        %v7695 = vmax.f32 %v7183, 0.0
        %v7696 = vmax.f32 %v7184, 0.0
        %v7697 = vmax.f32 %v7185, 0.0
        %v7698 = vmax.f32 %v7186, 0.0
        %v7699 = vmax.f32 %v7187, 0.0
        %v7700 = vmax.f32 %v7188, 0.0
        %v7701 = vmax.f32 %v7189, 0.0
        %v7702 = vmax.f32 %v7190, 0.0
        %v7703 = vmax.f32 %v7191, 0.0
        %v7704 = vmax.f32 %v7192, 0.0
        %v7705 = vmax.f32 %v7193, 0.0
        %v7706 = vmax.f32 %v7194, 0.0
        %v7707 = vmax.f32 %v7195, 0.0
        %v7708 = vmax.f32 %v7196, 0.0
        %v7709 = vmax.f32 %v7197, 0.0
        %v7710 = vmax.f32 %v7198, 0.0
        %v7711 = vmax.f32 %v7199, 0.0
        %v7712 = vmax.f32 %v7200, 0.0
        %v7713 = vmax.f32 %v7201, 0.0
        %v7714 = vmax.f32 %v7202, 0.0
        %v7715 = vmax.f32 %v7203, 0.0
        %v7716 = vmax.f32 %v7204, 0.0
        %v7717 = vmax.f32 %v7205, 0.0
        %v7718 = vmax.f32 %v7206, 0.0
        %v7719 = vmax.f32 %v7207, 0.0
        %v7720 = vmax.f32 %v7208, 0.0
        %v7721 = vmax.f32 %v7209, 0.0
        %v7722 = vmax.f32 %v7210, 0.0
        %v7723 = vmax.f32 %v7211, 0.0
        %v7724 = vmax.f32 %v7212, 0.0
        %v7725 = vmax.f32 %v7213, 0.0
        %v7726 = vmax.f32 %v7214, 0.0
        %v7727 = vmax.f32 %v7215, 0.0
        %v7728 = vmax.f32 %v7216, 0.0
        %v7729 = vmax.f32 %v7217, 0.0
        %v7730 = vmax.f32 %v7218, 0.0
        %v7731 = vmax.f32 %v7219, 0.0
        %v7732 = vmax.f32 %v7220, 0.0
        %v7733 = vmax.f32 %v7221, 0.0
        %v7734 = vmax.f32 %v7222, 0.0
        %v7735 = vmax.f32 %v7223, 0.0
        %v7736 = vmax.f32 %v7224, 0.0
        %v7737 = vmax.f32 %v7225, 0.0
        %v7738 = vmax.f32 %v7226, 0.0
        %v7739 = vmax.f32 %v7227, 0.0
        %v7740 = vmax.f32 %v7228, 0.0
        %v7741 = vmax.f32 %v7229, 0.0
        %v7742 = vmax.f32 %v7230, 0.0
        %v7743 = vmax.f32 %v7231, 0.0
        %v7744 = vmax.f32 %v7232, 0.0
        %v7745 = vmax.f32 %v7233, 0.0
        %v7746 = vmax.f32 %v7234, 0.0
        %v7747 = vmax.f32 %v7235, 0.0
        %v7748 = vmax.f32 %v7236, 0.0
        %v7749 = vmax.f32 %v7237, 0.0
        %v7750 = vmax.f32 %v7238, 0.0
        %v7751 = vmax.f32 %v7239, 0.0
        %v7752 = vmax.f32 %v7240, 0.0
        %v7753 = vmax.f32 %v7241, 0.0
        %v7754 = vmax.f32 %v7242, 0.0
        %v7755 = vmax.f32 %v7243, 0.0
        %v7756 = vmax.f32 %v7244, 0.0
        %v7757 = vmax.f32 %v7245, 0.0
        %v7758 = vmax.f32 %v7246, 0.0
        %v7759 = vmax.f32 %v7247, 0.0
        %v7760 = vmax.f32 %v7248, 0.0
        %v7761 = vmax.f32 %v7249, 0.0
        %v7762 = vmax.f32 %v7250, 0.0
        %v7763 = vmax.f32 %v7251, 0.0
        %v7764 = vmax.f32 %v7252, 0.0
        %v7765 = vmax.f32 %v7253, 0.0
        %v7766 = vmax.f32 %v7254, 0.0
        %v7767 = vmax.f32 %v7255, 0.0
        %v7768 = vmax.f32 %v7256, 0.0
        %v7769 = vmax.f32 %v7257, 0.0
        %v7770 = vmax.f32 %v7258, 0.0
        %v7771 = vmax.f32 %v7259, 0.0
        %v7772 = vmax.f32 %v7260, 0.0
        %v7773 = vmax.f32 %v7261, 0.0
        %v7774 = vmax.f32 %v7262, 0.0
        %v7775 = vmax.f32 %v7263, 0.0
        %v7776 = vmax.f32 %v7264, 0.0
        %v7777 = vmax.f32 %v7265, 0.0
        %v7778 = vmax.f32 %v7266, 0.0
        %v7779 = vmax.f32 %v7267, 0.0
        %v7780 = vmax.f32 %v7268, 0.0
        %v7781 = vmax.f32 %v7269, 0.0
        %v7782 = vpack.c.bf16 %v7274, %v7270
        %v7783 = vpack.c.bf16 %v7275, %v7271
        %v7784 = vpack.c.bf16 %v7276, %v7272
        %v7785 = vpack.c.bf16 %v7277, %v7273
        %v7786 = vpack.c.bf16 %v7282, %v7278
        %v7787 = vpack.c.bf16 %v7283, %v7279
        %v7788 = vpack.c.bf16 %v7284, %v7280
        %v7789 = vpack.c.bf16 %v7285, %v7281
        %v7790 = vpack.c.bf16 %v7290, %v7286
        %v7791 = vpack.c.bf16 %v7291, %v7287
        %v7792 = vpack.c.bf16 %v7292, %v7288
        %v7793 = vpack.c.bf16 %v7293, %v7289
        %v7794 = vpack.c.bf16 %v7298, %v7294
        %v7795 = vpack.c.bf16 %v7299, %v7295
        %v7796 = vpack.c.bf16 %v7300, %v7296
        %v7797 = vpack.c.bf16 %v7301, %v7297
        %v7798 = vpack.c.bf16 %v7306, %v7302
        %v7799 = vpack.c.bf16 %v7307, %v7303
        %v7800 = vpack.c.bf16 %v7308, %v7304
        %v7801 = vpack.c.bf16 %v7309, %v7305
        %v7802 = vpack.c.bf16 %v7314, %v7310
        %v7803 = vpack.c.bf16 %v7315, %v7311
        %v7804 = vpack.c.bf16 %v7316, %v7312
        %v7805 = vpack.c.bf16 %v7317, %v7313
        %v7806 = vpack.c.bf16 %v7322, %v7318
        %v7807 = vpack.c.bf16 %v7323, %v7319
        %v7808 = vpack.c.bf16 %v7324, %v7320
        %v7809 = vpack.c.bf16 %v7325, %v7321
        %v7810 = vpack.c.bf16 %v7330, %v7326
        %v7811 = vpack.c.bf16 %v7331, %v7327
        %v7812 = vpack.c.bf16 %v7332, %v7328
        %v7813 = vpack.c.bf16 %v7333, %v7329
        %v7814 = vpack.c.bf16 %v7338, %v7334
        %v7815 = vpack.c.bf16 %v7339, %v7335
        %v7816 = vpack.c.bf16 %v7340, %v7336
        %v7817 = vpack.c.bf16 %v7341, %v7337
        %v7818 = vpack.c.bf16 %v7346, %v7342
        %v7819 = vpack.c.bf16 %v7347, %v7343
        %v7820 = vpack.c.bf16 %v7348, %v7344
        %v7821 = vpack.c.bf16 %v7349, %v7345
        %v7822 = vpack.c.bf16 %v7354, %v7350
        %v7823 = vpack.c.bf16 %v7355, %v7351
        %v7824 = vpack.c.bf16 %v7356, %v7352
        %v7825 = vpack.c.bf16 %v7357, %v7353
        %v7826 = vpack.c.bf16 %v7362, %v7358
        %v7827 = vpack.c.bf16 %v7363, %v7359
        %v7828 = vpack.c.bf16 %v7364, %v7360
        %v7829 = vpack.c.bf16 %v7365, %v7361
        %v7830 = vpack.c.bf16 %v7370, %v7366
        %v7831 = vpack.c.bf16 %v7371, %v7367
        %v7832 = vpack.c.bf16 %v7372, %v7368
        %v7833 = vpack.c.bf16 %v7373, %v7369
        %v7834 = vpack.c.bf16 %v7378, %v7374
        %v7835 = vpack.c.bf16 %v7379, %v7375
        %v7836 = vpack.c.bf16 %v7380, %v7376
        %v7837 = vpack.c.bf16 %v7381, %v7377
        %v7838 = vpack.c.bf16 %v7386, %v7382
        %v7839 = vpack.c.bf16 %v7387, %v7383
        %v7840 = vpack.c.bf16 %v7388, %v7384
        %v7841 = vpack.c.bf16 %v7389, %v7385
        %v7842 = vpack.c.bf16 %v7394, %v7390
        %v7843 = vpack.c.bf16 %v7395, %v7391
        %v7844 = vpack.c.bf16 %v7396, %v7392
        %v7845 = vpack.c.bf16 %v7397, %v7393
        %v7846 = vpack.c.bf16 %v7402, %v7398
        %v7847 = vpack.c.bf16 %v7403, %v7399
        %v7848 = vpack.c.bf16 %v7404, %v7400
        %v7849 = vpack.c.bf16 %v7405, %v7401
        %v7850 = vpack.c.bf16 %v7410, %v7406
        %v7851 = vpack.c.bf16 %v7411, %v7407
        %v7852 = vpack.c.bf16 %v7412, %v7408
        %v7853 = vpack.c.bf16 %v7413, %v7409
        %v7854 = vpack.c.bf16 %v7418, %v7414
        %v7855 = vpack.c.bf16 %v7419, %v7415
        %v7856 = vpack.c.bf16 %v7420, %v7416
        %v7857 = vpack.c.bf16 %v7421, %v7417
        %v7858 = vpack.c.bf16 %v7426, %v7422
        %v7859 = vpack.c.bf16 %v7427, %v7423
        %v7860 = vpack.c.bf16 %v7428, %v7424
        %v7861 = vpack.c.bf16 %v7429, %v7425
        %v7862 = vpack.c.bf16 %v7434, %v7430
        %v7863 = vpack.c.bf16 %v7435, %v7431
        %v7864 = vpack.c.bf16 %v7436, %v7432
        %v7865 = vpack.c.bf16 %v7437, %v7433
        %v7866 = vpack.c.bf16 %v7442, %v7438
        %v7867 = vpack.c.bf16 %v7443, %v7439
        %v7868 = vpack.c.bf16 %v7444, %v7440
        %v7869 = vpack.c.bf16 %v7445, %v7441
        %v7870 = vpack.c.bf16 %v7450, %v7446
        %v7871 = vpack.c.bf16 %v7451, %v7447
        %v7872 = vpack.c.bf16 %v7452, %v7448
        %v7873 = vpack.c.bf16 %v7453, %v7449
        %v7874 = vpack.c.bf16 %v7458, %v7454
        %v7875 = vpack.c.bf16 %v7459, %v7455
        %v7876 = vpack.c.bf16 %v7460, %v7456
        %v7877 = vpack.c.bf16 %v7461, %v7457
        %v7878 = vpack.c.bf16 %v7466, %v7462
        %v7879 = vpack.c.bf16 %v7467, %v7463
        %v7880 = vpack.c.bf16 %v7468, %v7464
        %v7881 = vpack.c.bf16 %v7469, %v7465
        %v7882 = vpack.c.bf16 %v7474, %v7470
        %v7883 = vpack.c.bf16 %v7475, %v7471
        %v7884 = vpack.c.bf16 %v7476, %v7472
        %v7885 = vpack.c.bf16 %v7477, %v7473
        %v7886 = vpack.c.bf16 %v7482, %v7478
        %v7887 = vpack.c.bf16 %v7483, %v7479
        %v7888 = vpack.c.bf16 %v7484, %v7480
        %v7889 = vpack.c.bf16 %v7485, %v7481
        %v7890 = vpack.c.bf16 %v7490, %v7486
        %v7891 = vpack.c.bf16 %v7491, %v7487
        %v7892 = vpack.c.bf16 %v7492, %v7488
        %v7893 = vpack.c.bf16 %v7493, %v7489
        %v7894 = vpack.c.bf16 %v7498, %v7494
        %v7895 = vpack.c.bf16 %v7499, %v7495
        %v7896 = vpack.c.bf16 %v7500, %v7496
        %v7897 = vpack.c.bf16 %v7501, %v7497
        %v7898 = vpack.c.bf16 %v7506, %v7502
        %v7899 = vpack.c.bf16 %v7507, %v7503
        %v7900 = vpack.c.bf16 %v7508, %v7504
        %v7901 = vpack.c.bf16 %v7509, %v7505
        %v7902 = vpack.c.bf16 %v7514, %v7510
        %v7903 = vpack.c.bf16 %v7515, %v7511
        %v7904 = vpack.c.bf16 %v7516, %v7512
        %v7905 = vpack.c.bf16 %v7517, %v7513
        %v7906 = vpack.c.bf16 %v7522, %v7518
        %v7907 = vpack.c.bf16 %v7523, %v7519
        %v7908 = vpack.c.bf16 %v7524, %v7520
        %v7909 = vpack.c.bf16 %v7525, %v7521
        %v7910 = vpack.c.bf16 %v7530, %v7526
        %v7911 = vpack.c.bf16 %v7531, %v7527
        %v7912 = vpack.c.bf16 %v7532, %v7528
        %v7913 = vpack.c.bf16 %v7533, %v7529
        %v7914 = vpack.c.bf16 %v7538, %v7534
        %v7915 = vpack.c.bf16 %v7539, %v7535
        %v7916 = vpack.c.bf16 %v7540, %v7536
        %v7917 = vpack.c.bf16 %v7541, %v7537
        %v7918 = vpack.c.bf16 %v7546, %v7542
        %v7919 = vpack.c.bf16 %v7547, %v7543
        %v7920 = vpack.c.bf16 %v7548, %v7544
        %v7921 = vpack.c.bf16 %v7549, %v7545
        %v7922 = vpack.c.bf16 %v7554, %v7550
        %v7923 = vpack.c.bf16 %v7555, %v7551
        %v7924 = vpack.c.bf16 %v7556, %v7552
        %v7925 = vpack.c.bf16 %v7557, %v7553
        %v7926 = vpack.c.bf16 %v7562, %v7558
        %v7927 = vpack.c.bf16 %v7563, %v7559
        %v7928 = vpack.c.bf16 %v7564, %v7560
        %v7929 = vpack.c.bf16 %v7565, %v7561
        %v7930 = vpack.c.bf16 %v7570, %v7566
        %v7931 = vpack.c.bf16 %v7571, %v7567
        %v7932 = vpack.c.bf16 %v7572, %v7568
        %v7933 = vpack.c.bf16 %v7573, %v7569
        %v7934 = vpack.c.bf16 %v7578, %v7574
        %v7935 = vpack.c.bf16 %v7579, %v7575
        %v7936 = vpack.c.bf16 %v7580, %v7576
        %v7937 = vpack.c.bf16 %v7581, %v7577
        %v7938 = vpack.c.bf16 %v7586, %v7582
        %v7939 = vpack.c.bf16 %v7587, %v7583
        %v7940 = vpack.c.bf16 %v7588, %v7584
        %v7941 = vpack.c.bf16 %v7589, %v7585
        %v7942 = vpack.c.bf16 %v7594, %v7590
        %v7943 = vpack.c.bf16 %v7595, %v7591
        %v7944 = vpack.c.bf16 %v7596, %v7592
        %v7945 = vpack.c.bf16 %v7597, %v7593
        %v7946 = vpack.c.bf16 %v7602, %v7598
        %v7947 = vpack.c.bf16 %v7603, %v7599
        %v7948 = vpack.c.bf16 %v7604, %v7600
        %v7949 = vpack.c.bf16 %v7605, %v7601
        %v7950 = vpack.c.bf16 %v7610, %v7606
        %v7951 = vpack.c.bf16 %v7611, %v7607
        %v7952 = vpack.c.bf16 %v7612, %v7608
        %v7953 = vpack.c.bf16 %v7613, %v7609
        %v7954 = vpack.c.bf16 %v7618, %v7614
        %v7955 = vpack.c.bf16 %v7619, %v7615
        %v7956 = vpack.c.bf16 %v7620, %v7616
        %v7957 = vpack.c.bf16 %v7621, %v7617
        %v7958 = vpack.c.bf16 %v7626, %v7622
        %v7959 = vpack.c.bf16 %v7627, %v7623
        %v7960 = vpack.c.bf16 %v7628, %v7624
        %v7961 = vpack.c.bf16 %v7629, %v7625
        %v7962 = vpack.c.bf16 %v7634, %v7630
        %v7963 = vpack.c.bf16 %v7635, %v7631
        %v7964 = vpack.c.bf16 %v7636, %v7632
        %v7965 = vpack.c.bf16 %v7637, %v7633
        %v7966 = vpack.c.bf16 %v7642, %v7638
        %v7967 = vpack.c.bf16 %v7643, %v7639
        %v7968 = vpack.c.bf16 %v7644, %v7640
        %v7969 = vpack.c.bf16 %v7645, %v7641
        %v7970 = vpack.c.bf16 %v7650, %v7646
        %v7971 = vpack.c.bf16 %v7651, %v7647
        %v7972 = vpack.c.bf16 %v7652, %v7648
        %v7973 = vpack.c.bf16 %v7653, %v7649
        %v7974 = vpack.c.bf16 %v7658, %v7654
        %v7975 = vpack.c.bf16 %v7659, %v7655
        %v7976 = vpack.c.bf16 %v7660, %v7656
        %v7977 = vpack.c.bf16 %v7661, %v7657
        %v7978 = vpack.c.bf16 %v7666, %v7662
        %v7979 = vpack.c.bf16 %v7667, %v7663
        %v7980 = vpack.c.bf16 %v7668, %v7664
        %v7981 = vpack.c.bf16 %v7669, %v7665
        %v7982 = vpack.c.bf16 %v7674, %v7670
        %v7983 = vpack.c.bf16 %v7675, %v7671
        %v7984 = vpack.c.bf16 %v7676, %v7672
        %v7985 = vpack.c.bf16 %v7677, %v7673
        %v7986 = vpack.c.bf16 %v7682, %v7678
        %v7987 = vpack.c.bf16 %v7683, %v7679
        %v7988 = vpack.c.bf16 %v7684, %v7680
        %v7989 = vpack.c.bf16 %v7685, %v7681
        %v7990 = vpack.c.bf16 %v7690, %v7686
        %v7991 = vpack.c.bf16 %v7691, %v7687
        %v7992 = vpack.c.bf16 %v7692, %v7688
        %v7993 = vpack.c.bf16 %v7693, %v7689
        %v7994 = vpack.c.bf16 %v7698, %v7694
        %v7995 = vpack.c.bf16 %v7699, %v7695
        %v7996 = vpack.c.bf16 %v7700, %v7696
        %v7997 = vpack.c.bf16 %v7701, %v7697
        %v7998 = vpack.c.bf16 %v7706, %v7702
        %v7999 = vpack.c.bf16 %v7707, %v7703
        %v8000 = vpack.c.bf16 %v7708, %v7704
        %v8001 = vpack.c.bf16 %v7709, %v7705
        %v8002 = vpack.c.bf16 %v7714, %v7710
        %v8003 = vpack.c.bf16 %v7715, %v7711
        %v8004 = vpack.c.bf16 %v7716, %v7712
        %v8005 = vpack.c.bf16 %v7717, %v7713
        %v8006 = vpack.c.bf16 %v7722, %v7718
        %v8007 = vpack.c.bf16 %v7723, %v7719
        %v8008 = vpack.c.bf16 %v7724, %v7720
        %v8009 = vpack.c.bf16 %v7725, %v7721
        %v8010 = vpack.c.bf16 %v7730, %v7726
        %v8011 = vpack.c.bf16 %v7731, %v7727
        %v8012 = vpack.c.bf16 %v7732, %v7728
        %v8013 = vpack.c.bf16 %v7733, %v7729
        %v8014 = vpack.c.bf16 %v7738, %v7734
        %v8015 = vpack.c.bf16 %v7739, %v7735
        %v8016 = vpack.c.bf16 %v7740, %v7736
        %v8017 = vpack.c.bf16 %v7741, %v7737
        %v8018 = vpack.c.bf16 %v7746, %v7742
        %v8019 = vpack.c.bf16 %v7747, %v7743
        %v8020 = vpack.c.bf16 %v7748, %v7744
        %v8021 = vpack.c.bf16 %v7749, %v7745
        %v8022 = vpack.c.bf16 %v7754, %v7750
        %v8023 = vpack.c.bf16 %v7755, %v7751
        %v8024 = vpack.c.bf16 %v7756, %v7752
        %v8025 = vpack.c.bf16 %v7757, %v7753
        %v8026 = vpack.c.bf16 %v7762, %v7758
        %v8027 = vpack.c.bf16 %v7763, %v7759
        %v8028 = vpack.c.bf16 %v7764, %v7760
        %v8029 = vpack.c.bf16 %v7765, %v7761
        %v8030 = vpack.c.bf16 %v7770, %v7766
        %v8031 = vpack.c.bf16 %v7771, %v7767
        %v8032 = vpack.c.bf16 %v7772, %v7768
        %v8033 = vpack.c.bf16 %v7773, %v7769
        %v8034 = vpack.c.bf16 %v7778, %v7774
        %v8035 = vpack.c.bf16 %v7779, %v7775
        %v8036 = vpack.c.bf16 %v7780, %v7776
        %v8037 = vpack.c.bf16 %v7781, %v7777
        %v8038 = vld [vmem:[#allocation13] sm:$0xf]
        %v8039 = vld [vmem:[#allocation13 + $0x4] sm:$0xf]
        %v8040 = vld [vmem:[#allocation13 + $0x8] sm:$0xf]
        %v8041 = vld [vmem:[#allocation13 + $0xc] sm:$0xf]
        %v8042 = vld [vmem:[#allocation13 + $0x10] sm:$0xf]
        %v8043 = vld [vmem:[#allocation13 + $0x14] sm:$0xf]
        %v8044 = vld [vmem:[#allocation13 + $0x18] sm:$0xf]
        %v8045 = vld [vmem:[#allocation13 + $0x1c] sm:$0xf]
        %v8046 = vld [vmem:[#allocation13 + $0x20] sm:$0xf]
        %v8047 = vld [vmem:[#allocation13 + $0x24] sm:$0xf]
        %v8048 = vld [vmem:[#allocation13 + $0x28] sm:$0xf]
        %v8049 = vld [vmem:[#allocation13 + $0x2c] sm:$0xf]
        %v8050 = vld [vmem:[#allocation13 + $0x30] sm:$0xf]
        %v8051 = vld [vmem:[#allocation13 + $0x34] sm:$0xf]
        %v8052 = vld [vmem:[#allocation13 + $0x38] sm:$0xf]
        %v8053 = vld [vmem:[#allocation13 + $0x3c] sm:$0xf]
        %v8054 = vld [vmem:[#allocation13 + $0x40] sm:$0xf]
        %v8055 = vld [vmem:[#allocation13 + $0x44] sm:$0xf]
        %v8056 = vld [vmem:[#allocation13 + $0x48] sm:$0xf]
        %v8057 = vld [vmem:[#allocation13 + $0x4c] sm:$0xf]
        %v8058 = vld [vmem:[#allocation13 + $0x50] sm:$0xf]
        %v8059 = vld [vmem:[#allocation13 + $0x54] sm:$0xf]
        %v8060 = vld [vmem:[#allocation13 + $0x58] sm:$0xf]
        %v8061 = vld [vmem:[#allocation13 + $0x5c] sm:$0xf]
        %v8062 = vld [vmem:[#allocation13 + $0x60] sm:$0xf]
        %v8063 = vld [vmem:[#allocation13 + $0x64] sm:$0xf]
        %v8064 = vld [vmem:[#allocation13 + $0x68] sm:$0xf]
        %v8065 = vld [vmem:[#allocation13 + $0x6c] sm:$0xf]
        %v8066 = vld [vmem:[#allocation13 + $0x70] sm:$0xf]
        %v8067 = vld [vmem:[#allocation13 + $0x74] sm:$0xf]
        %v8068 = vld [vmem:[#allocation13 + $0x78] sm:$0xf]
        %v8069 = vld [vmem:[#allocation13 + $0x7c] sm:$0xf]
        %v8070 = vld [vmem:[#allocation13 + $0x80] sm:$0xf]
        %v8071 = vld [vmem:[#allocation13 + $0x84] sm:$0xf]
        %v8072 = vld [vmem:[#allocation13 + $0x88] sm:$0xf]
        %v8073 = vld [vmem:[#allocation13 + $0x8c] sm:$0xf]
        %v8074 = vld [vmem:[#allocation13 + $0x90] sm:$0xf]
        %v8075 = vld [vmem:[#allocation13 + $0x94] sm:$0xf]
        %v8076 = vld [vmem:[#allocation13 + $0x98] sm:$0xf]
        %v8077 = vld [vmem:[#allocation13 + $0x9c] sm:$0xf]
        %v8078 = vld [vmem:[#allocation13 + $0xa0] sm:$0xf]
        %v8079 = vld [vmem:[#allocation13 + $0xa4] sm:$0xf]
        %v8080 = vld [vmem:[#allocation13 + $0xa8] sm:$0xf]
        %v8081 = vld [vmem:[#allocation13 + $0xac] sm:$0xf]
        %v8082 = vld [vmem:[#allocation13 + $0xb0] sm:$0xf]
        %v8083 = vld [vmem:[#allocation13 + $0xb4] sm:$0xf]
        %v8084 = vld [vmem:[#allocation13 + $0xb8] sm:$0xf]
        %v8085 = vld [vmem:[#allocation13 + $0xbc] sm:$0xf]
        %v8086 = vld [vmem:[#allocation13 + $0xc0] sm:$0xf]
        %v8087 = vld [vmem:[#allocation13 + $0xc4] sm:$0xf]
        %v8088 = vld [vmem:[#allocation13 + $0xc8] sm:$0xf]
        %v8089 = vld [vmem:[#allocation13 + $0xcc] sm:$0xf]
        %v8090 = vld [vmem:[#allocation13 + $0xd0] sm:$0xf]
        %v8091 = vld [vmem:[#allocation13 + $0xd4] sm:$0xf]
        %v8092 = vld [vmem:[#allocation13 + $0xd8] sm:$0xf]
        %v8093 = vld [vmem:[#allocation13 + $0xdc] sm:$0xf]
        %v8094 = vld [vmem:[#allocation13 + $0xe0] sm:$0xf]
        %v8095 = vld [vmem:[#allocation13 + $0xe4] sm:$0xf]
        %v8096 = vld [vmem:[#allocation13 + $0xe8] sm:$0xf]
        %v8097 = vld [vmem:[#allocation13 + $0xec] sm:$0xf]
        %v8098 = vld [vmem:[#allocation13 + $0xf0] sm:$0xf]
        %v8099 = vld [vmem:[#allocation13 + $0xf4] sm:$0xf]
        %v8100 = vld [vmem:[#allocation13 + $0xf8] sm:$0xf]
        %v8101 = vld [vmem:[#allocation13 + $0xfc] sm:$0xf]
        %v8102 = vld [vmem:[%s9] sm:$0x1]
        %v8104 = vperm.slane %v8102, 0
        %v8170 = vunpack.c.l.b16 %v8038
        %v8171 = vunpack.c.l.b16 %v8039
        %v8172 = vunpack.c.l.b16 %v8040
        %v8173 = vunpack.c.l.b16 %v8041
        %v8174 = vunpack.c.l.b16 %v8042
        %v8175 = vunpack.c.l.b16 %v8043
        %v8176 = vunpack.c.l.b16 %v8044
        %v8177 = vunpack.c.l.b16 %v8045
        %v8178 = vunpack.c.l.b16 %v8046
        %v8179 = vunpack.c.l.b16 %v8047
        %v8180 = vunpack.c.l.b16 %v8048
        %v8181 = vunpack.c.l.b16 %v8049
        %v8182 = vunpack.c.l.b16 %v8050
        %v8183 = vunpack.c.l.b16 %v8051
        %v8184 = vunpack.c.l.b16 %v8052
        %v8185 = vunpack.c.l.b16 %v8053
        %v8186 = vunpack.c.l.b16 %v8054
        %v8187 = vunpack.c.l.b16 %v8055
        %v8188 = vunpack.c.l.b16 %v8056
        %v8189 = vunpack.c.l.b16 %v8057
        %v8190 = vunpack.c.l.b16 %v8058
        %v8191 = vunpack.c.l.b16 %v8059
        %v8192 = vunpack.c.l.b16 %v8060
        %v8193 = vunpack.c.l.b16 %v8061
        %v8194 = vunpack.c.l.b16 %v8062
        %v8195 = vunpack.c.l.b16 %v8063
        %v8196 = vunpack.c.l.b16 %v8064
        %v8197 = vunpack.c.l.b16 %v8065
        %v8198 = vunpack.c.l.b16 %v8066
        %v8199 = vunpack.c.l.b16 %v8067
        %v8200 = vunpack.c.l.b16 %v8068
        %v8201 = vunpack.c.l.b16 %v8069
        %v8202 = vunpack.c.l.b16 %v8070
        %v8203 = vunpack.c.l.b16 %v8071
        %v8204 = vunpack.c.l.b16 %v8072
        %v8205 = vunpack.c.l.b16 %v8073
        %v8206 = vunpack.c.l.b16 %v8074
        %v8207 = vunpack.c.l.b16 %v8075
        %v8208 = vunpack.c.l.b16 %v8076
        %v8209 = vunpack.c.l.b16 %v8077
        %v8210 = vunpack.c.l.b16 %v8078
        %v8211 = vunpack.c.l.b16 %v8079
        %v8212 = vunpack.c.l.b16 %v8080
        %v8213 = vunpack.c.l.b16 %v8081
        %v8214 = vunpack.c.l.b16 %v8082
        %v8215 = vunpack.c.l.b16 %v8083
        %v8216 = vunpack.c.l.b16 %v8084
        %v8217 = vunpack.c.l.b16 %v8085
        %v8218 = vunpack.c.l.b16 %v8086
        %v8219 = vunpack.c.l.b16 %v8087
        %v8220 = vunpack.c.l.b16 %v8088
        %v8221 = vunpack.c.l.b16 %v8089
        %v8222 = vunpack.c.l.b16 %v8090
        %v8223 = vunpack.c.l.b16 %v8091
        %v8224 = vunpack.c.l.b16 %v8092
        %v8225 = vunpack.c.l.b16 %v8093
        %v8226 = vunpack.c.l.b16 %v8094
        %v8227 = vunpack.c.l.b16 %v8095
        %v8228 = vunpack.c.l.b16 %v8096
        %v8229 = vunpack.c.l.b16 %v8097
        %v8230 = vunpack.c.l.b16 %v8098
        %v8231 = vunpack.c.l.b16 %v8099
        %v8232 = vunpack.c.l.b16 %v8100
        %v8233 = vunpack.c.l.b16 %v8101
        %v8234 = vpack.c.b16 %v8171, %v8170
        %v8235 = vpack.c.b16 %v8173, %v8172
        %v8236 = vpack.c.b16 %v8175, %v8174
        %v8237 = vpack.c.b16 %v8177, %v8176
        %v8238 = vpack.c.b16 %v8179, %v8178
        %v8239 = vpack.c.b16 %v8181, %v8180
        %v8240 = vpack.c.b16 %v8183, %v8182
        %v8241 = vpack.c.b16 %v8185, %v8184
        %v8242 = vpack.c.b16 %v8187, %v8186
        %v8243 = vpack.c.b16 %v8189, %v8188
        %v8244 = vpack.c.b16 %v8191, %v8190
        %v8245 = vpack.c.b16 %v8193, %v8192
        %v8246 = vpack.c.b16 %v8195, %v8194
        %v8247 = vpack.c.b16 %v8197, %v8196
        %v8248 = vpack.c.b16 %v8199, %v8198
        %v8249 = vpack.c.b16 %v8201, %v8200
        %v8250 = vpack.c.b16 %v8203, %v8202
        %v8251 = vpack.c.b16 %v8205, %v8204
        %v8252 = vpack.c.b16 %v8207, %v8206
        %v8253 = vpack.c.b16 %v8209, %v8208
        %v8254 = vpack.c.b16 %v8211, %v8210
        %v8255 = vpack.c.b16 %v8213, %v8212
        %v8256 = vpack.c.b16 %v8215, %v8214
        %v8257 = vpack.c.b16 %v8217, %v8216
        %v8258 = vpack.c.b16 %v8219, %v8218
        %v8259 = vpack.c.b16 %v8221, %v8220
        %v8260 = vpack.c.b16 %v8223, %v8222
        %v8261 = vpack.c.b16 %v8225, %v8224
        %v8262 = vpack.c.b16 %v8227, %v8226
        %v8263 = vpack.c.b16 %v8229, %v8228
        %v8264 = vpack.c.b16 %v8231, %v8230
        %v8265 = vpack.c.b16 %v8233, %v8232
        %8298 = vmatpush.bf16.msra.mxu0 %v8241
        %8299 = vmatpush.bf16.msra.mxu0 %v8240
        %8300 = vmatpush.bf16.msra.mxu0 %v8239
        %8301 = vmatpush.bf16.msra.mxu0 %v8238
        %8302 = vmatpush.bf16.msra.mxu0 %v8237
        %8303 = vmatpush.bf16.msra.mxu0 %v8236
        %8304 = vmatpush.bf16.msra.mxu0 %v8235
        %8305 = vmatpush.bf16.msra.mxu0 %v8234
        %8306 = vmatmul.bf16.gmra.mxu0 %v7782
        %v8307 = vpop.f32.mrf.mxu0
        %v8308 = vadd.f32 %v8104, %v8307
        %v8309 = vpop.f32.mrf.mxu0
        %v8310 = vadd.f32 %v8104, %v8309
        %8311 = vmatmul.bf16.gmra.mxu0 %v7786
        %v8312 = vpop.f32.mrf.mxu0
        %v8313 = vadd.f32 %v8104, %v8312
        %v8314 = vpop.f32.mrf.mxu0
        %v8315 = vadd.f32 %v8104, %v8314
        %8316 = vmatmul.bf16.gmra.mxu0 %v7790
        %v8317 = vpop.f32.mrf.mxu0
        %v8318 = vadd.f32 %v8104, %v8317
        %v8319 = vpop.f32.mrf.mxu0
        %v8320 = vadd.f32 %v8104, %v8319
        %8321 = vmatmul.bf16.gmra.mxu0 %v7794
        %v8322 = vpop.f32.mrf.mxu0
        %v8323 = vadd.f32 %v8104, %v8322
        %v8324 = vpop.f32.mrf.mxu0
        %v8325 = vadd.f32 %v8104, %v8324
        %8326 = vmatmul.bf16.gmra.mxu0 %v7798
        %v8327 = vpop.f32.mrf.mxu0
        %v8328 = vadd.f32 %v8104, %v8327
        %v8329 = vpop.f32.mrf.mxu0
        %v8330 = vadd.f32 %v8104, %v8329
        %8331 = vmatmul.bf16.gmra.mxu0 %v7802
        %v8332 = vpop.f32.mrf.mxu0
        %v8333 = vadd.f32 %v8104, %v8332
        %v8334 = vpop.f32.mrf.mxu0
        %v8335 = vadd.f32 %v8104, %v8334
        %8336 = vmatmul.bf16.gmra.mxu0 %v7806
        %v8337 = vpop.f32.mrf.mxu0
        %v8338 = vadd.f32 %v8104, %v8337
        %v8339 = vpop.f32.mrf.mxu0
        %v8340 = vadd.f32 %v8104, %v8339
        %8341 = vmatmul.bf16.gmra.mxu0 %v7810
        %v8342 = vpop.f32.mrf.mxu0
        %v8343 = vadd.f32 %v8104, %v8342
        %v8344 = vpop.f32.mrf.mxu0
        %v8345 = vadd.f32 %v8104, %v8344
        %8346 = vmatmul.bf16.gmra.mxu0 %v7814
        %v8347 = vpop.f32.mrf.mxu0
        %v8348 = vadd.f32 %v8104, %v8347
        %v8349 = vpop.f32.mrf.mxu0
        %v8350 = vadd.f32 %v8104, %v8349
        %8351 = vmatmul.bf16.gmra.mxu0 %v7818
        %v8352 = vpop.f32.mrf.mxu0
        %v8353 = vadd.f32 %v8104, %v8352
        %v8354 = vpop.f32.mrf.mxu0
        %v8355 = vadd.f32 %v8104, %v8354
        %8356 = vmatmul.bf16.gmra.mxu0 %v7822
        %v8357 = vpop.f32.mrf.mxu0
        %v8358 = vadd.f32 %v8104, %v8357
        %v8359 = vpop.f32.mrf.mxu0
        %v8360 = vadd.f32 %v8104, %v8359
        %8361 = vmatmul.bf16.gmra.mxu0 %v7826
        %v8362 = vpop.f32.mrf.mxu0
        %v8363 = vadd.f32 %v8104, %v8362
        %v8364 = vpop.f32.mrf.mxu0
        %v8365 = vadd.f32 %v8104, %v8364
        %8366 = vmatmul.bf16.gmra.mxu0 %v7830
        %v8367 = vpop.f32.mrf.mxu0
        %v8368 = vadd.f32 %v8104, %v8367
        %v8369 = vpop.f32.mrf.mxu0
        %v8370 = vadd.f32 %v8104, %v8369
        %8371 = vmatmul.bf16.gmra.mxu0 %v7834
        %v8372 = vpop.f32.mrf.mxu0
        %v8373 = vadd.f32 %v8104, %v8372
        %v8374 = vpop.f32.mrf.mxu0
        %v8375 = vadd.f32 %v8104, %v8374
        %8376 = vmatmul.bf16.gmra.mxu0 %v7838
        %v8377 = vpop.f32.mrf.mxu0
        %v8378 = vadd.f32 %v8104, %v8377
        %v8379 = vpop.f32.mrf.mxu0
        %v8380 = vadd.f32 %v8104, %v8379
        %8381 = vmatmul.bf16.gmra.mxu0 %v7842
        %v8382 = vpop.f32.mrf.mxu0
        %v8383 = vadd.f32 %v8104, %v8382
        %v8384 = vpop.f32.mrf.mxu0
        %v8385 = vadd.f32 %v8104, %v8384
        %8386 = vmatmul.bf16.gmra.mxu0 %v7846
        %v8387 = vpop.f32.mrf.mxu0
        %v8388 = vadd.f32 %v8104, %v8387
        %v8389 = vpop.f32.mrf.mxu0
        %v8390 = vadd.f32 %v8104, %v8389
        %8391 = vmatmul.bf16.gmra.mxu0 %v7850
        %v8392 = vpop.f32.mrf.mxu0
        %v8393 = vadd.f32 %v8104, %v8392
        %v8394 = vpop.f32.mrf.mxu0
        %v8395 = vadd.f32 %v8104, %v8394
        %8396 = vmatmul.bf16.gmra.mxu0 %v7854
        %v8397 = vpop.f32.mrf.mxu0
        %v8398 = vadd.f32 %v8104, %v8397
        %v8399 = vpop.f32.mrf.mxu0
        %v8400 = vadd.f32 %v8104, %v8399
        %8401 = vmatmul.bf16.gmra.mxu0 %v7858
        %v8402 = vpop.f32.mrf.mxu0
        %v8403 = vadd.f32 %v8104, %v8402
        %v8404 = vpop.f32.mrf.mxu0
        %v8405 = vadd.f32 %v8104, %v8404
        %8406 = vmatmul.bf16.gmra.mxu0 %v7862
        %v8407 = vpop.f32.mrf.mxu0
        %v8408 = vadd.f32 %v8104, %v8407
        %v8409 = vpop.f32.mrf.mxu0
        %v8410 = vadd.f32 %v8104, %v8409
        %8411 = vmatmul.bf16.gmra.mxu0 %v7866
        %v8412 = vpop.f32.mrf.mxu0
        %v8413 = vadd.f32 %v8104, %v8412
        %v8414 = vpop.f32.mrf.mxu0
        %v8415 = vadd.f32 %v8104, %v8414
        %8416 = vmatmul.bf16.gmra.mxu0 %v7870
        %v8417 = vpop.f32.mrf.mxu0
        %v8418 = vadd.f32 %v8104, %v8417
        %v8419 = vpop.f32.mrf.mxu0
        %v8420 = vadd.f32 %v8104, %v8419
        %8421 = vmatmul.bf16.gmra.mxu0 %v7874
        %v8422 = vpop.f32.mrf.mxu0
        %v8423 = vadd.f32 %v8104, %v8422
        %v8424 = vpop.f32.mrf.mxu0
        %v8425 = vadd.f32 %v8104, %v8424
        %8426 = vmatmul.bf16.gmra.mxu0 %v7878
        %v8427 = vpop.f32.mrf.mxu0
        %v8428 = vadd.f32 %v8104, %v8427
        %v8429 = vpop.f32.mrf.mxu0
        %v8430 = vadd.f32 %v8104, %v8429
        %8431 = vmatmul.bf16.gmra.mxu0 %v7882
        %v8432 = vpop.f32.mrf.mxu0
        %v8433 = vadd.f32 %v8104, %v8432
        %v8434 = vpop.f32.mrf.mxu0
        %v8435 = vadd.f32 %v8104, %v8434
        %8436 = vmatmul.bf16.gmra.mxu0 %v7886
        %v8437 = vpop.f32.mrf.mxu0
        %v8438 = vadd.f32 %v8104, %v8437
        %v8439 = vpop.f32.mrf.mxu0
        %v8440 = vadd.f32 %v8104, %v8439
        %8441 = vmatmul.bf16.gmra.mxu0 %v7890
        %v8442 = vpop.f32.mrf.mxu0
        %v8443 = vadd.f32 %v8104, %v8442
        %v8444 = vpop.f32.mrf.mxu0
        %v8445 = vadd.f32 %v8104, %v8444
        %8446 = vmatmul.bf16.gmra.mxu0 %v7894
        %v8447 = vpop.f32.mrf.mxu0
        %v8448 = vadd.f32 %v8104, %v8447
        %v8449 = vpop.f32.mrf.mxu0
        %v8450 = vadd.f32 %v8104, %v8449
        %8451 = vmatmul.bf16.gmra.mxu0 %v7898
        %v8452 = vpop.f32.mrf.mxu0
        %v8453 = vadd.f32 %v8104, %v8452
        %v8454 = vpop.f32.mrf.mxu0
        %v8455 = vadd.f32 %v8104, %v8454
        %8456 = vmatmul.bf16.gmra.mxu0 %v7902
        %v8457 = vpop.f32.mrf.mxu0
        %v8458 = vadd.f32 %v8104, %v8457
        %v8459 = vpop.f32.mrf.mxu0
        %v8460 = vadd.f32 %v8104, %v8459
        %8461 = vmatmul.bf16.gmra.mxu0 %v7906
        %v8462 = vpop.f32.mrf.mxu0
        %v8463 = vadd.f32 %v8104, %v8462
        %v8464 = vpop.f32.mrf.mxu0
        %v8465 = vadd.f32 %v8104, %v8464
        %8466 = vmatmul.bf16.gmra.mxu0 %v7910
        %v8467 = vpop.f32.mrf.mxu0
        %v8468 = vadd.f32 %v8104, %v8467
        %v8469 = vpop.f32.mrf.mxu0
        %v8470 = vadd.f32 %v8104, %v8469
        %8471 = vmatmul.bf16.gmra.mxu0 %v7914
        %v8472 = vpop.f32.mrf.mxu0
        %v8473 = vadd.f32 %v8104, %v8472
        %v8474 = vpop.f32.mrf.mxu0
        %v8475 = vadd.f32 %v8104, %v8474
        %8476 = vmatmul.bf16.gmra.mxu0 %v7918
        %v8477 = vpop.f32.mrf.mxu0
        %v8478 = vadd.f32 %v8104, %v8477
        %v8479 = vpop.f32.mrf.mxu0
        %v8480 = vadd.f32 %v8104, %v8479
        %8481 = vmatmul.bf16.gmra.mxu0 %v7922
        %v8482 = vpop.f32.mrf.mxu0
        %v8483 = vadd.f32 %v8104, %v8482
        %v8484 = vpop.f32.mrf.mxu0
        %v8485 = vadd.f32 %v8104, %v8484
        %8486 = vmatmul.bf16.gmra.mxu0 %v7926
        %v8487 = vpop.f32.mrf.mxu0
        %v8488 = vadd.f32 %v8104, %v8487
        %v8489 = vpop.f32.mrf.mxu0
        %v8490 = vadd.f32 %v8104, %v8489
        %8491 = vmatmul.bf16.gmra.mxu0 %v7930
        %v8492 = vpop.f32.mrf.mxu0
        %v8493 = vadd.f32 %v8104, %v8492
        %v8494 = vpop.f32.mrf.mxu0
        %v8495 = vadd.f32 %v8104, %v8494
        %8496 = vmatmul.bf16.gmra.mxu0 %v7934
        %v8497 = vpop.f32.mrf.mxu0
        %v8498 = vadd.f32 %v8104, %v8497
        %v8499 = vpop.f32.mrf.mxu0
        %v8500 = vadd.f32 %v8104, %v8499
        %8501 = vmatmul.bf16.gmra.mxu0 %v7938
        %v8502 = vpop.f32.mrf.mxu0
        %v8503 = vadd.f32 %v8104, %v8502
        %v8504 = vpop.f32.mrf.mxu0
        %v8505 = vadd.f32 %v8104, %v8504
        %8506 = vmatmul.bf16.gmra.mxu0 %v7942
        %v8507 = vpop.f32.mrf.mxu0
        %v8508 = vadd.f32 %v8104, %v8507
        %v8509 = vpop.f32.mrf.mxu0
        %v8510 = vadd.f32 %v8104, %v8509
        %8511 = vmatmul.bf16.gmra.mxu0 %v7946
        %v8512 = vpop.f32.mrf.mxu0
        %v8513 = vadd.f32 %v8104, %v8512
        %v8514 = vpop.f32.mrf.mxu0
        %v8515 = vadd.f32 %v8104, %v8514
        %8516 = vmatmul.bf16.gmra.mxu0 %v7950
        %v8517 = vpop.f32.mrf.mxu0
        %v8518 = vadd.f32 %v8104, %v8517
        %v8519 = vpop.f32.mrf.mxu0
        %v8520 = vadd.f32 %v8104, %v8519
        %8521 = vmatmul.bf16.gmra.mxu0 %v7954
        %v8522 = vpop.f32.mrf.mxu0
        %v8523 = vadd.f32 %v8104, %v8522
        %v8524 = vpop.f32.mrf.mxu0
        %v8525 = vadd.f32 %v8104, %v8524
        %8526 = vmatmul.bf16.gmra.mxu0 %v7958
        %v8527 = vpop.f32.mrf.mxu0
        %v8528 = vadd.f32 %v8104, %v8527
        %v8529 = vpop.f32.mrf.mxu0
        %v8530 = vadd.f32 %v8104, %v8529
        %8531 = vmatmul.bf16.gmra.mxu0 %v7962
        %v8532 = vpop.f32.mrf.mxu0
        %v8533 = vadd.f32 %v8104, %v8532
        %v8534 = vpop.f32.mrf.mxu0
        %v8535 = vadd.f32 %v8104, %v8534
        %8536 = vmatmul.bf16.gmra.mxu0 %v7966
        %v8537 = vpop.f32.mrf.mxu0
        %v8538 = vadd.f32 %v8104, %v8537
        %v8539 = vpop.f32.mrf.mxu0
        %v8540 = vadd.f32 %v8104, %v8539
        %8541 = vmatmul.bf16.gmra.mxu0 %v7970
        %v8542 = vpop.f32.mrf.mxu0
        %v8543 = vadd.f32 %v8104, %v8542
        %v8544 = vpop.f32.mrf.mxu0
        %v8545 = vadd.f32 %v8104, %v8544
        %8546 = vmatmul.bf16.gmra.mxu0 %v7974
        %v8547 = vpop.f32.mrf.mxu0
        %v8548 = vadd.f32 %v8104, %v8547
        %v8549 = vpop.f32.mrf.mxu0
        %v8550 = vadd.f32 %v8104, %v8549
        %8551 = vmatmul.bf16.gmra.mxu0 %v7978
        %v8552 = vpop.f32.mrf.mxu0
        %v8553 = vadd.f32 %v8104, %v8552
        %v8554 = vpop.f32.mrf.mxu0
        %v8555 = vadd.f32 %v8104, %v8554
        %8556 = vmatmul.bf16.gmra.mxu0 %v7982
        %v8557 = vpop.f32.mrf.mxu0
        %v8558 = vadd.f32 %v8104, %v8557
        %v8559 = vpop.f32.mrf.mxu0
        %v8560 = vadd.f32 %v8104, %v8559
        %8561 = vmatmul.bf16.gmra.mxu0 %v7986
        %v8562 = vpop.f32.mrf.mxu0
        %v8563 = vadd.f32 %v8104, %v8562
        %v8564 = vpop.f32.mrf.mxu0
        %v8565 = vadd.f32 %v8104, %v8564
        %8566 = vmatmul.bf16.gmra.mxu0 %v7990
        %v8567 = vpop.f32.mrf.mxu0
        %v8568 = vadd.f32 %v8104, %v8567
        %v8569 = vpop.f32.mrf.mxu0
        %v8570 = vadd.f32 %v8104, %v8569
        %8571 = vmatmul.bf16.gmra.mxu0 %v7994
        %v8572 = vpop.f32.mrf.mxu0
        %v8573 = vadd.f32 %v8104, %v8572
        %v8574 = vpop.f32.mrf.mxu0
        %v8575 = vadd.f32 %v8104, %v8574
        %8576 = vmatmul.bf16.gmra.mxu0 %v7998
        %v8577 = vpop.f32.mrf.mxu0
        %v8578 = vadd.f32 %v8104, %v8577
        %v8579 = vpop.f32.mrf.mxu0
        %v8580 = vadd.f32 %v8104, %v8579
        %8581 = vmatmul.bf16.gmra.mxu0 %v8002
        %v8582 = vpop.f32.mrf.mxu0
        %v8583 = vadd.f32 %v8104, %v8582
        %v8584 = vpop.f32.mrf.mxu0
        %v8585 = vadd.f32 %v8104, %v8584
        %8586 = vmatmul.bf16.gmra.mxu0 %v8006
        %v8587 = vpop.f32.mrf.mxu0
        %v8588 = vadd.f32 %v8104, %v8587
        %v8589 = vpop.f32.mrf.mxu0
        %v8590 = vadd.f32 %v8104, %v8589
        %8591 = vmatmul.bf16.gmra.mxu0 %v8010
        %v8592 = vpop.f32.mrf.mxu0
        %v8593 = vadd.f32 %v8104, %v8592
        %v8594 = vpop.f32.mrf.mxu0
        %v8595 = vadd.f32 %v8104, %v8594
        %8596 = vmatmul.bf16.gmra.mxu0 %v8014
        %v8597 = vpop.f32.mrf.mxu0
        %v8598 = vadd.f32 %v8104, %v8597
        %v8599 = vpop.f32.mrf.mxu0
        %v8600 = vadd.f32 %v8104, %v8599
        %8601 = vmatmul.bf16.gmra.mxu0 %v8018
        %v8602 = vpop.f32.mrf.mxu0
        %v8603 = vadd.f32 %v8104, %v8602
        %v8604 = vpop.f32.mrf.mxu0
        %v8605 = vadd.f32 %v8104, %v8604
        %8606 = vmatmul.bf16.gmra.mxu0 %v8022
        %v8607 = vpop.f32.mrf.mxu0
        %v8608 = vadd.f32 %v8104, %v8607
        %v8609 = vpop.f32.mrf.mxu0
        %v8610 = vadd.f32 %v8104, %v8609
        %8611 = vmatmul.bf16.gmra.mxu0 %v8026
        %v8612 = vpop.f32.mrf.mxu0
        %v8613 = vadd.f32 %v8104, %v8612
        %v8614 = vpop.f32.mrf.mxu0
        %v8615 = vadd.f32 %v8104, %v8614
        %8616 = vmatmul.bf16.gmra.mxu0 %v8030
        %v8617 = vpop.f32.mrf.mxu0
        %v8618 = vadd.f32 %v8104, %v8617
        %v8619 = vpop.f32.mrf.mxu0
        %v8620 = vadd.f32 %v8104, %v8619
        %8621 = vmatmul.bf16.gmra.mxu0 %v8034
        %v8622 = vpop.f32.mrf.mxu0
        %v8623 = vadd.f32 %v8104, %v8622
        %v8624 = vpop.f32.mrf.mxu0
        %v8625 = vadd.f32 %v8104, %v8624
        %8626 = vdwg.mxu0
        %8627 = vmatpush.bf16.msra.mxu0 %v8249
        %8628 = vmatpush.bf16.msra.mxu0 %v8248
        %8629 = vmatpush.bf16.msra.mxu0 %v8247
        %8630 = vmatpush.bf16.msra.mxu0 %v8246
        %8631 = vmatpush.bf16.msra.mxu0 %v8245
        %8632 = vmatpush.bf16.msra.mxu0 %v8244
        %8633 = vmatpush.bf16.msra.mxu0 %v8243
        %8634 = vmatpush.bf16.msra.mxu0 %v8242
        %8635 = vmatmul.bf16.gmra.mxu0 %v7783
        %v8636 = vpop.f32.mrf.mxu0
        %v8637 = vadd.f32 %v8308, %v8636
        %v8638 = vpop.f32.mrf.mxu0
        %v8639 = vadd.f32 %v8310, %v8638
        %8640 = vmatmul.bf16.gmra.mxu0 %v7787
        %v8641 = vpop.f32.mrf.mxu0
        %v8642 = vadd.f32 %v8313, %v8641
        %v8643 = vpop.f32.mrf.mxu0
        %v8644 = vadd.f32 %v8315, %v8643
        %8645 = vmatmul.bf16.gmra.mxu0 %v7791
        %v8646 = vpop.f32.mrf.mxu0
        %v8647 = vadd.f32 %v8318, %v8646
        %v8648 = vpop.f32.mrf.mxu0
        %v8649 = vadd.f32 %v8320, %v8648
        %8650 = vmatmul.bf16.gmra.mxu0 %v7795
        %v8651 = vpop.f32.mrf.mxu0
        %v8652 = vadd.f32 %v8323, %v8651
        %v8653 = vpop.f32.mrf.mxu0
        %v8654 = vadd.f32 %v8325, %v8653
        %8655 = vmatmul.bf16.gmra.mxu0 %v7799
        %v8656 = vpop.f32.mrf.mxu0
        %v8657 = vadd.f32 %v8328, %v8656
        %v8658 = vpop.f32.mrf.mxu0
        %v8659 = vadd.f32 %v8330, %v8658
        %8660 = vmatmul.bf16.gmra.mxu0 %v7803
        %v8661 = vpop.f32.mrf.mxu0
        %v8662 = vadd.f32 %v8333, %v8661
        %v8663 = vpop.f32.mrf.mxu0
        %v8664 = vadd.f32 %v8335, %v8663
        %8665 = vmatmul.bf16.gmra.mxu0 %v7807
        %v8666 = vpop.f32.mrf.mxu0
        %v8667 = vadd.f32 %v8338, %v8666
        %v8668 = vpop.f32.mrf.mxu0
        %v8669 = vadd.f32 %v8340, %v8668
        %8670 = vmatmul.bf16.gmra.mxu0 %v7811
        %v8671 = vpop.f32.mrf.mxu0
        %v8672 = vadd.f32 %v8343, %v8671
        %v8673 = vpop.f32.mrf.mxu0
        %v8674 = vadd.f32 %v8345, %v8673
        %8675 = vmatmul.bf16.gmra.mxu0 %v7815
        %v8676 = vpop.f32.mrf.mxu0
        %v8677 = vadd.f32 %v8348, %v8676
        %v8678 = vpop.f32.mrf.mxu0
        %v8679 = vadd.f32 %v8350, %v8678
        %8680 = vmatmul.bf16.gmra.mxu0 %v7819
        %v8681 = vpop.f32.mrf.mxu0
        %v8682 = vadd.f32 %v8353, %v8681
        %v8683 = vpop.f32.mrf.mxu0
        %v8684 = vadd.f32 %v8355, %v8683
        %8685 = vmatmul.bf16.gmra.mxu0 %v7823
        %v8686 = vpop.f32.mrf.mxu0
        %v8687 = vadd.f32 %v8358, %v8686
        %v8688 = vpop.f32.mrf.mxu0
        %v8689 = vadd.f32 %v8360, %v8688
        %8690 = vmatmul.bf16.gmra.mxu0 %v7827
        %v8691 = vpop.f32.mrf.mxu0
        %v8692 = vadd.f32 %v8363, %v8691
        %v8693 = vpop.f32.mrf.mxu0
        %v8694 = vadd.f32 %v8365, %v8693
        %8695 = vmatmul.bf16.gmra.mxu0 %v7831
        %v8696 = vpop.f32.mrf.mxu0
        %v8697 = vadd.f32 %v8368, %v8696
        %v8698 = vpop.f32.mrf.mxu0
        %v8699 = vadd.f32 %v8370, %v8698
        %8700 = vmatmul.bf16.gmra.mxu0 %v7835
        %v8701 = vpop.f32.mrf.mxu0
        %v8702 = vadd.f32 %v8373, %v8701
        %v8703 = vpop.f32.mrf.mxu0
        %v8704 = vadd.f32 %v8375, %v8703
        %8705 = vmatmul.bf16.gmra.mxu0 %v7839
        %v8706 = vpop.f32.mrf.mxu0
        %v8707 = vadd.f32 %v8378, %v8706
        %v8708 = vpop.f32.mrf.mxu0
        %v8709 = vadd.f32 %v8380, %v8708
        %8710 = vmatmul.bf16.gmra.mxu0 %v7843
        %v8711 = vpop.f32.mrf.mxu0
        %v8712 = vadd.f32 %v8383, %v8711
        %v8713 = vpop.f32.mrf.mxu0
        %v8714 = vadd.f32 %v8385, %v8713
        %8715 = vmatmul.bf16.gmra.mxu0 %v7847
        %v8716 = vpop.f32.mrf.mxu0
        %v8717 = vadd.f32 %v8388, %v8716
        %v8718 = vpop.f32.mrf.mxu0
        %v8719 = vadd.f32 %v8390, %v8718
        %8720 = vmatmul.bf16.gmra.mxu0 %v7851
        %v8721 = vpop.f32.mrf.mxu0
        %v8722 = vadd.f32 %v8393, %v8721
        %v8723 = vpop.f32.mrf.mxu0
        %v8724 = vadd.f32 %v8395, %v8723
        %8725 = vmatmul.bf16.gmra.mxu0 %v7855
        %v8726 = vpop.f32.mrf.mxu0
        %v8727 = vadd.f32 %v8398, %v8726
        %v8728 = vpop.f32.mrf.mxu0
        %v8729 = vadd.f32 %v8400, %v8728
        %8730 = vmatmul.bf16.gmra.mxu0 %v7859
        %v8731 = vpop.f32.mrf.mxu0
        %v8732 = vadd.f32 %v8403, %v8731
        %v8733 = vpop.f32.mrf.mxu0
        %v8734 = vadd.f32 %v8405, %v8733
        %8735 = vmatmul.bf16.gmra.mxu0 %v7863
        %v8736 = vpop.f32.mrf.mxu0
        %v8737 = vadd.f32 %v8408, %v8736
        %v8738 = vpop.f32.mrf.mxu0
        %v8739 = vadd.f32 %v8410, %v8738
        %8740 = vmatmul.bf16.gmra.mxu0 %v7867
        %v8741 = vpop.f32.mrf.mxu0
        %v8742 = vadd.f32 %v8413, %v8741
        %v8743 = vpop.f32.mrf.mxu0
        %v8744 = vadd.f32 %v8415, %v8743
        %8745 = vmatmul.bf16.gmra.mxu0 %v7871
        %v8746 = vpop.f32.mrf.mxu0
        %v8747 = vadd.f32 %v8418, %v8746
        %v8748 = vpop.f32.mrf.mxu0
        %v8749 = vadd.f32 %v8420, %v8748
        %8750 = vmatmul.bf16.gmra.mxu0 %v7875
        %v8751 = vpop.f32.mrf.mxu0
        %v8752 = vadd.f32 %v8423, %v8751
        %v8753 = vpop.f32.mrf.mxu0
        %v8754 = vadd.f32 %v8425, %v8753
        %8755 = vmatmul.bf16.gmra.mxu0 %v7879
        %v8756 = vpop.f32.mrf.mxu0
        %v8757 = vadd.f32 %v8428, %v8756
        %v8758 = vpop.f32.mrf.mxu0
        %v8759 = vadd.f32 %v8430, %v8758
        %8760 = vmatmul.bf16.gmra.mxu0 %v7883
        %v8761 = vpop.f32.mrf.mxu0
        %v8762 = vadd.f32 %v8433, %v8761
        %v8763 = vpop.f32.mrf.mxu0
        %v8764 = vadd.f32 %v8435, %v8763
        %8765 = vmatmul.bf16.gmra.mxu0 %v7887
        %v8766 = vpop.f32.mrf.mxu0
        %v8767 = vadd.f32 %v8438, %v8766
        %v8768 = vpop.f32.mrf.mxu0
        %v8769 = vadd.f32 %v8440, %v8768
        %8770 = vmatmul.bf16.gmra.mxu0 %v7891
        %v8771 = vpop.f32.mrf.mxu0
        %v8772 = vadd.f32 %v8443, %v8771
        %v8773 = vpop.f32.mrf.mxu0
        %v8774 = vadd.f32 %v8445, %v8773
        %8775 = vmatmul.bf16.gmra.mxu0 %v7895
        %v8776 = vpop.f32.mrf.mxu0
        %v8777 = vadd.f32 %v8448, %v8776
        %v8778 = vpop.f32.mrf.mxu0
        %v8779 = vadd.f32 %v8450, %v8778
        %8780 = vmatmul.bf16.gmra.mxu0 %v7899
        %v8781 = vpop.f32.mrf.mxu0
        %v8782 = vadd.f32 %v8453, %v8781
        %v8783 = vpop.f32.mrf.mxu0
        %v8784 = vadd.f32 %v8455, %v8783
        %8785 = vmatmul.bf16.gmra.mxu0 %v7903
        %v8786 = vpop.f32.mrf.mxu0
        %v8787 = vadd.f32 %v8458, %v8786
        %v8788 = vpop.f32.mrf.mxu0
        %v8789 = vadd.f32 %v8460, %v8788
        %8790 = vmatmul.bf16.gmra.mxu0 %v7907
        %v8791 = vpop.f32.mrf.mxu0
        %v8792 = vadd.f32 %v8463, %v8791
        %v8793 = vpop.f32.mrf.mxu0
        %v8794 = vadd.f32 %v8465, %v8793
        %8795 = vmatmul.bf16.gmra.mxu0 %v7911
        %v8796 = vpop.f32.mrf.mxu0
        %v8797 = vadd.f32 %v8468, %v8796
        %v8798 = vpop.f32.mrf.mxu0
        %v8799 = vadd.f32 %v8470, %v8798
        %8800 = vmatmul.bf16.gmra.mxu0 %v7915
        %v8801 = vpop.f32.mrf.mxu0
        %v8802 = vadd.f32 %v8473, %v8801
        %v8803 = vpop.f32.mrf.mxu0
        %v8804 = vadd.f32 %v8475, %v8803
        %8805 = vmatmul.bf16.gmra.mxu0 %v7919
        %v8806 = vpop.f32.mrf.mxu0
        %v8807 = vadd.f32 %v8478, %v8806
        %v8808 = vpop.f32.mrf.mxu0
        %v8809 = vadd.f32 %v8480, %v8808
        %8810 = vmatmul.bf16.gmra.mxu0 %v7923
        %v8811 = vpop.f32.mrf.mxu0
        %v8812 = vadd.f32 %v8483, %v8811
        %v8813 = vpop.f32.mrf.mxu0
        %v8814 = vadd.f32 %v8485, %v8813
        %8815 = vmatmul.bf16.gmra.mxu0 %v7927
        %v8816 = vpop.f32.mrf.mxu0
        %v8817 = vadd.f32 %v8488, %v8816
        %v8818 = vpop.f32.mrf.mxu0
        %v8819 = vadd.f32 %v8490, %v8818
        %8820 = vmatmul.bf16.gmra.mxu0 %v7931
        %v8821 = vpop.f32.mrf.mxu0
        %v8822 = vadd.f32 %v8493, %v8821
        %v8823 = vpop.f32.mrf.mxu0
        %v8824 = vadd.f32 %v8495, %v8823
        %8825 = vmatmul.bf16.gmra.mxu0 %v7935
        %v8826 = vpop.f32.mrf.mxu0
        %v8827 = vadd.f32 %v8498, %v8826
        %v8828 = vpop.f32.mrf.mxu0
        %v8829 = vadd.f32 %v8500, %v8828
        %8830 = vmatmul.bf16.gmra.mxu0 %v7939
        %v8831 = vpop.f32.mrf.mxu0
        %v8832 = vadd.f32 %v8503, %v8831
        %v8833 = vpop.f32.mrf.mxu0
        %v8834 = vadd.f32 %v8505, %v8833
        %8835 = vmatmul.bf16.gmra.mxu0 %v7943
        %v8836 = vpop.f32.mrf.mxu0
        %v8837 = vadd.f32 %v8508, %v8836
        %v8838 = vpop.f32.mrf.mxu0
        %v8839 = vadd.f32 %v8510, %v8838
        %8840 = vmatmul.bf16.gmra.mxu0 %v7947
        %v8841 = vpop.f32.mrf.mxu0
        %v8842 = vadd.f32 %v8513, %v8841
        %v8843 = vpop.f32.mrf.mxu0
        %v8844 = vadd.f32 %v8515, %v8843
        %8845 = vmatmul.bf16.gmra.mxu0 %v7951
        %v8846 = vpop.f32.mrf.mxu0
        %v8847 = vadd.f32 %v8518, %v8846
        %v8848 = vpop.f32.mrf.mxu0
        %v8849 = vadd.f32 %v8520, %v8848
        %8850 = vmatmul.bf16.gmra.mxu0 %v7955
        %v8851 = vpop.f32.mrf.mxu0
        %v8852 = vadd.f32 %v8523, %v8851
        %v8853 = vpop.f32.mrf.mxu0
        %v8854 = vadd.f32 %v8525, %v8853
        %8855 = vmatmul.bf16.gmra.mxu0 %v7959
        %v8856 = vpop.f32.mrf.mxu0
        %v8857 = vadd.f32 %v8528, %v8856
        %v8858 = vpop.f32.mrf.mxu0
        %v8859 = vadd.f32 %v8530, %v8858
        %8860 = vmatmul.bf16.gmra.mxu0 %v7963
        %v8861 = vpop.f32.mrf.mxu0
        %v8862 = vadd.f32 %v8533, %v8861
        %v8863 = vpop.f32.mrf.mxu0
        %v8864 = vadd.f32 %v8535, %v8863
        %8865 = vmatmul.bf16.gmra.mxu0 %v7967
        %v8866 = vpop.f32.mrf.mxu0
        %v8867 = vadd.f32 %v8538, %v8866
        %v8868 = vpop.f32.mrf.mxu0
        %v8869 = vadd.f32 %v8540, %v8868
        %8870 = vmatmul.bf16.gmra.mxu0 %v7971
        %v8871 = vpop.f32.mrf.mxu0
        %v8872 = vadd.f32 %v8543, %v8871
        %v8873 = vpop.f32.mrf.mxu0
        %v8874 = vadd.f32 %v8545, %v8873
        %8875 = vmatmul.bf16.gmra.mxu0 %v7975
        %v8876 = vpop.f32.mrf.mxu0
        %v8877 = vadd.f32 %v8548, %v8876
        %v8878 = vpop.f32.mrf.mxu0
        %v8879 = vadd.f32 %v8550, %v8878
        %8880 = vmatmul.bf16.gmra.mxu0 %v7979
        %v8881 = vpop.f32.mrf.mxu0
        %v8882 = vadd.f32 %v8553, %v8881
        %v8883 = vpop.f32.mrf.mxu0
        %v8884 = vadd.f32 %v8555, %v8883
        %8885 = vmatmul.bf16.gmra.mxu0 %v7983
        %v8886 = vpop.f32.mrf.mxu0
        %v8887 = vadd.f32 %v8558, %v8886
        %v8888 = vpop.f32.mrf.mxu0
        %v8889 = vadd.f32 %v8560, %v8888
        %8890 = vmatmul.bf16.gmra.mxu0 %v7987
        %v8891 = vpop.f32.mrf.mxu0
        %v8892 = vadd.f32 %v8563, %v8891
        %v8893 = vpop.f32.mrf.mxu0
        %v8894 = vadd.f32 %v8565, %v8893
        %8895 = vmatmul.bf16.gmra.mxu0 %v7991
        %v8896 = vpop.f32.mrf.mxu0
        %v8897 = vadd.f32 %v8568, %v8896
        %v8898 = vpop.f32.mrf.mxu0
        %v8899 = vadd.f32 %v8570, %v8898
        %8900 = vmatmul.bf16.gmra.mxu0 %v7995
        %v8901 = vpop.f32.mrf.mxu0
        %v8902 = vadd.f32 %v8573, %v8901
        %v8903 = vpop.f32.mrf.mxu0
        %v8904 = vadd.f32 %v8575, %v8903
        %8905 = vmatmul.bf16.gmra.mxu0 %v7999
        %v8906 = vpop.f32.mrf.mxu0
        %v8907 = vadd.f32 %v8578, %v8906
        %v8908 = vpop.f32.mrf.mxu0
        %v8909 = vadd.f32 %v8580, %v8908
        %8910 = vmatmul.bf16.gmra.mxu0 %v8003
        %v8911 = vpop.f32.mrf.mxu0
        %v8912 = vadd.f32 %v8583, %v8911
        %v8913 = vpop.f32.mrf.mxu0
        %v8914 = vadd.f32 %v8585, %v8913
        %8915 = vmatmul.bf16.gmra.mxu0 %v8007
        %v8916 = vpop.f32.mrf.mxu0
        %v8917 = vadd.f32 %v8588, %v8916
        %v8918 = vpop.f32.mrf.mxu0
        %v8919 = vadd.f32 %v8590, %v8918
        %8920 = vmatmul.bf16.gmra.mxu0 %v8011
        %v8921 = vpop.f32.mrf.mxu0
        %v8922 = vadd.f32 %v8593, %v8921
        %v8923 = vpop.f32.mrf.mxu0
        %v8924 = vadd.f32 %v8595, %v8923
        %8925 = vmatmul.bf16.gmra.mxu0 %v8015
        %v8926 = vpop.f32.mrf.mxu0
        %v8927 = vadd.f32 %v8598, %v8926
        %v8928 = vpop.f32.mrf.mxu0
        %v8929 = vadd.f32 %v8600, %v8928
        %8930 = vmatmul.bf16.gmra.mxu0 %v8019
        %v8931 = vpop.f32.mrf.mxu0
        %v8932 = vadd.f32 %v8603, %v8931
        %v8933 = vpop.f32.mrf.mxu0
        %v8934 = vadd.f32 %v8605, %v8933
        %8935 = vmatmul.bf16.gmra.mxu0 %v8023
        %v8936 = vpop.f32.mrf.mxu0
        %v8937 = vadd.f32 %v8608, %v8936
        %v8938 = vpop.f32.mrf.mxu0
        %v8939 = vadd.f32 %v8610, %v8938
        %8940 = vmatmul.bf16.gmra.mxu0 %v8027
        %v8941 = vpop.f32.mrf.mxu0
        %v8942 = vadd.f32 %v8613, %v8941
        %v8943 = vpop.f32.mrf.mxu0
        %v8944 = vadd.f32 %v8615, %v8943
        %8945 = vmatmul.bf16.gmra.mxu0 %v8031
        %v8946 = vpop.f32.mrf.mxu0
        %v8947 = vadd.f32 %v8618, %v8946
        %v8948 = vpop.f32.mrf.mxu0
        %v8949 = vadd.f32 %v8620, %v8948
        %8950 = vmatmul.bf16.gmra.mxu0 %v8035
        %v8951 = vpop.f32.mrf.mxu0
        %v8952 = vadd.f32 %v8623, %v8951
        %v8953 = vpop.f32.mrf.mxu0
        %v8954 = vadd.f32 %v8625, %v8953
        %8955 = vdwg.mxu0
        %8956 = vmatpush.bf16.msra.mxu0 %v8257
        %8957 = vmatpush.bf16.msra.mxu0 %v8256
        %8958 = vmatpush.bf16.msra.mxu0 %v8255
        %8959 = vmatpush.bf16.msra.mxu0 %v8254
        %8960 = vmatpush.bf16.msra.mxu0 %v8253
        %8961 = vmatpush.bf16.msra.mxu0 %v8252
        %8962 = vmatpush.bf16.msra.mxu0 %v8251
        %8963 = vmatpush.bf16.msra.mxu0 %v8250
        %8964 = vmatmul.bf16.gmra.mxu0 %v7784
        %v8965 = vpop.f32.mrf.mxu0
        %v8966 = vadd.f32 %v8637, %v8965
        %v8967 = vpop.f32.mrf.mxu0
        %v8968 = vadd.f32 %v8639, %v8967
        %8969 = vmatmul.bf16.gmra.mxu0 %v7788
        %v8970 = vpop.f32.mrf.mxu0
        %v8971 = vadd.f32 %v8642, %v8970
        %v8972 = vpop.f32.mrf.mxu0
        %v8973 = vadd.f32 %v8644, %v8972
        %8974 = vmatmul.bf16.gmra.mxu0 %v7792
        %v8975 = vpop.f32.mrf.mxu0
        %v8976 = vadd.f32 %v8647, %v8975
        %v8977 = vpop.f32.mrf.mxu0
        %v8978 = vadd.f32 %v8649, %v8977
        %8979 = vmatmul.bf16.gmra.mxu0 %v7796
        %v8980 = vpop.f32.mrf.mxu0
        %v8981 = vadd.f32 %v8652, %v8980
        %v8982 = vpop.f32.mrf.mxu0
        %v8983 = vadd.f32 %v8654, %v8982
        %8984 = vmatmul.bf16.gmra.mxu0 %v7800
        %v8985 = vpop.f32.mrf.mxu0
        %v8986 = vadd.f32 %v8657, %v8985
        %v8987 = vpop.f32.mrf.mxu0
        %v8988 = vadd.f32 %v8659, %v8987
        %8989 = vmatmul.bf16.gmra.mxu0 %v7804
        %v8990 = vpop.f32.mrf.mxu0
        %v8991 = vadd.f32 %v8662, %v8990
        %v8992 = vpop.f32.mrf.mxu0
        %v8993 = vadd.f32 %v8664, %v8992
        %8994 = vmatmul.bf16.gmra.mxu0 %v7808
        %v8995 = vpop.f32.mrf.mxu0
        %v8996 = vadd.f32 %v8667, %v8995
        %v8997 = vpop.f32.mrf.mxu0
        %v8998 = vadd.f32 %v8669, %v8997
        %8999 = vmatmul.bf16.gmra.mxu0 %v7812
        %v9000 = vpop.f32.mrf.mxu0
        %v9001 = vadd.f32 %v8672, %v9000
        %v9002 = vpop.f32.mrf.mxu0
        %v9003 = vadd.f32 %v8674, %v9002
        %9004 = vmatmul.bf16.gmra.mxu0 %v7816
        %v9005 = vpop.f32.mrf.mxu0
        %v9006 = vadd.f32 %v8677, %v9005
        %v9007 = vpop.f32.mrf.mxu0
        %v9008 = vadd.f32 %v8679, %v9007
        %9009 = vmatmul.bf16.gmra.mxu0 %v7820
        %v9010 = vpop.f32.mrf.mxu0
        %v9011 = vadd.f32 %v8682, %v9010
        %v9012 = vpop.f32.mrf.mxu0
        %v9013 = vadd.f32 %v8684, %v9012
        %9014 = vmatmul.bf16.gmra.mxu0 %v7824
        %v9015 = vpop.f32.mrf.mxu0
        %v9016 = vadd.f32 %v8687, %v9015
        %v9017 = vpop.f32.mrf.mxu0
        %v9018 = vadd.f32 %v8689, %v9017
        %9019 = vmatmul.bf16.gmra.mxu0 %v7828
        %v9020 = vpop.f32.mrf.mxu0
        %v9021 = vadd.f32 %v8692, %v9020
        %v9022 = vpop.f32.mrf.mxu0
        %v9023 = vadd.f32 %v8694, %v9022
        %9024 = vmatmul.bf16.gmra.mxu0 %v7832
        %v9025 = vpop.f32.mrf.mxu0
        %v9026 = vadd.f32 %v8697, %v9025
        %v9027 = vpop.f32.mrf.mxu0
        %v9028 = vadd.f32 %v8699, %v9027
        %9029 = vmatmul.bf16.gmra.mxu0 %v7836
        %v9030 = vpop.f32.mrf.mxu0
        %v9031 = vadd.f32 %v8702, %v9030
        %v9032 = vpop.f32.mrf.mxu0
        %v9033 = vadd.f32 %v8704, %v9032
        %9034 = vmatmul.bf16.gmra.mxu0 %v7840
        %v9035 = vpop.f32.mrf.mxu0
        %v9036 = vadd.f32 %v8707, %v9035
        %v9037 = vpop.f32.mrf.mxu0
        %v9038 = vadd.f32 %v8709, %v9037
        %9039 = vmatmul.bf16.gmra.mxu0 %v7844
        %v9040 = vpop.f32.mrf.mxu0
        %v9041 = vadd.f32 %v8712, %v9040
        %v9042 = vpop.f32.mrf.mxu0
        %v9043 = vadd.f32 %v8714, %v9042
        %9044 = vmatmul.bf16.gmra.mxu0 %v7848
        %v9045 = vpop.f32.mrf.mxu0
        %v9046 = vadd.f32 %v8717, %v9045
        %v9047 = vpop.f32.mrf.mxu0
        %v9048 = vadd.f32 %v8719, %v9047
        %9049 = vmatmul.bf16.gmra.mxu0 %v7852
        %v9050 = vpop.f32.mrf.mxu0
        %v9051 = vadd.f32 %v8722, %v9050
        %v9052 = vpop.f32.mrf.mxu0
        %v9053 = vadd.f32 %v8724, %v9052
        %9054 = vmatmul.bf16.gmra.mxu0 %v7856
        %v9055 = vpop.f32.mrf.mxu0
        %v9056 = vadd.f32 %v8727, %v9055
        %v9057 = vpop.f32.mrf.mxu0
        %v9058 = vadd.f32 %v8729, %v9057
        %9059 = vmatmul.bf16.gmra.mxu0 %v7860
        %v9060 = vpop.f32.mrf.mxu0
        %v9061 = vadd.f32 %v8732, %v9060
        %v9062 = vpop.f32.mrf.mxu0
        %v9063 = vadd.f32 %v8734, %v9062
        %9064 = vmatmul.bf16.gmra.mxu0 %v7864
        %v9065 = vpop.f32.mrf.mxu0
        %v9066 = vadd.f32 %v8737, %v9065
        %v9067 = vpop.f32.mrf.mxu0
        %v9068 = vadd.f32 %v8739, %v9067
        %9069 = vmatmul.bf16.gmra.mxu0 %v7868
        %v9070 = vpop.f32.mrf.mxu0
        %v9071 = vadd.f32 %v8742, %v9070
        %v9072 = vpop.f32.mrf.mxu0
        %v9073 = vadd.f32 %v8744, %v9072
        %9074 = vmatmul.bf16.gmra.mxu0 %v7872
        %v9075 = vpop.f32.mrf.mxu0
        %v9076 = vadd.f32 %v8747, %v9075
        %v9077 = vpop.f32.mrf.mxu0
        %v9078 = vadd.f32 %v8749, %v9077
        %9079 = vmatmul.bf16.gmra.mxu0 %v7876
        %v9080 = vpop.f32.mrf.mxu0
        %v9081 = vadd.f32 %v8752, %v9080
        %v9082 = vpop.f32.mrf.mxu0
        %v9083 = vadd.f32 %v8754, %v9082
        %9084 = vmatmul.bf16.gmra.mxu0 %v7880
        %v9085 = vpop.f32.mrf.mxu0
        %v9086 = vadd.f32 %v8757, %v9085
        %v9087 = vpop.f32.mrf.mxu0
        %v9088 = vadd.f32 %v8759, %v9087
        %9089 = vmatmul.bf16.gmra.mxu0 %v7884
        %v9090 = vpop.f32.mrf.mxu0
        %v9091 = vadd.f32 %v8762, %v9090
        %v9092 = vpop.f32.mrf.mxu0
        %v9093 = vadd.f32 %v8764, %v9092
        %9094 = vmatmul.bf16.gmra.mxu0 %v7888
        %v9095 = vpop.f32.mrf.mxu0
        %v9096 = vadd.f32 %v8767, %v9095
        %v9097 = vpop.f32.mrf.mxu0
        %v9098 = vadd.f32 %v8769, %v9097
        %9099 = vmatmul.bf16.gmra.mxu0 %v7892
        %v9100 = vpop.f32.mrf.mxu0
        %v9101 = vadd.f32 %v8772, %v9100
        %v9102 = vpop.f32.mrf.mxu0
        %v9103 = vadd.f32 %v8774, %v9102
        %9104 = vmatmul.bf16.gmra.mxu0 %v7896
        %v9105 = vpop.f32.mrf.mxu0
        %v9106 = vadd.f32 %v8777, %v9105
        %v9107 = vpop.f32.mrf.mxu0
        %v9108 = vadd.f32 %v8779, %v9107
        %9109 = vmatmul.bf16.gmra.mxu0 %v7900
        %v9110 = vpop.f32.mrf.mxu0
        %v9111 = vadd.f32 %v8782, %v9110
        %v9112 = vpop.f32.mrf.mxu0
        %v9113 = vadd.f32 %v8784, %v9112
        %9114 = vmatmul.bf16.gmra.mxu0 %v7904
        %v9115 = vpop.f32.mrf.mxu0
        %v9116 = vadd.f32 %v8787, %v9115
        %v9117 = vpop.f32.mrf.mxu0
        %v9118 = vadd.f32 %v8789, %v9117
        %9119 = vmatmul.bf16.gmra.mxu0 %v7908
        %v9120 = vpop.f32.mrf.mxu0
        %v9121 = vadd.f32 %v8792, %v9120
        %v9122 = vpop.f32.mrf.mxu0
        %v9123 = vadd.f32 %v8794, %v9122
        %9124 = vmatmul.bf16.gmra.mxu0 %v7912
        %v9125 = vpop.f32.mrf.mxu0
        %v9126 = vadd.f32 %v8797, %v9125
        %v9127 = vpop.f32.mrf.mxu0
        %v9128 = vadd.f32 %v8799, %v9127
        %9129 = vmatmul.bf16.gmra.mxu0 %v7916
        %v9130 = vpop.f32.mrf.mxu0
        %v9131 = vadd.f32 %v8802, %v9130
        %v9132 = vpop.f32.mrf.mxu0
        %v9133 = vadd.f32 %v8804, %v9132
        %9134 = vmatmul.bf16.gmra.mxu0 %v7920
        %v9135 = vpop.f32.mrf.mxu0
        %v9136 = vadd.f32 %v8807, %v9135
        %v9137 = vpop.f32.mrf.mxu0
        %v9138 = vadd.f32 %v8809, %v9137
        %9139 = vmatmul.bf16.gmra.mxu0 %v7924
        %v9140 = vpop.f32.mrf.mxu0
        %v9141 = vadd.f32 %v8812, %v9140
        %v9142 = vpop.f32.mrf.mxu0
        %v9143 = vadd.f32 %v8814, %v9142
        %9144 = vmatmul.bf16.gmra.mxu0 %v7928
        %v9145 = vpop.f32.mrf.mxu0
        %v9146 = vadd.f32 %v8817, %v9145
        %v9147 = vpop.f32.mrf.mxu0
        %v9148 = vadd.f32 %v8819, %v9147
        %9149 = vmatmul.bf16.gmra.mxu0 %v7932
        %v9150 = vpop.f32.mrf.mxu0
        %v9151 = vadd.f32 %v8822, %v9150
        %v9152 = vpop.f32.mrf.mxu0
        %v9153 = vadd.f32 %v8824, %v9152
        %9154 = vmatmul.bf16.gmra.mxu0 %v7936
        %v9155 = vpop.f32.mrf.mxu0
        %v9156 = vadd.f32 %v8827, %v9155
        %v9157 = vpop.f32.mrf.mxu0
        %v9158 = vadd.f32 %v8829, %v9157
        %9159 = vmatmul.bf16.gmra.mxu0 %v7940
        %v9160 = vpop.f32.mrf.mxu0
        %v9161 = vadd.f32 %v8832, %v9160
        %v9162 = vpop.f32.mrf.mxu0
        %v9163 = vadd.f32 %v8834, %v9162
        %9164 = vmatmul.bf16.gmra.mxu0 %v7944
        %v9165 = vpop.f32.mrf.mxu0
        %v9166 = vadd.f32 %v8837, %v9165
        %v9167 = vpop.f32.mrf.mxu0
        %v9168 = vadd.f32 %v8839, %v9167
        %9169 = vmatmul.bf16.gmra.mxu0 %v7948
        %v9170 = vpop.f32.mrf.mxu0
        %v9171 = vadd.f32 %v8842, %v9170
        %v9172 = vpop.f32.mrf.mxu0
        %v9173 = vadd.f32 %v8844, %v9172
        %9174 = vmatmul.bf16.gmra.mxu0 %v7952
        %v9175 = vpop.f32.mrf.mxu0
        %v9176 = vadd.f32 %v8847, %v9175
        %v9177 = vpop.f32.mrf.mxu0
        %v9178 = vadd.f32 %v8849, %v9177
        %9179 = vmatmul.bf16.gmra.mxu0 %v7956
        %v9180 = vpop.f32.mrf.mxu0
        %v9181 = vadd.f32 %v8852, %v9180
        %v9182 = vpop.f32.mrf.mxu0
        %v9183 = vadd.f32 %v8854, %v9182
        %9184 = vmatmul.bf16.gmra.mxu0 %v7960
        %v9185 = vpop.f32.mrf.mxu0
        %v9186 = vadd.f32 %v8857, %v9185
        %v9187 = vpop.f32.mrf.mxu0
        %v9188 = vadd.f32 %v8859, %v9187
        %9189 = vmatmul.bf16.gmra.mxu0 %v7964
        %v9190 = vpop.f32.mrf.mxu0
        %v9191 = vadd.f32 %v8862, %v9190
        %v9192 = vpop.f32.mrf.mxu0
        %v9193 = vadd.f32 %v8864, %v9192
        %9194 = vmatmul.bf16.gmra.mxu0 %v7968
        %v9195 = vpop.f32.mrf.mxu0
        %v9196 = vadd.f32 %v8867, %v9195
        %v9197 = vpop.f32.mrf.mxu0
        %v9198 = vadd.f32 %v8869, %v9197
        %9199 = vmatmul.bf16.gmra.mxu0 %v7972
        %v9200 = vpop.f32.mrf.mxu0
        %v9201 = vadd.f32 %v8872, %v9200
        %v9202 = vpop.f32.mrf.mxu0
        %v9203 = vadd.f32 %v8874, %v9202
        %9204 = vmatmul.bf16.gmra.mxu0 %v7976
        %v9205 = vpop.f32.mrf.mxu0
        %v9206 = vadd.f32 %v8877, %v9205
        %v9207 = vpop.f32.mrf.mxu0
        %v9208 = vadd.f32 %v8879, %v9207
        %9209 = vmatmul.bf16.gmra.mxu0 %v7980
        %v9210 = vpop.f32.mrf.mxu0
        %v9211 = vadd.f32 %v8882, %v9210
        %v9212 = vpop.f32.mrf.mxu0
        %v9213 = vadd.f32 %v8884, %v9212
        %9214 = vmatmul.bf16.gmra.mxu0 %v7984
        %v9215 = vpop.f32.mrf.mxu0
        %v9216 = vadd.f32 %v8887, %v9215
        %v9217 = vpop.f32.mrf.mxu0
        %v9218 = vadd.f32 %v8889, %v9217
        %9219 = vmatmul.bf16.gmra.mxu0 %v7988
        %v9220 = vpop.f32.mrf.mxu0
        %v9221 = vadd.f32 %v8892, %v9220
        %v9222 = vpop.f32.mrf.mxu0
        %v9223 = vadd.f32 %v8894, %v9222
        %9224 = vmatmul.bf16.gmra.mxu0 %v7992
        %v9225 = vpop.f32.mrf.mxu0
        %v9226 = vadd.f32 %v8897, %v9225
        %v9227 = vpop.f32.mrf.mxu0
        %v9228 = vadd.f32 %v8899, %v9227
        %9229 = vmatmul.bf16.gmra.mxu0 %v7996
        %v9230 = vpop.f32.mrf.mxu0
        %v9231 = vadd.f32 %v8902, %v9230
        %v9232 = vpop.f32.mrf.mxu0
        %v9233 = vadd.f32 %v8904, %v9232
        %9234 = vmatmul.bf16.gmra.mxu0 %v8000
        %v9235 = vpop.f32.mrf.mxu0
        %v9236 = vadd.f32 %v8907, %v9235
        %v9237 = vpop.f32.mrf.mxu0
        %v9238 = vadd.f32 %v8909, %v9237
        %9239 = vmatmul.bf16.gmra.mxu0 %v8004
        %v9240 = vpop.f32.mrf.mxu0
        %v9241 = vadd.f32 %v8912, %v9240
        %v9242 = vpop.f32.mrf.mxu0
        %v9243 = vadd.f32 %v8914, %v9242
        %9244 = vmatmul.bf16.gmra.mxu0 %v8008
        %v9245 = vpop.f32.mrf.mxu0
        %v9246 = vadd.f32 %v8917, %v9245
        %v9247 = vpop.f32.mrf.mxu0
        %v9248 = vadd.f32 %v8919, %v9247
        %9249 = vmatmul.bf16.gmra.mxu0 %v8012
        %v9250 = vpop.f32.mrf.mxu0
        %v9251 = vadd.f32 %v8922, %v9250
        %v9252 = vpop.f32.mrf.mxu0
        %v9253 = vadd.f32 %v8924, %v9252
        %9254 = vmatmul.bf16.gmra.mxu0 %v8016
        %v9255 = vpop.f32.mrf.mxu0
        %v9256 = vadd.f32 %v8927, %v9255
        %v9257 = vpop.f32.mrf.mxu0
        %v9258 = vadd.f32 %v8929, %v9257
        %9259 = vmatmul.bf16.gmra.mxu0 %v8020
        %v9260 = vpop.f32.mrf.mxu0
        %v9261 = vadd.f32 %v8932, %v9260
        %v9262 = vpop.f32.mrf.mxu0
        %v9263 = vadd.f32 %v8934, %v9262
        %9264 = vmatmul.bf16.gmra.mxu0 %v8024
        %v9265 = vpop.f32.mrf.mxu0
        %v9266 = vadd.f32 %v8937, %v9265
        %v9267 = vpop.f32.mrf.mxu0
        %v9268 = vadd.f32 %v8939, %v9267
        %9269 = vmatmul.bf16.gmra.mxu0 %v8028
        %v9270 = vpop.f32.mrf.mxu0
        %v9271 = vadd.f32 %v8942, %v9270
        %v9272 = vpop.f32.mrf.mxu0
        %v9273 = vadd.f32 %v8944, %v9272
        %9274 = vmatmul.bf16.gmra.mxu0 %v8032
        %v9275 = vpop.f32.mrf.mxu0
        %v9276 = vadd.f32 %v8947, %v9275
        %v9277 = vpop.f32.mrf.mxu0
        %v9278 = vadd.f32 %v8949, %v9277
        %9279 = vmatmul.bf16.gmra.mxu0 %v8036
        %v9280 = vpop.f32.mrf.mxu0
        %v9281 = vadd.f32 %v8952, %v9280
        %v9282 = vpop.f32.mrf.mxu0
        %v9283 = vadd.f32 %v8954, %v9282
        %9284 = vdwg.mxu0
        %9285 = vmatpush.bf16.msra.mxu0 %v8265
        %9286 = vmatpush.bf16.msra.mxu0 %v8264
        %9287 = vmatpush.bf16.msra.mxu0 %v8263
        %9288 = vmatpush.bf16.msra.mxu0 %v8262
        %9289 = vmatpush.bf16.msra.mxu0 %v8261
        %9290 = vmatpush.bf16.msra.mxu0 %v8260
        %9291 = vmatpush.bf16.msra.mxu0 %v8259
        %9292 = vmatpush.bf16.msra.mxu0 %v8258
        %9293 = vmatmul.bf16.gmra.mxu0 %v7785
        %v9294 = vpop.f32.mrf.mxu0
        %v9295 = vadd.f32 %v8966, %v9294
        %v9296 = vpop.f32.mrf.mxu0
        %v9297 = vadd.f32 %v8968, %v9296
        %9298 = vmatmul.bf16.gmra.mxu0 %v7789
        %v9299 = vpop.f32.mrf.mxu0
        %v9300 = vadd.f32 %v8971, %v9299
        %v9301 = vpop.f32.mrf.mxu0
        %v9302 = vadd.f32 %v8973, %v9301
        %9303 = vmatmul.bf16.gmra.mxu0 %v7793
        %v9304 = vpop.f32.mrf.mxu0
        %v9305 = vadd.f32 %v8976, %v9304
        %v9306 = vpop.f32.mrf.mxu0
        %v9307 = vadd.f32 %v8978, %v9306
        %9308 = vmatmul.bf16.gmra.mxu0 %v7797
        %v9309 = vpop.f32.mrf.mxu0
        %v9310 = vadd.f32 %v8981, %v9309
        %v9311 = vpop.f32.mrf.mxu0
        %v9312 = vadd.f32 %v8983, %v9311
        %9313 = vmatmul.bf16.gmra.mxu0 %v7801
        %v9314 = vpop.f32.mrf.mxu0
        %v9315 = vadd.f32 %v8986, %v9314
        %v9316 = vpop.f32.mrf.mxu0
        %v9317 = vadd.f32 %v8988, %v9316
        %9318 = vmatmul.bf16.gmra.mxu0 %v7805
        %v9319 = vpop.f32.mrf.mxu0
        %v9320 = vadd.f32 %v8991, %v9319
        %v9321 = vpop.f32.mrf.mxu0
        %v9322 = vadd.f32 %v8993, %v9321
        %9323 = vmatmul.bf16.gmra.mxu0 %v7809
        %v9324 = vpop.f32.mrf.mxu0
        %v9325 = vadd.f32 %v8996, %v9324
        %v9326 = vpop.f32.mrf.mxu0
        %v9327 = vadd.f32 %v8998, %v9326
        %9328 = vmatmul.bf16.gmra.mxu0 %v7813
        %v9329 = vpop.f32.mrf.mxu0
        %v9330 = vadd.f32 %v9001, %v9329
        %v9331 = vpop.f32.mrf.mxu0
        %v9332 = vadd.f32 %v9003, %v9331
        %9333 = vmatmul.bf16.gmra.mxu0 %v7817
        %v9334 = vpop.f32.mrf.mxu0
        %v9335 = vadd.f32 %v9006, %v9334
        %v9336 = vpop.f32.mrf.mxu0
        %v9337 = vadd.f32 %v9008, %v9336
        %9338 = vmatmul.bf16.gmra.mxu0 %v7821
        %v9339 = vpop.f32.mrf.mxu0
        %v9340 = vadd.f32 %v9011, %v9339
        %v9341 = vpop.f32.mrf.mxu0
        %v9342 = vadd.f32 %v9013, %v9341
        %9343 = vmatmul.bf16.gmra.mxu0 %v7825
        %v9344 = vpop.f32.mrf.mxu0
        %v9345 = vadd.f32 %v9016, %v9344
        %v9346 = vpop.f32.mrf.mxu0
        %v9347 = vadd.f32 %v9018, %v9346
        %9348 = vmatmul.bf16.gmra.mxu0 %v7829
        %v9349 = vpop.f32.mrf.mxu0
        %v9350 = vadd.f32 %v9021, %v9349
        %v9351 = vpop.f32.mrf.mxu0
        %v9352 = vadd.f32 %v9023, %v9351
        %9353 = vmatmul.bf16.gmra.mxu0 %v7833
        %v9354 = vpop.f32.mrf.mxu0
        %v9355 = vadd.f32 %v9026, %v9354
        %v9356 = vpop.f32.mrf.mxu0
        %v9357 = vadd.f32 %v9028, %v9356
        %9358 = vmatmul.bf16.gmra.mxu0 %v7837
        %v9359 = vpop.f32.mrf.mxu0
        %v9360 = vadd.f32 %v9031, %v9359
        %v9361 = vpop.f32.mrf.mxu0
        %v9362 = vadd.f32 %v9033, %v9361
        %9363 = vmatmul.bf16.gmra.mxu0 %v7841
        %v9364 = vpop.f32.mrf.mxu0
        %v9365 = vadd.f32 %v9036, %v9364
        %v9366 = vpop.f32.mrf.mxu0
        %v9367 = vadd.f32 %v9038, %v9366
        %9368 = vmatmul.bf16.gmra.mxu0 %v7845
        %v9369 = vpop.f32.mrf.mxu0
        %v9370 = vadd.f32 %v9041, %v9369
        %v9371 = vpop.f32.mrf.mxu0
        %v9372 = vadd.f32 %v9043, %v9371
        %9373 = vmatmul.bf16.gmra.mxu0 %v7849
        %v9374 = vpop.f32.mrf.mxu0
        %v9375 = vadd.f32 %v9046, %v9374
        %v9376 = vpop.f32.mrf.mxu0
        %v9377 = vadd.f32 %v9048, %v9376
        %9378 = vmatmul.bf16.gmra.mxu0 %v7853
        %v9379 = vpop.f32.mrf.mxu0
        %v9380 = vadd.f32 %v9051, %v9379
        %v9381 = vpop.f32.mrf.mxu0
        %v9382 = vadd.f32 %v9053, %v9381
        %9383 = vmatmul.bf16.gmra.mxu0 %v7857
        %v9384 = vpop.f32.mrf.mxu0
        %v9385 = vadd.f32 %v9056, %v9384
        %v9386 = vpop.f32.mrf.mxu0
        %v9387 = vadd.f32 %v9058, %v9386
        %9388 = vmatmul.bf16.gmra.mxu0 %v7861
        %v9389 = vpop.f32.mrf.mxu0
        %v9390 = vadd.f32 %v9061, %v9389
        %v9391 = vpop.f32.mrf.mxu0
        %v9392 = vadd.f32 %v9063, %v9391
        %9393 = vmatmul.bf16.gmra.mxu0 %v7865
        %v9394 = vpop.f32.mrf.mxu0
        %v9395 = vadd.f32 %v9066, %v9394
        %v9396 = vpop.f32.mrf.mxu0
        %v9397 = vadd.f32 %v9068, %v9396
        %9398 = vmatmul.bf16.gmra.mxu0 %v7869
        %v9399 = vpop.f32.mrf.mxu0
        %v9400 = vadd.f32 %v9071, %v9399
        %v9401 = vpop.f32.mrf.mxu0
        %v9402 = vadd.f32 %v9073, %v9401
        %9403 = vmatmul.bf16.gmra.mxu0 %v7873
        %v9404 = vpop.f32.mrf.mxu0
        %v9405 = vadd.f32 %v9076, %v9404
        %v9406 = vpop.f32.mrf.mxu0
        %v9407 = vadd.f32 %v9078, %v9406
        %9408 = vmatmul.bf16.gmra.mxu0 %v7877
        %v9409 = vpop.f32.mrf.mxu0
        %v9410 = vadd.f32 %v9081, %v9409
        %v9411 = vpop.f32.mrf.mxu0
        %v9412 = vadd.f32 %v9083, %v9411
        %9413 = vmatmul.bf16.gmra.mxu0 %v7881
        %v9414 = vpop.f32.mrf.mxu0
        %v9415 = vadd.f32 %v9086, %v9414
        %v9416 = vpop.f32.mrf.mxu0
        %v9417 = vadd.f32 %v9088, %v9416
        %9418 = vmatmul.bf16.gmra.mxu0 %v7885
        %v9419 = vpop.f32.mrf.mxu0
        %v9420 = vadd.f32 %v9091, %v9419
        %v9421 = vpop.f32.mrf.mxu0
        %v9422 = vadd.f32 %v9093, %v9421
        %9423 = vmatmul.bf16.gmra.mxu0 %v7889
        %v9424 = vpop.f32.mrf.mxu0
        %v9425 = vadd.f32 %v9096, %v9424
        %v9426 = vpop.f32.mrf.mxu0
        %v9427 = vadd.f32 %v9098, %v9426
        %9428 = vmatmul.bf16.gmra.mxu0 %v7893
        %v9429 = vpop.f32.mrf.mxu0
        %v9430 = vadd.f32 %v9101, %v9429
        %v9431 = vpop.f32.mrf.mxu0
        %v9432 = vadd.f32 %v9103, %v9431
        %9433 = vmatmul.bf16.gmra.mxu0 %v7897
        %v9434 = vpop.f32.mrf.mxu0
        %v9435 = vadd.f32 %v9106, %v9434
        %v9436 = vpop.f32.mrf.mxu0
        %v9437 = vadd.f32 %v9108, %v9436
        %9438 = vmatmul.bf16.gmra.mxu0 %v7901
        %v9439 = vpop.f32.mrf.mxu0
        %v9440 = vadd.f32 %v9111, %v9439
        %v9441 = vpop.f32.mrf.mxu0
        %v9442 = vadd.f32 %v9113, %v9441
        %9443 = vmatmul.bf16.gmra.mxu0 %v7905
        %v9444 = vpop.f32.mrf.mxu0
        %v9445 = vadd.f32 %v9116, %v9444
        %v9446 = vpop.f32.mrf.mxu0
        %v9447 = vadd.f32 %v9118, %v9446
        %9448 = vmatmul.bf16.gmra.mxu0 %v7909
        %v9449 = vpop.f32.mrf.mxu0
        %v9450 = vadd.f32 %v9121, %v9449
        %v9451 = vpop.f32.mrf.mxu0
        %v9452 = vadd.f32 %v9123, %v9451
        %9453 = vmatmul.bf16.gmra.mxu0 %v7913
        %v9454 = vpop.f32.mrf.mxu0
        %v9455 = vadd.f32 %v9126, %v9454
        %v9456 = vpop.f32.mrf.mxu0
        %v9457 = vadd.f32 %v9128, %v9456
        %9458 = vmatmul.bf16.gmra.mxu0 %v7917
        %v9459 = vpop.f32.mrf.mxu0
        %v9460 = vadd.f32 %v9131, %v9459
        %v9461 = vpop.f32.mrf.mxu0
        %v9462 = vadd.f32 %v9133, %v9461
        %9463 = vmatmul.bf16.gmra.mxu0 %v7921
        %v9464 = vpop.f32.mrf.mxu0
        %v9465 = vadd.f32 %v9136, %v9464
        %v9466 = vpop.f32.mrf.mxu0
        %v9467 = vadd.f32 %v9138, %v9466
        %9468 = vmatmul.bf16.gmra.mxu0 %v7925
        %v9469 = vpop.f32.mrf.mxu0
        %v9470 = vadd.f32 %v9141, %v9469
        %v9471 = vpop.f32.mrf.mxu0
        %v9472 = vadd.f32 %v9143, %v9471
        %9473 = vmatmul.bf16.gmra.mxu0 %v7929
        %v9474 = vpop.f32.mrf.mxu0
        %v9475 = vadd.f32 %v9146, %v9474
        %v9476 = vpop.f32.mrf.mxu0
        %v9477 = vadd.f32 %v9148, %v9476
        %9478 = vmatmul.bf16.gmra.mxu0 %v7933
        %v9479 = vpop.f32.mrf.mxu0
        %v9480 = vadd.f32 %v9151, %v9479
        %v9481 = vpop.f32.mrf.mxu0
        %v9482 = vadd.f32 %v9153, %v9481
        %9483 = vmatmul.bf16.gmra.mxu0 %v7937
        %v9484 = vpop.f32.mrf.mxu0
        %v9485 = vadd.f32 %v9156, %v9484
        %v9486 = vpop.f32.mrf.mxu0
        %v9487 = vadd.f32 %v9158, %v9486
        %9488 = vmatmul.bf16.gmra.mxu0 %v7941
        %v9489 = vpop.f32.mrf.mxu0
        %v9490 = vadd.f32 %v9161, %v9489
        %v9491 = vpop.f32.mrf.mxu0
        %v9492 = vadd.f32 %v9163, %v9491
        %9493 = vmatmul.bf16.gmra.mxu0 %v7945
        %v9494 = vpop.f32.mrf.mxu0
        %v9495 = vadd.f32 %v9166, %v9494
        %v9496 = vpop.f32.mrf.mxu0
        %v9497 = vadd.f32 %v9168, %v9496
        %9498 = vmatmul.bf16.gmra.mxu0 %v7949
        %v9499 = vpop.f32.mrf.mxu0
        %v9500 = vadd.f32 %v9171, %v9499
        %v9501 = vpop.f32.mrf.mxu0
        %v9502 = vadd.f32 %v9173, %v9501
        %9503 = vmatmul.bf16.gmra.mxu0 %v7953
        %v9504 = vpop.f32.mrf.mxu0
        %v9505 = vadd.f32 %v9176, %v9504
        %v9506 = vpop.f32.mrf.mxu0
        %v9507 = vadd.f32 %v9178, %v9506
        %9508 = vmatmul.bf16.gmra.mxu0 %v7957
        %v9509 = vpop.f32.mrf.mxu0
        %v9510 = vadd.f32 %v9181, %v9509
        %v9511 = vpop.f32.mrf.mxu0
        %v9512 = vadd.f32 %v9183, %v9511
        %9513 = vmatmul.bf16.gmra.mxu0 %v7961
        %v9514 = vpop.f32.mrf.mxu0
        %v9515 = vadd.f32 %v9186, %v9514
        %v9516 = vpop.f32.mrf.mxu0
        %v9517 = vadd.f32 %v9188, %v9516
        %9518 = vmatmul.bf16.gmra.mxu0 %v7965
        %v9519 = vpop.f32.mrf.mxu0
        %v9520 = vadd.f32 %v9191, %v9519
        %v9521 = vpop.f32.mrf.mxu0
        %v9522 = vadd.f32 %v9193, %v9521
        %9523 = vmatmul.bf16.gmra.mxu0 %v7969
        %v9524 = vpop.f32.mrf.mxu0
        %v9525 = vadd.f32 %v9196, %v9524
        %v9526 = vpop.f32.mrf.mxu0
        %v9527 = vadd.f32 %v9198, %v9526
        %9528 = vmatmul.bf16.gmra.mxu0 %v7973
        %v9529 = vpop.f32.mrf.mxu0
        %v9530 = vadd.f32 %v9201, %v9529
        %v9531 = vpop.f32.mrf.mxu0
        %v9532 = vadd.f32 %v9203, %v9531
        %9533 = vmatmul.bf16.gmra.mxu0 %v7977
        %v9534 = vpop.f32.mrf.mxu0
        %v9535 = vadd.f32 %v9206, %v9534
        %v9536 = vpop.f32.mrf.mxu0
        %v9537 = vadd.f32 %v9208, %v9536
        %9538 = vmatmul.bf16.gmra.mxu0 %v7981
        %v9539 = vpop.f32.mrf.mxu0
        %v9540 = vadd.f32 %v9211, %v9539
        %v9541 = vpop.f32.mrf.mxu0
        %v9542 = vadd.f32 %v9213, %v9541
        %9543 = vmatmul.bf16.gmra.mxu0 %v7985
        %v9544 = vpop.f32.mrf.mxu0
        %v9545 = vadd.f32 %v9216, %v9544
        %v9546 = vpop.f32.mrf.mxu0
        %v9547 = vadd.f32 %v9218, %v9546
        %9548 = vmatmul.bf16.gmra.mxu0 %v7989
        %v9549 = vpop.f32.mrf.mxu0
        %v9550 = vadd.f32 %v9221, %v9549
        %v9551 = vpop.f32.mrf.mxu0
        %v9552 = vadd.f32 %v9223, %v9551
        %9553 = vmatmul.bf16.gmra.mxu0 %v7993
        %v9554 = vpop.f32.mrf.mxu0
        %v9555 = vadd.f32 %v9226, %v9554
        %v9556 = vpop.f32.mrf.mxu0
        %v9557 = vadd.f32 %v9228, %v9556
        %9558 = vmatmul.bf16.gmra.mxu0 %v7997
        %v9559 = vpop.f32.mrf.mxu0
        %v9560 = vadd.f32 %v9231, %v9559
        %v9561 = vpop.f32.mrf.mxu0
        %v9562 = vadd.f32 %v9233, %v9561
        %9563 = vmatmul.bf16.gmra.mxu0 %v8001
        %v9564 = vpop.f32.mrf.mxu0
        %v9565 = vadd.f32 %v9236, %v9564
        %v9566 = vpop.f32.mrf.mxu0
        %v9567 = vadd.f32 %v9238, %v9566
        %9568 = vmatmul.bf16.gmra.mxu0 %v8005
        %v9569 = vpop.f32.mrf.mxu0
        %v9570 = vadd.f32 %v9241, %v9569
        %v9571 = vpop.f32.mrf.mxu0
        %v9572 = vadd.f32 %v9243, %v9571
        %9573 = vmatmul.bf16.gmra.mxu0 %v8009
        %v9574 = vpop.f32.mrf.mxu0
        %v9575 = vadd.f32 %v9246, %v9574
        %v9576 = vpop.f32.mrf.mxu0
        %v9577 = vadd.f32 %v9248, %v9576
        %9578 = vmatmul.bf16.gmra.mxu0 %v8013
        %v9579 = vpop.f32.mrf.mxu0
        %v9580 = vadd.f32 %v9251, %v9579
        %v9581 = vpop.f32.mrf.mxu0
        %v9582 = vadd.f32 %v9253, %v9581
        %9583 = vmatmul.bf16.gmra.mxu0 %v8017
        %v9584 = vpop.f32.mrf.mxu0
        %v9585 = vadd.f32 %v9256, %v9584
        %v9586 = vpop.f32.mrf.mxu0
        %v9587 = vadd.f32 %v9258, %v9586
        %9588 = vmatmul.bf16.gmra.mxu0 %v8021
        %v9589 = vpop.f32.mrf.mxu0
        %v9590 = vadd.f32 %v9261, %v9589
        %v9591 = vpop.f32.mrf.mxu0
        %v9592 = vadd.f32 %v9263, %v9591
        %9593 = vmatmul.bf16.gmra.mxu0 %v8025
        %v9594 = vpop.f32.mrf.mxu0
        %v9595 = vadd.f32 %v9266, %v9594
        %v9596 = vpop.f32.mrf.mxu0
        %v9597 = vadd.f32 %v9268, %v9596
        %9598 = vmatmul.bf16.gmra.mxu0 %v8029
        %v9599 = vpop.f32.mrf.mxu0
        %v9600 = vadd.f32 %v9271, %v9599
        %v9601 = vpop.f32.mrf.mxu0
        %v9602 = vadd.f32 %v9273, %v9601
        %9603 = vmatmul.bf16.gmra.mxu0 %v8033
        %v9604 = vpop.f32.mrf.mxu0
        %v9605 = vadd.f32 %v9276, %v9604
        %v9606 = vpop.f32.mrf.mxu0
        %v9607 = vadd.f32 %v9278, %v9606
        %9608 = vmatmul.bf16.gmra.mxu0 %v8037
        %v9609 = vpop.f32.mrf.mxu0
        %v9610 = vadd.f32 %v9281, %v9609
        %v9611 = vpop.f32.mrf.mxu0
        %v9612 = vadd.f32 %v9283, %v9611
        %9613 = vdwg.mxu0
        %v9614 = vmax.f32 %v9295, 0.0
        %v9615 = vmax.f32 %v9297, 0.0
        %v9616 = vmax.f32 %v9300, 0.0
        %v9617 = vmax.f32 %v9302, 0.0
        %v9618 = vmax.f32 %v9305, 0.0
        %v9619 = vmax.f32 %v9307, 0.0
        %v9620 = vmax.f32 %v9310, 0.0
        %v9621 = vmax.f32 %v9312, 0.0
        %v9622 = vmax.f32 %v9315, 0.0
        %v9623 = vmax.f32 %v9317, 0.0
        %v9624 = vmax.f32 %v9320, 0.0
        %v9625 = vmax.f32 %v9322, 0.0
        %v9626 = vmax.f32 %v9325, 0.0
        %v9627 = vmax.f32 %v9327, 0.0
        %v9628 = vmax.f32 %v9330, 0.0
        %v9629 = vmax.f32 %v9332, 0.0
        %v9630 = vmax.f32 %v9335, 0.0
        %v9631 = vmax.f32 %v9337, 0.0
        %v9632 = vmax.f32 %v9340, 0.0
        %v9633 = vmax.f32 %v9342, 0.0
        %v9634 = vmax.f32 %v9345, 0.0
        %v9635 = vmax.f32 %v9347, 0.0
        %v9636 = vmax.f32 %v9350, 0.0
        %v9637 = vmax.f32 %v9352, 0.0
        %v9638 = vmax.f32 %v9355, 0.0
        %v9639 = vmax.f32 %v9357, 0.0
        %v9640 = vmax.f32 %v9360, 0.0
        %v9641 = vmax.f32 %v9362, 0.0
        %v9642 = vmax.f32 %v9365, 0.0
        %v9643 = vmax.f32 %v9367, 0.0
        %v9644 = vmax.f32 %v9370, 0.0
        %v9645 = vmax.f32 %v9372, 0.0
        %v9646 = vmax.f32 %v9375, 0.0
        %v9647 = vmax.f32 %v9377, 0.0
        %v9648 = vmax.f32 %v9380, 0.0
        %v9649 = vmax.f32 %v9382, 0.0
        %v9650 = vmax.f32 %v9385, 0.0
        %v9651 = vmax.f32 %v9387, 0.0
        %v9652 = vmax.f32 %v9390, 0.0
        %v9653 = vmax.f32 %v9392, 0.0
        %v9654 = vmax.f32 %v9395, 0.0
        %v9655 = vmax.f32 %v9397, 0.0
        %v9656 = vmax.f32 %v9400, 0.0
        %v9657 = vmax.f32 %v9402, 0.0
        %v9658 = vmax.f32 %v9405, 0.0
        %v9659 = vmax.f32 %v9407, 0.0
        %v9660 = vmax.f32 %v9410, 0.0
        %v9661 = vmax.f32 %v9412, 0.0
        %v9662 = vmax.f32 %v9415, 0.0
        %v9663 = vmax.f32 %v9417, 0.0
        %v9664 = vmax.f32 %v9420, 0.0
        %v9665 = vmax.f32 %v9422, 0.0
        %v9666 = vmax.f32 %v9425, 0.0
        %v9667 = vmax.f32 %v9427, 0.0
        %v9668 = vmax.f32 %v9430, 0.0
        %v9669 = vmax.f32 %v9432, 0.0
        %v9670 = vmax.f32 %v9435, 0.0
        %v9671 = vmax.f32 %v9437, 0.0
        %v9672 = vmax.f32 %v9440, 0.0
        %v9673 = vmax.f32 %v9442, 0.0
        %v9674 = vmax.f32 %v9445, 0.0
        %v9675 = vmax.f32 %v9447, 0.0
        %v9676 = vmax.f32 %v9450, 0.0
        %v9677 = vmax.f32 %v9452, 0.0
        %v9678 = vmax.f32 %v9455, 0.0
        %v9679 = vmax.f32 %v9457, 0.0
        %v9680 = vmax.f32 %v9460, 0.0
        %v9681 = vmax.f32 %v9462, 0.0
        %v9682 = vmax.f32 %v9465, 0.0
        %v9683 = vmax.f32 %v9467, 0.0
        %v9684 = vmax.f32 %v9470, 0.0
        %v9685 = vmax.f32 %v9472, 0.0
        %v9686 = vmax.f32 %v9475, 0.0
        %v9687 = vmax.f32 %v9477, 0.0
        %v9688 = vmax.f32 %v9480, 0.0
        %v9689 = vmax.f32 %v9482, 0.0
        %v9690 = vmax.f32 %v9485, 0.0
        %v9691 = vmax.f32 %v9487, 0.0
        %v9692 = vmax.f32 %v9490, 0.0
        %v9693 = vmax.f32 %v9492, 0.0
        %v9694 = vmax.f32 %v9495, 0.0
        %v9695 = vmax.f32 %v9497, 0.0
        %v9696 = vmax.f32 %v9500, 0.0
        %v9697 = vmax.f32 %v9502, 0.0
        %v9698 = vmax.f32 %v9505, 0.0
        %v9699 = vmax.f32 %v9507, 0.0
        %v9700 = vmax.f32 %v9510, 0.0
        %v9701 = vmax.f32 %v9512, 0.0
        %v9702 = vmax.f32 %v9515, 0.0
        %v9703 = vmax.f32 %v9517, 0.0
        %v9704 = vmax.f32 %v9520, 0.0
        %v9705 = vmax.f32 %v9522, 0.0
        %v9706 = vmax.f32 %v9525, 0.0
        %v9707 = vmax.f32 %v9527, 0.0
        %v9708 = vmax.f32 %v9530, 0.0
        %v9709 = vmax.f32 %v9532, 0.0
        %v9710 = vmax.f32 %v9535, 0.0
        %v9711 = vmax.f32 %v9537, 0.0
        %v9712 = vmax.f32 %v9540, 0.0
        %v9713 = vmax.f32 %v9542, 0.0
        %v9714 = vmax.f32 %v9545, 0.0
        %v9715 = vmax.f32 %v9547, 0.0
        %v9716 = vmax.f32 %v9550, 0.0
        %v9717 = vmax.f32 %v9552, 0.0
        %v9718 = vmax.f32 %v9555, 0.0
        %v9719 = vmax.f32 %v9557, 0.0
        %v9720 = vmax.f32 %v9560, 0.0
        %v9721 = vmax.f32 %v9562, 0.0
        %v9722 = vmax.f32 %v9565, 0.0
        %v9723 = vmax.f32 %v9567, 0.0
        %v9724 = vmax.f32 %v9570, 0.0
        %v9725 = vmax.f32 %v9572, 0.0
        %v9726 = vmax.f32 %v9575, 0.0
        %v9727 = vmax.f32 %v9577, 0.0
        %v9728 = vmax.f32 %v9580, 0.0
        %v9729 = vmax.f32 %v9582, 0.0
        %v9730 = vmax.f32 %v9585, 0.0
        %v9731 = vmax.f32 %v9587, 0.0
        %v9732 = vmax.f32 %v9590, 0.0
        %v9733 = vmax.f32 %v9592, 0.0
        %v9734 = vmax.f32 %v9595, 0.0
        %v9735 = vmax.f32 %v9597, 0.0
        %v9736 = vmax.f32 %v9600, 0.0
        %v9737 = vmax.f32 %v9602, 0.0
        %v9738 = vmax.f32 %v9605, 0.0
        %v9739 = vmax.f32 %v9607, 0.0
        %v9740 = vmax.f32 %v9610, 0.0
        %v9741 = vmax.f32 %v9612, 0.0
        %v9742 = vmax.f32 %v9614, %v9615
        %v9743 = vmax.f32 %v9742, %v9616
        %v9744 = vmax.f32 %v9743, %v9617
        %v9745 = vmax.f32 %v9744, %v9618
        %v9746 = vmax.f32 %v9745, %v9619
        %v9747 = vmax.f32 %v9746, %v9620
        %v9748 = vmax.f32 %v9747, %v9621
        %v9749 = vmax.f32 %v9748, %v9622
        %v9750 = vmax.f32 %v9749, %v9623
        %v9751 = vmax.f32 %v9750, %v9624
        %v9752 = vmax.f32 %v9751, %v9625
        %v9753 = vmax.f32 %v9752, %v9626
        %v9754 = vmax.f32 %v9753, %v9627
        %v9755 = vmax.f32 %v9754, %v9628
        %v9756 = vmax.f32 %v9755, %v9629
        %v9757 = vrot.slane %v9756, 4
        %v9758 = vmax.f32 %v9756, %v9757
        %v9759 = vrot.slane %v9758, 2
        %v9760 = vmax.f32 %v9758, %v9759
        %v9761 = vrot.slane %v9760, 1
        %v9762 = vmax.f32 %v9760, %v9761
        %v9763 = vmax.f32 %v9630, %v9631
        %v9764 = vmax.f32 %v9763, %v9632
        %v9765 = vmax.f32 %v9764, %v9633
        %v9766 = vmax.f32 %v9765, %v9634
        %v9767 = vmax.f32 %v9766, %v9635
        %v9768 = vmax.f32 %v9767, %v9636
        %v9769 = vmax.f32 %v9768, %v9637
        %v9770 = vmax.f32 %v9769, %v9638
        %v9771 = vmax.f32 %v9770, %v9639
        %v9772 = vmax.f32 %v9771, %v9640
        %v9773 = vmax.f32 %v9772, %v9641
        %v9774 = vmax.f32 %v9773, %v9642
        %v9775 = vmax.f32 %v9774, %v9643
        %v9776 = vmax.f32 %v9775, %v9644
        %v9777 = vmax.f32 %v9776, %v9645
        %v9778 = vrot.slane %v9777, 4
        %v9779 = vmax.f32 %v9777, %v9778
        %v9780 = vrot.slane %v9779, 2
        %v9781 = vmax.f32 %v9779, %v9780
        %v9782 = vrot.slane %v9781, 1
        %v9783 = vmax.f32 %v9781, %v9782
        %v9784 = vmax.f32 %v9646, %v9647
        %v9785 = vmax.f32 %v9784, %v9648
        %v9786 = vmax.f32 %v9785, %v9649
        %v9787 = vmax.f32 %v9786, %v9650
        %v9788 = vmax.f32 %v9787, %v9651
        %v9789 = vmax.f32 %v9788, %v9652
        %v9790 = vmax.f32 %v9789, %v9653
        %v9791 = vmax.f32 %v9790, %v9654
        %v9792 = vmax.f32 %v9791, %v9655
        %v9793 = vmax.f32 %v9792, %v9656
        %v9794 = vmax.f32 %v9793, %v9657
        %v9795 = vmax.f32 %v9794, %v9658
        %v9796 = vmax.f32 %v9795, %v9659
        %v9797 = vmax.f32 %v9796, %v9660
        %v9798 = vmax.f32 %v9797, %v9661
        %v9799 = vrot.slane %v9798, 4
        %v9800 = vmax.f32 %v9798, %v9799
        %v9801 = vrot.slane %v9800, 2
        %v9802 = vmax.f32 %v9800, %v9801
        %v9803 = vrot.slane %v9802, 1
        %v9804 = vmax.f32 %v9802, %v9803
        %v9805 = vmax.f32 %v9662, %v9663
        %v9806 = vmax.f32 %v9805, %v9664
        %v9807 = vmax.f32 %v9806, %v9665
        %v9808 = vmax.f32 %v9807, %v9666
        %v9809 = vmax.f32 %v9808, %v9667
        %v9810 = vmax.f32 %v9809, %v9668
        %v9811 = vmax.f32 %v9810, %v9669
        %v9812 = vmax.f32 %v9811, %v9670
        %v9813 = vmax.f32 %v9812, %v9671
        %v9814 = vmax.f32 %v9813, %v9672
        %v9815 = vmax.f32 %v9814, %v9673
        %v9816 = vmax.f32 %v9815, %v9674
        %v9817 = vmax.f32 %v9816, %v9675
        %v9818 = vmax.f32 %v9817, %v9676
        %v9819 = vmax.f32 %v9818, %v9677
        %v9820 = vrot.slane %v9819, 4
        %v9821 = vmax.f32 %v9819, %v9820
        %v9822 = vrot.slane %v9821, 2
        %v9823 = vmax.f32 %v9821, %v9822
        %v9824 = vrot.slane %v9823, 1
        %v9825 = vmax.f32 %v9823, %v9824
        %v9826 = vmax.f32 %v9678, %v9679
        %v9827 = vmax.f32 %v9826, %v9680
        %v9828 = vmax.f32 %v9827, %v9681
        %v9829 = vmax.f32 %v9828, %v9682
        %v9830 = vmax.f32 %v9829, %v9683
        %v9831 = vmax.f32 %v9830, %v9684
        %v9832 = vmax.f32 %v9831, %v9685
        %v9833 = vmax.f32 %v9832, %v9686
        %v9834 = vmax.f32 %v9833, %v9687
        %v9835 = vmax.f32 %v9834, %v9688
        %v9836 = vmax.f32 %v9835, %v9689
        %v9837 = vmax.f32 %v9836, %v9690
        %v9838 = vmax.f32 %v9837, %v9691
        %v9839 = vmax.f32 %v9838, %v9692
        %v9840 = vmax.f32 %v9839, %v9693
        %v9841 = vrot.slane %v9840, 4
        %v9842 = vmax.f32 %v9840, %v9841
        %v9843 = vrot.slane %v9842, 2
        %v9844 = vmax.f32 %v9842, %v9843
        %v9845 = vrot.slane %v9844, 1
        %v9846 = vmax.f32 %v9844, %v9845
        %v9847 = vmax.f32 %v9694, %v9695
        %v9848 = vmax.f32 %v9847, %v9696
        %v9849 = vmax.f32 %v9848, %v9697
        %v9850 = vmax.f32 %v9849, %v9698
        %v9851 = vmax.f32 %v9850, %v9699
        %v9852 = vmax.f32 %v9851, %v9700
        %v9853 = vmax.f32 %v9852, %v9701
        %v9854 = vmax.f32 %v9853, %v9702
        %v9855 = vmax.f32 %v9854, %v9703
        %v9856 = vmax.f32 %v9855, %v9704
        %v9857 = vmax.f32 %v9856, %v9705
        %v9858 = vmax.f32 %v9857, %v9706
        %v9859 = vmax.f32 %v9858, %v9707
        %v9860 = vmax.f32 %v9859, %v9708
        %v9861 = vmax.f32 %v9860, %v9709
        %v9862 = vrot.slane %v9861, 4
        %v9863 = vmax.f32 %v9861, %v9862
        %v9864 = vrot.slane %v9863, 2
        %v9865 = vmax.f32 %v9863, %v9864
        %v9866 = vrot.slane %v9865, 1
        %v9867 = vmax.f32 %v9865, %v9866
        %v9868 = vmax.f32 %v9710, %v9711
        %v9869 = vmax.f32 %v9868, %v9712
        %v9870 = vmax.f32 %v9869, %v9713
        %v9871 = vmax.f32 %v9870, %v9714
        %v9872 = vmax.f32 %v9871, %v9715
        %v9873 = vmax.f32 %v9872, %v9716
        %v9874 = vmax.f32 %v9873, %v9717
        %v9875 = vmax.f32 %v9874, %v9718
        %v9876 = vmax.f32 %v9875, %v9719
        %v9877 = vmax.f32 %v9876, %v9720
        %v9878 = vmax.f32 %v9877, %v9721
        %v9879 = vmax.f32 %v9878, %v9722
        %v9880 = vmax.f32 %v9879, %v9723
        %v9881 = vmax.f32 %v9880, %v9724
        %v9882 = vmax.f32 %v9881, %v9725
        %v9883 = vrot.slane %v9882, 4
        %v9884 = vmax.f32 %v9882, %v9883
        %v9885 = vrot.slane %v9884, 2
        %v9886 = vmax.f32 %v9884, %v9885
        %v9887 = vrot.slane %v9886, 1
        %v9888 = vmax.f32 %v9886, %v9887
        %v9889 = vmax.f32 %v9726, %v9727
        %v9890 = vmax.f32 %v9889, %v9728
        %v9891 = vmax.f32 %v9890, %v9729
        %v9892 = vmax.f32 %v9891, %v9730
        %v9893 = vmax.f32 %v9892, %v9731
        %v9894 = vmax.f32 %v9893, %v9732
        %v9895 = vmax.f32 %v9894, %v9733
        %v9896 = vmax.f32 %v9895, %v9734
        %v9897 = vmax.f32 %v9896, %v9735
        %v9898 = vmax.f32 %v9897, %v9736
        %v9899 = vmax.f32 %v9898, %v9737
        %v9900 = vmax.f32 %v9899, %v9738
        %v9901 = vmax.f32 %v9900, %v9739
        %v9902 = vmax.f32 %v9901, %v9740
        %v9903 = vmax.f32 %v9902, %v9741
        %v9904 = vrot.slane %v9903, 4
        %v9905 = vmax.f32 %v9903, %v9904
        %v9906 = vrot.slane %v9905, 2
        %v9907 = vmax.f32 %v9905, %v9906
        %v9908 = vrot.slane %v9907, 1
        %v9909 = vmax.f32 %v9907, %v9908
        %v9918 = vsel %vm6197, %v9783, %v9762
        %v9919 = vsel %vm6199, %v9804, %v9918
        %v9920 = vsel %vm6201, %v9825, %v9919
        %v9921 = vsel %vm6203, %v9846, %v9920
        %v9922 = vsel %vm6205, %v9867, %v9921
        %v9923 = vsel %vm6207, %v9888, %v9922
        %v9924 = vsel %vm6209, %v9909, %v9923
        %9926 = vst [vmem:[%s476] sm:$0xff] %v9924
        %s9927 = sand.u32 %s253, 1
        %s9928 = scalar_lea.sflag [#allocation4], %s9927
        %s9929 = sand.u32 %s253, 1
        %s9930 = smul.addr %s9929, 8
        %s9931 = scalar_lea.vmem [#allocation14], %s9930
        // Predicated region
        $region89: #{tpu_custom_call.1} parent=59 // pred_check
          %p9932 = pneg %p263
        $region90: #{tpu_custom_call.1} parent=59 // pred_check_branch
          %9934 = sbr.rel (%p9932) target = $region92
        $region91: #{tpu_custom_call.1} parent=59 // pred_region
          %9936 = vsyncadd %s9928, 0
          %s9937 = smul.addr %s30, 8
          %s9938 = scalar_lea.hbm %s10, %s9937
          %s9940 = sshll.u32 %s9931, 4
          %s9941 = int_to_ptr.vmem [resolvable:$true] %s9940
          %s9942 = sshll.u32 %s9938, 4
          %s9943 = int_to_ptr.hbm [resolvable:$true] %s9942
          %9945 = dma.vmem_to_hbm [thread:$0]  %s9941, 128, %s9943, %s9928
        $region92: #{tpu_custom_call.1} parent=59 // pred_fallthru
          _
      $region60: #{tpu_custom_call.1} parent=5 // pred_fallthru
        _
      %p9946 = scmp.le.s32.totalorder 2, %s25
      // Predicated region
      $region93: #{tpu_custom_call.1} parent=5 // pred_check
        %p9947 = pneg %p9946
      $region94: #{tpu_custom_call.1} parent=5 // pred_check_branch
        %9949 = sbr.rel (%p9947) target = $region96
      $region95: #{tpu_custom_call.1} parent=5 // pred_region
        %s9950 = ssub.s32 %s25, 2
        // Predicated region
        $region97: #{tpu_custom_call.1} parent=95 // pred_check
          %p9951 = pneg %p269
        $region98: #{tpu_custom_call.1} parent=95 // pred_check_branch
          %9953 = sbr.rel (%p9951) target = $region100
        $region99: #{tpu_custom_call.1} parent=95 // pred_region
          %s9954 = sand.u32 %s254, 1
          %s9955 = scalar_lea.sflag [#allocation4], %s9954
          %s9956 = sand.u32 %s254, 1
          %s9957 = smul.addr %s9956, 8
          %s9958 = scalar_lea.vmem [#allocation14], %s9957
          %9960 = dma.done %s9955, 128
        $region100: #{tpu_custom_call.1} parent=95 // pred_fallthru
          _
      $region96: #{tpu_custom_call.1} parent=5 // pred_fallthru
        _
    $region6: #{tpu_custom_call.1} parent=1 // loop_footer
      %s29 = sadd.s32 1, %s25
    $region7: #{tpu_custom_call.1} parent=1 // loop_footer_branch
      %24 = sbr.rel target = $region3
    $region8: #{tpu_custom_call.1} parent=1 // loop_exit
      _
    %9961 = vsyncpa [#allocation3], 1
    %s9962 = scalar_lea.sflag [#allocation3], 1
    %9963 = vsyncpa %s9962, 1
    %9964 = vsyncpa [#allocation6], 1
    %9965 = vsyncpa [#allocation9], 1
    %9966 = vsyncpa [#allocation12], 1
    %9967 = vsyncpa [#allocation4], 1
    %s9968 = scalar_lea.sflag [#allocation4], 1
    %9969 = vsyncpa %s9968, 1

</llo_original>
